<compile_context>
chip_gen: v6e
topology: v6e:2x2x1
jax: 0.10.0
libtpu: 0.0.40
codegen_flags: <defaults>
</compile_context>

<pallas_src>
import functools
import math

import jax
import jax.numpy as jnp
from jax import lax
from jax.experimental import pallas as pl
from jax.experimental.pallas import tpu as pltpu

# ----------------------------------------------------------------------------
# Model definition (layer sizes from the PyTorch module)
# ----------------------------------------------------------------------------
ENC_DIMS = [784, 729, 243, 81, 27, 9, 5]
DEC_DIMS = [5, 9, 27, 81, 243, 729, 784]
LAYER_DIMS = list(zip(ENC_DIMS[:-1], ENC_DIMS[1:])) + list(zip(DEC_DIMS[:-1], DEC_DIMS[1:]))
TANH_LAYERS = {5, 11}          # encoder[-1] and decoder[-1] use Tanh
N_LAYERS = len(LAYER_DIMS)     # 12


def _round_up(n, m):
    return ((n + m - 1) // m) * m


# Lane-aligned (multiple-of-128) padded layer dims.  Padding is exact:
# padded weight cols / bias entries are 0 -> pre-activation 0 -> GELU/tanh 0,
# and padded weight rows of the next layer are 0 as well.
PAD_LAYER_DIMS = [(_round_up(i, 128), _round_up(o, 128)) for (i, o) in LAYER_DIMS]
D_IN_PAD = PAD_LAYER_DIMS[0][0]                 # 896
D_OUT_PAD = PAD_LAYER_DIMS[-1][1]               # 896
MAX_OUT_PAD = max(o for _, o in PAD_LAYER_DIMS)  # 896


def _gelu_exact(x):
    # PyTorch nn.GELU() default is the exact erf formulation.
    return 0.5 * x * (1.0 + lax.erf(x * 0.7071067811865476))


# ----------------------------------------------------------------------------
# Pallas kernel: full forward pass for one batch tile
# ----------------------------------------------------------------------------
def _autoencoder_kernel(x_ref, *refs):
    out_ref = refs[-1]
    b_ref = refs[-2]            # (N_LAYERS, MAX_OUT_PAD) f32, zero-padded biases
    w_refs = refs[:-2]          # 12 padded bf16 weights, each (in_pad, out_pad)
    assert len(w_refs) == N_LAYERS

    h = x_ref[...]              # (bm, 896) float32
    for li, (_, out_pad) in enumerate(PAD_LAYER_DIMS):
        w = w_refs[li][...]                      # (in_pad, out_pad) bf16
        b = b_ref[li:li + 1, 0:out_pad]          # (1, out_pad)      f32
        # bf16 x bf16 -> f32 accumulation on the MXU; elementwise stays f32.
        acc = jnp.dot(h.astype(jnp.bfloat16), w,
                      preferred_element_type=jnp.float32)
        h = acc + b
        h = jnp.tanh(h) if li in TANH_LAYERS else _gelu_exact(h)
    out_ref[...] = h.astype(out_ref.dtype)


# ----------------------------------------------------------------------------
# Wrapper
# ----------------------------------------------------------------------------
@functools.partial(jax.jit, static_argnames=("bm",))
def autoencoder_forward(x, params, *, bm=256):
    """x: (B, 784) f32; params: list of 12 (w, b) with w=(in, out), b=(out,).

    bm=256 keeps the MXU full on v6e/v7x; 128 is also fine on v5e.  For
    realistic batches (B >= 2*bm) the grid has >= 2 "parallel" steps, letting
    v7x shard the batch across its two TensorCores.
    """
    B, d_in = x.shape
    assert d_in == 784 and len(params) == N_LAYERS

    # --- pad + pack parameters (zero padding -> exact math) ------------------
    w_padded = []
    b_packed = jnp.zeros((N_LAYERS, MAX_OUT_PAD), jnp.float32)
    for li, ((w, b), (ip, op)) in enumerate(zip(params, PAD_LAYER_DIMS)):
        fi, fo = LAYER_DIMS[li]
        wp = jnp.zeros((ip, op), jnp.float32).at[:fi, :fo].set(w)
        w_padded.append(wp.astype(jnp.bfloat16))          # bf16 MXU operands
        b_packed = b_packed.at[li, :fo].set(jnp.reshape(b, (-1,)))

    # torch.clone(x) is a functional no-op; just pad the lane dim to 896.
    x_pad = jnp.pad(x.astype(jnp.float32), ((0, 0), (0, D_IN_PAD - d_in)))

    bm_eff = min(bm, _round_up(B, 8))
    grid = (pl.cdiv(B, bm_eff),)

    in_specs = [pl.BlockSpec((bm_eff, D_IN_PAD), lambda i: (i, 0))]
    for wp in w_padded:
        in_specs.append(pl.BlockSpec(wp.shape, lambda i: (0, 0)))
    in_specs.append(pl.BlockSpec(b_packed.shape, lambda i: (0, 0)))
    out_spec = pl.BlockSpec((bm_eff, D_OUT_PAD), lambda i: (i, 0))

    out = pl.pallas_call(
        _autoencoder_kernel,
        out_shape=jax.ShapeDtypeStruct((B, D_OUT_PAD), jnp.float32),
        grid_spec=pltpu.PrefetchScalarGridSpec(
            num_scalar_prefetch=0,
            grid=grid,
            in_specs=in_specs,
            out_specs=out_spec,
        ),
        compiler_params=pltpu.CompilerParams(
            dimension_semantics=("parallel",),
            # ~15 MB actual need at bm=256; 48 MiB fits v7x's 64 MiB VMEM.
            vmem_limit_bytes=48 << 20,
        ),
    )(x_pad, *w_padded, b_packed)

    return out[:, :784]


# ----------------------------------------------------------------------------
# Deterministic parameter init (mirrors PyTorch init distributions)
# ----------------------------------------------------------------------------
def init_params(key):
    params = []
    for li, (fan_in, fan_out) in enumerate(LAYER_DIMS):
        key, kw, kb = jax.random.split(key, 3)
        if li in TANH_LAYERS:
            # xavier_uniform_ applied to encoder[-1] / decoder[-1] weights
            bound = math.sqrt(6.0 / (fan_in + fan_out))
        else:
            # default nn.Linear: kaiming_uniform_(a=sqrt(5)) -> U(-1/sqrt(fan_in), .)
            bound = 1.0 / math.sqrt(fan_in)
        w = jax.random.uniform(kw, (fan_in, fan_out), jnp.float32, -bound, bound)
        b_bound = 1.0 / math.sqrt(fan_in)
        b = jax.random.uniform(kb, (fan_out,), jnp.float32, -b_bound, b_bound)
        params.append((w, b))
    return params


# Pure-JAX reference with matching bf16-matmul / f32-elementwise numerics.
def reference_forward(x, params):
    h = x.astype(jnp.float32)
    for li, (w, b) in enumerate(params):
        acc = jnp.dot(h.astype(jnp.bfloat16), w.astype(jnp.bfloat16),
                      preferred_element_type=jnp.float32)
        h = acc + b[None, :]
        h = jnp.tanh(h) if li in TANH_LAYERS else _gelu_exact(h)
    return h


if __name__ == "__main__":
    key = jax.random.PRNGKey(0)
    key, kx = jax.random.split(key)

    B = 16  # small demo batch
    x = jax.random.normal(kx, (B, 784), jnp.float32)
    params = init_params(key)

    out = autoencoder_forward(x, params)
    out = jax.block_until_ready(out)

    ref = reference_forward(x, params)
    assert out.shape == (B, 784)
    err = float(jnp.max(jnp.abs(out - ref)))
    assert err < 5e-3, f"mismatch vs reference: max abs err = {err}"

    print("KERNEL_OK")
</pallas_src>

<mosaic_0001>
module attributes {stable_mosaic.version = 11 : i64} {
  func.func @_autoencoder_kernel(%arg0: i32, %arg1: memref<16x896xf32, #tpu.memory_space<vmem>>, %arg2: memref<896x768xbf16, #tpu.memory_space<vmem>>, %arg3: memref<768x256xbf16, #tpu.memory_space<vmem>>, %arg4: memref<256x128xbf16, #tpu.memory_space<vmem>>, %arg5: memref<128x128xbf16, #tpu.memory_space<vmem>>, %arg6: memref<128x128xbf16, #tpu.memory_space<vmem>>, %arg7: memref<128x128xbf16, #tpu.memory_space<vmem>>, %arg8: memref<128x128xbf16, #tpu.memory_space<vmem>>, %arg9: memref<128x128xbf16, #tpu.memory_space<vmem>>, %arg10: memref<128x128xbf16, #tpu.memory_space<vmem>>, %arg11: memref<128x256xbf16, #tpu.memory_space<vmem>>, %arg12: memref<256x768xbf16, #tpu.memory_space<vmem>>, %arg13: memref<768x896xbf16, #tpu.memory_space<vmem>>, %arg14: memref<12x896xf32, #tpu.memory_space<vmem>>, %arg15: memref<16x896xf32, #tpu.memory_space<vmem>>) attributes {dimension_semantics = [#tpu.dimension_semantics<parallel>], iteration_bounds = array<i64: 1>, scalar_prefetch = 0 : i64, scratch_operands = 0 : i64, tpu.core_type = #tpu.core_type<tc>, window_params = [{transform_indices = @transform_0, window_bounds = array<i64: 16, 896>}, {pipeline_mode = #tpu.pipeline_mode<synchronous>, transform_indices = @transform_1, window_bounds = array<i64: 896, 768>}, {pipeline_mode = #tpu.pipeline_mode<synchronous>, transform_indices = @transform_2, window_bounds = array<i64: 768, 256>}, {pipeline_mode = #tpu.pipeline_mode<synchronous>, transform_indices = @transform_3, window_bounds = array<i64: 256, 128>}, {pipeline_mode = #tpu.pipeline_mode<synchronous>, transform_indices = @transform_4, window_bounds = array<i64: 128, 128>}, {pipeline_mode = #tpu.pipeline_mode<synchronous>, transform_indices = @transform_5, window_bounds = array<i64: 128, 128>}, {pipeline_mode = #tpu.pipeline_mode<synchronous>, transform_indices = @transform_6, window_bounds = array<i64: 128, 128>}, {pipeline_mode = #tpu.pipeline_mode<synchronous>, transform_indices = @transform_7, window_bounds = array<i64: 128, 128>}, {pipeline_mode = #tpu.pipeline_mode<synchronous>, transform_indices = @transform_8, window_bounds = array<i64: 128, 128>}, {pipeline_mode = #tpu.pipeline_mode<synchronous>, transform_indices = @transform_9, window_bounds = array<i64: 128, 128>}, {pipeline_mode = #tpu.pipeline_mode<synchronous>, transform_indices = @transform_10, window_bounds = array<i64: 128, 256>}, {pipeline_mode = #tpu.pipeline_mode<synchronous>, transform_indices = @transform_11, window_bounds = array<i64: 256, 768>}, {pipeline_mode = #tpu.pipeline_mode<synchronous>, transform_indices = @transform_12, window_bounds = array<i64: 768, 896>}, {pipeline_mode = #tpu.pipeline_mode<synchronous>, transform_indices = @transform_13, window_bounds = array<i64: 12, 896>}, {transform_indices = @transform_14, window_bounds = array<i64: 16, 896>}]} {
    %c0 = arith.constant 0 : index
    %c0_0 = arith.constant 0 : index
    %0 = vector.load %arg1[%c0, %c0_0] : memref<16x896xf32, #tpu.memory_space<vmem>>, vector<16x896xf32>
    %c0_1 = arith.constant 0 : index
    %c0_2 = arith.constant 0 : index
    %1 = vector.load %arg2[%c0_1, %c0_2] : memref<896x768xbf16, #tpu.memory_space<vmem>>, vector<896x768xbf16>
    %c0_3 = arith.constant 0 : index
    %c0_4 = arith.constant 0 : index
    %2 = vector.load %arg14[%c0_3, %c0_4] : memref<12x896xf32, #tpu.memory_space<vmem>>, vector<1x768xf32>
    %3 = arith.truncf %0 : vector<16x896xf32> to vector<16x896xbf16>
    %cst = arith.constant dense<0.000000e+00> : vector<16x768xf32>
    %4 = tpu.matmul %3, %1, %cst {dimension_numbers = #tpu.dot_dimension_numbers<[1], [0], [0], [1], [0, 0, 1, 1], [], []>} : vector<16x896xbf16>, vector<896x768xbf16>, vector<16x768xf32> -> vector<16x768xf32>
    %5 = vector.broadcast %2 : vector<1x768xf32> to vector<16x768xf32>
    %6 = arith.addf %4, %5 : vector<16x768xf32>
    %cst_5 = arith.constant 5.000000e-01 : f32
    %7 = vector.broadcast %cst_5 : f32 to vector<16x768xf32>
    %8 = arith.mulf %7, %6 : vector<16x768xf32>
    %cst_6 = arith.constant 0.707106769 : f32
    %9 = vector.broadcast %cst_6 : f32 to vector<16x768xf32>
    %10 = arith.mulf %6, %9 : vector<16x768xf32>
    %11 = math.erf %10 : vector<16x768xf32>
    %cst_7 = arith.constant 1.000000e+00 : f32
    %12 = vector.broadcast %cst_7 : f32 to vector<16x768xf32>
    %13 = arith.addf %12, %11 : vector<16x768xf32>
    %14 = arith.mulf %8, %13 : vector<16x768xf32>
    %c0_8 = arith.constant 0 : index
    %c0_9 = arith.constant 0 : index
    %15 = vector.load %arg3[%c0_8, %c0_9] : memref<768x256xbf16, #tpu.memory_space<vmem>>, vector<768x256xbf16>
    %c1 = arith.constant 1 : index
    %c0_10 = arith.constant 0 : index
    %16 = vector.load %arg14[%c1, %c0_10] : memref<12x896xf32, #tpu.memory_space<vmem>>, vector<1x256xf32>
    %17 = arith.truncf %14 : vector<16x768xf32> to vector<16x768xbf16>
    %cst_11 = arith.constant dense<0.000000e+00> : vector<16x256xf32>
    %18 = tpu.matmul %17, %15, %cst_11 {dimension_numbers = #tpu.dot_dimension_numbers<[1], [0], [0], [1], [0, 0, 1, 1], [], []>} : vector<16x768xbf16>, vector<768x256xbf16>, vector<16x256xf32> -> vector<16x256xf32>
    %19 = vector.broadcast %16 : vector<1x256xf32> to vector<16x256xf32>
    %20 = arith.addf %18, %19 : vector<16x256xf32>
    %cst_12 = arith.constant 5.000000e-01 : f32
    %21 = vector.broadcast %cst_12 : f32 to vector<16x256xf32>
    %22 = arith.mulf %21, %20 : vector<16x256xf32>
    %cst_13 = arith.constant 0.707106769 : f32
    %23 = vector.broadcast %cst_13 : f32 to vector<16x256xf32>
    %24 = arith.mulf %20, %23 : vector<16x256xf32>
    %25 = math.erf %24 : vector<16x256xf32>
    %cst_14 = arith.constant 1.000000e+00 : f32
    %26 = vector.broadcast %cst_14 : f32 to vector<16x256xf32>
    %27 = arith.addf %26, %25 : vector<16x256xf32>
    %28 = arith.mulf %22, %27 : vector<16x256xf32>
    %c0_15 = arith.constant 0 : index
    %c0_16 = arith.constant 0 : index
    %29 = vector.load %arg4[%c0_15, %c0_16] : memref<256x128xbf16, #tpu.memory_space<vmem>>, vector<256x128xbf16>
    %c2 = arith.constant 2 : index
    %c0_17 = arith.constant 0 : index
    %30 = vector.load %arg14[%c2, %c0_17] : memref<12x896xf32, #tpu.memory_space<vmem>>, vector<1x128xf32>
    %31 = arith.truncf %28 : vector<16x256xf32> to vector<16x256xbf16>
    %cst_18 = arith.constant dense<0.000000e+00> : vector<16x128xf32>
    %32 = tpu.matmul %31, %29, %cst_18 {dimension_numbers = #tpu.dot_dimension_numbers<[1], [0], [0], [1], [0, 0, 1, 1], [], []>} : vector<16x256xbf16>, vector<256x128xbf16>, vector<16x128xf32> -> vector<16x128xf32>
    %33 = vector.broadcast %30 : vector<1x128xf32> to vector<16x128xf32>
    %34 = arith.addf %32, %33 : vector<16x128xf32>
    %cst_19 = arith.constant 5.000000e-01 : f32
    %35 = vector.broadcast %cst_19 : f32 to vector<16x128xf32>
    %36 = arith.mulf %35, %34 : vector<16x128xf32>
    %cst_20 = arith.constant 0.707106769 : f32
    %37 = vector.broadcast %cst_20 : f32 to vector<16x128xf32>
    %38 = arith.mulf %34, %37 : vector<16x128xf32>
    %39 = math.erf %38 : vector<16x128xf32>
    %cst_21 = arith.constant 1.000000e+00 : f32
    %40 = vector.broadcast %cst_21 : f32 to vector<16x128xf32>
    %41 = arith.addf %40, %39 : vector<16x128xf32>
    %42 = arith.mulf %36, %41 : vector<16x128xf32>
    %c0_22 = arith.constant 0 : index
    %c0_23 = arith.constant 0 : index
    %43 = vector.load %arg5[%c0_22, %c0_23] : memref<128x128xbf16, #tpu.memory_space<vmem>>, vector<128x128xbf16>
    %c3 = arith.constant 3 : index
    %c0_24 = arith.constant 0 : index
    %44 = vector.load %arg14[%c3, %c0_24] : memref<12x896xf32, #tpu.memory_space<vmem>>, vector<1x128xf32>
    %45 = arith.truncf %42 : vector<16x128xf32> to vector<16x128xbf16>
    %cst_25 = arith.constant dense<0.000000e+00> : vector<16x128xf32>
    %46 = tpu.matmul %45, %43, %cst_25 {dimension_numbers = #tpu.dot_dimension_numbers<[1], [0], [0], [1], [0, 0, 1, 1], [], []>} : vector<16x128xbf16>, vector<128x128xbf16>, vector<16x128xf32> -> vector<16x128xf32>
    %47 = vector.broadcast %44 : vector<1x128xf32> to vector<16x128xf32>
    %48 = arith.addf %46, %47 : vector<16x128xf32>
    %cst_26 = arith.constant 5.000000e-01 : f32
    %49 = vector.broadcast %cst_26 : f32 to vector<16x128xf32>
    %50 = arith.mulf %49, %48 : vector<16x128xf32>
    %cst_27 = arith.constant 0.707106769 : f32
    %51 = vector.broadcast %cst_27 : f32 to vector<16x128xf32>
    %52 = arith.mulf %48, %51 : vector<16x128xf32>
    %53 = math.erf %52 : vector<16x128xf32>
    %cst_28 = arith.constant 1.000000e+00 : f32
    %54 = vector.broadcast %cst_28 : f32 to vector<16x128xf32>
    %55 = arith.addf %54, %53 : vector<16x128xf32>
    %56 = arith.mulf %50, %55 : vector<16x128xf32>
    %c0_29 = arith.constant 0 : index
    %c0_30 = arith.constant 0 : index
    %57 = vector.load %arg6[%c0_29, %c0_30] : memref<128x128xbf16, #tpu.memory_space<vmem>>, vector<128x128xbf16>
    %c4 = arith.constant 4 : index
    %c0_31 = arith.constant 0 : index
    %58 = vector.load %arg14[%c4, %c0_31] : memref<12x896xf32, #tpu.memory_space<vmem>>, vector<1x128xf32>
    %59 = arith.truncf %56 : vector<16x128xf32> to vector<16x128xbf16>
    %cst_32 = arith.constant dense<0.000000e+00> : vector<16x128xf32>
    %60 = tpu.matmul %59, %57, %cst_32 {dimension_numbers = #tpu.dot_dimension_numbers<[1], [0], [0], [1], [0, 0, 1, 1], [], []>} : vector<16x128xbf16>, vector<128x128xbf16>, vector<16x128xf32> -> vector<16x128xf32>
    %61 = vector.broadcast %58 : vector<1x128xf32> to vector<16x128xf32>
    %62 = arith.addf %60, %61 : vector<16x128xf32>
    %cst_33 = arith.constant 5.000000e-01 : f32
    %63 = vector.broadcast %cst_33 : f32 to vector<16x128xf32>
    %64 = arith.mulf %63, %62 : vector<16x128xf32>
    %cst_34 = arith.constant 0.707106769 : f32
    %65 = vector.broadcast %cst_34 : f32 to vector<16x128xf32>
    %66 = arith.mulf %62, %65 : vector<16x128xf32>
    %67 = math.erf %66 : vector<16x128xf32>
    %cst_35 = arith.constant 1.000000e+00 : f32
    %68 = vector.broadcast %cst_35 : f32 to vector<16x128xf32>
    %69 = arith.addf %68, %67 : vector<16x128xf32>
    %70 = arith.mulf %64, %69 : vector<16x128xf32>
    %c0_36 = arith.constant 0 : index
    %c0_37 = arith.constant 0 : index
    %71 = vector.load %arg7[%c0_36, %c0_37] : memref<128x128xbf16, #tpu.memory_space<vmem>>, vector<128x128xbf16>
    %c5 = arith.constant 5 : index
    %c0_38 = arith.constant 0 : index
    %72 = vector.load %arg14[%c5, %c0_38] : memref<12x896xf32, #tpu.memory_space<vmem>>, vector<1x128xf32>
    %73 = arith.truncf %70 : vector<16x128xf32> to vector<16x128xbf16>
    %cst_39 = arith.constant dense<0.000000e+00> : vector<16x128xf32>
    %74 = tpu.matmul %73, %71, %cst_39 {dimension_numbers = #tpu.dot_dimension_numbers<[1], [0], [0], [1], [0, 0, 1, 1], [], []>} : vector<16x128xbf16>, vector<128x128xbf16>, vector<16x128xf32> -> vector<16x128xf32>
    %75 = vector.broadcast %72 : vector<1x128xf32> to vector<16x128xf32>
    %76 = arith.addf %74, %75 : vector<16x128xf32>
    %77 = math.tanh %76 : vector<16x128xf32>
    %c0_40 = arith.constant 0 : index
    %c0_41 = arith.constant 0 : index
    %78 = vector.load %arg8[%c0_40, %c0_41] : memref<128x128xbf16, #tpu.memory_space<vmem>>, vector<128x128xbf16>
    %c6 = arith.constant 6 : index
    %c0_42 = arith.constant 0 : index
    %79 = vector.load %arg14[%c6, %c0_42] : memref<12x896xf32, #tpu.memory_space<vmem>>, vector<1x128xf32>
    %80 = arith.truncf %77 : vector<16x128xf32> to vector<16x128xbf16>
    %cst_43 = arith.constant dense<0.000000e+00> : vector<16x128xf32>
    %81 = tpu.matmul %80, %78, %cst_43 {dimension_numbers = #tpu.dot_dimension_numbers<[1], [0], [0], [1], [0, 0, 1, 1], [], []>} : vector<16x128xbf16>, vector<128x128xbf16>, vector<16x128xf32> -> vector<16x128xf32>
    %82 = vector.broadcast %79 : vector<1x128xf32> to vector<16x128xf32>
    %83 = arith.addf %81, %82 : vector<16x128xf32>
    %cst_44 = arith.constant 5.000000e-01 : f32
    %84 = vector.broadcast %cst_44 : f32 to vector<16x128xf32>
    %85 = arith.mulf %84, %83 : vector<16x128xf32>
    %cst_45 = arith.constant 0.707106769 : f32
    %86 = vector.broadcast %cst_45 : f32 to vector<16x128xf32>
    %87 = arith.mulf %83, %86 : vector<16x128xf32>
    %88 = math.erf %87 : vector<16x128xf32>
    %cst_46 = arith.constant 1.000000e+00 : f32
    %89 = vector.broadcast %cst_46 : f32 to vector<16x128xf32>
    %90 = arith.addf %89, %88 : vector<16x128xf32>
    %91 = arith.mulf %85, %90 : vector<16x128xf32>
    %c0_47 = arith.constant 0 : index
    %c0_48 = arith.constant 0 : index
    %92 = vector.load %arg9[%c0_47, %c0_48] : memref<128x128xbf16, #tpu.memory_space<vmem>>, vector<128x128xbf16>
    %c7 = arith.constant 7 : index
    %c0_49 = arith.constant 0 : index
    %93 = vector.load %arg14[%c7, %c0_49] : memref<12x896xf32, #tpu.memory_space<vmem>>, vector<1x128xf32>
    %94 = arith.truncf %91 : vector<16x128xf32> to vector<16x128xbf16>
    %cst_50 = arith.constant dense<0.000000e+00> : vector<16x128xf32>
    %95 = tpu.matmul %94, %92, %cst_50 {dimension_numbers = #tpu.dot_dimension_numbers<[1], [0], [0], [1], [0, 0, 1, 1], [], []>} : vector<16x128xbf16>, vector<128x128xbf16>, vector<16x128xf32> -> vector<16x128xf32>
    %96 = vector.broadcast %93 : vector<1x128xf32> to vector<16x128xf32>
    %97 = arith.addf %95, %96 : vector<16x128xf32>
    %cst_51 = arith.constant 5.000000e-01 : f32
    %98 = vector.broadcast %cst_51 : f32 to vector<16x128xf32>
    %99 = arith.mulf %98, %97 : vector<16x128xf32>
    %cst_52 = arith.constant 0.707106769 : f32
    %100 = vector.broadcast %cst_52 : f32 to vector<16x128xf32>
    %101 = arith.mulf %97, %100 : vector<16x128xf32>
    %102 = math.erf %101 : vector<16x128xf32>
    %cst_53 = arith.constant 1.000000e+00 : f32
    %103 = vector.broadcast %cst_53 : f32 to vector<16x128xf32>
    %104 = arith.addf %103, %102 : vector<16x128xf32>
    %105 = arith.mulf %99, %104 : vector<16x128xf32>
    %c0_54 = arith.constant 0 : index
    %c0_55 = arith.constant 0 : index
    %106 = vector.load %arg10[%c0_54, %c0_55] : memref<128x128xbf16, #tpu.memory_space<vmem>>, vector<128x128xbf16>
    %c8 = arith.constant 8 : index
    %c0_56 = arith.constant 0 : index
    %107 = vector.load %arg14[%c8, %c0_56] : memref<12x896xf32, #tpu.memory_space<vmem>>, vector<1x128xf32>
    %108 = arith.truncf %105 : vector<16x128xf32> to vector<16x128xbf16>
    %cst_57 = arith.constant dense<0.000000e+00> : vector<16x128xf32>
    %109 = tpu.matmul %108, %106, %cst_57 {dimension_numbers = #tpu.dot_dimension_numbers<[1], [0], [0], [1], [0, 0, 1, 1], [], []>} : vector<16x128xbf16>, vector<128x128xbf16>, vector<16x128xf32> -> vector<16x128xf32>
    %110 = vector.broadcast %107 : vector<1x128xf32> to vector<16x128xf32>
    %111 = arith.addf %109, %110 : vector<16x128xf32>
    %cst_58 = arith.constant 5.000000e-01 : f32
    %112 = vector.broadcast %cst_58 : f32 to vector<16x128xf32>
    %113 = arith.mulf %112, %111 : vector<16x128xf32>
    %cst_59 = arith.constant 0.707106769 : f32
    %114 = vector.broadcast %cst_59 : f32 to vector<16x128xf32>
    %115 = arith.mulf %111, %114 : vector<16x128xf32>
    %116 = math.erf %115 : vector<16x128xf32>
    %cst_60 = arith.constant 1.000000e+00 : f32
    %117 = vector.broadcast %cst_60 : f32 to vector<16x128xf32>
    %118 = arith.addf %117, %116 : vector<16x128xf32>
    %119 = arith.mulf %113, %118 : vector<16x128xf32>
    %c0_61 = arith.constant 0 : index
    %c0_62 = arith.constant 0 : index
    %120 = vector.load %arg11[%c0_61, %c0_62] : memref<128x256xbf16, #tpu.memory_space<vmem>>, vector<128x256xbf16>
    %c9 = arith.constant 9 : index
    %c0_63 = arith.constant 0 : index
    %121 = vector.load %arg14[%c9, %c0_63] : memref<12x896xf32, #tpu.memory_space<vmem>>, vector<1x256xf32>
    %122 = arith.truncf %119 : vector<16x128xf32> to vector<16x128xbf16>
    %cst_64 = arith.constant dense<0.000000e+00> : vector<16x256xf32>
    %123 = tpu.matmul %122, %120, %cst_64 {dimension_numbers = #tpu.dot_dimension_numbers<[1], [0], [0], [1], [0, 0, 1, 1], [], []>} : vector<16x128xbf16>, vector<128x256xbf16>, vector<16x256xf32> -> vector<16x256xf32>
    %124 = vector.broadcast %121 : vector<1x256xf32> to vector<16x256xf32>
    %125 = arith.addf %123, %124 : vector<16x256xf32>
    %cst_65 = arith.constant 5.000000e-01 : f32
    %126 = vector.broadcast %cst_65 : f32 to vector<16x256xf32>
    %127 = arith.mulf %126, %125 : vector<16x256xf32>
    %cst_66 = arith.constant 0.707106769 : f32
    %128 = vector.broadcast %cst_66 : f32 to vector<16x256xf32>
    %129 = arith.mulf %125, %128 : vector<16x256xf32>
    %130 = math.erf %129 : vector<16x256xf32>
    %cst_67 = arith.constant 1.000000e+00 : f32
    %131 = vector.broadcast %cst_67 : f32 to vector<16x256xf32>
    %132 = arith.addf %131, %130 : vector<16x256xf32>
    %133 = arith.mulf %127, %132 : vector<16x256xf32>
    %c0_68 = arith.constant 0 : index
    %c0_69 = arith.constant 0 : index
    %134 = vector.load %arg12[%c0_68, %c0_69] : memref<256x768xbf16, #tpu.memory_space<vmem>>, vector<256x768xbf16>
    %c10 = arith.constant 10 : index
    %c0_70 = arith.constant 0 : index
    %135 = vector.load %arg14[%c10, %c0_70] : memref<12x896xf32, #tpu.memory_space<vmem>>, vector<1x768xf32>
    %136 = arith.truncf %133 : vector<16x256xf32> to vector<16x256xbf16>
    %cst_71 = arith.constant dense<0.000000e+00> : vector<16x768xf32>
    %137 = tpu.matmul %136, %134, %cst_71 {dimension_numbers = #tpu.dot_dimension_numbers<[1], [0], [0], [1], [0, 0, 1, 1], [], []>} : vector<16x256xbf16>, vector<256x768xbf16>, vector<16x768xf32> -> vector<16x768xf32>
    %138 = vector.broadcast %135 : vector<1x768xf32> to vector<16x768xf32>
    %139 = arith.addf %137, %138 : vector<16x768xf32>
    %cst_72 = arith.constant 5.000000e-01 : f32
    %140 = vector.broadcast %cst_72 : f32 to vector<16x768xf32>
    %141 = arith.mulf %140, %139 : vector<16x768xf32>
    %cst_73 = arith.constant 0.707106769 : f32
    %142 = vector.broadcast %cst_73 : f32 to vector<16x768xf32>
    %143 = arith.mulf %139, %142 : vector<16x768xf32>
    %144 = math.erf %143 : vector<16x768xf32>
    %cst_74 = arith.constant 1.000000e+00 : f32
    %145 = vector.broadcast %cst_74 : f32 to vector<16x768xf32>
    %146 = arith.addf %145, %144 : vector<16x768xf32>
    %147 = arith.mulf %141, %146 : vector<16x768xf32>
    %c0_75 = arith.constant 0 : index
    %c0_76 = arith.constant 0 : index
    %148 = vector.load %arg13[%c0_75, %c0_76] : memref<768x896xbf16, #tpu.memory_space<vmem>>, vector<768x896xbf16>
    %c11 = arith.constant 11 : index
    %c0_77 = arith.constant 0 : index
    %149 = vector.load %arg14[%c11, %c0_77] : memref<12x896xf32, #tpu.memory_space<vmem>>, vector<1x896xf32>
    %150 = arith.truncf %147 : vector<16x768xf32> to vector<16x768xbf16>
    %cst_78 = arith.constant dense<0.000000e+00> : vector<16x896xf32>
    %151 = tpu.matmul %150, %148, %cst_78 {dimension_numbers = #tpu.dot_dimension_numbers<[1], [0], [0], [1], [0, 0, 1, 1], [], []>} : vector<16x768xbf16>, vector<768x896xbf16>, vector<16x896xf32> -> vector<16x896xf32>
    %152 = vector.broadcast %149 : vector<1x896xf32> to vector<16x896xf32>
    %153 = arith.addf %151, %152 : vector<16x896xf32>
    %154 = math.tanh %153 : vector<16x896xf32>
    %c0_79 = arith.constant 0 : index
    %c0_80 = arith.constant 0 : index
    %155 = vector.load %arg15[%c0_79, %c0_80] : memref<16x896xf32, #tpu.memory_space<vmem>>, vector<16x896xf32>
    tpu.vector_store %arg15[%c0_79, %c0_80], %154 {strides = array<i32>} : memref<16x896xf32, #tpu.memory_space<vmem>>, vector<16x896xf32>,
    return
  }
  func.func @transform_0(%arg0: i32) -> (i32, i32) {
    %c0_i32 = arith.constant 0 : i32
    %c0_i32_0 = arith.constant 0 : i32
    return %arg0, %c0_i32 : i32, i32
  }
  func.func @transform_1(%arg0: i32) -> (i32, i32) {
    %c0_i32 = arith.constant 0 : i32
    %c0_i32_0 = arith.constant 0 : i32
    %c0_i32_1 = arith.constant 0 : i32
    return %c0_i32, %c0_i32_0 : i32, i32
  }
  func.func @transform_2(%arg0: i32) -> (i32, i32) {
    %c0_i32 = arith.constant 0 : i32
    %c0_i32_0 = arith.constant 0 : i32
    %c0_i32_1 = arith.constant 0 : i32
    return %c0_i32, %c0_i32_0 : i32, i32
  }
  func.func @transform_3(%arg0: i32) -> (i32, i32) {
    %c0_i32 = arith.constant 0 : i32
    %c0_i32_0 = arith.constant 0 : i32
    %c0_i32_1 = arith.constant 0 : i32
    return %c0_i32, %c0_i32_0 : i32, i32
  }
  func.func @transform_4(%arg0: i32) -> (i32, i32) {
    %c0_i32 = arith.constant 0 : i32
    %c0_i32_0 = arith.constant 0 : i32
    %c0_i32_1 = arith.constant 0 : i32
    return %c0_i32, %c0_i32_0 : i32, i32
  }
  func.func @transform_5(%arg0: i32) -> (i32, i32) {
    %c0_i32 = arith.constant 0 : i32
    %c0_i32_0 = arith.constant 0 : i32
    %c0_i32_1 = arith.constant 0 : i32
    return %c0_i32, %c0_i32_0 : i32, i32
  }
  func.func @transform_6(%arg0: i32) -> (i32, i32) {
    %c0_i32 = arith.constant 0 : i32
    %c0_i32_0 = arith.constant 0 : i32
    %c0_i32_1 = arith.constant 0 : i32
    return %c0_i32, %c0_i32_0 : i32, i32
  }
  func.func @transform_7(%arg0: i32) -> (i32, i32) {
    %c0_i32 = arith.constant 0 : i32
    %c0_i32_0 = arith.constant 0 : i32
    %c0_i32_1 = arith.constant 0 : i32
    return %c0_i32, %c0_i32_0 : i32, i32
  }
  func.func @transform_8(%arg0: i32) -> (i32, i32) {
    %c0_i32 = arith.constant 0 : i32
    %c0_i32_0 = arith.constant 0 : i32
    %c0_i32_1 = arith.constant 0 : i32
    return %c0_i32, %c0_i32_0 : i32, i32
  }
  func.func @transform_9(%arg0: i32) -> (i32, i32) {
    %c0_i32 = arith.constant 0 : i32
    %c0_i32_0 = arith.constant 0 : i32
    %c0_i32_1 = arith.constant 0 : i32
    return %c0_i32, %c0_i32_0 : i32, i32
  }
  func.func @transform_10(%arg0: i32) -> (i32, i32) {
    %c0_i32 = arith.constant 0 : i32
    %c0_i32_0 = arith.constant 0 : i32
    %c0_i32_1 = arith.constant 0 : i32
    return %c0_i32, %c0_i32_0 : i32, i32
  }
  func.func @transform_11(%arg0: i32) -> (i32, i32) {
    %c0_i32 = arith.constant 0 : i32
    %c0_i32_0 = arith.constant 0 : i32
    %c0_i32_1 = arith.constant 0 : i32
    return %c0_i32, %c0_i32_0 : i32, i32
  }
  func.func @transform_12(%arg0: i32) -> (i32, i32) {
    %c0_i32 = arith.constant 0 : i32
    %c0_i32_0 = arith.constant 0 : i32
    %c0_i32_1 = arith.constant 0 : i32
    return %c0_i32, %c0_i32_0 : i32, i32
  }
  func.func @transform_13(%arg0: i32) -> (i32, i32) {
    %c0_i32 = arith.constant 0 : i32
    %c0_i32_0 = arith.constant 0 : i32
    %c0_i32_1 = arith.constant 0 : i32
    return %c0_i32, %c0_i32_0 : i32, i32
  }
  func.func @transform_14(%arg0: i32) -> (i32, i32) {
    %c0_i32 = arith.constant 0 : i32
    %c0_i32_0 = arith.constant 0 : i32
    return %arg0, %c0_i32 : i32, i32
  }
}

</mosaic_0001>

<llo_original>
// kernel: autoencoder_forward.1
$region0: #{autoencoder_forward.1}
  #allocation0 [shape = 'u32[]', space=smem, size = 0x4, offset = 0x4, fixed_abs, tag = 'smem constant byte address 0x4 - core index']
  #allocation1 [shape = 'u32[144,128]{1,0:T(1,128)}', space=vmem, size = 0x12000, scoped, tag = 'internal scratch']
  %s0 = inlined_call_operand.vmem [shape: f32[16,896], index: 0, kind: input, shape index: {}]
  %s1 = inlined_call_operand.vmem [shape: bf16[896,768], index: 1, kind: input, shape index: {}]
  %s2 = inlined_call_operand.vmem [shape: bf16[768,256], index: 2, kind: input, shape index: {}]
  %s3 = inlined_call_operand.vmem [shape: bf16[256,128], index: 3, kind: input, shape index: {}]
  %s4 = inlined_call_operand.vmem [shape: bf16[128,128], index: 4, kind: input, shape index: {}]
  %s5 = inlined_call_operand.vmem [shape: bf16[128,128], index: 5, kind: input, shape index: {}]
  %s6 = inlined_call_operand.vmem [shape: bf16[128,128], index: 6, kind: input, shape index: {}]
  %s7 = inlined_call_operand.vmem [shape: bf16[128,128], index: 7, kind: input, shape index: {}]
  %s8 = inlined_call_operand.vmem [shape: bf16[128,128], index: 8, kind: input, shape index: {}]
  %s9 = inlined_call_operand.vmem [shape: bf16[128,128], index: 9, kind: input, shape index: {}]
  %s10 = inlined_call_operand.vmem [shape: bf16[128,256], index: 10, kind: input, shape index: {}]
  %s11 = inlined_call_operand.vmem [shape: bf16[256,768], index: 11, kind: input, shape index: {}]
  %s12 = inlined_call_operand.vmem [shape: bf16[768,896], index: 12, kind: input, shape index: {}]
  %s13 = inlined_call_operand.vmem [shape: f32[12,896], index: 13, kind: input, shape index: {}]
  %s14 = inlined_call_operand.hbm [shape: f32[16,896], index: 14, kind: output, shape index: {}]
  %s15 = sld [smem:[#allocation0]]
  $region66: #{autoencoder_forward.1} parent=0
    _
  %s17 = ssub.s32 1, %s15
  %s18 = scalar_select 0, %s17, %s15
  $region1: #{autoencoder_forward.1} parent=0
    #allocation2 [shape = 'u8[57344]{0}', space=vmem, size = 0xe000, scoped, tag = 'output window, operand 0, single buffered']
    #allocation3 [shape = 's32[1]{0}', space=sflag, size = 0x4, scoped, tag = 'scoped memory for autoencoder_forward.1']
    %19 = vsyncpa [#allocation3], 0
    // Predicated region
    $region2: #{autoencoder_forward.1} parent=1 // pred_check
      _
    $region3: #{autoencoder_forward.1} parent=1 // pred_check_branch
      %21 = sbr.rel (0) target = $region5
    $region4: #{autoencoder_forward.1} parent=1 // pred_region
      _
    $region5: #{autoencoder_forward.1} parent=1 // pred_fallthru
      _
    // Predicated region
    $region6: #{autoencoder_forward.1} parent=1 // pred_check
      _
    $region7: #{autoencoder_forward.1} parent=1 // pred_check_branch
      %23 = sbr.rel (0) target = $region9
    $region8: #{autoencoder_forward.1} parent=1 // pred_region
      _
    $region9: #{autoencoder_forward.1} parent=1 // pred_fallthru
      _
    // Predicated region
    $region10: #{autoencoder_forward.1} parent=1 // pred_check
      _
    $region11: #{autoencoder_forward.1} parent=1 // pred_check_branch
      %25 = sbr.rel (0) target = $region13
    $region12: #{autoencoder_forward.1} parent=1 // pred_region
      _
    $region13: #{autoencoder_forward.1} parent=1 // pred_fallthru
      _
    // Predicated region
    $region14: #{autoencoder_forward.1} parent=1 // pred_check
      _
    $region15: #{autoencoder_forward.1} parent=1 // pred_check_branch
      %27 = sbr.rel (0) target = $region17
    $region16: #{autoencoder_forward.1} parent=1 // pred_region
      _
    $region17: #{autoencoder_forward.1} parent=1 // pred_fallthru
      _
    // Predicated region
    $region18: #{autoencoder_forward.1} parent=1 // pred_check
      _
    $region19: #{autoencoder_forward.1} parent=1 // pred_check_branch
      %29 = sbr.rel (0) target = $region21
    $region20: #{autoencoder_forward.1} parent=1 // pred_region
      _
    $region21: #{autoencoder_forward.1} parent=1 // pred_fallthru
      _
    // Predicated region
    $region22: #{autoencoder_forward.1} parent=1 // pred_check
      _
    $region23: #{autoencoder_forward.1} parent=1 // pred_check_branch
      %31 = sbr.rel (0) target = $region25
    $region24: #{autoencoder_forward.1} parent=1 // pred_region
      _
    $region25: #{autoencoder_forward.1} parent=1 // pred_fallthru
      _
    // Predicated region
    $region26: #{autoencoder_forward.1} parent=1 // pred_check
      _
    $region27: #{autoencoder_forward.1} parent=1 // pred_check_branch
      %33 = sbr.rel (0) target = $region29
    $region28: #{autoencoder_forward.1} parent=1 // pred_region
      _
    $region29: #{autoencoder_forward.1} parent=1 // pred_fallthru
      _
    // Predicated region
    $region30: #{autoencoder_forward.1} parent=1 // pred_check
      _
    $region31: #{autoencoder_forward.1} parent=1 // pred_check_branch
      %35 = sbr.rel (0) target = $region33
    $region32: #{autoencoder_forward.1} parent=1 // pred_region
      _
    $region33: #{autoencoder_forward.1} parent=1 // pred_fallthru
      _
    // Predicated region
    $region34: #{autoencoder_forward.1} parent=1 // pred_check
      _
    $region35: #{autoencoder_forward.1} parent=1 // pred_check_branch
      %37 = sbr.rel (0) target = $region37
    $region36: #{autoencoder_forward.1} parent=1 // pred_region
      _
    $region37: #{autoencoder_forward.1} parent=1 // pred_fallthru
      _
    // Predicated region
    $region38: #{autoencoder_forward.1} parent=1 // pred_check
      _
    $region39: #{autoencoder_forward.1} parent=1 // pred_check_branch
      %39 = sbr.rel (0) target = $region41
    $region40: #{autoencoder_forward.1} parent=1 // pred_region
      _
    $region41: #{autoencoder_forward.1} parent=1 // pred_fallthru
      _
    // Predicated region
    $region42: #{autoencoder_forward.1} parent=1 // pred_check
      _
    $region43: #{autoencoder_forward.1} parent=1 // pred_check_branch
      %41 = sbr.rel (0) target = $region45
    $region44: #{autoencoder_forward.1} parent=1 // pred_region
      _
    $region45: #{autoencoder_forward.1} parent=1 // pred_fallthru
      _
    // Predicated region
    $region46: #{autoencoder_forward.1} parent=1 // pred_check
      _
    $region47: #{autoencoder_forward.1} parent=1 // pred_check_branch
      %43 = sbr.rel (0) target = $region49
    $region48: #{autoencoder_forward.1} parent=1 // pred_region
      _
    $region49: #{autoencoder_forward.1} parent=1 // pred_fallthru
      _
    // Predicated region
    $region50: #{autoencoder_forward.1} parent=1 // pred_check
      _
    $region51: #{autoencoder_forward.1} parent=1 // pred_check_branch
      %45 = sbr.rel (0) target = $region53
    $region52: #{autoencoder_forward.1} parent=1 // pred_region
      _
    $region53: #{autoencoder_forward.1} parent=1 // pred_fallthru
      _
    // Predicated region
    $region54: #{autoencoder_forward.1} parent=1 // pred_check
      _
    $region55: #{autoencoder_forward.1} parent=1 // pred_check_branch
      %47 = sbr.rel (0) target = $region57
    $region56: #{autoencoder_forward.1} parent=1 // pred_region
      _
    $region57: #{autoencoder_forward.1} parent=1 // pred_fallthru
      _
    %v49 = vld [vmem:[%s0] sm:$0xff]
    %v50 = vld [vmem:[%s0 + $0x8] sm:$0xff]
    %v51 = vld [vmem:[%s0 + $0x10] sm:$0xff]
    %v52 = vld [vmem:[%s0 + $0x18] sm:$0xff]
    %v53 = vld [vmem:[%s0 + $0x20] sm:$0xff]
    %v54 = vld [vmem:[%s0 + $0x28] sm:$0xff]
    %v55 = vld [vmem:[%s0 + $0x30] sm:$0xff]
    %v56 = vld [vmem:[%s0 + $0x38] sm:$0xff]
    %v57 = vld [vmem:[%s0 + $0x40] sm:$0xff]
    %v58 = vld [vmem:[%s0 + $0x48] sm:$0xff]
    %v59 = vld [vmem:[%s0 + $0x50] sm:$0xff]
    %v60 = vld [vmem:[%s0 + $0x58] sm:$0xff]
    %v61 = vld [vmem:[%s0 + $0x60] sm:$0xff]
    %v62 = vld [vmem:[%s0 + $0x68] sm:$0xff]
    %v63 = vld [vmem:[%s1] sm:$0xff]
    %v64 = vld [vmem:[%s1 + $0x8] sm:$0xff]
    %v65 = vld [vmem:[%s1 + $0x10] sm:$0xff]
    %v66 = vld [vmem:[%s1 + $0x18] sm:$0xff]
    %v67 = vld [vmem:[%s1 + $0x20] sm:$0xff]
    %v68 = vld [vmem:[%s1 + $0x28] sm:$0xff]
    %v69 = vld [vmem:[%s1 + $0x30] sm:$0xff]
    %v70 = vld [vmem:[%s1 + $0x38] sm:$0xff]
    %v71 = vld [vmem:[%s1 + $0x40] sm:$0xff]
    %v72 = vld [vmem:[%s1 + $0x48] sm:$0xff]
    %v73 = vld [vmem:[%s1 + $0x50] sm:$0xff]
    %v74 = vld [vmem:[%s1 + $0x58] sm:$0xff]
    %v75 = vld [vmem:[%s1 + $0x60] sm:$0xff]
    %v76 = vld [vmem:[%s1 + $0x68] sm:$0xff]
    %v77 = vld [vmem:[%s1 + $0x70] sm:$0xff]
    %v78 = vld [vmem:[%s1 + $0x78] sm:$0xff]
    %v79 = vld [vmem:[%s1 + $0x80] sm:$0xff]
    %v80 = vld [vmem:[%s1 + $0x88] sm:$0xff]
    %v81 = vld [vmem:[%s1 + $0x90] sm:$0xff]
    %v82 = vld [vmem:[%s1 + $0x98] sm:$0xff]
    %v83 = vld [vmem:[%s1 + $0xa0] sm:$0xff]
    %v84 = vld [vmem:[%s1 + $0xa8] sm:$0xff]
    %v85 = vld [vmem:[%s1 + $0xb0] sm:$0xff]
    %v86 = vld [vmem:[%s1 + $0xb8] sm:$0xff]
    %v87 = vld [vmem:[%s1 + $0xc0] sm:$0xff]
    %v88 = vld [vmem:[%s1 + $0xc8] sm:$0xff]
    %v89 = vld [vmem:[%s1 + $0xd0] sm:$0xff]
    %v90 = vld [vmem:[%s1 + $0xd8] sm:$0xff]
    %v91 = vld [vmem:[%s1 + $0xe0] sm:$0xff]
    %v92 = vld [vmem:[%s1 + $0xe8] sm:$0xff]
    %v93 = vld [vmem:[%s1 + $0xf0] sm:$0xff]
    %v94 = vld [vmem:[%s1 + $0xf8] sm:$0xff]
    %v95 = vld [vmem:[%s1 + $0x100] sm:$0xff]
    %v96 = vld [vmem:[%s1 + $0x108] sm:$0xff]
    %v97 = vld [vmem:[%s1 + $0x110] sm:$0xff]
    %v98 = vld [vmem:[%s1 + $0x118] sm:$0xff]
    %v99 = vld [vmem:[%s1 + $0x120] sm:$0xff]
    %v100 = vld [vmem:[%s1 + $0x128] sm:$0xff]
    %v101 = vld [vmem:[%s1 + $0x130] sm:$0xff]
    %v102 = vld [vmem:[%s1 + $0x138] sm:$0xff]
    %v103 = vld [vmem:[%s1 + $0x140] sm:$0xff]
    %v104 = vld [vmem:[%s1 + $0x148] sm:$0xff]
    %v105 = vld [vmem:[%s1 + $0x150] sm:$0xff]
    %v106 = vld [vmem:[%s1 + $0x158] sm:$0xff]
    %v107 = vld [vmem:[%s1 + $0x160] sm:$0xff]
    %v108 = vld [vmem:[%s1 + $0x168] sm:$0xff]
    %v109 = vld [vmem:[%s1 + $0x170] sm:$0xff]
    %v110 = vld [vmem:[%s1 + $0x178] sm:$0xff]
    %v111 = vld [vmem:[%s1 + $0x180] sm:$0xff]
    %v112 = vld [vmem:[%s1 + $0x188] sm:$0xff]
    %v113 = vld [vmem:[%s1 + $0x190] sm:$0xff]
    %v114 = vld [vmem:[%s1 + $0x198] sm:$0xff]
    %v115 = vld [vmem:[%s1 + $0x1a0] sm:$0xff]
    %v116 = vld [vmem:[%s1 + $0x1a8] sm:$0xff]
    %v117 = vld [vmem:[%s1 + $0x1b0] sm:$0xff]
    %v118 = vld [vmem:[%s1 + $0x1b8] sm:$0xff]
    %v119 = vld [vmem:[%s1 + $0x1c0] sm:$0xff]
    %v120 = vld [vmem:[%s1 + $0x1c8] sm:$0xff]
    %v121 = vld [vmem:[%s1 + $0x1d0] sm:$0xff]
    %v122 = vld [vmem:[%s1 + $0x1d8] sm:$0xff]
    %v123 = vld [vmem:[%s1 + $0x1e0] sm:$0xff]
    %v124 = vld [vmem:[%s1 + $0x1e8] sm:$0xff]
    %v125 = vld [vmem:[%s1 + $0x1f0] sm:$0xff]
    %v126 = vld [vmem:[%s1 + $0x1f8] sm:$0xff]
    %v127 = vld [vmem:[%s1 + $0x200] sm:$0xff]
    %v128 = vld [vmem:[%s1 + $0x208] sm:$0xff]
    %v129 = vld [vmem:[%s1 + $0x210] sm:$0xff]
    %v130 = vld [vmem:[%s1 + $0x218] sm:$0xff]
    %v131 = vld [vmem:[%s1 + $0x220] sm:$0xff]
    %v132 = vld [vmem:[%s1 + $0x228] sm:$0xff]
    %v133 = vld [vmem:[%s1 + $0x230] sm:$0xff]
    %v134 = vld [vmem:[%s1 + $0x238] sm:$0xff]
    %v135 = vld [vmem:[%s1 + $0x240] sm:$0xff]
    %v136 = vld [vmem:[%s1 + $0x248] sm:$0xff]
    %v137 = vld [vmem:[%s1 + $0x250] sm:$0xff]
    %v138 = vld [vmem:[%s1 + $0x258] sm:$0xff]
    %v139 = vld [vmem:[%s1 + $0x260] sm:$0xff]
    %v140 = vld [vmem:[%s1 + $0x268] sm:$0xff]
    %v141 = vld [vmem:[%s1 + $0x270] sm:$0xff]
    %v142 = vld [vmem:[%s1 + $0x278] sm:$0xff]
    %v143 = vld [vmem:[%s1 + $0x280] sm:$0xff]
    %v144 = vld [vmem:[%s1 + $0x288] sm:$0xff]
    %v145 = vld [vmem:[%s1 + $0x290] sm:$0xff]
    %v146 = vld [vmem:[%s1 + $0x298] sm:$0xff]
    %v147 = vld [vmem:[%s1 + $0x2a0] sm:$0xff]
    %v148 = vld [vmem:[%s1 + $0x2a8] sm:$0xff]
    %v149 = vld [vmem:[%s1 + $0x2b0] sm:$0xff]
    %v150 = vld [vmem:[%s1 + $0x2b8] sm:$0xff]
    %v151 = vld [vmem:[%s1 + $0x2c0] sm:$0xff]
    %v152 = vld [vmem:[%s1 + $0x2c8] sm:$0xff]
    %v153 = vld [vmem:[%s1 + $0x2d0] sm:$0xff]
    %v154 = vld [vmem:[%s1 + $0x2d8] sm:$0xff]
    %v155 = vld [vmem:[%s1 + $0x2e0] sm:$0xff]
    %v156 = vld [vmem:[%s1 + $0x2e8] sm:$0xff]
    %v157 = vld [vmem:[%s1 + $0x2f0] sm:$0xff]
    %v158 = vld [vmem:[%s1 + $0x2f8] sm:$0xff]
    %v159 = vld [vmem:[%s1 + $0x300] sm:$0xff]
    %v160 = vld [vmem:[%s1 + $0x308] sm:$0xff]
    %v161 = vld [vmem:[%s1 + $0x310] sm:$0xff]
    %v162 = vld [vmem:[%s1 + $0x318] sm:$0xff]
    %v163 = vld [vmem:[%s1 + $0x320] sm:$0xff]
    %v164 = vld [vmem:[%s1 + $0x328] sm:$0xff]
    %v165 = vld [vmem:[%s1 + $0x330] sm:$0xff]
    %v166 = vld [vmem:[%s1 + $0x338] sm:$0xff]
    %v167 = vld [vmem:[%s1 + $0x340] sm:$0xff]
    %v168 = vld [vmem:[%s1 + $0x348] sm:$0xff]
    %v169 = vld [vmem:[%s1 + $0x350] sm:$0xff]
    %v170 = vld [vmem:[%s1 + $0x358] sm:$0xff]
    %v171 = vld [vmem:[%s1 + $0x360] sm:$0xff]
    %v172 = vld [vmem:[%s1 + $0x368] sm:$0xff]
    %v173 = vld [vmem:[%s1 + $0x370] sm:$0xff]
    %v174 = vld [vmem:[%s1 + $0x378] sm:$0xff]
    %v175 = vld [vmem:[%s1 + $0x380] sm:$0xff]
    %v176 = vld [vmem:[%s1 + $0x388] sm:$0xff]
    %v177 = vld [vmem:[%s1 + $0x390] sm:$0xff]
    %v178 = vld [vmem:[%s1 + $0x398] sm:$0xff]
    %v179 = vld [vmem:[%s1 + $0x3a0] sm:$0xff]
    %v180 = vld [vmem:[%s1 + $0x3a8] sm:$0xff]
    %v181 = vld [vmem:[%s1 + $0x3b0] sm:$0xff]
    %v182 = vld [vmem:[%s1 + $0x3b8] sm:$0xff]
    %v183 = vld [vmem:[%s1 + $0x3c0] sm:$0xff]
    %v184 = vld [vmem:[%s1 + $0x3c8] sm:$0xff]
    %v185 = vld [vmem:[%s1 + $0x3d0] sm:$0xff]
    %v186 = vld [vmem:[%s1 + $0x3d8] sm:$0xff]
    %v187 = vld [vmem:[%s1 + $0x3e0] sm:$0xff]
    %v188 = vld [vmem:[%s1 + $0x3e8] sm:$0xff]
    %v189 = vld [vmem:[%s1 + $0x3f0] sm:$0xff]
    %v190 = vld [vmem:[%s1 + $0x3f8] sm:$0xff]
    %v191 = vld [vmem:[%s1 + $0x400] sm:$0xff]
    %v192 = vld [vmem:[%s1 + $0x408] sm:$0xff]
    %v193 = vld [vmem:[%s1 + $0x410] sm:$0xff]
    %v194 = vld [vmem:[%s1 + $0x418] sm:$0xff]
    %v195 = vld [vmem:[%s1 + $0x420] sm:$0xff]
    %v196 = vld [vmem:[%s1 + $0x428] sm:$0xff]
    %v197 = vld [vmem:[%s1 + $0x430] sm:$0xff]
    %v198 = vld [vmem:[%s1 + $0x438] sm:$0xff]
    %v199 = vld [vmem:[%s1 + $0x440] sm:$0xff]
    %v200 = vld [vmem:[%s1 + $0x448] sm:$0xff]
    %v201 = vld [vmem:[%s1 + $0x450] sm:$0xff]
    %v202 = vld [vmem:[%s1 + $0x458] sm:$0xff]
    %v203 = vld [vmem:[%s1 + $0x460] sm:$0xff]
    %v204 = vld [vmem:[%s1 + $0x468] sm:$0xff]
    %v205 = vld [vmem:[%s1 + $0x470] sm:$0xff]
    %v206 = vld [vmem:[%s1 + $0x478] sm:$0xff]
    %v207 = vld [vmem:[%s1 + $0x480] sm:$0xff]
    %v208 = vld [vmem:[%s1 + $0x488] sm:$0xff]
    %v209 = vld [vmem:[%s1 + $0x490] sm:$0xff]
    %v210 = vld [vmem:[%s1 + $0x498] sm:$0xff]
    %v211 = vld [vmem:[%s1 + $0x4a0] sm:$0xff]
    %v212 = vld [vmem:[%s1 + $0x4a8] sm:$0xff]
    %v213 = vld [vmem:[%s1 + $0x4b0] sm:$0xff]
    %v214 = vld [vmem:[%s1 + $0x4b8] sm:$0xff]
    %v215 = vld [vmem:[%s1 + $0x4c0] sm:$0xff]
    %v216 = vld [vmem:[%s1 + $0x4c8] sm:$0xff]
    %v217 = vld [vmem:[%s1 + $0x4d0] sm:$0xff]
    %v218 = vld [vmem:[%s1 + $0x4d8] sm:$0xff]
    %v219 = vld [vmem:[%s1 + $0x4e0] sm:$0xff]
    %v220 = vld [vmem:[%s1 + $0x4e8] sm:$0xff]
    %v221 = vld [vmem:[%s1 + $0x4f0] sm:$0xff]
    %v222 = vld [vmem:[%s1 + $0x4f8] sm:$0xff]
    %v223 = vld [vmem:[%s1 + $0x500] sm:$0xff]
    %v224 = vld [vmem:[%s1 + $0x508] sm:$0xff]
    %v225 = vld [vmem:[%s1 + $0x510] sm:$0xff]
    %v226 = vld [vmem:[%s1 + $0x518] sm:$0xff]
    %v227 = vld [vmem:[%s1 + $0x520] sm:$0xff]
    %v228 = vld [vmem:[%s1 + $0x528] sm:$0xff]
    %v229 = vld [vmem:[%s1 + $0x530] sm:$0xff]
    %v230 = vld [vmem:[%s1 + $0x538] sm:$0xff]
    %v231 = vld [vmem:[%s1 + $0x540] sm:$0xff]
    %v232 = vld [vmem:[%s1 + $0x548] sm:$0xff]
    %v233 = vld [vmem:[%s1 + $0x550] sm:$0xff]
    %v234 = vld [vmem:[%s1 + $0x558] sm:$0xff]
    %v235 = vld [vmem:[%s1 + $0x560] sm:$0xff]
    %v236 = vld [vmem:[%s1 + $0x568] sm:$0xff]
    %v237 = vld [vmem:[%s1 + $0x570] sm:$0xff]
    %v238 = vld [vmem:[%s1 + $0x578] sm:$0xff]
    %v239 = vld [vmem:[%s1 + $0x580] sm:$0xff]
    %v240 = vld [vmem:[%s1 + $0x588] sm:$0xff]
    %v241 = vld [vmem:[%s1 + $0x590] sm:$0xff]
    %v242 = vld [vmem:[%s1 + $0x598] sm:$0xff]
    %v243 = vld [vmem:[%s1 + $0x5a0] sm:$0xff]
    %v244 = vld [vmem:[%s1 + $0x5a8] sm:$0xff]
    %v245 = vld [vmem:[%s1 + $0x5b0] sm:$0xff]
    %v246 = vld [vmem:[%s1 + $0x5b8] sm:$0xff]
    %v247 = vld [vmem:[%s1 + $0x5c0] sm:$0xff]
    %v248 = vld [vmem:[%s1 + $0x5c8] sm:$0xff]
    %v249 = vld [vmem:[%s1 + $0x5d0] sm:$0xff]
    %v250 = vld [vmem:[%s1 + $0x5d8] sm:$0xff]
    %v251 = vld [vmem:[%s1 + $0x5e0] sm:$0xff]
    %v252 = vld [vmem:[%s1 + $0x5e8] sm:$0xff]
    %v253 = vld [vmem:[%s1 + $0x5f0] sm:$0xff]
    %v254 = vld [vmem:[%s1 + $0x5f8] sm:$0xff]
    %v255 = vld [vmem:[%s1 + $0x600] sm:$0xff]
    %v256 = vld [vmem:[%s1 + $0x608] sm:$0xff]
    %v257 = vld [vmem:[%s1 + $0x610] sm:$0xff]
    %v258 = vld [vmem:[%s1 + $0x618] sm:$0xff]
    %v259 = vld [vmem:[%s1 + $0x620] sm:$0xff]
    %v260 = vld [vmem:[%s1 + $0x628] sm:$0xff]
    %v261 = vld [vmem:[%s1 + $0x630] sm:$0xff]
    %v262 = vld [vmem:[%s1 + $0x638] sm:$0xff]
    %v263 = vld [vmem:[%s1 + $0x640] sm:$0xff]
    %v264 = vld [vmem:[%s1 + $0x648] sm:$0xff]
    %v265 = vld [vmem:[%s1 + $0x650] sm:$0xff]
    %v266 = vld [vmem:[%s1 + $0x658] sm:$0xff]
    %v267 = vld [vmem:[%s1 + $0x660] sm:$0xff]
    %v268 = vld [vmem:[%s1 + $0x668] sm:$0xff]
    %v269 = vld [vmem:[%s1 + $0x670] sm:$0xff]
    %v270 = vld [vmem:[%s1 + $0x678] sm:$0xff]
    %v271 = vld [vmem:[%s1 + $0x680] sm:$0xff]
    %v272 = vld [vmem:[%s1 + $0x688] sm:$0xff]
    %v273 = vld [vmem:[%s1 + $0x690] sm:$0xff]
    %v274 = vld [vmem:[%s1 + $0x698] sm:$0xff]
    %v275 = vld [vmem:[%s1 + $0x6a0] sm:$0xff]
    %v276 = vld [vmem:[%s1 + $0x6a8] sm:$0xff]
    %v277 = vld [vmem:[%s1 + $0x6b0] sm:$0xff]
    %v278 = vld [vmem:[%s1 + $0x6b8] sm:$0xff]
    %v279 = vld [vmem:[%s1 + $0x6c0] sm:$0xff]
    %v280 = vld [vmem:[%s1 + $0x6c8] sm:$0xff]
    %v281 = vld [vmem:[%s1 + $0x6d0] sm:$0xff]
    %v282 = vld [vmem:[%s1 + $0x6d8] sm:$0xff]
    %v283 = vld [vmem:[%s1 + $0x6e0] sm:$0xff]
    %v284 = vld [vmem:[%s1 + $0x6e8] sm:$0xff]
    %v285 = vld [vmem:[%s1 + $0x6f0] sm:$0xff]
    %v286 = vld [vmem:[%s1 + $0x6f8] sm:$0xff]
    %v287 = vld [vmem:[%s1 + $0x700] sm:$0xff]
    %v288 = vld [vmem:[%s1 + $0x708] sm:$0xff]
    %v289 = vld [vmem:[%s1 + $0x710] sm:$0xff]
    %v290 = vld [vmem:[%s1 + $0x718] sm:$0xff]
    %v291 = vld [vmem:[%s1 + $0x720] sm:$0xff]
    %v292 = vld [vmem:[%s1 + $0x728] sm:$0xff]
    %v293 = vld [vmem:[%s1 + $0x730] sm:$0xff]
    %v294 = vld [vmem:[%s1 + $0x738] sm:$0xff]
    %v295 = vld [vmem:[%s1 + $0x740] sm:$0xff]
    %v296 = vld [vmem:[%s1 + $0x748] sm:$0xff]
    %v297 = vld [vmem:[%s1 + $0x750] sm:$0xff]
    %v298 = vld [vmem:[%s1 + $0x758] sm:$0xff]
    %v299 = vld [vmem:[%s1 + $0x760] sm:$0xff]
    %v300 = vld [vmem:[%s1 + $0x768] sm:$0xff]
    %v301 = vld [vmem:[%s1 + $0x770] sm:$0xff]
    %v302 = vld [vmem:[%s1 + $0x778] sm:$0xff]
    %v303 = vld [vmem:[%s1 + $0x780] sm:$0xff]
    %v304 = vld [vmem:[%s1 + $0x788] sm:$0xff]
    %v305 = vld [vmem:[%s1 + $0x790] sm:$0xff]
    %v306 = vld [vmem:[%s1 + $0x798] sm:$0xff]
    %v307 = vld [vmem:[%s1 + $0x7a0] sm:$0xff]
    %v308 = vld [vmem:[%s1 + $0x7a8] sm:$0xff]
    %v309 = vld [vmem:[%s1 + $0x7b0] sm:$0xff]
    %v310 = vld [vmem:[%s1 + $0x7b8] sm:$0xff]
    %v311 = vld [vmem:[%s1 + $0x7c0] sm:$0xff]
    %v312 = vld [vmem:[%s1 + $0x7c8] sm:$0xff]
    %v313 = vld [vmem:[%s1 + $0x7d0] sm:$0xff]
    %v314 = vld [vmem:[%s1 + $0x7d8] sm:$0xff]
    %v315 = vld [vmem:[%s1 + $0x7e0] sm:$0xff]
    %v316 = vld [vmem:[%s1 + $0x7e8] sm:$0xff]
    %v317 = vld [vmem:[%s1 + $0x7f0] sm:$0xff]
    %v318 = vld [vmem:[%s1 + $0x7f8] sm:$0xff]
    %v319 = vld [vmem:[%s1 + $0x800] sm:$0xff]
    %v320 = vld [vmem:[%s1 + $0x808] sm:$0xff]
    %v321 = vld [vmem:[%s1 + $0x810] sm:$0xff]
    %v322 = vld [vmem:[%s1 + $0x818] sm:$0xff]
    %v323 = vld [vmem:[%s1 + $0x820] sm:$0xff]
    %v324 = vld [vmem:[%s1 + $0x828] sm:$0xff]
    %v325 = vld [vmem:[%s1 + $0x830] sm:$0xff]
    %v326 = vld [vmem:[%s1 + $0x838] sm:$0xff]
    %v327 = vld [vmem:[%s1 + $0x840] sm:$0xff]
    %v328 = vld [vmem:[%s1 + $0x848] sm:$0xff]
    %v329 = vld [vmem:[%s1 + $0x850] sm:$0xff]
    %v330 = vld [vmem:[%s1 + $0x858] sm:$0xff]
    %v331 = vld [vmem:[%s1 + $0x860] sm:$0xff]
    %v332 = vld [vmem:[%s1 + $0x868] sm:$0xff]
    %v333 = vld [vmem:[%s1 + $0x870] sm:$0xff]
    %v334 = vld [vmem:[%s1 + $0x878] sm:$0xff]
    %v335 = vld [vmem:[%s1 + $0x880] sm:$0xff]
    %v336 = vld [vmem:[%s1 + $0x888] sm:$0xff]
    %v337 = vld [vmem:[%s1 + $0x890] sm:$0xff]
    %v338 = vld [vmem:[%s1 + $0x898] sm:$0xff]
    %v339 = vld [vmem:[%s1 + $0x8a0] sm:$0xff]
    %v340 = vld [vmem:[%s1 + $0x8a8] sm:$0xff]
    %v341 = vld [vmem:[%s1 + $0x8b0] sm:$0xff]
    %v342 = vld [vmem:[%s1 + $0x8b8] sm:$0xff]
    %v343 = vld [vmem:[%s1 + $0x8c0] sm:$0xff]
    %v344 = vld [vmem:[%s1 + $0x8c8] sm:$0xff]
    %v345 = vld [vmem:[%s1 + $0x8d0] sm:$0xff]
    %v346 = vld [vmem:[%s1 + $0x8d8] sm:$0xff]
    %v347 = vld [vmem:[%s1 + $0x8e0] sm:$0xff]
    %v348 = vld [vmem:[%s1 + $0x8e8] sm:$0xff]
    %v349 = vld [vmem:[%s1 + $0x8f0] sm:$0xff]
    %v350 = vld [vmem:[%s1 + $0x8f8] sm:$0xff]
    %v351 = vld [vmem:[%s1 + $0x900] sm:$0xff]
    %v352 = vld [vmem:[%s1 + $0x908] sm:$0xff]
    %v353 = vld [vmem:[%s1 + $0x910] sm:$0xff]
    %v354 = vld [vmem:[%s1 + $0x918] sm:$0xff]
    %v355 = vld [vmem:[%s1 + $0x920] sm:$0xff]
    %v356 = vld [vmem:[%s1 + $0x928] sm:$0xff]
    %v357 = vld [vmem:[%s1 + $0x930] sm:$0xff]
    %v358 = vld [vmem:[%s1 + $0x938] sm:$0xff]
    %v359 = vld [vmem:[%s1 + $0x940] sm:$0xff]
    %v360 = vld [vmem:[%s1 + $0x948] sm:$0xff]
    %v361 = vld [vmem:[%s1 + $0x950] sm:$0xff]
    %v362 = vld [vmem:[%s1 + $0x958] sm:$0xff]
    %v363 = vld [vmem:[%s1 + $0x960] sm:$0xff]
    %v364 = vld [vmem:[%s1 + $0x968] sm:$0xff]
    %v365 = vld [vmem:[%s1 + $0x970] sm:$0xff]
    %v366 = vld [vmem:[%s1 + $0x978] sm:$0xff]
    %v367 = vld [vmem:[%s1 + $0x980] sm:$0xff]
    %v368 = vld [vmem:[%s1 + $0x988] sm:$0xff]
    %v369 = vld [vmem:[%s1 + $0x990] sm:$0xff]
    %v370 = vld [vmem:[%s1 + $0x998] sm:$0xff]
    %v371 = vld [vmem:[%s1 + $0x9a0] sm:$0xff]
    %v372 = vld [vmem:[%s1 + $0x9a8] sm:$0xff]
    %v373 = vld [vmem:[%s1 + $0x9b0] sm:$0xff]
    %v374 = vld [vmem:[%s1 + $0x9b8] sm:$0xff]
    %v375 = vld [vmem:[%s1 + $0x9c0] sm:$0xff]
    %v376 = vld [vmem:[%s1 + $0x9c8] sm:$0xff]
    %v377 = vld [vmem:[%s1 + $0x9d0] sm:$0xff]
    %v378 = vld [vmem:[%s1 + $0x9d8] sm:$0xff]
    %v379 = vld [vmem:[%s1 + $0x9e0] sm:$0xff]
    %v380 = vld [vmem:[%s1 + $0x9e8] sm:$0xff]
    %v381 = vld [vmem:[%s1 + $0x9f0] sm:$0xff]
    %v382 = vld [vmem:[%s1 + $0x9f8] sm:$0xff]
    %v383 = vld [vmem:[%s1 + $0xa00] sm:$0xff]
    %v384 = vld [vmem:[%s1 + $0xa08] sm:$0xff]
    %v385 = vld [vmem:[%s1 + $0xa10] sm:$0xff]
    %v386 = vld [vmem:[%s1 + $0xa18] sm:$0xff]
    %v387 = vld [vmem:[%s1 + $0xa20] sm:$0xff]
    %v388 = vld [vmem:[%s1 + $0xa28] sm:$0xff]
    %v389 = vld [vmem:[%s1 + $0xa30] sm:$0xff]
    %v390 = vld [vmem:[%s1 + $0xa38] sm:$0xff]
    %v391 = vld [vmem:[%s1 + $0xa40] sm:$0xff]
    %v392 = vld [vmem:[%s1 + $0xa48] sm:$0xff]
    %v393 = vld [vmem:[%s1 + $0xa50] sm:$0xff]
    %v394 = vld [vmem:[%s1 + $0xa58] sm:$0xff]
    %v395 = vld [vmem:[%s1 + $0xa60] sm:$0xff]
    %v396 = vld [vmem:[%s1 + $0xa68] sm:$0xff]
    %v397 = vld [vmem:[%s1 + $0xa70] sm:$0xff]
    %v398 = vld [vmem:[%s1 + $0xa78] sm:$0xff]
    %v399 = vld [vmem:[%s13] ss:$8 sm:$0xf]
    %v400 = vld [vmem:[%s13] ss:$8 sm:$0x30]
    %v401 = vor.u32 %v399, %v400
    %v402 = vpack.c.bf16 %v56, %v49
    %v403 = vpack.c.bf16 %v57, %v50
    %v404 = vpack.c.bf16 %v58, %v51
    %v405 = vpack.c.bf16 %v59, %v52
    %v406 = vpack.c.bf16 %v60, %v53
    %v407 = vpack.c.bf16 %v61, %v54
    %v408 = vpack.c.bf16 %v62, %v55
    %v410 = vlaneseq
    %v411 = vshrl.u32 %v410, 7
    %v412 = vsub.s32 0, %v411
    %v413 = vrot.slane %v401, %v412
    %v414 = vlaneseq
    %v415 = vshrl.u32 %v414, 7
    %v416 = vsub.s32 1, %v415
    %v417 = vrot.slane %v401, %v416
    %v418 = vlaneseq
    %v419 = vshrl.u32 %v418, 7
    %v420 = vsub.s32 2, %v419
    %v421 = vrot.slane %v401, %v420
    %v422 = vlaneseq
    %v423 = vshrl.u32 %v422, 7
    %v424 = vsub.s32 3, %v423
    %v425 = vrot.slane %v401, %v424
    %v426 = vlaneseq
    %v427 = vshrl.u32 %v426, 7
    %v428 = vsub.s32 4, %v427
    %v429 = vrot.slane %v401, %v428
    %v430 = vlaneseq
    %v431 = vshrl.u32 %v430, 7
    %v432 = vsub.s32 5, %v431
    %v433 = vrot.slane %v401, %v432
    %v776 = vunpack.c.l.b16 %v63
    %v777 = vunpack.c.h.b16 %v63
    %v778 = vunpack.c.l.b16 %v64
    %v779 = vunpack.c.h.b16 %v64
    %v780 = vunpack.c.l.b16 %v65
    %v781 = vunpack.c.h.b16 %v65
    %v782 = vunpack.c.l.b16 %v66
    %v783 = vunpack.c.h.b16 %v66
    %v784 = vunpack.c.l.b16 %v67
    %v785 = vunpack.c.h.b16 %v67
    %v786 = vunpack.c.l.b16 %v68
    %v787 = vunpack.c.h.b16 %v68
    %v788 = vunpack.c.l.b16 %v69
    %v789 = vunpack.c.h.b16 %v69
    %v790 = vunpack.c.l.b16 %v70
    %v791 = vunpack.c.h.b16 %v70
    %v792 = vunpack.c.l.b16 %v71
    %v793 = vunpack.c.h.b16 %v71
    %v794 = vunpack.c.l.b16 %v72
    %v795 = vunpack.c.h.b16 %v72
    %v796 = vunpack.c.l.b16 %v73
    %v797 = vunpack.c.h.b16 %v73
    %v798 = vunpack.c.l.b16 %v74
    %v799 = vunpack.c.h.b16 %v74
    %v800 = vunpack.c.l.b16 %v75
    %v801 = vunpack.c.h.b16 %v75
    %v802 = vunpack.c.l.b16 %v76
    %v803 = vunpack.c.h.b16 %v76
    %v804 = vunpack.c.l.b16 %v77
    %v805 = vunpack.c.h.b16 %v77
    %v806 = vunpack.c.l.b16 %v78
    %v807 = vunpack.c.h.b16 %v78
    %v808 = vunpack.c.l.b16 %v79
    %v809 = vunpack.c.h.b16 %v79
    %v810 = vunpack.c.l.b16 %v80
    %v811 = vunpack.c.h.b16 %v80
    %v812 = vunpack.c.l.b16 %v81
    %v813 = vunpack.c.h.b16 %v81
    %v814 = vunpack.c.l.b16 %v82
    %v815 = vunpack.c.h.b16 %v82
    %v816 = vunpack.c.l.b16 %v83
    %v817 = vunpack.c.h.b16 %v83
    %v818 = vunpack.c.l.b16 %v84
    %v819 = vunpack.c.h.b16 %v84
    %v820 = vunpack.c.l.b16 %v85
    %v821 = vunpack.c.h.b16 %v85
    %v822 = vunpack.c.l.b16 %v86
    %v823 = vunpack.c.h.b16 %v86
    %v824 = vunpack.c.l.b16 %v87
    %v825 = vunpack.c.h.b16 %v87
    %v826 = vunpack.c.l.b16 %v88
    %v827 = vunpack.c.h.b16 %v88
    %v828 = vunpack.c.l.b16 %v89
    %v829 = vunpack.c.h.b16 %v89
    %v830 = vunpack.c.l.b16 %v90
    %v831 = vunpack.c.h.b16 %v90
    %v832 = vunpack.c.l.b16 %v91
    %v833 = vunpack.c.h.b16 %v91
    %v834 = vunpack.c.l.b16 %v92
    %v835 = vunpack.c.h.b16 %v92
    %v836 = vunpack.c.l.b16 %v93
    %v837 = vunpack.c.h.b16 %v93
    %v838 = vunpack.c.l.b16 %v94
    %v839 = vunpack.c.h.b16 %v94
    %v840 = vunpack.c.l.b16 %v95
    %v841 = vunpack.c.h.b16 %v95
    %v842 = vunpack.c.l.b16 %v96
    %v843 = vunpack.c.h.b16 %v96
    %v844 = vunpack.c.l.b16 %v97
    %v845 = vunpack.c.h.b16 %v97
    %v846 = vunpack.c.l.b16 %v98
    %v847 = vunpack.c.h.b16 %v98
    %v848 = vunpack.c.l.b16 %v99
    %v849 = vunpack.c.h.b16 %v99
    %v850 = vunpack.c.l.b16 %v100
    %v851 = vunpack.c.h.b16 %v100
    %v852 = vunpack.c.l.b16 %v101
    %v853 = vunpack.c.h.b16 %v101
    %v854 = vunpack.c.l.b16 %v102
    %v855 = vunpack.c.h.b16 %v102
    %v856 = vunpack.c.l.b16 %v103
    %v857 = vunpack.c.h.b16 %v103
    %v858 = vunpack.c.l.b16 %v104
    %v859 = vunpack.c.h.b16 %v104
    %v860 = vunpack.c.l.b16 %v105
    %v861 = vunpack.c.h.b16 %v105
    %v862 = vunpack.c.l.b16 %v106
    %v863 = vunpack.c.h.b16 %v106
    %v864 = vunpack.c.l.b16 %v107
    %v865 = vunpack.c.h.b16 %v107
    %v866 = vunpack.c.l.b16 %v108
    %v867 = vunpack.c.h.b16 %v108
    %v868 = vunpack.c.l.b16 %v109
    %v869 = vunpack.c.h.b16 %v109
    %v870 = vunpack.c.l.b16 %v110
    %v871 = vunpack.c.h.b16 %v110
    %v872 = vunpack.c.l.b16 %v111
    %v873 = vunpack.c.h.b16 %v111
    %v874 = vunpack.c.l.b16 %v112
    %v875 = vunpack.c.h.b16 %v112
    %v876 = vunpack.c.l.b16 %v113
    %v877 = vunpack.c.h.b16 %v113
    %v878 = vunpack.c.l.b16 %v114
    %v879 = vunpack.c.h.b16 %v114
    %v880 = vunpack.c.l.b16 %v115
    %v881 = vunpack.c.h.b16 %v115
    %v882 = vunpack.c.l.b16 %v116
    %v883 = vunpack.c.h.b16 %v116
    %v884 = vunpack.c.l.b16 %v117
    %v885 = vunpack.c.h.b16 %v117
    %v886 = vunpack.c.l.b16 %v118
    %v887 = vunpack.c.h.b16 %v118
    %v888 = vunpack.c.l.b16 %v119
    %v889 = vunpack.c.h.b16 %v119
    %v890 = vunpack.c.l.b16 %v120
    %v891 = vunpack.c.h.b16 %v120
    %v892 = vunpack.c.l.b16 %v121
    %v893 = vunpack.c.h.b16 %v121
    %v894 = vunpack.c.l.b16 %v122
    %v895 = vunpack.c.h.b16 %v122
    %v896 = vunpack.c.l.b16 %v123
    %v897 = vunpack.c.h.b16 %v123
    %v898 = vunpack.c.l.b16 %v124
    %v899 = vunpack.c.h.b16 %v124
    %v900 = vunpack.c.l.b16 %v125
    %v901 = vunpack.c.h.b16 %v125
    %v902 = vunpack.c.l.b16 %v126
    %v903 = vunpack.c.h.b16 %v126
    %v904 = vunpack.c.l.b16 %v127
    %v905 = vunpack.c.h.b16 %v127
    %v906 = vunpack.c.l.b16 %v128
    %v907 = vunpack.c.h.b16 %v128
    %v908 = vunpack.c.l.b16 %v129
    %v909 = vunpack.c.h.b16 %v129
    %v910 = vunpack.c.l.b16 %v130
    %v911 = vunpack.c.h.b16 %v130
    %v912 = vunpack.c.l.b16 %v131
    %v913 = vunpack.c.h.b16 %v131
    %v914 = vunpack.c.l.b16 %v132
    %v915 = vunpack.c.h.b16 %v132
    %v916 = vunpack.c.l.b16 %v133
    %v917 = vunpack.c.h.b16 %v133
    %v918 = vunpack.c.l.b16 %v134
    %v919 = vunpack.c.h.b16 %v134
    %v920 = vunpack.c.l.b16 %v135
    %v921 = vunpack.c.h.b16 %v135
    %v922 = vunpack.c.l.b16 %v136
    %v923 = vunpack.c.h.b16 %v136
    %v924 = vunpack.c.l.b16 %v137
    %v925 = vunpack.c.h.b16 %v137
    %v926 = vunpack.c.l.b16 %v138
    %v927 = vunpack.c.h.b16 %v138
    %v928 = vunpack.c.l.b16 %v139
    %v929 = vunpack.c.h.b16 %v139
    %v930 = vunpack.c.l.b16 %v140
    %v931 = vunpack.c.h.b16 %v140
    %v932 = vunpack.c.l.b16 %v141
    %v933 = vunpack.c.h.b16 %v141
    %v934 = vunpack.c.l.b16 %v142
    %v935 = vunpack.c.h.b16 %v142
    %v936 = vunpack.c.l.b16 %v143
    %v937 = vunpack.c.h.b16 %v143
    %v938 = vunpack.c.l.b16 %v144
    %v939 = vunpack.c.h.b16 %v144
    %v940 = vunpack.c.l.b16 %v145
    %v941 = vunpack.c.h.b16 %v145
    %v942 = vunpack.c.l.b16 %v146
    %v943 = vunpack.c.h.b16 %v146
    %v944 = vunpack.c.l.b16 %v147
    %v945 = vunpack.c.h.b16 %v147
    %v946 = vunpack.c.l.b16 %v148
    %v947 = vunpack.c.h.b16 %v148
    %v948 = vunpack.c.l.b16 %v149
    %v949 = vunpack.c.h.b16 %v149
    %v950 = vunpack.c.l.b16 %v150
    %v951 = vunpack.c.h.b16 %v150
    %v952 = vunpack.c.l.b16 %v151
    %v953 = vunpack.c.h.b16 %v151
    %v954 = vunpack.c.l.b16 %v152
    %v955 = vunpack.c.h.b16 %v152
    %v956 = vunpack.c.l.b16 %v153
    %v957 = vunpack.c.h.b16 %v153
    %v958 = vunpack.c.l.b16 %v154
    %v959 = vunpack.c.h.b16 %v154
    %v960 = vunpack.c.l.b16 %v155
    %v961 = vunpack.c.h.b16 %v155
    %v962 = vunpack.c.l.b16 %v156
    %v963 = vunpack.c.h.b16 %v156
    %v964 = vunpack.c.l.b16 %v157
    %v965 = vunpack.c.h.b16 %v157
    %v966 = vunpack.c.l.b16 %v158
    %v967 = vunpack.c.h.b16 %v158
    %v968 = vunpack.c.l.b16 %v159
    %v969 = vunpack.c.h.b16 %v159
    %v970 = vunpack.c.l.b16 %v160
    %v971 = vunpack.c.h.b16 %v160
    %v972 = vunpack.c.l.b16 %v161
    %v973 = vunpack.c.h.b16 %v161
    %v974 = vunpack.c.l.b16 %v162
    %v975 = vunpack.c.h.b16 %v162
    %v976 = vunpack.c.l.b16 %v163
    %v977 = vunpack.c.h.b16 %v163
    %v978 = vunpack.c.l.b16 %v164
    %v979 = vunpack.c.h.b16 %v164
    %v980 = vunpack.c.l.b16 %v165
    %v981 = vunpack.c.h.b16 %v165
    %v982 = vunpack.c.l.b16 %v166
    %v983 = vunpack.c.h.b16 %v166
    %v984 = vunpack.c.l.b16 %v167
    %v985 = vunpack.c.h.b16 %v167
    %v986 = vunpack.c.l.b16 %v168
    %v987 = vunpack.c.h.b16 %v168
    %v988 = vunpack.c.l.b16 %v169
    %v989 = vunpack.c.h.b16 %v169
    %v990 = vunpack.c.l.b16 %v170
    %v991 = vunpack.c.h.b16 %v170
    %v992 = vunpack.c.l.b16 %v171
    %v993 = vunpack.c.h.b16 %v171
    %v994 = vunpack.c.l.b16 %v172
    %v995 = vunpack.c.h.b16 %v172
    %v996 = vunpack.c.l.b16 %v173
    %v997 = vunpack.c.h.b16 %v173
    %v998 = vunpack.c.l.b16 %v174
    %v999 = vunpack.c.h.b16 %v174
    %v1000 = vunpack.c.l.b16 %v175
    %v1001 = vunpack.c.h.b16 %v175
    %v1002 = vunpack.c.l.b16 %v176
    %v1003 = vunpack.c.h.b16 %v176
    %v1004 = vunpack.c.l.b16 %v177
    %v1005 = vunpack.c.h.b16 %v177
    %v1006 = vunpack.c.l.b16 %v178
    %v1007 = vunpack.c.h.b16 %v178
    %v1008 = vunpack.c.l.b16 %v179
    %v1009 = vunpack.c.h.b16 %v179
    %v1010 = vunpack.c.l.b16 %v180
    %v1011 = vunpack.c.h.b16 %v180
    %v1012 = vunpack.c.l.b16 %v181
    %v1013 = vunpack.c.h.b16 %v181
    %v1014 = vunpack.c.l.b16 %v182
    %v1015 = vunpack.c.h.b16 %v182
    %v1016 = vunpack.c.l.b16 %v183
    %v1017 = vunpack.c.h.b16 %v183
    %v1018 = vunpack.c.l.b16 %v184
    %v1019 = vunpack.c.h.b16 %v184
    %v1020 = vunpack.c.l.b16 %v185
    %v1021 = vunpack.c.h.b16 %v185
    %v1022 = vunpack.c.l.b16 %v186
    %v1023 = vunpack.c.h.b16 %v186
    %v1024 = vunpack.c.l.b16 %v187
    %v1025 = vunpack.c.h.b16 %v187
    %v1026 = vunpack.c.l.b16 %v188
    %v1027 = vunpack.c.h.b16 %v188
    %v1028 = vunpack.c.l.b16 %v189
    %v1029 = vunpack.c.h.b16 %v189
    %v1030 = vunpack.c.l.b16 %v190
    %v1031 = vunpack.c.h.b16 %v190
    %v1032 = vunpack.c.l.b16 %v191
    %v1033 = vunpack.c.h.b16 %v191
    %v1034 = vunpack.c.l.b16 %v192
    %v1035 = vunpack.c.h.b16 %v192
    %v1036 = vunpack.c.l.b16 %v193
    %v1037 = vunpack.c.h.b16 %v193
    %v1038 = vunpack.c.l.b16 %v194
    %v1039 = vunpack.c.h.b16 %v194
    %v1040 = vunpack.c.l.b16 %v195
    %v1041 = vunpack.c.h.b16 %v195
    %v1042 = vunpack.c.l.b16 %v196
    %v1043 = vunpack.c.h.b16 %v196
    %v1044 = vunpack.c.l.b16 %v197
    %v1045 = vunpack.c.h.b16 %v197
    %v1046 = vunpack.c.l.b16 %v198
    %v1047 = vunpack.c.h.b16 %v198
    %v1048 = vunpack.c.l.b16 %v199
    %v1049 = vunpack.c.h.b16 %v199
    %v1050 = vunpack.c.l.b16 %v200
    %v1051 = vunpack.c.h.b16 %v200
    %v1052 = vunpack.c.l.b16 %v201
    %v1053 = vunpack.c.h.b16 %v201
    %v1054 = vunpack.c.l.b16 %v202
    %v1055 = vunpack.c.h.b16 %v202
    %v1056 = vunpack.c.l.b16 %v203
    %v1057 = vunpack.c.h.b16 %v203
    %v1058 = vunpack.c.l.b16 %v204
    %v1059 = vunpack.c.h.b16 %v204
    %v1060 = vunpack.c.l.b16 %v205
    %v1061 = vunpack.c.h.b16 %v205
    %v1062 = vunpack.c.l.b16 %v206
    %v1063 = vunpack.c.h.b16 %v206
    %v1064 = vunpack.c.l.b16 %v207
    %v1065 = vunpack.c.h.b16 %v207
    %v1066 = vunpack.c.l.b16 %v208
    %v1067 = vunpack.c.h.b16 %v208
    %v1068 = vunpack.c.l.b16 %v209
    %v1069 = vunpack.c.h.b16 %v209
    %v1070 = vunpack.c.l.b16 %v210
    %v1071 = vunpack.c.h.b16 %v210
    %v1072 = vunpack.c.l.b16 %v211
    %v1073 = vunpack.c.h.b16 %v211
    %v1074 = vunpack.c.l.b16 %v212
    %v1075 = vunpack.c.h.b16 %v212
    %v1076 = vunpack.c.l.b16 %v213
    %v1077 = vunpack.c.h.b16 %v213
    %v1078 = vunpack.c.l.b16 %v214
    %v1079 = vunpack.c.h.b16 %v214
    %v1080 = vunpack.c.l.b16 %v215
    %v1081 = vunpack.c.h.b16 %v215
    %v1082 = vunpack.c.l.b16 %v216
    %v1083 = vunpack.c.h.b16 %v216
    %v1084 = vunpack.c.l.b16 %v217
    %v1085 = vunpack.c.h.b16 %v217
    %v1086 = vunpack.c.l.b16 %v218
    %v1087 = vunpack.c.h.b16 %v218
    %v1088 = vunpack.c.l.b16 %v219
    %v1089 = vunpack.c.h.b16 %v219
    %v1090 = vunpack.c.l.b16 %v220
    %v1091 = vunpack.c.h.b16 %v220
    %v1092 = vunpack.c.l.b16 %v221
    %v1093 = vunpack.c.h.b16 %v221
    %v1094 = vunpack.c.l.b16 %v222
    %v1095 = vunpack.c.h.b16 %v222
    %v1096 = vunpack.c.l.b16 %v223
    %v1097 = vunpack.c.h.b16 %v223
    %v1098 = vunpack.c.l.b16 %v224
    %v1099 = vunpack.c.h.b16 %v224
    %v1100 = vunpack.c.l.b16 %v225
    %v1101 = vunpack.c.h.b16 %v225
    %v1102 = vunpack.c.l.b16 %v226
    %v1103 = vunpack.c.h.b16 %v226
    %v1104 = vunpack.c.l.b16 %v227
    %v1105 = vunpack.c.h.b16 %v227
    %v1106 = vunpack.c.l.b16 %v228
    %v1107 = vunpack.c.h.b16 %v228
    %v1108 = vunpack.c.l.b16 %v229
    %v1109 = vunpack.c.h.b16 %v229
    %v1110 = vunpack.c.l.b16 %v230
    %v1111 = vunpack.c.h.b16 %v230
    %v1112 = vunpack.c.l.b16 %v231
    %v1113 = vunpack.c.h.b16 %v231
    %v1114 = vunpack.c.l.b16 %v232
    %v1115 = vunpack.c.h.b16 %v232
    %v1116 = vunpack.c.l.b16 %v233
    %v1117 = vunpack.c.h.b16 %v233
    %v1118 = vunpack.c.l.b16 %v234
    %v1119 = vunpack.c.h.b16 %v234
    %v1120 = vunpack.c.l.b16 %v235
    %v1121 = vunpack.c.h.b16 %v235
    %v1122 = vunpack.c.l.b16 %v236
    %v1123 = vunpack.c.h.b16 %v236
    %v1124 = vunpack.c.l.b16 %v237
    %v1125 = vunpack.c.h.b16 %v237
    %v1126 = vunpack.c.l.b16 %v238
    %v1127 = vunpack.c.h.b16 %v238
    %v1128 = vunpack.c.l.b16 %v239
    %v1129 = vunpack.c.h.b16 %v239
    %v1130 = vunpack.c.l.b16 %v240
    %v1131 = vunpack.c.h.b16 %v240
    %v1132 = vunpack.c.l.b16 %v241
    %v1133 = vunpack.c.h.b16 %v241
    %v1134 = vunpack.c.l.b16 %v242
    %v1135 = vunpack.c.h.b16 %v242
    %v1136 = vunpack.c.l.b16 %v243
    %v1137 = vunpack.c.h.b16 %v243
    %v1138 = vunpack.c.l.b16 %v244
    %v1139 = vunpack.c.h.b16 %v244
    %v1140 = vunpack.c.l.b16 %v245
    %v1141 = vunpack.c.h.b16 %v245
    %v1142 = vunpack.c.l.b16 %v246
    %v1143 = vunpack.c.h.b16 %v246
    %v1144 = vunpack.c.l.b16 %v247
    %v1145 = vunpack.c.h.b16 %v247
    %v1146 = vunpack.c.l.b16 %v248
    %v1147 = vunpack.c.h.b16 %v248
    %v1148 = vunpack.c.l.b16 %v249
    %v1149 = vunpack.c.h.b16 %v249
    %v1150 = vunpack.c.l.b16 %v250
    %v1151 = vunpack.c.h.b16 %v250
    %v1152 = vunpack.c.l.b16 %v251
    %v1153 = vunpack.c.h.b16 %v251
    %v1154 = vunpack.c.l.b16 %v252
    %v1155 = vunpack.c.h.b16 %v252
    %v1156 = vunpack.c.l.b16 %v253
    %v1157 = vunpack.c.h.b16 %v253
    %v1158 = vunpack.c.l.b16 %v254
    %v1159 = vunpack.c.h.b16 %v254
    %v1160 = vunpack.c.l.b16 %v255
    %v1161 = vunpack.c.h.b16 %v255
    %v1162 = vunpack.c.l.b16 %v256
    %v1163 = vunpack.c.h.b16 %v256
    %v1164 = vunpack.c.l.b16 %v257
    %v1165 = vunpack.c.h.b16 %v257
    %v1166 = vunpack.c.l.b16 %v258
    %v1167 = vunpack.c.h.b16 %v258
    %v1168 = vunpack.c.l.b16 %v259
    %v1169 = vunpack.c.h.b16 %v259
    %v1170 = vunpack.c.l.b16 %v260
    %v1171 = vunpack.c.h.b16 %v260
    %v1172 = vunpack.c.l.b16 %v261
    %v1173 = vunpack.c.h.b16 %v261
    %v1174 = vunpack.c.l.b16 %v262
    %v1175 = vunpack.c.h.b16 %v262
    %v1176 = vunpack.c.l.b16 %v263
    %v1177 = vunpack.c.h.b16 %v263
    %v1178 = vunpack.c.l.b16 %v264
    %v1179 = vunpack.c.h.b16 %v264
    %v1180 = vunpack.c.l.b16 %v265
    %v1181 = vunpack.c.h.b16 %v265
    %v1182 = vunpack.c.l.b16 %v266
    %v1183 = vunpack.c.h.b16 %v266
    %v1184 = vunpack.c.l.b16 %v267
    %v1185 = vunpack.c.h.b16 %v267
    %v1186 = vunpack.c.l.b16 %v268
    %v1187 = vunpack.c.h.b16 %v268
    %v1188 = vunpack.c.l.b16 %v269
    %v1189 = vunpack.c.h.b16 %v269
    %v1190 = vunpack.c.l.b16 %v270
    %v1191 = vunpack.c.h.b16 %v270
    %v1192 = vunpack.c.l.b16 %v271
    %v1193 = vunpack.c.h.b16 %v271
    %v1194 = vunpack.c.l.b16 %v272
    %v1195 = vunpack.c.h.b16 %v272
    %v1196 = vunpack.c.l.b16 %v273
    %v1197 = vunpack.c.h.b16 %v273
    %v1198 = vunpack.c.l.b16 %v274
    %v1199 = vunpack.c.h.b16 %v274
    %v1200 = vunpack.c.l.b16 %v275
    %v1201 = vunpack.c.h.b16 %v275
    %v1202 = vunpack.c.l.b16 %v276
    %v1203 = vunpack.c.h.b16 %v276
    %v1204 = vunpack.c.l.b16 %v277
    %v1205 = vunpack.c.h.b16 %v277
    %v1206 = vunpack.c.l.b16 %v278
    %v1207 = vunpack.c.h.b16 %v278
    %v1208 = vunpack.c.l.b16 %v279
    %v1209 = vunpack.c.h.b16 %v279
    %v1210 = vunpack.c.l.b16 %v280
    %v1211 = vunpack.c.h.b16 %v280
    %v1212 = vunpack.c.l.b16 %v281
    %v1213 = vunpack.c.h.b16 %v281
    %v1214 = vunpack.c.l.b16 %v282
    %v1215 = vunpack.c.h.b16 %v282
    %v1216 = vunpack.c.l.b16 %v283
    %v1217 = vunpack.c.h.b16 %v283
    %v1218 = vunpack.c.l.b16 %v284
    %v1219 = vunpack.c.h.b16 %v284
    %v1220 = vunpack.c.l.b16 %v285
    %v1221 = vunpack.c.h.b16 %v285
    %v1222 = vunpack.c.l.b16 %v286
    %v1223 = vunpack.c.h.b16 %v286
    %v1224 = vunpack.c.l.b16 %v287
    %v1225 = vunpack.c.h.b16 %v287
    %v1226 = vunpack.c.l.b16 %v288
    %v1227 = vunpack.c.h.b16 %v288
    %v1228 = vunpack.c.l.b16 %v289
    %v1229 = vunpack.c.h.b16 %v289
    %v1230 = vunpack.c.l.b16 %v290
    %v1231 = vunpack.c.h.b16 %v290
    %v1232 = vunpack.c.l.b16 %v291
    %v1233 = vunpack.c.h.b16 %v291
    %v1234 = vunpack.c.l.b16 %v292
    %v1235 = vunpack.c.h.b16 %v292
    %v1236 = vunpack.c.l.b16 %v293
    %v1237 = vunpack.c.h.b16 %v293
    %v1238 = vunpack.c.l.b16 %v294
    %v1239 = vunpack.c.h.b16 %v294
    %v1240 = vunpack.c.l.b16 %v295
    %v1241 = vunpack.c.h.b16 %v295
    %v1242 = vunpack.c.l.b16 %v296
    %v1243 = vunpack.c.h.b16 %v296
    %v1244 = vunpack.c.l.b16 %v297
    %v1245 = vunpack.c.h.b16 %v297
    %v1246 = vunpack.c.l.b16 %v298
    %v1247 = vunpack.c.h.b16 %v298
    %v1248 = vunpack.c.l.b16 %v299
    %v1249 = vunpack.c.h.b16 %v299
    %v1250 = vunpack.c.l.b16 %v300
    %v1251 = vunpack.c.h.b16 %v300
    %v1252 = vunpack.c.l.b16 %v301
    %v1253 = vunpack.c.h.b16 %v301
    %v1254 = vunpack.c.l.b16 %v302
    %v1255 = vunpack.c.h.b16 %v302
    %v1256 = vunpack.c.l.b16 %v303
    %v1257 = vunpack.c.h.b16 %v303
    %v1258 = vunpack.c.l.b16 %v304
    %v1259 = vunpack.c.h.b16 %v304
    %v1260 = vunpack.c.l.b16 %v305
    %v1261 = vunpack.c.h.b16 %v305
    %v1262 = vunpack.c.l.b16 %v306
    %v1263 = vunpack.c.h.b16 %v306
    %v1264 = vunpack.c.l.b16 %v307
    %v1265 = vunpack.c.h.b16 %v307
    %v1266 = vunpack.c.l.b16 %v308
    %v1267 = vunpack.c.h.b16 %v308
    %v1268 = vunpack.c.l.b16 %v309
    %v1269 = vunpack.c.h.b16 %v309
    %v1270 = vunpack.c.l.b16 %v310
    %v1271 = vunpack.c.h.b16 %v310
    %v1272 = vunpack.c.l.b16 %v311
    %v1273 = vunpack.c.h.b16 %v311
    %v1274 = vunpack.c.l.b16 %v312
    %v1275 = vunpack.c.h.b16 %v312
    %v1276 = vunpack.c.l.b16 %v313
    %v1277 = vunpack.c.h.b16 %v313
    %v1278 = vunpack.c.l.b16 %v314
    %v1279 = vunpack.c.h.b16 %v314
    %v1280 = vunpack.c.l.b16 %v315
    %v1281 = vunpack.c.h.b16 %v315
    %v1282 = vunpack.c.l.b16 %v316
    %v1283 = vunpack.c.h.b16 %v316
    %v1284 = vunpack.c.l.b16 %v317
    %v1285 = vunpack.c.h.b16 %v317
    %v1286 = vunpack.c.l.b16 %v318
    %v1287 = vunpack.c.h.b16 %v318
    %v1288 = vunpack.c.l.b16 %v319
    %v1289 = vunpack.c.h.b16 %v319
    %v1290 = vunpack.c.l.b16 %v320
    %v1291 = vunpack.c.h.b16 %v320
    %v1292 = vunpack.c.l.b16 %v321
    %v1293 = vunpack.c.h.b16 %v321
    %v1294 = vunpack.c.l.b16 %v322
    %v1295 = vunpack.c.h.b16 %v322
    %v1296 = vunpack.c.l.b16 %v323
    %v1297 = vunpack.c.h.b16 %v323
    %v1298 = vunpack.c.l.b16 %v324
    %v1299 = vunpack.c.h.b16 %v324
    %v1300 = vunpack.c.l.b16 %v325
    %v1301 = vunpack.c.h.b16 %v325
    %v1302 = vunpack.c.l.b16 %v326
    %v1303 = vunpack.c.h.b16 %v326
    %v1304 = vunpack.c.l.b16 %v327
    %v1305 = vunpack.c.h.b16 %v327
    %v1306 = vunpack.c.l.b16 %v328
    %v1307 = vunpack.c.h.b16 %v328
    %v1308 = vunpack.c.l.b16 %v329
    %v1309 = vunpack.c.h.b16 %v329
    %v1310 = vunpack.c.l.b16 %v330
    %v1311 = vunpack.c.h.b16 %v330
    %v1312 = vunpack.c.l.b16 %v331
    %v1313 = vunpack.c.h.b16 %v331
    %v1314 = vunpack.c.l.b16 %v332
    %v1315 = vunpack.c.h.b16 %v332
    %v1316 = vunpack.c.l.b16 %v333
    %v1317 = vunpack.c.h.b16 %v333
    %v1318 = vunpack.c.l.b16 %v334
    %v1319 = vunpack.c.h.b16 %v334
    %v1320 = vunpack.c.l.b16 %v335
    %v1321 = vunpack.c.h.b16 %v335
    %v1322 = vunpack.c.l.b16 %v336
    %v1323 = vunpack.c.h.b16 %v336
    %v1324 = vunpack.c.l.b16 %v337
    %v1325 = vunpack.c.h.b16 %v337
    %v1326 = vunpack.c.l.b16 %v338
    %v1327 = vunpack.c.h.b16 %v338
    %v1328 = vunpack.c.l.b16 %v339
    %v1329 = vunpack.c.h.b16 %v339
    %v1330 = vunpack.c.l.b16 %v340
    %v1331 = vunpack.c.h.b16 %v340
    %v1332 = vunpack.c.l.b16 %v341
    %v1333 = vunpack.c.h.b16 %v341
    %v1334 = vunpack.c.l.b16 %v342
    %v1335 = vunpack.c.h.b16 %v342
    %v1336 = vunpack.c.l.b16 %v343
    %v1337 = vunpack.c.h.b16 %v343
    %v1338 = vunpack.c.l.b16 %v344
    %v1339 = vunpack.c.h.b16 %v344
    %v1340 = vunpack.c.l.b16 %v345
    %v1341 = vunpack.c.h.b16 %v345
    %v1342 = vunpack.c.l.b16 %v346
    %v1343 = vunpack.c.h.b16 %v346
    %v1344 = vunpack.c.l.b16 %v347
    %v1345 = vunpack.c.h.b16 %v347
    %v1346 = vunpack.c.l.b16 %v348
    %v1347 = vunpack.c.h.b16 %v348
    %v1348 = vunpack.c.l.b16 %v349
    %v1349 = vunpack.c.h.b16 %v349
    %v1350 = vunpack.c.l.b16 %v350
    %v1351 = vunpack.c.h.b16 %v350
    %v1352 = vunpack.c.l.b16 %v351
    %v1353 = vunpack.c.h.b16 %v351
    %v1354 = vunpack.c.l.b16 %v352
    %v1355 = vunpack.c.h.b16 %v352
    %v1356 = vunpack.c.l.b16 %v353
    %v1357 = vunpack.c.h.b16 %v353
    %v1358 = vunpack.c.l.b16 %v354
    %v1359 = vunpack.c.h.b16 %v354
    %v1360 = vunpack.c.l.b16 %v355
    %v1361 = vunpack.c.h.b16 %v355
    %v1362 = vunpack.c.l.b16 %v356
    %v1363 = vunpack.c.h.b16 %v356
    %v1364 = vunpack.c.l.b16 %v357
    %v1365 = vunpack.c.h.b16 %v357
    %v1366 = vunpack.c.l.b16 %v358
    %v1367 = vunpack.c.h.b16 %v358
    %v1368 = vunpack.c.l.b16 %v359
    %v1369 = vunpack.c.h.b16 %v359
    %v1370 = vunpack.c.l.b16 %v360
    %v1371 = vunpack.c.h.b16 %v360
    %v1372 = vunpack.c.l.b16 %v361
    %v1373 = vunpack.c.h.b16 %v361
    %v1374 = vunpack.c.l.b16 %v362
    %v1375 = vunpack.c.h.b16 %v362
    %v1376 = vunpack.c.l.b16 %v363
    %v1377 = vunpack.c.h.b16 %v363
    %v1378 = vunpack.c.l.b16 %v364
    %v1379 = vunpack.c.h.b16 %v364
    %v1380 = vunpack.c.l.b16 %v365
    %v1381 = vunpack.c.h.b16 %v365
    %v1382 = vunpack.c.l.b16 %v366
    %v1383 = vunpack.c.h.b16 %v366
    %v1384 = vunpack.c.l.b16 %v367
    %v1385 = vunpack.c.h.b16 %v367
    %v1386 = vunpack.c.l.b16 %v368
    %v1387 = vunpack.c.h.b16 %v368
    %v1388 = vunpack.c.l.b16 %v369
    %v1389 = vunpack.c.h.b16 %v369
    %v1390 = vunpack.c.l.b16 %v370
    %v1391 = vunpack.c.h.b16 %v370
    %v1392 = vunpack.c.l.b16 %v371
    %v1393 = vunpack.c.h.b16 %v371
    %v1394 = vunpack.c.l.b16 %v372
    %v1395 = vunpack.c.h.b16 %v372
    %v1396 = vunpack.c.l.b16 %v373
    %v1397 = vunpack.c.h.b16 %v373
    %v1398 = vunpack.c.l.b16 %v374
    %v1399 = vunpack.c.h.b16 %v374
    %v1400 = vunpack.c.l.b16 %v375
    %v1401 = vunpack.c.h.b16 %v375
    %v1402 = vunpack.c.l.b16 %v376
    %v1403 = vunpack.c.h.b16 %v376
    %v1404 = vunpack.c.l.b16 %v377
    %v1405 = vunpack.c.h.b16 %v377
    %v1406 = vunpack.c.l.b16 %v378
    %v1407 = vunpack.c.h.b16 %v378
    %v1408 = vunpack.c.l.b16 %v379
    %v1409 = vunpack.c.h.b16 %v379
    %v1410 = vunpack.c.l.b16 %v380
    %v1411 = vunpack.c.h.b16 %v380
    %v1412 = vunpack.c.l.b16 %v381
    %v1413 = vunpack.c.h.b16 %v381
    %v1414 = vunpack.c.l.b16 %v382
    %v1415 = vunpack.c.h.b16 %v382
    %v1416 = vunpack.c.l.b16 %v383
    %v1417 = vunpack.c.h.b16 %v383
    %v1418 = vunpack.c.l.b16 %v384
    %v1419 = vunpack.c.h.b16 %v384
    %v1420 = vunpack.c.l.b16 %v385
    %v1421 = vunpack.c.h.b16 %v385
    %v1422 = vunpack.c.l.b16 %v386
    %v1423 = vunpack.c.h.b16 %v386
    %v1424 = vunpack.c.l.b16 %v387
    %v1425 = vunpack.c.h.b16 %v387
    %v1426 = vunpack.c.l.b16 %v388
    %v1427 = vunpack.c.h.b16 %v388
    %v1428 = vunpack.c.l.b16 %v389
    %v1429 = vunpack.c.h.b16 %v389
    %v1430 = vunpack.c.l.b16 %v390
    %v1431 = vunpack.c.h.b16 %v390
    %v1432 = vunpack.c.l.b16 %v391
    %v1433 = vunpack.c.h.b16 %v391
    %v1434 = vunpack.c.l.b16 %v392
    %v1435 = vunpack.c.h.b16 %v392
    %v1436 = vunpack.c.l.b16 %v393
    %v1437 = vunpack.c.h.b16 %v393
    %v1438 = vunpack.c.l.b16 %v394
    %v1439 = vunpack.c.h.b16 %v394
    %v1440 = vunpack.c.l.b16 %v395
    %v1441 = vunpack.c.h.b16 %v395
    %v1442 = vunpack.c.l.b16 %v396
    %v1443 = vunpack.c.h.b16 %v396
    %v1444 = vunpack.c.l.b16 %v397
    %v1445 = vunpack.c.h.b16 %v397
    %v1446 = vunpack.c.l.b16 %v398
    %v1447 = vunpack.c.h.b16 %v398
    %v1448 = vpack.c.b16 %v782, %v776
    %v1449 = vpack.c.b16 %v783, %v777
    %v1450 = vpack.c.b16 %v784, %v778
    %v1451 = vpack.c.b16 %v785, %v779
    %v1452 = vpack.c.b16 %v786, %v780
    %v1453 = vpack.c.b16 %v787, %v781
    %v1454 = vpack.c.b16 %v794, %v788
    %v1455 = vpack.c.b16 %v795, %v789
    %v1456 = vpack.c.b16 %v796, %v790
    %v1457 = vpack.c.b16 %v797, %v791
    %v1458 = vpack.c.b16 %v798, %v792
    %v1459 = vpack.c.b16 %v799, %v793
    %v1460 = vpack.c.b16 %v806, %v800
    %v1461 = vpack.c.b16 %v807, %v801
    %v1462 = vpack.c.b16 %v808, %v802
    %v1463 = vpack.c.b16 %v809, %v803
    %v1464 = vpack.c.b16 %v810, %v804
    %v1465 = vpack.c.b16 %v811, %v805
    %v1466 = vpack.c.b16 %v818, %v812
    %v1467 = vpack.c.b16 %v819, %v813
    %v1468 = vpack.c.b16 %v820, %v814
    %v1469 = vpack.c.b16 %v821, %v815
    %v1470 = vpack.c.b16 %v822, %v816
    %v1471 = vpack.c.b16 %v823, %v817
    %v1472 = vpack.c.b16 %v830, %v824
    %v1473 = vpack.c.b16 %v831, %v825
    %v1474 = vpack.c.b16 %v832, %v826
    %v1475 = vpack.c.b16 %v833, %v827
    %v1476 = vpack.c.b16 %v834, %v828
    %v1477 = vpack.c.b16 %v835, %v829
    %v1478 = vpack.c.b16 %v842, %v836
    %v1479 = vpack.c.b16 %v843, %v837
    %v1480 = vpack.c.b16 %v844, %v838
    %v1481 = vpack.c.b16 %v845, %v839
    %v1482 = vpack.c.b16 %v846, %v840
    %v1483 = vpack.c.b16 %v847, %v841
    %v1484 = vpack.c.b16 %v854, %v848
    %v1485 = vpack.c.b16 %v855, %v849
    %v1486 = vpack.c.b16 %v856, %v850
    %v1487 = vpack.c.b16 %v857, %v851
    %v1488 = vpack.c.b16 %v858, %v852
    %v1489 = vpack.c.b16 %v859, %v853
    %v1490 = vpack.c.b16 %v866, %v860
    %v1491 = vpack.c.b16 %v867, %v861
    %v1492 = vpack.c.b16 %v868, %v862
    %v1493 = vpack.c.b16 %v869, %v863
    %v1494 = vpack.c.b16 %v870, %v864
    %v1495 = vpack.c.b16 %v871, %v865
    %v1496 = vpack.c.b16 %v878, %v872
    %v1497 = vpack.c.b16 %v879, %v873
    %v1498 = vpack.c.b16 %v880, %v874
    %v1499 = vpack.c.b16 %v881, %v875
    %v1500 = vpack.c.b16 %v882, %v876
    %v1501 = vpack.c.b16 %v883, %v877
    %v1502 = vpack.c.b16 %v890, %v884
    %v1503 = vpack.c.b16 %v891, %v885
    %v1504 = vpack.c.b16 %v892, %v886
    %v1505 = vpack.c.b16 %v893, %v887
    %v1506 = vpack.c.b16 %v894, %v888
    %v1507 = vpack.c.b16 %v895, %v889
    %v1508 = vpack.c.b16 %v902, %v896
    %v1509 = vpack.c.b16 %v903, %v897
    %v1510 = vpack.c.b16 %v904, %v898
    %v1511 = vpack.c.b16 %v905, %v899
    %v1512 = vpack.c.b16 %v906, %v900
    %v1513 = vpack.c.b16 %v907, %v901
    %v1514 = vpack.c.b16 %v914, %v908
    %v1515 = vpack.c.b16 %v915, %v909
    %v1516 = vpack.c.b16 %v916, %v910
    %v1517 = vpack.c.b16 %v917, %v911
    %v1518 = vpack.c.b16 %v918, %v912
    %v1519 = vpack.c.b16 %v919, %v913
    %v1520 = vpack.c.b16 %v926, %v920
    %v1521 = vpack.c.b16 %v927, %v921
    %v1522 = vpack.c.b16 %v928, %v922
    %v1523 = vpack.c.b16 %v929, %v923
    %v1524 = vpack.c.b16 %v930, %v924
    %v1525 = vpack.c.b16 %v931, %v925
    %v1526 = vpack.c.b16 %v938, %v932
    %v1527 = vpack.c.b16 %v939, %v933
    %v1528 = vpack.c.b16 %v940, %v934
    %v1529 = vpack.c.b16 %v941, %v935
    %v1530 = vpack.c.b16 %v942, %v936
    %v1531 = vpack.c.b16 %v943, %v937
    %v1532 = vpack.c.b16 %v950, %v944
    %v1533 = vpack.c.b16 %v951, %v945
    %v1534 = vpack.c.b16 %v952, %v946
    %v1535 = vpack.c.b16 %v953, %v947
    %v1536 = vpack.c.b16 %v954, %v948
    %v1537 = vpack.c.b16 %v955, %v949
    %v1538 = vpack.c.b16 %v962, %v956
    %v1539 = vpack.c.b16 %v963, %v957
    %v1540 = vpack.c.b16 %v964, %v958
    %v1541 = vpack.c.b16 %v965, %v959
    %v1542 = vpack.c.b16 %v966, %v960
    %v1543 = vpack.c.b16 %v967, %v961
    %v1544 = vpack.c.b16 %v974, %v968
    %v1545 = vpack.c.b16 %v975, %v969
    %v1546 = vpack.c.b16 %v976, %v970
    %v1547 = vpack.c.b16 %v977, %v971
    %v1548 = vpack.c.b16 %v978, %v972
    %v1549 = vpack.c.b16 %v979, %v973
    %v1550 = vpack.c.b16 %v986, %v980
    %v1551 = vpack.c.b16 %v987, %v981
    %v1552 = vpack.c.b16 %v988, %v982
    %v1553 = vpack.c.b16 %v989, %v983
    %v1554 = vpack.c.b16 %v990, %v984
    %v1555 = vpack.c.b16 %v991, %v985
    %v1556 = vpack.c.b16 %v998, %v992
    %v1557 = vpack.c.b16 %v999, %v993
    %v1558 = vpack.c.b16 %v1000, %v994
    %v1559 = vpack.c.b16 %v1001, %v995
    %v1560 = vpack.c.b16 %v1002, %v996
    %v1561 = vpack.c.b16 %v1003, %v997
    %v1562 = vpack.c.b16 %v1010, %v1004
    %v1563 = vpack.c.b16 %v1011, %v1005
    %v1564 = vpack.c.b16 %v1012, %v1006
    %v1565 = vpack.c.b16 %v1013, %v1007
    %v1566 = vpack.c.b16 %v1014, %v1008
    %v1567 = vpack.c.b16 %v1015, %v1009
    %v1568 = vpack.c.b16 %v1022, %v1016
    %v1569 = vpack.c.b16 %v1023, %v1017
    %v1570 = vpack.c.b16 %v1024, %v1018
    %v1571 = vpack.c.b16 %v1025, %v1019
    %v1572 = vpack.c.b16 %v1026, %v1020
    %v1573 = vpack.c.b16 %v1027, %v1021
    %v1574 = vpack.c.b16 %v1034, %v1028
    %v1575 = vpack.c.b16 %v1035, %v1029
    %v1576 = vpack.c.b16 %v1036, %v1030
    %v1577 = vpack.c.b16 %v1037, %v1031
    %v1578 = vpack.c.b16 %v1038, %v1032
    %v1579 = vpack.c.b16 %v1039, %v1033
    %v1580 = vpack.c.b16 %v1046, %v1040
    %v1581 = vpack.c.b16 %v1047, %v1041
    %v1582 = vpack.c.b16 %v1048, %v1042
    %v1583 = vpack.c.b16 %v1049, %v1043
    %v1584 = vpack.c.b16 %v1050, %v1044
    %v1585 = vpack.c.b16 %v1051, %v1045
    %v1586 = vpack.c.b16 %v1058, %v1052
    %v1587 = vpack.c.b16 %v1059, %v1053
    %v1588 = vpack.c.b16 %v1060, %v1054
    %v1589 = vpack.c.b16 %v1061, %v1055
    %v1590 = vpack.c.b16 %v1062, %v1056
    %v1591 = vpack.c.b16 %v1063, %v1057
    %v1592 = vpack.c.b16 %v1070, %v1064
    %v1593 = vpack.c.b16 %v1071, %v1065
    %v1594 = vpack.c.b16 %v1072, %v1066
    %v1595 = vpack.c.b16 %v1073, %v1067
    %v1596 = vpack.c.b16 %v1074, %v1068
    %v1597 = vpack.c.b16 %v1075, %v1069
    %v1598 = vpack.c.b16 %v1082, %v1076
    %v1599 = vpack.c.b16 %v1083, %v1077
    %v1600 = vpack.c.b16 %v1084, %v1078
    %v1601 = vpack.c.b16 %v1085, %v1079
    %v1602 = vpack.c.b16 %v1086, %v1080
    %v1603 = vpack.c.b16 %v1087, %v1081
    %v1604 = vpack.c.b16 %v1094, %v1088
    %v1605 = vpack.c.b16 %v1095, %v1089
    %v1606 = vpack.c.b16 %v1096, %v1090
    %v1607 = vpack.c.b16 %v1097, %v1091
    %v1608 = vpack.c.b16 %v1098, %v1092
    %v1609 = vpack.c.b16 %v1099, %v1093
    %v1610 = vpack.c.b16 %v1106, %v1100
    %v1611 = vpack.c.b16 %v1107, %v1101
    %v1612 = vpack.c.b16 %v1108, %v1102
    %v1613 = vpack.c.b16 %v1109, %v1103
    %v1614 = vpack.c.b16 %v1110, %v1104
    %v1615 = vpack.c.b16 %v1111, %v1105
    %v1616 = vpack.c.b16 %v1118, %v1112
    %v1617 = vpack.c.b16 %v1119, %v1113
    %v1618 = vpack.c.b16 %v1120, %v1114
    %v1619 = vpack.c.b16 %v1121, %v1115
    %v1620 = vpack.c.b16 %v1122, %v1116
    %v1621 = vpack.c.b16 %v1123, %v1117
    %v1622 = vpack.c.b16 %v1130, %v1124
    %v1623 = vpack.c.b16 %v1131, %v1125
    %v1624 = vpack.c.b16 %v1132, %v1126
    %v1625 = vpack.c.b16 %v1133, %v1127
    %v1626 = vpack.c.b16 %v1134, %v1128
    %v1627 = vpack.c.b16 %v1135, %v1129
    %v1628 = vpack.c.b16 %v1142, %v1136
    %v1629 = vpack.c.b16 %v1143, %v1137
    %v1630 = vpack.c.b16 %v1144, %v1138
    %v1631 = vpack.c.b16 %v1145, %v1139
    %v1632 = vpack.c.b16 %v1146, %v1140
    %v1633 = vpack.c.b16 %v1147, %v1141
    %v1634 = vpack.c.b16 %v1154, %v1148
    %v1635 = vpack.c.b16 %v1155, %v1149
    %v1636 = vpack.c.b16 %v1156, %v1150
    %v1637 = vpack.c.b16 %v1157, %v1151
    %v1638 = vpack.c.b16 %v1158, %v1152
    %v1639 = vpack.c.b16 %v1159, %v1153
    %v1640 = vpack.c.b16 %v1166, %v1160
    %v1641 = vpack.c.b16 %v1167, %v1161
    %v1642 = vpack.c.b16 %v1168, %v1162
    %v1643 = vpack.c.b16 %v1169, %v1163
    %v1644 = vpack.c.b16 %v1170, %v1164
    %v1645 = vpack.c.b16 %v1171, %v1165
    %v1646 = vpack.c.b16 %v1178, %v1172
    %v1647 = vpack.c.b16 %v1179, %v1173
    %v1648 = vpack.c.b16 %v1180, %v1174
    %v1649 = vpack.c.b16 %v1181, %v1175
    %v1650 = vpack.c.b16 %v1182, %v1176
    %v1651 = vpack.c.b16 %v1183, %v1177
    %v1652 = vpack.c.b16 %v1190, %v1184
    %v1653 = vpack.c.b16 %v1191, %v1185
    %v1654 = vpack.c.b16 %v1192, %v1186
    %v1655 = vpack.c.b16 %v1193, %v1187
    %v1656 = vpack.c.b16 %v1194, %v1188
    %v1657 = vpack.c.b16 %v1195, %v1189
    %v1658 = vpack.c.b16 %v1202, %v1196
    %v1659 = vpack.c.b16 %v1203, %v1197
    %v1660 = vpack.c.b16 %v1204, %v1198
    %v1661 = vpack.c.b16 %v1205, %v1199
    %v1662 = vpack.c.b16 %v1206, %v1200
    %v1663 = vpack.c.b16 %v1207, %v1201
    %v1664 = vpack.c.b16 %v1214, %v1208
    %v1665 = vpack.c.b16 %v1215, %v1209
    %v1666 = vpack.c.b16 %v1216, %v1210
    %v1667 = vpack.c.b16 %v1217, %v1211
    %v1668 = vpack.c.b16 %v1218, %v1212
    %v1669 = vpack.c.b16 %v1219, %v1213
    %v1670 = vpack.c.b16 %v1226, %v1220
    %v1671 = vpack.c.b16 %v1227, %v1221
    %v1672 = vpack.c.b16 %v1228, %v1222
    %v1673 = vpack.c.b16 %v1229, %v1223
    %v1674 = vpack.c.b16 %v1230, %v1224
    %v1675 = vpack.c.b16 %v1231, %v1225
    %v1676 = vpack.c.b16 %v1238, %v1232
    %v1677 = vpack.c.b16 %v1239, %v1233
    %v1678 = vpack.c.b16 %v1240, %v1234
    %v1679 = vpack.c.b16 %v1241, %v1235
    %v1680 = vpack.c.b16 %v1242, %v1236
    %v1681 = vpack.c.b16 %v1243, %v1237
    %v1682 = vpack.c.b16 %v1250, %v1244
    %v1683 = vpack.c.b16 %v1251, %v1245
    %v1684 = vpack.c.b16 %v1252, %v1246
    %v1685 = vpack.c.b16 %v1253, %v1247
    %v1686 = vpack.c.b16 %v1254, %v1248
    %v1687 = vpack.c.b16 %v1255, %v1249
    %v1688 = vpack.c.b16 %v1262, %v1256
    %v1689 = vpack.c.b16 %v1263, %v1257
    %v1690 = vpack.c.b16 %v1264, %v1258
    %v1691 = vpack.c.b16 %v1265, %v1259
    %v1692 = vpack.c.b16 %v1266, %v1260
    %v1693 = vpack.c.b16 %v1267, %v1261
    %v1694 = vpack.c.b16 %v1274, %v1268
    %v1695 = vpack.c.b16 %v1275, %v1269
    %v1696 = vpack.c.b16 %v1276, %v1270
    %v1697 = vpack.c.b16 %v1277, %v1271
    %v1698 = vpack.c.b16 %v1278, %v1272
    %v1699 = vpack.c.b16 %v1279, %v1273
    %v1700 = vpack.c.b16 %v1286, %v1280
    %v1701 = vpack.c.b16 %v1287, %v1281
    %v1702 = vpack.c.b16 %v1288, %v1282
    %v1703 = vpack.c.b16 %v1289, %v1283
    %v1704 = vpack.c.b16 %v1290, %v1284
    %v1705 = vpack.c.b16 %v1291, %v1285
    %v1706 = vpack.c.b16 %v1298, %v1292
    %v1707 = vpack.c.b16 %v1299, %v1293
    %v1708 = vpack.c.b16 %v1300, %v1294
    %v1709 = vpack.c.b16 %v1301, %v1295
    %v1710 = vpack.c.b16 %v1302, %v1296
    %v1711 = vpack.c.b16 %v1303, %v1297
    %v1712 = vpack.c.b16 %v1310, %v1304
    %v1713 = vpack.c.b16 %v1311, %v1305
    %v1714 = vpack.c.b16 %v1312, %v1306
    %v1715 = vpack.c.b16 %v1313, %v1307
    %v1716 = vpack.c.b16 %v1314, %v1308
    %v1717 = vpack.c.b16 %v1315, %v1309
    %v1718 = vpack.c.b16 %v1322, %v1316
    %v1719 = vpack.c.b16 %v1323, %v1317
    %v1720 = vpack.c.b16 %v1324, %v1318
    %v1721 = vpack.c.b16 %v1325, %v1319
    %v1722 = vpack.c.b16 %v1326, %v1320
    %v1723 = vpack.c.b16 %v1327, %v1321
    %v1724 = vpack.c.b16 %v1334, %v1328
    %v1725 = vpack.c.b16 %v1335, %v1329
    %v1726 = vpack.c.b16 %v1336, %v1330
    %v1727 = vpack.c.b16 %v1337, %v1331
    %v1728 = vpack.c.b16 %v1338, %v1332
    %v1729 = vpack.c.b16 %v1339, %v1333
    %v1730 = vpack.c.b16 %v1346, %v1340
    %v1731 = vpack.c.b16 %v1347, %v1341
    %v1732 = vpack.c.b16 %v1348, %v1342
    %v1733 = vpack.c.b16 %v1349, %v1343
    %v1734 = vpack.c.b16 %v1350, %v1344
    %v1735 = vpack.c.b16 %v1351, %v1345
    %v1736 = vpack.c.b16 %v1358, %v1352
    %v1737 = vpack.c.b16 %v1359, %v1353
    %v1738 = vpack.c.b16 %v1360, %v1354
    %v1739 = vpack.c.b16 %v1361, %v1355
    %v1740 = vpack.c.b16 %v1362, %v1356
    %v1741 = vpack.c.b16 %v1363, %v1357
    %v1742 = vpack.c.b16 %v1370, %v1364
    %v1743 = vpack.c.b16 %v1371, %v1365
    %v1744 = vpack.c.b16 %v1372, %v1366
    %v1745 = vpack.c.b16 %v1373, %v1367
    %v1746 = vpack.c.b16 %v1374, %v1368
    %v1747 = vpack.c.b16 %v1375, %v1369
    %v1748 = vpack.c.b16 %v1382, %v1376
    %v1749 = vpack.c.b16 %v1383, %v1377
    %v1750 = vpack.c.b16 %v1384, %v1378
    %v1751 = vpack.c.b16 %v1385, %v1379
    %v1752 = vpack.c.b16 %v1386, %v1380
    %v1753 = vpack.c.b16 %v1387, %v1381
    %v1754 = vpack.c.b16 %v1394, %v1388
    %v1755 = vpack.c.b16 %v1395, %v1389
    %v1756 = vpack.c.b16 %v1396, %v1390
    %v1757 = vpack.c.b16 %v1397, %v1391
    %v1758 = vpack.c.b16 %v1398, %v1392
    %v1759 = vpack.c.b16 %v1399, %v1393
    %v1760 = vpack.c.b16 %v1406, %v1400
    %v1761 = vpack.c.b16 %v1407, %v1401
    %v1762 = vpack.c.b16 %v1408, %v1402
    %v1763 = vpack.c.b16 %v1409, %v1403
    %v1764 = vpack.c.b16 %v1410, %v1404
    %v1765 = vpack.c.b16 %v1411, %v1405
    %v1766 = vpack.c.b16 %v1418, %v1412
    %v1767 = vpack.c.b16 %v1419, %v1413
    %v1768 = vpack.c.b16 %v1420, %v1414
    %v1769 = vpack.c.b16 %v1421, %v1415
    %v1770 = vpack.c.b16 %v1422, %v1416
    %v1771 = vpack.c.b16 %v1423, %v1417
    %v1772 = vpack.c.b16 %v1430, %v1424
    %v1773 = vpack.c.b16 %v1431, %v1425
    %v1774 = vpack.c.b16 %v1432, %v1426
    %v1775 = vpack.c.b16 %v1433, %v1427
    %v1776 = vpack.c.b16 %v1434, %v1428
    %v1777 = vpack.c.b16 %v1435, %v1429
    %v1778 = vpack.c.b16 %v1442, %v1436
    %v1779 = vpack.c.b16 %v1443, %v1437
    %v1780 = vpack.c.b16 %v1444, %v1438
    %v1781 = vpack.c.b16 %v1445, %v1439
    %v1782 = vpack.c.b16 %v1446, %v1440
    %v1783 = vpack.c.b16 %v1447, %v1441
    %2120 = vmatprep.subr.bf16.mxu0 %v1491
    %2121 = vmatpush1.bf16.msra.mxu0 %v1490
    %2122 = vmatprep.subr.bf16.mxu0 %v1485
    %2123 = vmatpush1.bf16.msra.mxu0 %v1484
    %2124 = vmatprep.subr.bf16.mxu0 %v1479
    %2125 = vmatpush1.bf16.msra.mxu0 %v1478
    %2126 = vmatprep.subr.bf16.mxu0 %v1473
    %2127 = vmatpush1.bf16.msra.mxu0 %v1472
    %2128 = vmatprep.subr.bf16.mxu0 %v1467
    %2129 = vmatpush1.bf16.msra.mxu0 %v1466
    %2130 = vmatprep.subr.bf16.mxu0 %v1461
    %2131 = vmatpush1.bf16.msra.mxu0 %v1460
    %2132 = vmatprep.subr.bf16.mxu0 %v1455
    %2133 = vmatpush1.bf16.msra.mxu0 %v1454
    %2134 = vmatprep.subr.bf16.mxu0 %v1449
    %2135 = vmatpush1.bf16.msra.mxu0 %v1448
    %2136 = vmatprep.subr.bf16.mxu0 %v1539
    %2137 = vmatpush2.bf16.msra.mxu0 %v1538
    %2138 = vmatprep.subr.bf16.mxu0 %v1533
    %2139 = vmatpush2.bf16.msra.mxu0 %v1532
    %2140 = vmatprep.subr.bf16.mxu0 %v1527
    %2141 = vmatpush2.bf16.msra.mxu0 %v1526
    %2142 = vmatprep.subr.bf16.mxu0 %v1521
    %2143 = vmatpush2.bf16.msra.mxu0 %v1520
    %2144 = vmatprep.subr.bf16.mxu0 %v1515
    %2145 = vmatpush2.bf16.msra.mxu0 %v1514
    %2146 = vmatprep.subr.bf16.mxu0 %v1509
    %2147 = vmatpush2.bf16.msra.mxu0 %v1508
    %2148 = vmatprep.subr.bf16.mxu0 %v1503
    %2149 = vmatpush2.bf16.msra.mxu0 %v1502
    %2150 = vmatprep.subr.bf16.mxu0 %v1497
    %2151 = vmatpush2.bf16.msra.mxu0 %v1496
    %2152 = vmatprep.mubr.bf16.mxu0 %v403
    %2153 = vmatmul.mubr.bf16.gmra.mxu0 %v402
    %v2154 = vpop.f32.mrf.mxu0
    %v2155 = vadd.f32 %v413, %v2154
    %v2156 = vpop.f32.mrf.mxu0
    %v2157 = vadd.f32 %v417, %v2156
    %v2158 = vpop.f32.mrf.mxu0
    %v2159 = vadd.f32 %v413, %v2158
    %v2160 = vpop.f32.mrf.mxu0
    %v2161 = vadd.f32 %v417, %v2160
    %2162 = vdwg.mxu0
    %2163 = vmatprep.subr.bf16.mxu0 %v1587
    %2164 = vmatpush1.bf16.msra.mxu0 %v1586
    %2165 = vmatprep.subr.bf16.mxu0 %v1581
    %2166 = vmatpush1.bf16.msra.mxu0 %v1580
    %2167 = vmatprep.subr.bf16.mxu0 %v1575
    %2168 = vmatpush1.bf16.msra.mxu0 %v1574
    %2169 = vmatprep.subr.bf16.mxu0 %v1569
    %2170 = vmatpush1.bf16.msra.mxu0 %v1568
    %2171 = vmatprep.subr.bf16.mxu0 %v1563
    %2172 = vmatpush1.bf16.msra.mxu0 %v1562
    %2173 = vmatprep.subr.bf16.mxu0 %v1557
    %2174 = vmatpush1.bf16.msra.mxu0 %v1556
    %2175 = vmatprep.subr.bf16.mxu0 %v1551
    %2176 = vmatpush1.bf16.msra.mxu0 %v1550
    %2177 = vmatprep.subr.bf16.mxu0 %v1545
    %2178 = vmatpush1.bf16.msra.mxu0 %v1544
    %2179 = vmatprep.subr.bf16.mxu0 %v1635
    %2180 = vmatpush2.bf16.msra.mxu0 %v1634
    %2181 = vmatprep.subr.bf16.mxu0 %v1629
    %2182 = vmatpush2.bf16.msra.mxu0 %v1628
    %2183 = vmatprep.subr.bf16.mxu0 %v1623
    %2184 = vmatpush2.bf16.msra.mxu0 %v1622
    %2185 = vmatprep.subr.bf16.mxu0 %v1617
    %2186 = vmatpush2.bf16.msra.mxu0 %v1616
    %2187 = vmatprep.subr.bf16.mxu0 %v1611
    %2188 = vmatpush2.bf16.msra.mxu0 %v1610
    %2189 = vmatprep.subr.bf16.mxu0 %v1605
    %2190 = vmatpush2.bf16.msra.mxu0 %v1604
    %2191 = vmatprep.subr.bf16.mxu0 %v1599
    %2192 = vmatpush2.bf16.msra.mxu0 %v1598
    %2193 = vmatprep.subr.bf16.mxu0 %v1593
    %2194 = vmatpush2.bf16.msra.mxu0 %v1592
    %2195 = vmatprep.mubr.bf16.mxu0 %v405
    %2196 = vmatmul.mubr.bf16.gmra.mxu0 %v404
    %v2197 = vpop.f32.mrf.mxu0
    %v2198 = vadd.f32 %v2155, %v2197
    %v2199 = vpop.f32.mrf.mxu0
    %v2200 = vadd.f32 %v2157, %v2199
    %v2201 = vpop.f32.mrf.mxu0
    %v2202 = vadd.f32 %v2159, %v2201
    %v2203 = vpop.f32.mrf.mxu0
    %v2204 = vadd.f32 %v2161, %v2203
    %2205 = vdwg.mxu0
    %2206 = vmatprep.subr.bf16.mxu0 %v1683
    %2207 = vmatpush1.bf16.msra.mxu0 %v1682
    %2208 = vmatprep.subr.bf16.mxu0 %v1677
    %2209 = vmatpush1.bf16.msra.mxu0 %v1676
    %2210 = vmatprep.subr.bf16.mxu0 %v1671
    %2211 = vmatpush1.bf16.msra.mxu0 %v1670
    %2212 = vmatprep.subr.bf16.mxu0 %v1665
    %2213 = vmatpush1.bf16.msra.mxu0 %v1664
    %2214 = vmatprep.subr.bf16.mxu0 %v1659
    %2215 = vmatpush1.bf16.msra.mxu0 %v1658
    %2216 = vmatprep.subr.bf16.mxu0 %v1653
    %2217 = vmatpush1.bf16.msra.mxu0 %v1652
    %2218 = vmatprep.subr.bf16.mxu0 %v1647
    %2219 = vmatpush1.bf16.msra.mxu0 %v1646
    %2220 = vmatprep.subr.bf16.mxu0 %v1641
    %2221 = vmatpush1.bf16.msra.mxu0 %v1640
    %2222 = vmatprep.subr.bf16.mxu0 %v1731
    %2223 = vmatpush2.bf16.msra.mxu0 %v1730
    %2224 = vmatprep.subr.bf16.mxu0 %v1725
    %2225 = vmatpush2.bf16.msra.mxu0 %v1724
    %2226 = vmatprep.subr.bf16.mxu0 %v1719
    %2227 = vmatpush2.bf16.msra.mxu0 %v1718
    %2228 = vmatprep.subr.bf16.mxu0 %v1713
    %2229 = vmatpush2.bf16.msra.mxu0 %v1712
    %2230 = vmatprep.subr.bf16.mxu0 %v1707
    %2231 = vmatpush2.bf16.msra.mxu0 %v1706
    %2232 = vmatprep.subr.bf16.mxu0 %v1701
    %2233 = vmatpush2.bf16.msra.mxu0 %v1700
    %2234 = vmatprep.subr.bf16.mxu0 %v1695
    %2235 = vmatpush2.bf16.msra.mxu0 %v1694
    %2236 = vmatprep.subr.bf16.mxu0 %v1689
    %2237 = vmatpush2.bf16.msra.mxu0 %v1688
    %2238 = vmatprep.mubr.bf16.mxu0 %v407
    %2239 = vmatmul.mubr.bf16.gmra.mxu0 %v406
    %v2240 = vpop.f32.mrf.mxu0
    %v2241 = vadd.f32 %v2198, %v2240
    %v2242 = vpop.f32.mrf.mxu0
    %v2243 = vadd.f32 %v2200, %v2242
    %v2244 = vpop.f32.mrf.mxu0
    %v2245 = vadd.f32 %v2202, %v2244
    %v2246 = vpop.f32.mrf.mxu0
    %v2247 = vadd.f32 %v2204, %v2246
    %2248 = vdwg.mxu0
    %2249 = vmatprep.subr.bf16.mxu0 %v1779
    %2250 = vmatpush1.bf16.msra.mxu0 %v1778
    %2251 = vmatprep.subr.bf16.mxu0 %v1773
    %2252 = vmatpush1.bf16.msra.mxu0 %v1772
    %2253 = vmatprep.subr.bf16.mxu0 %v1767
    %2254 = vmatpush1.bf16.msra.mxu0 %v1766
    %2255 = vmatprep.subr.bf16.mxu0 %v1761
    %2256 = vmatpush1.bf16.msra.mxu0 %v1760
    %2257 = vmatprep.subr.bf16.mxu0 %v1755
    %2258 = vmatpush1.bf16.msra.mxu0 %v1754
    %2259 = vmatprep.subr.bf16.mxu0 %v1749
    %2260 = vmatpush1.bf16.msra.mxu0 %v1748
    %2261 = vmatprep.subr.bf16.mxu0 %v1743
    %2262 = vmatpush1.bf16.msra.mxu0 %v1742
    %2263 = vmatprep.subr.bf16.mxu0 %v1737
    %2264 = vmatpush1.bf16.msra.mxu0 %v1736
    %2265 = vmatprep.subr.bf16.mxu0 0
    %2266 = vmatpush2.bf16.msra.mxu0 0
    %2267 = vmatprep.subr.bf16.mxu0 0
    %2268 = vmatpush2.bf16.msra.mxu0 0
    %2269 = vmatprep.subr.bf16.mxu0 0
    %2270 = vmatpush2.bf16.msra.mxu0 0
    %2271 = vmatprep.subr.bf16.mxu0 0
    %2272 = vmatpush2.bf16.msra.mxu0 0
    %2273 = vmatprep.subr.bf16.mxu0 0
    %2274 = vmatpush2.bf16.msra.mxu0 0
    %2275 = vmatprep.subr.bf16.mxu0 0
    %2276 = vmatpush2.bf16.msra.mxu0 0
    %2277 = vmatprep.subr.bf16.mxu0 0
    %2278 = vmatpush2.bf16.msra.mxu0 0
    %2279 = vmatprep.subr.bf16.mxu0 0
    %2280 = vmatpush2.bf16.msra.mxu0 0
    %2281 = vmatprep.mubr.bf16.mxu0 0
    %2282 = vmatmul.mubr.bf16.gmra.mxu0 %v408
    %v2283 = vpop.f32.mrf.mxu0
    %v2284 = vadd.f32 %v2241, %v2283
    %v2285 = vpop.f32.mrf.mxu0
    %v2286 = vadd.f32 %v2243, %v2285
    %v2287 = vpop.f32.mrf.mxu0
    %v2288 = vadd.f32 %v2245, %v2287
    %v2289 = vpop.f32.mrf.mxu0
    %v2290 = vadd.f32 %v2247, %v2289
    %2291 = vdwg.mxu0
    %2292 = vmatprep.subr.bf16.mxu0 %v1493
    %2293 = vmatpush1.bf16.msra.mxu0 %v1492
    %2294 = vmatprep.subr.bf16.mxu0 %v1487
    %2295 = vmatpush1.bf16.msra.mxu0 %v1486
    %2296 = vmatprep.subr.bf16.mxu0 %v1481
    %2297 = vmatpush1.bf16.msra.mxu0 %v1480
    %2298 = vmatprep.subr.bf16.mxu0 %v1475
    %2299 = vmatpush1.bf16.msra.mxu0 %v1474
    %2300 = vmatprep.subr.bf16.mxu0 %v1469
    %2301 = vmatpush1.bf16.msra.mxu0 %v1468
    %2302 = vmatprep.subr.bf16.mxu0 %v1463
    %2303 = vmatpush1.bf16.msra.mxu0 %v1462
    %2304 = vmatprep.subr.bf16.mxu0 %v1457
    %2305 = vmatpush1.bf16.msra.mxu0 %v1456
    %2306 = vmatprep.subr.bf16.mxu0 %v1451
    %2307 = vmatpush1.bf16.msra.mxu0 %v1450
    %2308 = vmatprep.subr.bf16.mxu0 %v1541
    %2309 = vmatpush2.bf16.msra.mxu0 %v1540
    %2310 = vmatprep.subr.bf16.mxu0 %v1535
    %2311 = vmatpush2.bf16.msra.mxu0 %v1534
    %2312 = vmatprep.subr.bf16.mxu0 %v1529
    %2313 = vmatpush2.bf16.msra.mxu0 %v1528
    %2314 = vmatprep.subr.bf16.mxu0 %v1523
    %2315 = vmatpush2.bf16.msra.mxu0 %v1522
    %2316 = vmatprep.subr.bf16.mxu0 %v1517
    %2317 = vmatpush2.bf16.msra.mxu0 %v1516
    %2318 = vmatprep.subr.bf16.mxu0 %v1511
    %2319 = vmatpush2.bf16.msra.mxu0 %v1510
    %2320 = vmatprep.subr.bf16.mxu0 %v1505
    %2321 = vmatpush2.bf16.msra.mxu0 %v1504
    %2322 = vmatprep.subr.bf16.mxu0 %v1499
    %2323 = vmatpush2.bf16.msra.mxu0 %v1498
    %2324 = vmatprep.mubr.bf16.mxu0 %v403
    %2325 = vmatmul.mubr.bf16.gmra.mxu0 %v402
    %v2326 = vpop.f32.mrf.mxu0
    %v2327 = vadd.f32 %v421, %v2326
    %v2328 = vpop.f32.mrf.mxu0
    %v2329 = vadd.f32 %v425, %v2328
    %v2330 = vpop.f32.mrf.mxu0
    %v2331 = vadd.f32 %v421, %v2330
    %v2332 = vpop.f32.mrf.mxu0
    %v2333 = vadd.f32 %v425, %v2332
    %2334 = vdwg.mxu0
    %2335 = vmatprep.subr.bf16.mxu0 %v1589
    %2336 = vmatpush1.bf16.msra.mxu0 %v1588
    %2337 = vmatprep.subr.bf16.mxu0 %v1583
    %2338 = vmatpush1.bf16.msra.mxu0 %v1582
    %2339 = vmatprep.subr.bf16.mxu0 %v1577
    %2340 = vmatpush1.bf16.msra.mxu0 %v1576
    %2341 = vmatprep.subr.bf16.mxu0 %v1571
    %2342 = vmatpush1.bf16.msra.mxu0 %v1570
    %2343 = vmatprep.subr.bf16.mxu0 %v1565
    %2344 = vmatpush1.bf16.msra.mxu0 %v1564
    %2345 = vmatprep.subr.bf16.mxu0 %v1559
    %2346 = vmatpush1.bf16.msra.mxu0 %v1558
    %2347 = vmatprep.subr.bf16.mxu0 %v1553
    %2348 = vmatpush1.bf16.msra.mxu0 %v1552
    %2349 = vmatprep.subr.bf16.mxu0 %v1547
    %2350 = vmatpush1.bf16.msra.mxu0 %v1546
    %2351 = vmatprep.subr.bf16.mxu0 %v1637
    %2352 = vmatpush2.bf16.msra.mxu0 %v1636
    %2353 = vmatprep.subr.bf16.mxu0 %v1631
    %2354 = vmatpush2.bf16.msra.mxu0 %v1630
    %2355 = vmatprep.subr.bf16.mxu0 %v1625
    %2356 = vmatpush2.bf16.msra.mxu0 %v1624
    %2357 = vmatprep.subr.bf16.mxu0 %v1619
    %2358 = vmatpush2.bf16.msra.mxu0 %v1618
    %2359 = vmatprep.subr.bf16.mxu0 %v1613
    %2360 = vmatpush2.bf16.msra.mxu0 %v1612
    %2361 = vmatprep.subr.bf16.mxu0 %v1607
    %2362 = vmatpush2.bf16.msra.mxu0 %v1606
    %2363 = vmatprep.subr.bf16.mxu0 %v1601
    %2364 = vmatpush2.bf16.msra.mxu0 %v1600
    %2365 = vmatprep.subr.bf16.mxu0 %v1595
    %2366 = vmatpush2.bf16.msra.mxu0 %v1594
    %2367 = vmatprep.mubr.bf16.mxu0 %v405
    %2368 = vmatmul.mubr.bf16.gmra.mxu0 %v404
    %v2369 = vpop.f32.mrf.mxu0
    %v2370 = vadd.f32 %v2327, %v2369
    %v2371 = vpop.f32.mrf.mxu0
    %v2372 = vadd.f32 %v2329, %v2371
    %v2373 = vpop.f32.mrf.mxu0
    %v2374 = vadd.f32 %v2331, %v2373
    %v2375 = vpop.f32.mrf.mxu0
    %v2376 = vadd.f32 %v2333, %v2375
    %2377 = vdwg.mxu0
    %2378 = vmatprep.subr.bf16.mxu0 %v1685
    %2379 = vmatpush1.bf16.msra.mxu0 %v1684
    %2380 = vmatprep.subr.bf16.mxu0 %v1679
    %2381 = vmatpush1.bf16.msra.mxu0 %v1678
    %2382 = vmatprep.subr.bf16.mxu0 %v1673
    %2383 = vmatpush1.bf16.msra.mxu0 %v1672
    %2384 = vmatprep.subr.bf16.mxu0 %v1667
    %2385 = vmatpush1.bf16.msra.mxu0 %v1666
    %2386 = vmatprep.subr.bf16.mxu0 %v1661
    %2387 = vmatpush1.bf16.msra.mxu0 %v1660
    %2388 = vmatprep.subr.bf16.mxu0 %v1655
    %2389 = vmatpush1.bf16.msra.mxu0 %v1654
    %2390 = vmatprep.subr.bf16.mxu0 %v1649
    %2391 = vmatpush1.bf16.msra.mxu0 %v1648
    %2392 = vmatprep.subr.bf16.mxu0 %v1643
    %2393 = vmatpush1.bf16.msra.mxu0 %v1642
    %2394 = vmatprep.subr.bf16.mxu0 %v1733
    %2395 = vmatpush2.bf16.msra.mxu0 %v1732
    %2396 = vmatprep.subr.bf16.mxu0 %v1727
    %2397 = vmatpush2.bf16.msra.mxu0 %v1726
    %2398 = vmatprep.subr.bf16.mxu0 %v1721
    %2399 = vmatpush2.bf16.msra.mxu0 %v1720
    %2400 = vmatprep.subr.bf16.mxu0 %v1715
    %2401 = vmatpush2.bf16.msra.mxu0 %v1714
    %2402 = vmatprep.subr.bf16.mxu0 %v1709
    %2403 = vmatpush2.bf16.msra.mxu0 %v1708
    %2404 = vmatprep.subr.bf16.mxu0 %v1703
    %2405 = vmatpush2.bf16.msra.mxu0 %v1702
    %2406 = vmatprep.subr.bf16.mxu0 %v1697
    %2407 = vmatpush2.bf16.msra.mxu0 %v1696
    %2408 = vmatprep.subr.bf16.mxu0 %v1691
    %2409 = vmatpush2.bf16.msra.mxu0 %v1690
    %2410 = vmatprep.mubr.bf16.mxu0 %v407
    %2411 = vmatmul.mubr.bf16.gmra.mxu0 %v406
    %v2412 = vpop.f32.mrf.mxu0
    %v2413 = vadd.f32 %v2370, %v2412
    %v2414 = vpop.f32.mrf.mxu0
    %v2415 = vadd.f32 %v2372, %v2414
    %v2416 = vpop.f32.mrf.mxu0
    %v2417 = vadd.f32 %v2374, %v2416
    %v2418 = vpop.f32.mrf.mxu0
    %v2419 = vadd.f32 %v2376, %v2418
    %2420 = vdwg.mxu0
    %2421 = vmatprep.subr.bf16.mxu0 %v1781
    %2422 = vmatpush1.bf16.msra.mxu0 %v1780
    %2423 = vmatprep.subr.bf16.mxu0 %v1775
    %2424 = vmatpush1.bf16.msra.mxu0 %v1774
    %2425 = vmatprep.subr.bf16.mxu0 %v1769
    %2426 = vmatpush1.bf16.msra.mxu0 %v1768
    %2427 = vmatprep.subr.bf16.mxu0 %v1763
    %2428 = vmatpush1.bf16.msra.mxu0 %v1762
    %2429 = vmatprep.subr.bf16.mxu0 %v1757
    %2430 = vmatpush1.bf16.msra.mxu0 %v1756
    %2431 = vmatprep.subr.bf16.mxu0 %v1751
    %2432 = vmatpush1.bf16.msra.mxu0 %v1750
    %2433 = vmatprep.subr.bf16.mxu0 %v1745
    %2434 = vmatpush1.bf16.msra.mxu0 %v1744
    %2435 = vmatprep.subr.bf16.mxu0 %v1739
    %2436 = vmatpush1.bf16.msra.mxu0 %v1738
    %2437 = vmatprep.subr.bf16.mxu0 0
    %2438 = vmatpush2.bf16.msra.mxu0 0
    %2439 = vmatprep.subr.bf16.mxu0 0
    %2440 = vmatpush2.bf16.msra.mxu0 0
    %2441 = vmatprep.subr.bf16.mxu0 0
    %2442 = vmatpush2.bf16.msra.mxu0 0
    %2443 = vmatprep.subr.bf16.mxu0 0
    %2444 = vmatpush2.bf16.msra.mxu0 0
    %2445 = vmatprep.subr.bf16.mxu0 0
    %2446 = vmatpush2.bf16.msra.mxu0 0
    %2447 = vmatprep.subr.bf16.mxu0 0
    %2448 = vmatpush2.bf16.msra.mxu0 0
    %2449 = vmatprep.subr.bf16.mxu0 0
    %2450 = vmatpush2.bf16.msra.mxu0 0
    %2451 = vmatprep.subr.bf16.mxu0 0
    %2452 = vmatpush2.bf16.msra.mxu0 0
    %2453 = vmatprep.mubr.bf16.mxu0 0
    %2454 = vmatmul.mubr.bf16.gmra.mxu0 %v408
    %v2455 = vpop.f32.mrf.mxu0
    %v2456 = vadd.f32 %v2413, %v2455
    %v2457 = vpop.f32.mrf.mxu0
    %v2458 = vadd.f32 %v2415, %v2457
    %v2459 = vpop.f32.mrf.mxu0
    %v2460 = vadd.f32 %v2417, %v2459
    %v2461 = vpop.f32.mrf.mxu0
    %v2462 = vadd.f32 %v2419, %v2461
    %2463 = vdwg.mxu0
    %2464 = vmatprep.subr.bf16.mxu0 %v1495
    %2465 = vmatpush1.bf16.msra.mxu0 %v1494
    %2466 = vmatprep.subr.bf16.mxu0 %v1489
    %2467 = vmatpush1.bf16.msra.mxu0 %v1488
    %2468 = vmatprep.subr.bf16.mxu0 %v1483
    %2469 = vmatpush1.bf16.msra.mxu0 %v1482
    %2470 = vmatprep.subr.bf16.mxu0 %v1477
    %2471 = vmatpush1.bf16.msra.mxu0 %v1476
    %2472 = vmatprep.subr.bf16.mxu0 %v1471
    %2473 = vmatpush1.bf16.msra.mxu0 %v1470
    %2474 = vmatprep.subr.bf16.mxu0 %v1465
    %2475 = vmatpush1.bf16.msra.mxu0 %v1464
    %2476 = vmatprep.subr.bf16.mxu0 %v1459
    %2477 = vmatpush1.bf16.msra.mxu0 %v1458
    %2478 = vmatprep.subr.bf16.mxu0 %v1453
    %2479 = vmatpush1.bf16.msra.mxu0 %v1452
    %2480 = vmatprep.subr.bf16.mxu0 %v1543
    %2481 = vmatpush2.bf16.msra.mxu0 %v1542
    %2482 = vmatprep.subr.bf16.mxu0 %v1537
    %2483 = vmatpush2.bf16.msra.mxu0 %v1536
    %2484 = vmatprep.subr.bf16.mxu0 %v1531
    %2485 = vmatpush2.bf16.msra.mxu0 %v1530
    %2486 = vmatprep.subr.bf16.mxu0 %v1525
    %2487 = vmatpush2.bf16.msra.mxu0 %v1524
    %2488 = vmatprep.subr.bf16.mxu0 %v1519
    %2489 = vmatpush2.bf16.msra.mxu0 %v1518
    %2490 = vmatprep.subr.bf16.mxu0 %v1513
    %2491 = vmatpush2.bf16.msra.mxu0 %v1512
    %2492 = vmatprep.subr.bf16.mxu0 %v1507
    %2493 = vmatpush2.bf16.msra.mxu0 %v1506
    %2494 = vmatprep.subr.bf16.mxu0 %v1501
    %2495 = vmatpush2.bf16.msra.mxu0 %v1500
    %2496 = vmatprep.mubr.bf16.mxu0 %v403
    %2497 = vmatmul.mubr.bf16.gmra.mxu0 %v402
    %v2498 = vpop.f32.mrf.mxu0
    %v2499 = vadd.f32 %v429, %v2498
    %v2500 = vpop.f32.mrf.mxu0
    %v2501 = vadd.f32 %v433, %v2500
    %v2502 = vpop.f32.mrf.mxu0
    %v2503 = vadd.f32 %v429, %v2502
    %v2504 = vpop.f32.mrf.mxu0
    %v2505 = vadd.f32 %v433, %v2504
    %2506 = vdwg.mxu0
    %2507 = vmatprep.subr.bf16.mxu0 %v1591
    %2508 = vmatpush1.bf16.msra.mxu0 %v1590
    %2509 = vmatprep.subr.bf16.mxu0 %v1585
    %2510 = vmatpush1.bf16.msra.mxu0 %v1584
    %2511 = vmatprep.subr.bf16.mxu0 %v1579
    %2512 = vmatpush1.bf16.msra.mxu0 %v1578
    %2513 = vmatprep.subr.bf16.mxu0 %v1573
    %2514 = vmatpush1.bf16.msra.mxu0 %v1572
    %2515 = vmatprep.subr.bf16.mxu0 %v1567
    %2516 = vmatpush1.bf16.msra.mxu0 %v1566
    %2517 = vmatprep.subr.bf16.mxu0 %v1561
    %2518 = vmatpush1.bf16.msra.mxu0 %v1560
    %2519 = vmatprep.subr.bf16.mxu0 %v1555
    %2520 = vmatpush1.bf16.msra.mxu0 %v1554
    %2521 = vmatprep.subr.bf16.mxu0 %v1549
    %2522 = vmatpush1.bf16.msra.mxu0 %v1548
    %2523 = vmatprep.subr.bf16.mxu0 %v1639
    %2524 = vmatpush2.bf16.msra.mxu0 %v1638
    %2525 = vmatprep.subr.bf16.mxu0 %v1633
    %2526 = vmatpush2.bf16.msra.mxu0 %v1632
    %2527 = vmatprep.subr.bf16.mxu0 %v1627
    %2528 = vmatpush2.bf16.msra.mxu0 %v1626
    %2529 = vmatprep.subr.bf16.mxu0 %v1621
    %2530 = vmatpush2.bf16.msra.mxu0 %v1620
    %2531 = vmatprep.subr.bf16.mxu0 %v1615
    %2532 = vmatpush2.bf16.msra.mxu0 %v1614
    %2533 = vmatprep.subr.bf16.mxu0 %v1609
    %2534 = vmatpush2.bf16.msra.mxu0 %v1608
    %2535 = vmatprep.subr.bf16.mxu0 %v1603
    %2536 = vmatpush2.bf16.msra.mxu0 %v1602
    %2537 = vmatprep.subr.bf16.mxu0 %v1597
    %2538 = vmatpush2.bf16.msra.mxu0 %v1596
    %2539 = vmatprep.mubr.bf16.mxu0 %v405
    %2540 = vmatmul.mubr.bf16.gmra.mxu0 %v404
    %v2541 = vpop.f32.mrf.mxu0
    %v2542 = vadd.f32 %v2499, %v2541
    %v2543 = vpop.f32.mrf.mxu0
    %v2544 = vadd.f32 %v2501, %v2543
    %v2545 = vpop.f32.mrf.mxu0
    %v2546 = vadd.f32 %v2503, %v2545
    %v2547 = vpop.f32.mrf.mxu0
    %v2548 = vadd.f32 %v2505, %v2547
    %2549 = vdwg.mxu0
    %2550 = vmatprep.subr.bf16.mxu0 %v1687
    %2551 = vmatpush1.bf16.msra.mxu0 %v1686
    %2552 = vmatprep.subr.bf16.mxu0 %v1681
    %2553 = vmatpush1.bf16.msra.mxu0 %v1680
    %2554 = vmatprep.subr.bf16.mxu0 %v1675
    %2555 = vmatpush1.bf16.msra.mxu0 %v1674
    %2556 = vmatprep.subr.bf16.mxu0 %v1669
    %2557 = vmatpush1.bf16.msra.mxu0 %v1668
    %2558 = vmatprep.subr.bf16.mxu0 %v1663
    %2559 = vmatpush1.bf16.msra.mxu0 %v1662
    %2560 = vmatprep.subr.bf16.mxu0 %v1657
    %2561 = vmatpush1.bf16.msra.mxu0 %v1656
    %2562 = vmatprep.subr.bf16.mxu0 %v1651
    %2563 = vmatpush1.bf16.msra.mxu0 %v1650
    %2564 = vmatprep.subr.bf16.mxu0 %v1645
    %2565 = vmatpush1.bf16.msra.mxu0 %v1644
    %2566 = vmatprep.subr.bf16.mxu0 %v1735
    %2567 = vmatpush2.bf16.msra.mxu0 %v1734
    %2568 = vmatprep.subr.bf16.mxu0 %v1729
    %2569 = vmatpush2.bf16.msra.mxu0 %v1728
    %2570 = vmatprep.subr.bf16.mxu0 %v1723
    %2571 = vmatpush2.bf16.msra.mxu0 %v1722
    %2572 = vmatprep.subr.bf16.mxu0 %v1717
    %2573 = vmatpush2.bf16.msra.mxu0 %v1716
    %2574 = vmatprep.subr.bf16.mxu0 %v1711
    %2575 = vmatpush2.bf16.msra.mxu0 %v1710
    %2576 = vmatprep.subr.bf16.mxu0 %v1705
    %2577 = vmatpush2.bf16.msra.mxu0 %v1704
    %2578 = vmatprep.subr.bf16.mxu0 %v1699
    %2579 = vmatpush2.bf16.msra.mxu0 %v1698
    %2580 = vmatprep.subr.bf16.mxu0 %v1693
    %2581 = vmatpush2.bf16.msra.mxu0 %v1692
    %2582 = vmatprep.mubr.bf16.mxu0 %v407
    %2583 = vmatmul.mubr.bf16.gmra.mxu0 %v406
    %v2584 = vpop.f32.mrf.mxu0
    %v2585 = vadd.f32 %v2542, %v2584
    %v2586 = vpop.f32.mrf.mxu0
    %v2587 = vadd.f32 %v2544, %v2586
    %v2588 = vpop.f32.mrf.mxu0
    %v2589 = vadd.f32 %v2546, %v2588
    %v2590 = vpop.f32.mrf.mxu0
    %v2591 = vadd.f32 %v2548, %v2590
    %2592 = vdwg.mxu0
    %2593 = vmatprep.subr.bf16.mxu0 %v1783
    %2594 = vmatpush1.bf16.msra.mxu0 %v1782
    %2595 = vmatprep.subr.bf16.mxu0 %v1777
    %2596 = vmatpush1.bf16.msra.mxu0 %v1776
    %2597 = vmatprep.subr.bf16.mxu0 %v1771
    %2598 = vmatpush1.bf16.msra.mxu0 %v1770
    %2599 = vmatprep.subr.bf16.mxu0 %v1765
    %2600 = vmatpush1.bf16.msra.mxu0 %v1764
    %2601 = vmatprep.subr.bf16.mxu0 %v1759
    %2602 = vmatpush1.bf16.msra.mxu0 %v1758
    %2603 = vmatprep.subr.bf16.mxu0 %v1753
    %2604 = vmatpush1.bf16.msra.mxu0 %v1752
    %2605 = vmatprep.subr.bf16.mxu0 %v1747
    %2606 = vmatpush1.bf16.msra.mxu0 %v1746
    %2607 = vmatprep.subr.bf16.mxu0 %v1741
    %2608 = vmatpush1.bf16.msra.mxu0 %v1740
    %2609 = vmatprep.subr.bf16.mxu0 0
    %2610 = vmatpush2.bf16.msra.mxu0 0
    %2611 = vmatprep.subr.bf16.mxu0 0
    %2612 = vmatpush2.bf16.msra.mxu0 0
    %2613 = vmatprep.subr.bf16.mxu0 0
    %2614 = vmatpush2.bf16.msra.mxu0 0
    %2615 = vmatprep.subr.bf16.mxu0 0
    %2616 = vmatpush2.bf16.msra.mxu0 0
    %2617 = vmatprep.subr.bf16.mxu0 0
    %2618 = vmatpush2.bf16.msra.mxu0 0
    %2619 = vmatprep.subr.bf16.mxu0 0
    %2620 = vmatpush2.bf16.msra.mxu0 0
    %2621 = vmatprep.subr.bf16.mxu0 0
    %2622 = vmatpush2.bf16.msra.mxu0 0
    %2623 = vmatprep.subr.bf16.mxu0 0
    %2624 = vmatpush2.bf16.msra.mxu0 0
    %2625 = vmatprep.mubr.bf16.mxu0 0
    %2626 = vmatmul.mubr.bf16.gmra.mxu0 %v408
    %v2627 = vpop.f32.mrf.mxu0
    %v2628 = vadd.f32 %v2585, %v2627
    %v2629 = vpop.f32.mrf.mxu0
    %v2630 = vadd.f32 %v2587, %v2629
    %v2631 = vpop.f32.mrf.mxu0
    %v2632 = vadd.f32 %v2589, %v2631
    %v2633 = vpop.f32.mrf.mxu0
    %v2634 = vadd.f32 %v2591, %v2633
    %2635 = vdwg.mxu0
    %v2636 = vmul.f32 %v2284, 0.5
    %v2637 = vmul.f32 %v2286, 0.5
    %v2638 = vmul.f32 %v2456, 0.5
    %v2639 = vmul.f32 %v2458, 0.5
    %v2640 = vmul.f32 %v2628, 0.5
    %v2641 = vmul.f32 %v2630, 0.5
    %v2642 = vmul.f32 %v2288, 0.5
    %v2643 = vmul.f32 %v2290, 0.5
    %v2644 = vmul.f32 %v2460, 0.5
    %v2645 = vmul.f32 %v2462, 0.5
    %v2646 = vmul.f32 %v2632, 0.5
    %v2647 = vmul.f32 %v2634, 0.5
    %v2648 = vmul.f32 %v2284, 0.70710677
    %v2649 = vmul.f32 %v2286, 0.70710677
    %v2650 = vmul.f32 %v2456, 0.70710677
    %v2651 = vmul.f32 %v2458, 0.70710677
    %v2652 = vmul.f32 %v2628, 0.70710677
    %v2653 = vmul.f32 %v2630, 0.70710677
    %v2654 = vmul.f32 %v2288, 0.70710677
    %v2655 = vmul.f32 %v2290, 0.70710677
    %v2656 = vmul.f32 %v2460, 0.70710677
    %v2657 = vmul.f32 %v2462, 0.70710677
    %v2658 = vmul.f32 %v2632, 0.70710677
    %v2659 = vmul.f32 %v2634, 0.70710677
    %v2660 = verf.f32.pop %v2648
    %v2661 = verf.f32.pop %v2649
    %v2662 = verf.f32.pop %v2650
    %v2663 = verf.f32.pop %v2651
    %v2664 = verf.f32.pop %v2652
    %v2665 = verf.f32.pop %v2653
    %v2666 = verf.f32.pop %v2654
    %v2667 = verf.f32.pop %v2655
    %v2668 = verf.f32.pop %v2656
    %v2669 = verf.f32.pop %v2657
    %v2670 = verf.f32.pop %v2658
    %v2671 = verf.f32.pop %v2659
    %v2672 = vadd.f32 %v2660, 1.0
    %v2673 = vadd.f32 %v2661, 1.0
    %v2674 = vadd.f32 %v2662, 1.0
    %v2675 = vadd.f32 %v2663, 1.0
    %v2676 = vadd.f32 %v2664, 1.0
    %v2677 = vadd.f32 %v2665, 1.0
    %v2678 = vadd.f32 %v2666, 1.0
    %v2679 = vadd.f32 %v2667, 1.0
    %v2680 = vadd.f32 %v2668, 1.0
    %v2681 = vadd.f32 %v2669, 1.0
    %v2682 = vadd.f32 %v2670, 1.0
    %v2683 = vadd.f32 %v2671, 1.0
    %v2684 = vmul.f32 %v2636, %v2672
    %v2685 = vmul.f32 %v2637, %v2673
    %v2686 = vmul.f32 %v2638, %v2674
    %v2687 = vmul.f32 %v2639, %v2675
    %v2688 = vmul.f32 %v2640, %v2676
    %v2689 = vmul.f32 %v2641, %v2677
    %v2690 = vmul.f32 %v2642, %v2678
    %v2691 = vmul.f32 %v2643, %v2679
    %v2692 = vmul.f32 %v2644, %v2680
    %v2693 = vmul.f32 %v2645, %v2681
    %v2694 = vmul.f32 %v2646, %v2682
    %v2695 = vmul.f32 %v2647, %v2683
    %v2696 = vld [vmem:[%s2] sm:$0xff]
    %v2697 = vld [vmem:[%s2 + $0x8] sm:$0xff]
    %v2698 = vld [vmem:[%s2 + $0x10] sm:$0xff]
    %v2699 = vld [vmem:[%s2 + $0x18] sm:$0xff]
    %v2700 = vld [vmem:[%s2 + $0x20] sm:$0xff]
    %v2701 = vld [vmem:[%s2 + $0x28] sm:$0xff]
    %v2702 = vld [vmem:[%s2 + $0x30] sm:$0xff]
    %v2703 = vld [vmem:[%s2 + $0x38] sm:$0xff]
    %v2704 = vld [vmem:[%s2 + $0x40] sm:$0xff]
    %v2705 = vld [vmem:[%s2 + $0x48] sm:$0xff]
    %v2706 = vld [vmem:[%s2 + $0x50] sm:$0xff]
    %v2707 = vld [vmem:[%s2 + $0x58] sm:$0xff]
    %v2708 = vld [vmem:[%s2 + $0x60] sm:$0xff]
    %v2709 = vld [vmem:[%s2 + $0x68] sm:$0xff]
    %v2710 = vld [vmem:[%s2 + $0x70] sm:$0xff]
    %v2711 = vld [vmem:[%s2 + $0x78] sm:$0xff]
    %v2712 = vld [vmem:[%s2 + $0x80] sm:$0xff]
    %v2713 = vld [vmem:[%s2 + $0x88] sm:$0xff]
    %v2714 = vld [vmem:[%s2 + $0x90] sm:$0xff]
    %v2715 = vld [vmem:[%s2 + $0x98] sm:$0xff]
    %v2716 = vld [vmem:[%s2 + $0xa0] sm:$0xff]
    %v2717 = vld [vmem:[%s2 + $0xa8] sm:$0xff]
    %v2718 = vld [vmem:[%s2 + $0xb0] sm:$0xff]
    %v2719 = vld [vmem:[%s2 + $0xb8] sm:$0xff]
    %v2720 = vld [vmem:[%s2 + $0xc0] sm:$0xff]
    %v2721 = vld [vmem:[%s2 + $0xc8] sm:$0xff]
    %v2722 = vld [vmem:[%s2 + $0xd0] sm:$0xff]
    %v2723 = vld [vmem:[%s2 + $0xd8] sm:$0xff]
    %v2724 = vld [vmem:[%s2 + $0xe0] sm:$0xff]
    %v2725 = vld [vmem:[%s2 + $0xe8] sm:$0xff]
    %v2726 = vld [vmem:[%s2 + $0xf0] sm:$0xff]
    %v2727 = vld [vmem:[%s2 + $0xf8] sm:$0xff]
    %v2728 = vld [vmem:[%s2 + $0x100] sm:$0xff]
    %v2729 = vld [vmem:[%s2 + $0x108] sm:$0xff]
    %v2730 = vld [vmem:[%s2 + $0x110] sm:$0xff]
    %v2731 = vld [vmem:[%s2 + $0x118] sm:$0xff]
    %v2732 = vld [vmem:[%s2 + $0x120] sm:$0xff]
    %v2733 = vld [vmem:[%s2 + $0x128] sm:$0xff]
    %v2734 = vld [vmem:[%s2 + $0x130] sm:$0xff]
    %v2735 = vld [vmem:[%s2 + $0x138] sm:$0xff]
    %v2736 = vld [vmem:[%s2 + $0x140] sm:$0xff]
    %v2737 = vld [vmem:[%s2 + $0x148] sm:$0xff]
    %v2738 = vld [vmem:[%s2 + $0x150] sm:$0xff]
    %v2739 = vld [vmem:[%s2 + $0x158] sm:$0xff]
    %v2740 = vld [vmem:[%s2 + $0x160] sm:$0xff]
    %v2741 = vld [vmem:[%s2 + $0x168] sm:$0xff]
    %v2742 = vld [vmem:[%s2 + $0x170] sm:$0xff]
    %v2743 = vld [vmem:[%s2 + $0x178] sm:$0xff]
    %v2744 = vld [vmem:[%s2 + $0x180] sm:$0xff]
    %v2745 = vld [vmem:[%s2 + $0x188] sm:$0xff]
    %v2746 = vld [vmem:[%s2 + $0x190] sm:$0xff]
    %v2747 = vld [vmem:[%s2 + $0x198] sm:$0xff]
    %v2748 = vld [vmem:[%s2 + $0x1a0] sm:$0xff]
    %v2749 = vld [vmem:[%s2 + $0x1a8] sm:$0xff]
    %v2750 = vld [vmem:[%s2 + $0x1b0] sm:$0xff]
    %v2751 = vld [vmem:[%s2 + $0x1b8] sm:$0xff]
    %v2752 = vld [vmem:[%s2 + $0x1c0] sm:$0xff]
    %v2753 = vld [vmem:[%s2 + $0x1c8] sm:$0xff]
    %v2754 = vld [vmem:[%s2 + $0x1d0] sm:$0xff]
    %v2755 = vld [vmem:[%s2 + $0x1d8] sm:$0xff]
    %v2756 = vld [vmem:[%s2 + $0x1e0] sm:$0xff]
    %v2757 = vld [vmem:[%s2 + $0x1e8] sm:$0xff]
    %v2758 = vld [vmem:[%s2 + $0x1f0] sm:$0xff]
    %v2759 = vld [vmem:[%s2 + $0x1f8] sm:$0xff]
    %v2760 = vld [vmem:[%s2 + $0x200] sm:$0xff]
    %v2761 = vld [vmem:[%s2 + $0x208] sm:$0xff]
    %v2762 = vld [vmem:[%s2 + $0x210] sm:$0xff]
    %v2763 = vld [vmem:[%s2 + $0x218] sm:$0xff]
    %v2764 = vld [vmem:[%s2 + $0x220] sm:$0xff]
    %v2765 = vld [vmem:[%s2 + $0x228] sm:$0xff]
    %v2766 = vld [vmem:[%s2 + $0x230] sm:$0xff]
    %v2767 = vld [vmem:[%s2 + $0x238] sm:$0xff]
    %v2768 = vld [vmem:[%s2 + $0x240] sm:$0xff]
    %v2769 = vld [vmem:[%s2 + $0x248] sm:$0xff]
    %v2770 = vld [vmem:[%s2 + $0x250] sm:$0xff]
    %v2771 = vld [vmem:[%s2 + $0x258] sm:$0xff]
    %v2772 = vld [vmem:[%s2 + $0x260] sm:$0xff]
    %v2773 = vld [vmem:[%s2 + $0x268] sm:$0xff]
    %v2774 = vld [vmem:[%s2 + $0x270] sm:$0xff]
    %v2775 = vld [vmem:[%s2 + $0x278] sm:$0xff]
    %v2776 = vld [vmem:[%s2 + $0x280] sm:$0xff]
    %v2777 = vld [vmem:[%s2 + $0x288] sm:$0xff]
    %v2778 = vld [vmem:[%s2 + $0x290] sm:$0xff]
    %v2779 = vld [vmem:[%s2 + $0x298] sm:$0xff]
    %v2780 = vld [vmem:[%s2 + $0x2a0] sm:$0xff]
    %v2781 = vld [vmem:[%s2 + $0x2a8] sm:$0xff]
    %v2782 = vld [vmem:[%s2 + $0x2b0] sm:$0xff]
    %v2783 = vld [vmem:[%s2 + $0x2b8] sm:$0xff]
    %v2784 = vld [vmem:[%s2 + $0x2c0] sm:$0xff]
    %v2785 = vld [vmem:[%s2 + $0x2c8] sm:$0xff]
    %v2786 = vld [vmem:[%s2 + $0x2d0] sm:$0xff]
    %v2787 = vld [vmem:[%s2 + $0x2d8] sm:$0xff]
    %v2788 = vld [vmem:[%s2 + $0x2e0] sm:$0xff]
    %v2789 = vld [vmem:[%s2 + $0x2e8] sm:$0xff]
    %v2790 = vld [vmem:[%s2 + $0x2f0] sm:$0xff]
    %v2791 = vld [vmem:[%s2 + $0x2f8] sm:$0xff]
    %s2792 = scalar_lea.vmem %s13, 1
    %v2793 = vld [vmem:[%s2792] ss:$8 sm:$0x3]
    %v2794 = vpack.c.bf16 %v2690, %v2684
    %v2795 = vpack.c.bf16 %v2691, %v2685
    %v2796 = vpack.c.bf16 %v2692, %v2686
    %v2797 = vpack.c.bf16 %v2693, %v2687
    %v2798 = vpack.c.bf16 %v2694, %v2688
    %v2799 = vpack.c.bf16 %v2695, %v2689
    %v2801 = vlaneseq
    %v2802 = vshrl.u32 %v2801, 7
    %v2803 = vsub.s32 0, %v2802
    %v2804 = vrot.slane %v2793, %v2803
    %v2805 = vlaneseq
    %v2806 = vshrl.u32 %v2805, 7
    %v2807 = vsub.s32 1, %v2806
    %v2808 = vrot.slane %v2793, %v2807
    %v2907 = vunpack.c.l.b16 %v2696
    %v2908 = vunpack.c.h.b16 %v2696
    %v2909 = vunpack.c.l.b16 %v2697
    %v2910 = vunpack.c.h.b16 %v2697
    %v2911 = vunpack.c.l.b16 %v2698
    %v2912 = vunpack.c.h.b16 %v2698
    %v2913 = vunpack.c.l.b16 %v2699
    %v2914 = vunpack.c.h.b16 %v2699
    %v2915 = vunpack.c.l.b16 %v2700
    %v2916 = vunpack.c.h.b16 %v2700
    %v2917 = vunpack.c.l.b16 %v2701
    %v2918 = vunpack.c.h.b16 %v2701
    %v2919 = vunpack.c.l.b16 %v2702
    %v2920 = vunpack.c.h.b16 %v2702
    %v2921 = vunpack.c.l.b16 %v2703
    %v2922 = vunpack.c.h.b16 %v2703
    %v2923 = vunpack.c.l.b16 %v2704
    %v2924 = vunpack.c.h.b16 %v2704
    %v2925 = vunpack.c.l.b16 %v2705
    %v2926 = vunpack.c.h.b16 %v2705
    %v2927 = vunpack.c.l.b16 %v2706
    %v2928 = vunpack.c.h.b16 %v2706
    %v2929 = vunpack.c.l.b16 %v2707
    %v2930 = vunpack.c.h.b16 %v2707
    %v2931 = vunpack.c.l.b16 %v2708
    %v2932 = vunpack.c.h.b16 %v2708
    %v2933 = vunpack.c.l.b16 %v2709
    %v2934 = vunpack.c.h.b16 %v2709
    %v2935 = vunpack.c.l.b16 %v2710
    %v2936 = vunpack.c.h.b16 %v2710
    %v2937 = vunpack.c.l.b16 %v2711
    %v2938 = vunpack.c.h.b16 %v2711
    %v2939 = vunpack.c.l.b16 %v2712
    %v2940 = vunpack.c.h.b16 %v2712
    %v2941 = vunpack.c.l.b16 %v2713
    %v2942 = vunpack.c.h.b16 %v2713
    %v2943 = vunpack.c.l.b16 %v2714
    %v2944 = vunpack.c.h.b16 %v2714
    %v2945 = vunpack.c.l.b16 %v2715
    %v2946 = vunpack.c.h.b16 %v2715
    %v2947 = vunpack.c.l.b16 %v2716
    %v2948 = vunpack.c.h.b16 %v2716
    %v2949 = vunpack.c.l.b16 %v2717
    %v2950 = vunpack.c.h.b16 %v2717
    %v2951 = vunpack.c.l.b16 %v2718
    %v2952 = vunpack.c.h.b16 %v2718
    %v2953 = vunpack.c.l.b16 %v2719
    %v2954 = vunpack.c.h.b16 %v2719
    %v2955 = vunpack.c.l.b16 %v2720
    %v2956 = vunpack.c.h.b16 %v2720
    %v2957 = vunpack.c.l.b16 %v2721
    %v2958 = vunpack.c.h.b16 %v2721
    %v2959 = vunpack.c.l.b16 %v2722
    %v2960 = vunpack.c.h.b16 %v2722
    %v2961 = vunpack.c.l.b16 %v2723
    %v2962 = vunpack.c.h.b16 %v2723
    %v2963 = vunpack.c.l.b16 %v2724
    %v2964 = vunpack.c.h.b16 %v2724
    %v2965 = vunpack.c.l.b16 %v2725
    %v2966 = vunpack.c.h.b16 %v2725
    %v2967 = vunpack.c.l.b16 %v2726
    %v2968 = vunpack.c.h.b16 %v2726
    %v2969 = vunpack.c.l.b16 %v2727
    %v2970 = vunpack.c.h.b16 %v2727
    %v2971 = vunpack.c.l.b16 %v2728
    %v2972 = vunpack.c.h.b16 %v2728
    %v2973 = vunpack.c.l.b16 %v2729
    %v2974 = vunpack.c.h.b16 %v2729
    %v2975 = vunpack.c.l.b16 %v2730
    %v2976 = vunpack.c.h.b16 %v2730
    %v2977 = vunpack.c.l.b16 %v2731
    %v2978 = vunpack.c.h.b16 %v2731
    %v2979 = vunpack.c.l.b16 %v2732
    %v2980 = vunpack.c.h.b16 %v2732
    %v2981 = vunpack.c.l.b16 %v2733
    %v2982 = vunpack.c.h.b16 %v2733
    %v2983 = vunpack.c.l.b16 %v2734
    %v2984 = vunpack.c.h.b16 %v2734
    %v2985 = vunpack.c.l.b16 %v2735
    %v2986 = vunpack.c.h.b16 %v2735
    %v2987 = vunpack.c.l.b16 %v2736
    %v2988 = vunpack.c.h.b16 %v2736
    %v2989 = vunpack.c.l.b16 %v2737
    %v2990 = vunpack.c.h.b16 %v2737
    %v2991 = vunpack.c.l.b16 %v2738
    %v2992 = vunpack.c.h.b16 %v2738
    %v2993 = vunpack.c.l.b16 %v2739
    %v2994 = vunpack.c.h.b16 %v2739
    %v2995 = vunpack.c.l.b16 %v2740
    %v2996 = vunpack.c.h.b16 %v2740
    %v2997 = vunpack.c.l.b16 %v2741
    %v2998 = vunpack.c.h.b16 %v2741
    %v2999 = vunpack.c.l.b16 %v2742
    %v3000 = vunpack.c.h.b16 %v2742
    %v3001 = vunpack.c.l.b16 %v2743
    %v3002 = vunpack.c.h.b16 %v2743
    %v3003 = vunpack.c.l.b16 %v2744
    %v3004 = vunpack.c.h.b16 %v2744
    %v3005 = vunpack.c.l.b16 %v2745
    %v3006 = vunpack.c.h.b16 %v2745
    %v3007 = vunpack.c.l.b16 %v2746
    %v3008 = vunpack.c.h.b16 %v2746
    %v3009 = vunpack.c.l.b16 %v2747
    %v3010 = vunpack.c.h.b16 %v2747
    %v3011 = vunpack.c.l.b16 %v2748
    %v3012 = vunpack.c.h.b16 %v2748
    %v3013 = vunpack.c.l.b16 %v2749
    %v3014 = vunpack.c.h.b16 %v2749
    %v3015 = vunpack.c.l.b16 %v2750
    %v3016 = vunpack.c.h.b16 %v2750
    %v3017 = vunpack.c.l.b16 %v2751
    %v3018 = vunpack.c.h.b16 %v2751
    %v3019 = vunpack.c.l.b16 %v2752
    %v3020 = vunpack.c.h.b16 %v2752
    %v3021 = vunpack.c.l.b16 %v2753
    %v3022 = vunpack.c.h.b16 %v2753
    %v3023 = vunpack.c.l.b16 %v2754
    %v3024 = vunpack.c.h.b16 %v2754
    %v3025 = vunpack.c.l.b16 %v2755
    %v3026 = vunpack.c.h.b16 %v2755
    %v3027 = vunpack.c.l.b16 %v2756
    %v3028 = vunpack.c.h.b16 %v2756
    %v3029 = vunpack.c.l.b16 %v2757
    %v3030 = vunpack.c.h.b16 %v2757
    %v3031 = vunpack.c.l.b16 %v2758
    %v3032 = vunpack.c.h.b16 %v2758
    %v3033 = vunpack.c.l.b16 %v2759
    %v3034 = vunpack.c.h.b16 %v2759
    %v3035 = vunpack.c.l.b16 %v2760
    %v3036 = vunpack.c.h.b16 %v2760
    %v3037 = vunpack.c.l.b16 %v2761
    %v3038 = vunpack.c.h.b16 %v2761
    %v3039 = vunpack.c.l.b16 %v2762
    %v3040 = vunpack.c.h.b16 %v2762
    %v3041 = vunpack.c.l.b16 %v2763
    %v3042 = vunpack.c.h.b16 %v2763
    %v3043 = vunpack.c.l.b16 %v2764
    %v3044 = vunpack.c.h.b16 %v2764
    %v3045 = vunpack.c.l.b16 %v2765
    %v3046 = vunpack.c.h.b16 %v2765
    %v3047 = vunpack.c.l.b16 %v2766
    %v3048 = vunpack.c.h.b16 %v2766
    %v3049 = vunpack.c.l.b16 %v2767
    %v3050 = vunpack.c.h.b16 %v2767
    %v3051 = vunpack.c.l.b16 %v2768
    %v3052 = vunpack.c.h.b16 %v2768
    %v3053 = vunpack.c.l.b16 %v2769
    %v3054 = vunpack.c.h.b16 %v2769
    %v3055 = vunpack.c.l.b16 %v2770
    %v3056 = vunpack.c.h.b16 %v2770
    %v3057 = vunpack.c.l.b16 %v2771
    %v3058 = vunpack.c.h.b16 %v2771
    %v3059 = vunpack.c.l.b16 %v2772
    %v3060 = vunpack.c.h.b16 %v2772
    %v3061 = vunpack.c.l.b16 %v2773
    %v3062 = vunpack.c.h.b16 %v2773
    %v3063 = vunpack.c.l.b16 %v2774
    %v3064 = vunpack.c.h.b16 %v2774
    %v3065 = vunpack.c.l.b16 %v2775
    %v3066 = vunpack.c.h.b16 %v2775
    %v3067 = vunpack.c.l.b16 %v2776
    %v3068 = vunpack.c.h.b16 %v2776
    %v3069 = vunpack.c.l.b16 %v2777
    %v3070 = vunpack.c.h.b16 %v2777
    %v3071 = vunpack.c.l.b16 %v2778
    %v3072 = vunpack.c.h.b16 %v2778
    %v3073 = vunpack.c.l.b16 %v2779
    %v3074 = vunpack.c.h.b16 %v2779
    %v3075 = vunpack.c.l.b16 %v2780
    %v3076 = vunpack.c.h.b16 %v2780
    %v3077 = vunpack.c.l.b16 %v2781
    %v3078 = vunpack.c.h.b16 %v2781
    %v3079 = vunpack.c.l.b16 %v2782
    %v3080 = vunpack.c.h.b16 %v2782
    %v3081 = vunpack.c.l.b16 %v2783
    %v3082 = vunpack.c.h.b16 %v2783
    %v3083 = vunpack.c.l.b16 %v2784
    %v3084 = vunpack.c.h.b16 %v2784
    %v3085 = vunpack.c.l.b16 %v2785
    %v3086 = vunpack.c.h.b16 %v2785
    %v3087 = vunpack.c.l.b16 %v2786
    %v3088 = vunpack.c.h.b16 %v2786
    %v3089 = vunpack.c.l.b16 %v2787
    %v3090 = vunpack.c.h.b16 %v2787
    %v3091 = vunpack.c.l.b16 %v2788
    %v3092 = vunpack.c.h.b16 %v2788
    %v3093 = vunpack.c.l.b16 %v2789
    %v3094 = vunpack.c.h.b16 %v2789
    %v3095 = vunpack.c.l.b16 %v2790
    %v3096 = vunpack.c.h.b16 %v2790
    %v3097 = vunpack.c.l.b16 %v2791
    %v3098 = vunpack.c.h.b16 %v2791
    %v3099 = vpack.c.b16 %v2909, %v2907
    %v3100 = vpack.c.b16 %v2910, %v2908
    %v3101 = vpack.c.b16 %v2913, %v2911
    %v3102 = vpack.c.b16 %v2914, %v2912
    %v3103 = vpack.c.b16 %v2917, %v2915
    %v3104 = vpack.c.b16 %v2918, %v2916
    %v3105 = vpack.c.b16 %v2921, %v2919
    %v3106 = vpack.c.b16 %v2922, %v2920
    %v3107 = vpack.c.b16 %v2925, %v2923
    %v3108 = vpack.c.b16 %v2926, %v2924
    %v3109 = vpack.c.b16 %v2929, %v2927
    %v3110 = vpack.c.b16 %v2930, %v2928
    %v3111 = vpack.c.b16 %v2933, %v2931
    %v3112 = vpack.c.b16 %v2934, %v2932
    %v3113 = vpack.c.b16 %v2937, %v2935
    %v3114 = vpack.c.b16 %v2938, %v2936
    %v3115 = vpack.c.b16 %v2941, %v2939
    %v3116 = vpack.c.b16 %v2942, %v2940
    %v3117 = vpack.c.b16 %v2945, %v2943
    %v3118 = vpack.c.b16 %v2946, %v2944
    %v3119 = vpack.c.b16 %v2949, %v2947
    %v3120 = vpack.c.b16 %v2950, %v2948
    %v3121 = vpack.c.b16 %v2953, %v2951
    %v3122 = vpack.c.b16 %v2954, %v2952
    %v3123 = vpack.c.b16 %v2957, %v2955
    %v3124 = vpack.c.b16 %v2958, %v2956
    %v3125 = vpack.c.b16 %v2961, %v2959
    %v3126 = vpack.c.b16 %v2962, %v2960
    %v3127 = vpack.c.b16 %v2965, %v2963
    %v3128 = vpack.c.b16 %v2966, %v2964
    %v3129 = vpack.c.b16 %v2969, %v2967
    %v3130 = vpack.c.b16 %v2970, %v2968
    %v3131 = vpack.c.b16 %v2973, %v2971
    %v3132 = vpack.c.b16 %v2974, %v2972
    %v3133 = vpack.c.b16 %v2977, %v2975
    %v3134 = vpack.c.b16 %v2978, %v2976
    %v3135 = vpack.c.b16 %v2981, %v2979
    %v3136 = vpack.c.b16 %v2982, %v2980
    %v3137 = vpack.c.b16 %v2985, %v2983
    %v3138 = vpack.c.b16 %v2986, %v2984
    %v3139 = vpack.c.b16 %v2989, %v2987
    %v3140 = vpack.c.b16 %v2990, %v2988
    %v3141 = vpack.c.b16 %v2993, %v2991
    %v3142 = vpack.c.b16 %v2994, %v2992
    %v3143 = vpack.c.b16 %v2997, %v2995
    %v3144 = vpack.c.b16 %v2998, %v2996
    %v3145 = vpack.c.b16 %v3001, %v2999
    %v3146 = vpack.c.b16 %v3002, %v3000
    %v3147 = vpack.c.b16 %v3005, %v3003
    %v3148 = vpack.c.b16 %v3006, %v3004
    %v3149 = vpack.c.b16 %v3009, %v3007
    %v3150 = vpack.c.b16 %v3010, %v3008
    %v3151 = vpack.c.b16 %v3013, %v3011
    %v3152 = vpack.c.b16 %v3014, %v3012
    %v3153 = vpack.c.b16 %v3017, %v3015
    %v3154 = vpack.c.b16 %v3018, %v3016
    %v3155 = vpack.c.b16 %v3021, %v3019
    %v3156 = vpack.c.b16 %v3022, %v3020
    %v3157 = vpack.c.b16 %v3025, %v3023
    %v3158 = vpack.c.b16 %v3026, %v3024
    %v3159 = vpack.c.b16 %v3029, %v3027
    %v3160 = vpack.c.b16 %v3030, %v3028
    %v3161 = vpack.c.b16 %v3033, %v3031
    %v3162 = vpack.c.b16 %v3034, %v3032
    %v3163 = vpack.c.b16 %v3037, %v3035
    %v3164 = vpack.c.b16 %v3038, %v3036
    %v3165 = vpack.c.b16 %v3041, %v3039
    %v3166 = vpack.c.b16 %v3042, %v3040
    %v3167 = vpack.c.b16 %v3045, %v3043
    %v3168 = vpack.c.b16 %v3046, %v3044
    %v3169 = vpack.c.b16 %v3049, %v3047
    %v3170 = vpack.c.b16 %v3050, %v3048
    %v3171 = vpack.c.b16 %v3053, %v3051
    %v3172 = vpack.c.b16 %v3054, %v3052
    %v3173 = vpack.c.b16 %v3057, %v3055
    %v3174 = vpack.c.b16 %v3058, %v3056
    %v3175 = vpack.c.b16 %v3061, %v3059
    %v3176 = vpack.c.b16 %v3062, %v3060
    %v3177 = vpack.c.b16 %v3065, %v3063
    %v3178 = vpack.c.b16 %v3066, %v3064
    %v3179 = vpack.c.b16 %v3069, %v3067
    %v3180 = vpack.c.b16 %v3070, %v3068
    %v3181 = vpack.c.b16 %v3073, %v3071
    %v3182 = vpack.c.b16 %v3074, %v3072
    %v3183 = vpack.c.b16 %v3077, %v3075
    %v3184 = vpack.c.b16 %v3078, %v3076
    %v3185 = vpack.c.b16 %v3081, %v3079
    %v3186 = vpack.c.b16 %v3082, %v3080
    %v3187 = vpack.c.b16 %v3085, %v3083
    %v3188 = vpack.c.b16 %v3086, %v3084
    %v3189 = vpack.c.b16 %v3089, %v3087
    %v3190 = vpack.c.b16 %v3090, %v3088
    %v3191 = vpack.c.b16 %v3093, %v3091
    %v3192 = vpack.c.b16 %v3094, %v3092
    %v3193 = vpack.c.b16 %v3097, %v3095
    %v3194 = vpack.c.b16 %v3098, %v3096
    %3291 = vmatprep.subr.bf16.mxu0 %v3114
    %3292 = vmatpush1.bf16.msra.mxu0 %v3113
    %3293 = vmatprep.subr.bf16.mxu0 %v3112
    %3294 = vmatpush1.bf16.msra.mxu0 %v3111
    %3295 = vmatprep.subr.bf16.mxu0 %v3110
    %3296 = vmatpush1.bf16.msra.mxu0 %v3109
    %3297 = vmatprep.subr.bf16.mxu0 %v3108
    %3298 = vmatpush1.bf16.msra.mxu0 %v3107
    %3299 = vmatprep.subr.bf16.mxu0 %v3106
    %3300 = vmatpush1.bf16.msra.mxu0 %v3105
    %3301 = vmatprep.subr.bf16.mxu0 %v3104
    %3302 = vmatpush1.bf16.msra.mxu0 %v3103
    %3303 = vmatprep.subr.bf16.mxu0 %v3102
    %3304 = vmatpush1.bf16.msra.mxu0 %v3101
    %3305 = vmatprep.subr.bf16.mxu0 %v3100
    %3306 = vmatpush1.bf16.msra.mxu0 %v3099
    %3307 = vmatprep.subr.bf16.mxu0 %v3130
    %3308 = vmatpush2.bf16.msra.mxu0 %v3129
    %3309 = vmatprep.subr.bf16.mxu0 %v3128
    %3310 = vmatpush2.bf16.msra.mxu0 %v3127
    %3311 = vmatprep.subr.bf16.mxu0 %v3126
    %3312 = vmatpush2.bf16.msra.mxu0 %v3125
    %3313 = vmatprep.subr.bf16.mxu0 %v3124
    %3314 = vmatpush2.bf16.msra.mxu0 %v3123
    %3315 = vmatprep.subr.bf16.mxu0 %v3122
    %3316 = vmatpush2.bf16.msra.mxu0 %v3121
    %3317 = vmatprep.subr.bf16.mxu0 %v3120
    %3318 = vmatpush2.bf16.msra.mxu0 %v3119
    %3319 = vmatprep.subr.bf16.mxu0 %v3118
    %3320 = vmatpush2.bf16.msra.mxu0 %v3117
    %3321 = vmatprep.subr.bf16.mxu0 %v3116
    %3322 = vmatpush2.bf16.msra.mxu0 %v3115
    %3323 = vmatprep.mubr.bf16.mxu0 %v2795
    %3324 = vmatmul.mubr.bf16.gmra.mxu0 %v2794
    %v3325 = vpop.f32.mrf.mxu0
    %v3326 = vadd.f32 %v2804, %v3325
    %v3327 = vpop.f32.mrf.mxu0
    %v3328 = vadd.f32 %v2808, %v3327
    %v3329 = vpop.f32.mrf.mxu0
    %v3330 = vadd.f32 %v2804, %v3329
    %v3331 = vpop.f32.mrf.mxu0
    %v3332 = vadd.f32 %v2808, %v3331
    %3333 = vdwg.mxu0
    %3334 = vmatprep.subr.bf16.mxu0 %v3146
    %3335 = vmatpush1.bf16.msra.mxu0 %v3145
    %3336 = vmatprep.subr.bf16.mxu0 %v3144
    %3337 = vmatpush1.bf16.msra.mxu0 %v3143
    %3338 = vmatprep.subr.bf16.mxu0 %v3142
    %3339 = vmatpush1.bf16.msra.mxu0 %v3141
    %3340 = vmatprep.subr.bf16.mxu0 %v3140
    %3341 = vmatpush1.bf16.msra.mxu0 %v3139
    %3342 = vmatprep.subr.bf16.mxu0 %v3138
    %3343 = vmatpush1.bf16.msra.mxu0 %v3137
    %3344 = vmatprep.subr.bf16.mxu0 %v3136
    %3345 = vmatpush1.bf16.msra.mxu0 %v3135
    %3346 = vmatprep.subr.bf16.mxu0 %v3134
    %3347 = vmatpush1.bf16.msra.mxu0 %v3133
    %3348 = vmatprep.subr.bf16.mxu0 %v3132
    %3349 = vmatpush1.bf16.msra.mxu0 %v3131
    %3350 = vmatprep.subr.bf16.mxu0 %v3162
    %3351 = vmatpush2.bf16.msra.mxu0 %v3161
    %3352 = vmatprep.subr.bf16.mxu0 %v3160
    %3353 = vmatpush2.bf16.msra.mxu0 %v3159
    %3354 = vmatprep.subr.bf16.mxu0 %v3158
    %3355 = vmatpush2.bf16.msra.mxu0 %v3157
    %3356 = vmatprep.subr.bf16.mxu0 %v3156
    %3357 = vmatpush2.bf16.msra.mxu0 %v3155
    %3358 = vmatprep.subr.bf16.mxu0 %v3154
    %3359 = vmatpush2.bf16.msra.mxu0 %v3153
    %3360 = vmatprep.subr.bf16.mxu0 %v3152
    %3361 = vmatpush2.bf16.msra.mxu0 %v3151
    %3362 = vmatprep.subr.bf16.mxu0 %v3150
    %3363 = vmatpush2.bf16.msra.mxu0 %v3149
    %3364 = vmatprep.subr.bf16.mxu0 %v3148
    %3365 = vmatpush2.bf16.msra.mxu0 %v3147
    %3366 = vmatprep.mubr.bf16.mxu0 %v2797
    %3367 = vmatmul.mubr.bf16.gmra.mxu0 %v2796
    %v3368 = vpop.f32.mrf.mxu0
    %v3369 = vadd.f32 %v3326, %v3368
    %v3370 = vpop.f32.mrf.mxu0
    %v3371 = vadd.f32 %v3328, %v3370
    %v3372 = vpop.f32.mrf.mxu0
    %v3373 = vadd.f32 %v3330, %v3372
    %v3374 = vpop.f32.mrf.mxu0
    %v3375 = vadd.f32 %v3332, %v3374
    %3376 = vdwg.mxu0
    %3377 = vmatprep.subr.bf16.mxu0 %v3178
    %3378 = vmatpush1.bf16.msra.mxu0 %v3177
    %3379 = vmatprep.subr.bf16.mxu0 %v3176
    %3380 = vmatpush1.bf16.msra.mxu0 %v3175
    %3381 = vmatprep.subr.bf16.mxu0 %v3174
    %3382 = vmatpush1.bf16.msra.mxu0 %v3173
    %3383 = vmatprep.subr.bf16.mxu0 %v3172
    %3384 = vmatpush1.bf16.msra.mxu0 %v3171
    %3385 = vmatprep.subr.bf16.mxu0 %v3170
    %3386 = vmatpush1.bf16.msra.mxu0 %v3169
    %3387 = vmatprep.subr.bf16.mxu0 %v3168
    %3388 = vmatpush1.bf16.msra.mxu0 %v3167
    %3389 = vmatprep.subr.bf16.mxu0 %v3166
    %3390 = vmatpush1.bf16.msra.mxu0 %v3165
    %3391 = vmatprep.subr.bf16.mxu0 %v3164
    %3392 = vmatpush1.bf16.msra.mxu0 %v3163
    %3393 = vmatprep.subr.bf16.mxu0 %v3194
    %3394 = vmatpush2.bf16.msra.mxu0 %v3193
    %3395 = vmatprep.subr.bf16.mxu0 %v3192
    %3396 = vmatpush2.bf16.msra.mxu0 %v3191
    %3397 = vmatprep.subr.bf16.mxu0 %v3190
    %3398 = vmatpush2.bf16.msra.mxu0 %v3189
    %3399 = vmatprep.subr.bf16.mxu0 %v3188
    %3400 = vmatpush2.bf16.msra.mxu0 %v3187
    %3401 = vmatprep.subr.bf16.mxu0 %v3186
    %3402 = vmatpush2.bf16.msra.mxu0 %v3185
    %3403 = vmatprep.subr.bf16.mxu0 %v3184
    %3404 = vmatpush2.bf16.msra.mxu0 %v3183
    %3405 = vmatprep.subr.bf16.mxu0 %v3182
    %3406 = vmatpush2.bf16.msra.mxu0 %v3181
    %3407 = vmatprep.subr.bf16.mxu0 %v3180
    %3408 = vmatpush2.bf16.msra.mxu0 %v3179
    %3409 = vmatprep.mubr.bf16.mxu0 %v2799
    %3410 = vmatmul.mubr.bf16.gmra.mxu0 %v2798
    %v3411 = vpop.f32.mrf.mxu0
    %v3412 = vadd.f32 %v3369, %v3411
    %v3413 = vpop.f32.mrf.mxu0
    %v3414 = vadd.f32 %v3371, %v3413
    %v3415 = vpop.f32.mrf.mxu0
    %v3416 = vadd.f32 %v3373, %v3415
    %v3417 = vpop.f32.mrf.mxu0
    %v3418 = vadd.f32 %v3375, %v3417
    %3419 = vdwg.mxu0
    %v3420 = vmul.f32 %v3412, 0.5
    %v3421 = vmul.f32 %v3414, 0.5
    %v3422 = vmul.f32 %v3416, 0.5
    %v3423 = vmul.f32 %v3418, 0.5
    %v3424 = vmul.f32 %v3412, 0.70710677
    %v3425 = vmul.f32 %v3414, 0.70710677
    %v3426 = vmul.f32 %v3416, 0.70710677
    %v3427 = vmul.f32 %v3418, 0.70710677
    %v3428 = verf.f32.pop %v3424
    %v3429 = verf.f32.pop %v3425
    %v3430 = verf.f32.pop %v3426
    %v3431 = verf.f32.pop %v3427
    %v3432 = vadd.f32 %v3428, 1.0
    %v3433 = vadd.f32 %v3429, 1.0
    %v3434 = vadd.f32 %v3430, 1.0
    %v3435 = vadd.f32 %v3431, 1.0
    %v3436 = vmul.f32 %v3420, %v3432
    %v3437 = vmul.f32 %v3421, %v3433
    %v3438 = vmul.f32 %v3422, %v3434
    %v3439 = vmul.f32 %v3423, %v3435
    %v3440 = vld [vmem:[%s3] sm:$0xf]
    %v3441 = vld [vmem:[%s3 + $0x4] sm:$0xf]
    %v3442 = vld [vmem:[%s3 + $0x8] sm:$0xf]
    %v3443 = vld [vmem:[%s3 + $0xc] sm:$0xf]
    %v3444 = vld [vmem:[%s3 + $0x10] sm:$0xf]
    %v3445 = vld [vmem:[%s3 + $0x14] sm:$0xf]
    %v3446 = vld [vmem:[%s3 + $0x18] sm:$0xf]
    %v3447 = vld [vmem:[%s3 + $0x1c] sm:$0xf]
    %v3448 = vld [vmem:[%s3 + $0x20] sm:$0xf]
    %v3449 = vld [vmem:[%s3 + $0x24] sm:$0xf]
    %v3450 = vld [vmem:[%s3 + $0x28] sm:$0xf]
    %v3451 = vld [vmem:[%s3 + $0x2c] sm:$0xf]
    %v3452 = vld [vmem:[%s3 + $0x30] sm:$0xf]
    %v3453 = vld [vmem:[%s3 + $0x34] sm:$0xf]
    %v3454 = vld [vmem:[%s3 + $0x38] sm:$0xf]
    %v3455 = vld [vmem:[%s3 + $0x3c] sm:$0xf]
    %v3456 = vld [vmem:[%s3 + $0x40] sm:$0xf]
    %v3457 = vld [vmem:[%s3 + $0x44] sm:$0xf]
    %v3458 = vld [vmem:[%s3 + $0x48] sm:$0xf]
    %v3459 = vld [vmem:[%s3 + $0x4c] sm:$0xf]
    %v3460 = vld [vmem:[%s3 + $0x50] sm:$0xf]
    %v3461 = vld [vmem:[%s3 + $0x54] sm:$0xf]
    %v3462 = vld [vmem:[%s3 + $0x58] sm:$0xf]
    %v3463 = vld [vmem:[%s3 + $0x5c] sm:$0xf]
    %v3464 = vld [vmem:[%s3 + $0x60] sm:$0xf]
    %v3465 = vld [vmem:[%s3 + $0x64] sm:$0xf]
    %v3466 = vld [vmem:[%s3 + $0x68] sm:$0xf]
    %v3467 = vld [vmem:[%s3 + $0x6c] sm:$0xf]
    %v3468 = vld [vmem:[%s3 + $0x70] sm:$0xf]
    %v3469 = vld [vmem:[%s3 + $0x74] sm:$0xf]
    %v3470 = vld [vmem:[%s3 + $0x78] sm:$0xf]
    %v3471 = vld [vmem:[%s3 + $0x7c] sm:$0xf]
    %v3472 = vld [vmem:[%s13 + $0x2] ss:$0 sm:$0xff]
    %v3473 = vpack.c.bf16 %v3438, %v3436
    %v3474 = vpack.c.bf16 %v3439, %v3437
    %v3507 = vunpack.c.l.b16 %v3440
    %v3508 = vunpack.c.l.b16 %v3441
    %v3509 = vunpack.c.l.b16 %v3442
    %v3510 = vunpack.c.l.b16 %v3443
    %v3511 = vunpack.c.l.b16 %v3444
    %v3512 = vunpack.c.l.b16 %v3445
    %v3513 = vunpack.c.l.b16 %v3446
    %v3514 = vunpack.c.l.b16 %v3447
    %v3515 = vunpack.c.l.b16 %v3448
    %v3516 = vunpack.c.l.b16 %v3449
    %v3517 = vunpack.c.l.b16 %v3450
    %v3518 = vunpack.c.l.b16 %v3451
    %v3519 = vunpack.c.l.b16 %v3452
    %v3520 = vunpack.c.l.b16 %v3453
    %v3521 = vunpack.c.l.b16 %v3454
    %v3522 = vunpack.c.l.b16 %v3455
    %v3523 = vunpack.c.l.b16 %v3456
    %v3524 = vunpack.c.l.b16 %v3457
    %v3525 = vunpack.c.l.b16 %v3458
    %v3526 = vunpack.c.l.b16 %v3459
    %v3527 = vunpack.c.l.b16 %v3460
    %v3528 = vunpack.c.l.b16 %v3461
    %v3529 = vunpack.c.l.b16 %v3462
    %v3530 = vunpack.c.l.b16 %v3463
    %v3531 = vunpack.c.l.b16 %v3464
    %v3532 = vunpack.c.l.b16 %v3465
    %v3533 = vunpack.c.l.b16 %v3466
    %v3534 = vunpack.c.l.b16 %v3467
    %v3535 = vunpack.c.l.b16 %v3468
    %v3536 = vunpack.c.l.b16 %v3469
    %v3537 = vunpack.c.l.b16 %v3470
    %v3538 = vunpack.c.l.b16 %v3471
    %v3539 = vpack.c.b16 %v3508, %v3507
    %v3540 = vpack.c.b16 %v3510, %v3509
    %v3541 = vpack.c.b16 %v3512, %v3511
    %v3542 = vpack.c.b16 %v3514, %v3513
    %v3543 = vpack.c.b16 %v3516, %v3515
    %v3544 = vpack.c.b16 %v3518, %v3517
    %v3545 = vpack.c.b16 %v3520, %v3519
    %v3546 = vpack.c.b16 %v3522, %v3521
    %v3547 = vpack.c.b16 %v3524, %v3523
    %v3548 = vpack.c.b16 %v3526, %v3525
    %v3549 = vpack.c.b16 %v3528, %v3527
    %v3550 = vpack.c.b16 %v3530, %v3529
    %v3551 = vpack.c.b16 %v3532, %v3531
    %v3552 = vpack.c.b16 %v3534, %v3533
    %v3553 = vpack.c.b16 %v3536, %v3535
    %v3554 = vpack.c.b16 %v3538, %v3537
    %3571 = vmatprep.subr.bf16.mxu0 0
    %3572 = vmatpush1.bf16.msra.mxu0 %v3546
    %3573 = vmatprep.subr.bf16.mxu0 0
    %3574 = vmatpush1.bf16.msra.mxu0 %v3545
    %3575 = vmatprep.subr.bf16.mxu0 0
    %3576 = vmatpush1.bf16.msra.mxu0 %v3544
    %3577 = vmatprep.subr.bf16.mxu0 0
    %3578 = vmatpush1.bf16.msra.mxu0 %v3543
    %3579 = vmatprep.subr.bf16.mxu0 0
    %3580 = vmatpush1.bf16.msra.mxu0 %v3542
    %3581 = vmatprep.subr.bf16.mxu0 0
    %3582 = vmatpush1.bf16.msra.mxu0 %v3541
    %3583 = vmatprep.subr.bf16.mxu0 0
    %3584 = vmatpush1.bf16.msra.mxu0 %v3540
    %3585 = vmatprep.subr.bf16.mxu0 0
    %3586 = vmatpush1.bf16.msra.mxu0 %v3539
    %3587 = vmatprep.subr.bf16.mxu0 0
    %3588 = vmatpush2.bf16.msra.mxu0 %v3554
    %3589 = vmatprep.subr.bf16.mxu0 0
    %3590 = vmatpush2.bf16.msra.mxu0 %v3553
    %3591 = vmatprep.subr.bf16.mxu0 0
    %3592 = vmatpush2.bf16.msra.mxu0 %v3552
    %3593 = vmatprep.subr.bf16.mxu0 0
    %3594 = vmatpush2.bf16.msra.mxu0 %v3551
    %3595 = vmatprep.subr.bf16.mxu0 0
    %3596 = vmatpush2.bf16.msra.mxu0 %v3550
    %3597 = vmatprep.subr.bf16.mxu0 0
    %3598 = vmatpush2.bf16.msra.mxu0 %v3549
    %3599 = vmatprep.subr.bf16.mxu0 0
    %3600 = vmatpush2.bf16.msra.mxu0 %v3548
    %3601 = vmatprep.subr.bf16.mxu0 0
    %3602 = vmatpush2.bf16.msra.mxu0 %v3547
    %3603 = vmatprep.mubr.bf16.mxu0 %v3474
    %3604 = vmatmul.mubr.bf16.gmra.mxu0 %v3473
    %v3605 = vpop.f32.mrf.mxu0
    %v3606 = vadd.f32 %v3472, %v3605
    %v3607 = vpop.f32.mrf.mxu0
    %v3608 = vpop.f32.mrf.mxu0
    %v3609 = vadd.f32 %v3472, %v3608
    %v3610 = vpop.f32.mrf.mxu0
    %3611 = vdwg.mxu0
    %v3612 = vmul.f32 %v3606, 0.5
    %v3613 = vmul.f32 %v3609, 0.5
    %v3614 = vmul.f32 %v3606, 0.70710677
    %v3615 = vmul.f32 %v3609, 0.70710677
    %v3616 = verf.f32.pop %v3614
    %v3617 = verf.f32.pop %v3615
    %v3618 = vadd.f32 %v3616, 1.0
    %v3619 = vadd.f32 %v3617, 1.0
    %v3620 = vmul.f32 %v3612, %v3618
    %v3621 = vmul.f32 %v3613, %v3619
    %v3622 = vld [vmem:[%s4] sm:$0xf]
    %v3623 = vld [vmem:[%s4 + $0x4] sm:$0xf]
    %v3624 = vld [vmem:[%s4 + $0x8] sm:$0xf]
    %v3625 = vld [vmem:[%s4 + $0xc] sm:$0xf]
    %v3626 = vld [vmem:[%s4 + $0x10] sm:$0xf]
    %v3627 = vld [vmem:[%s4 + $0x14] sm:$0xf]
    %v3628 = vld [vmem:[%s4 + $0x18] sm:$0xf]
    %v3629 = vld [vmem:[%s4 + $0x1c] sm:$0xf]
    %v3630 = vld [vmem:[%s4 + $0x20] sm:$0xf]
    %v3631 = vld [vmem:[%s4 + $0x24] sm:$0xf]
    %v3632 = vld [vmem:[%s4 + $0x28] sm:$0xf]
    %v3633 = vld [vmem:[%s4 + $0x2c] sm:$0xf]
    %v3634 = vld [vmem:[%s4 + $0x30] sm:$0xf]
    %v3635 = vld [vmem:[%s4 + $0x34] sm:$0xf]
    %v3636 = vld [vmem:[%s4 + $0x38] sm:$0xf]
    %v3637 = vld [vmem:[%s4 + $0x3c] sm:$0xf]
    %v3638 = vld [vmem:[%s13 + $0x3] ss:$0 sm:$0xff]
    %v3639 = vpack.c.bf16 %v3621, %v3620
    %v3656 = vunpack.c.l.b16 %v3622
    %v3657 = vunpack.c.l.b16 %v3623
    %v3658 = vunpack.c.l.b16 %v3624
    %v3659 = vunpack.c.l.b16 %v3625
    %v3660 = vunpack.c.l.b16 %v3626
    %v3661 = vunpack.c.l.b16 %v3627
    %v3662 = vunpack.c.l.b16 %v3628
    %v3663 = vunpack.c.l.b16 %v3629
    %v3664 = vunpack.c.l.b16 %v3630
    %v3665 = vunpack.c.l.b16 %v3631
    %v3666 = vunpack.c.l.b16 %v3632
    %v3667 = vunpack.c.l.b16 %v3633
    %v3668 = vunpack.c.l.b16 %v3634
    %v3669 = vunpack.c.l.b16 %v3635
    %v3670 = vunpack.c.l.b16 %v3636
    %v3671 = vunpack.c.l.b16 %v3637
    %v3672 = vpack.c.b16 %v3657, %v3656
    %v3673 = vpack.c.b16 %v3659, %v3658
    %v3674 = vpack.c.b16 %v3661, %v3660
    %v3675 = vpack.c.b16 %v3663, %v3662
    %v3676 = vpack.c.b16 %v3665, %v3664
    %v3677 = vpack.c.b16 %v3667, %v3666
    %v3678 = vpack.c.b16 %v3669, %v3668
    %v3679 = vpack.c.b16 %v3671, %v3670
    %3688 = vmatprep.subr.bf16.mxu0 0
    %3689 = vmatpush1.bf16.msra.mxu0 %v3679
    %3690 = vmatprep.subr.bf16.mxu0 0
    %3691 = vmatpush1.bf16.msra.mxu0 %v3678
    %3692 = vmatprep.subr.bf16.mxu0 0
    %3693 = vmatpush1.bf16.msra.mxu0 %v3677
    %3694 = vmatprep.subr.bf16.mxu0 0
    %3695 = vmatpush1.bf16.msra.mxu0 %v3676
    %3696 = vmatprep.subr.bf16.mxu0 0
    %3697 = vmatpush1.bf16.msra.mxu0 %v3675
    %3698 = vmatprep.subr.bf16.mxu0 0
    %3699 = vmatpush1.bf16.msra.mxu0 %v3674
    %3700 = vmatprep.subr.bf16.mxu0 0
    %3701 = vmatpush1.bf16.msra.mxu0 %v3673
    %3702 = vmatprep.subr.bf16.mxu0 0
    %3703 = vmatpush1.bf16.msra.mxu0 %v3672
    %3704 = vmatprep.subr.bf16.mxu0 0
    %3705 = vmatpush2.bf16.msra.mxu0 0
    %3706 = vmatprep.subr.bf16.mxu0 0
    %3707 = vmatpush2.bf16.msra.mxu0 0
    %3708 = vmatprep.subr.bf16.mxu0 0
    %3709 = vmatpush2.bf16.msra.mxu0 0
    %3710 = vmatprep.subr.bf16.mxu0 0
    %3711 = vmatpush2.bf16.msra.mxu0 0
    %3712 = vmatprep.subr.bf16.mxu0 0
    %3713 = vmatpush2.bf16.msra.mxu0 0
    %3714 = vmatprep.subr.bf16.mxu0 0
    %3715 = vmatpush2.bf16.msra.mxu0 0
    %3716 = vmatprep.subr.bf16.mxu0 0
    %3717 = vmatpush2.bf16.msra.mxu0 0
    %3718 = vmatprep.subr.bf16.mxu0 0
    %3719 = vmatpush2.bf16.msra.mxu0 0
    %3720 = vmatprep.mubr.bf16.mxu0 0
    %3721 = vmatmul.mubr.bf16.gmra.mxu0 %v3639
    %v3722 = vpop.f32.mrf.mxu0
    %v3723 = vadd.f32 %v3638, %v3722
    %v3724 = vpop.f32.mrf.mxu0
    %v3725 = vpop.f32.mrf.mxu0
    %v3726 = vadd.f32 %v3638, %v3725
    %v3727 = vpop.f32.mrf.mxu0
    %3728 = vdwg.mxu0
    %v3729 = vmul.f32 %v3723, 0.5
    %v3730 = vmul.f32 %v3726, 0.5
    %v3731 = vmul.f32 %v3723, 0.70710677
    %v3732 = vmul.f32 %v3726, 0.70710677
    %v3733 = verf.f32.pop %v3731
    %v3734 = verf.f32.pop %v3732
    %v3735 = vadd.f32 %v3733, 1.0
    %v3736 = vadd.f32 %v3734, 1.0
    %v3737 = vmul.f32 %v3729, %v3735
    %v3738 = vmul.f32 %v3730, %v3736
    %v3739 = vld [vmem:[%s5] sm:$0xf]
    %v3740 = vld [vmem:[%s5 + $0x4] sm:$0xf]
    %v3741 = vld [vmem:[%s5 + $0x8] sm:$0xf]
    %v3742 = vld [vmem:[%s5 + $0xc] sm:$0xf]
    %v3743 = vld [vmem:[%s5 + $0x10] sm:$0xf]
    %v3744 = vld [vmem:[%s5 + $0x14] sm:$0xf]
    %v3745 = vld [vmem:[%s5 + $0x18] sm:$0xf]
    %v3746 = vld [vmem:[%s5 + $0x1c] sm:$0xf]
    %v3747 = vld [vmem:[%s5 + $0x20] sm:$0xf]
    %v3748 = vld [vmem:[%s5 + $0x24] sm:$0xf]
    %v3749 = vld [vmem:[%s5 + $0x28] sm:$0xf]
    %v3750 = vld [vmem:[%s5 + $0x2c] sm:$0xf]
    %v3751 = vld [vmem:[%s5 + $0x30] sm:$0xf]
    %v3752 = vld [vmem:[%s5 + $0x34] sm:$0xf]
    %v3753 = vld [vmem:[%s5 + $0x38] sm:$0xf]
    %v3754 = vld [vmem:[%s5 + $0x3c] sm:$0xf]
    %v3755 = vld [vmem:[%s13 + $0x4] ss:$0 sm:$0xff]
    %v3756 = vpack.c.bf16 %v3738, %v3737
    %v3773 = vunpack.c.l.b16 %v3739
    %v3774 = vunpack.c.l.b16 %v3740
    %v3775 = vunpack.c.l.b16 %v3741
    %v3776 = vunpack.c.l.b16 %v3742
    %v3777 = vunpack.c.l.b16 %v3743
    %v3778 = vunpack.c.l.b16 %v3744
    %v3779 = vunpack.c.l.b16 %v3745
    %v3780 = vunpack.c.l.b16 %v3746
    %v3781 = vunpack.c.l.b16 %v3747
    %v3782 = vunpack.c.l.b16 %v3748
    %v3783 = vunpack.c.l.b16 %v3749
    %v3784 = vunpack.c.l.b16 %v3750
    %v3785 = vunpack.c.l.b16 %v3751
    %v3786 = vunpack.c.l.b16 %v3752
    %v3787 = vunpack.c.l.b16 %v3753
    %v3788 = vunpack.c.l.b16 %v3754
    %v3789 = vpack.c.b16 %v3774, %v3773
    %v3790 = vpack.c.b16 %v3776, %v3775
    %v3791 = vpack.c.b16 %v3778, %v3777
    %v3792 = vpack.c.b16 %v3780, %v3779
    %v3793 = vpack.c.b16 %v3782, %v3781
    %v3794 = vpack.c.b16 %v3784, %v3783
    %v3795 = vpack.c.b16 %v3786, %v3785
    %v3796 = vpack.c.b16 %v3788, %v3787
    %3805 = vmatprep.subr.bf16.mxu0 0
    %3806 = vmatpush1.bf16.msra.mxu0 %v3796
    %3807 = vmatprep.subr.bf16.mxu0 0
    %3808 = vmatpush1.bf16.msra.mxu0 %v3795
    %3809 = vmatprep.subr.bf16.mxu0 0
    %3810 = vmatpush1.bf16.msra.mxu0 %v3794
    %3811 = vmatprep.subr.bf16.mxu0 0
    %3812 = vmatpush1.bf16.msra.mxu0 %v3793
    %3813 = vmatprep.subr.bf16.mxu0 0
    %3814 = vmatpush1.bf16.msra.mxu0 %v3792
    %3815 = vmatprep.subr.bf16.mxu0 0
    %3816 = vmatpush1.bf16.msra.mxu0 %v3791
    %3817 = vmatprep.subr.bf16.mxu0 0
    %3818 = vmatpush1.bf16.msra.mxu0 %v3790
    %3819 = vmatprep.subr.bf16.mxu0 0
    %3820 = vmatpush1.bf16.msra.mxu0 %v3789
    %3821 = vmatprep.subr.bf16.mxu0 0
    %3822 = vmatpush2.bf16.msra.mxu0 0
    %3823 = vmatprep.subr.bf16.mxu0 0
    %3824 = vmatpush2.bf16.msra.mxu0 0
    %3825 = vmatprep.subr.bf16.mxu0 0
    %3826 = vmatpush2.bf16.msra.mxu0 0
    %3827 = vmatprep.subr.bf16.mxu0 0
    %3828 = vmatpush2.bf16.msra.mxu0 0
    %3829 = vmatprep.subr.bf16.mxu0 0
    %3830 = vmatpush2.bf16.msra.mxu0 0
    %3831 = vmatprep.subr.bf16.mxu0 0
    %3832 = vmatpush2.bf16.msra.mxu0 0
    %3833 = vmatprep.subr.bf16.mxu0 0
    %3834 = vmatpush2.bf16.msra.mxu0 0
    %3835 = vmatprep.subr.bf16.mxu0 0
    %3836 = vmatpush2.bf16.msra.mxu0 0
    %3837 = vmatprep.mubr.bf16.mxu0 0
    %3838 = vmatmul.mubr.bf16.gmra.mxu0 %v3756
    %v3839 = vpop.f32.mrf.mxu0
    %v3840 = vadd.f32 %v3755, %v3839
    %v3841 = vpop.f32.mrf.mxu0
    %v3842 = vpop.f32.mrf.mxu0
    %v3843 = vadd.f32 %v3755, %v3842
    %v3844 = vpop.f32.mrf.mxu0
    %3845 = vdwg.mxu0
    %v3846 = vmul.f32 %v3840, 0.5
    %v3847 = vmul.f32 %v3843, 0.5
    %v3848 = vmul.f32 %v3840, 0.70710677
    %v3849 = vmul.f32 %v3843, 0.70710677
    %v3850 = verf.f32.pop %v3848
    %v3851 = verf.f32.pop %v3849
    %v3852 = vadd.f32 %v3850, 1.0
    %v3853 = vadd.f32 %v3851, 1.0
    %v3854 = vmul.f32 %v3846, %v3852
    %v3855 = vmul.f32 %v3847, %v3853
    %v3856 = vld [vmem:[%s6] sm:$0xf]
    %v3857 = vld [vmem:[%s6 + $0x4] sm:$0xf]
    %v3858 = vld [vmem:[%s6 + $0x8] sm:$0xf]
    %v3859 = vld [vmem:[%s6 + $0xc] sm:$0xf]
    %v3860 = vld [vmem:[%s6 + $0x10] sm:$0xf]
    %v3861 = vld [vmem:[%s6 + $0x14] sm:$0xf]
    %v3862 = vld [vmem:[%s6 + $0x18] sm:$0xf]
    %v3863 = vld [vmem:[%s6 + $0x1c] sm:$0xf]
    %v3864 = vld [vmem:[%s6 + $0x20] sm:$0xf]
    %v3865 = vld [vmem:[%s6 + $0x24] sm:$0xf]
    %v3866 = vld [vmem:[%s6 + $0x28] sm:$0xf]
    %v3867 = vld [vmem:[%s6 + $0x2c] sm:$0xf]
    %v3868 = vld [vmem:[%s6 + $0x30] sm:$0xf]
    %v3869 = vld [vmem:[%s6 + $0x34] sm:$0xf]
    %v3870 = vld [vmem:[%s6 + $0x38] sm:$0xf]
    %v3871 = vld [vmem:[%s6 + $0x3c] sm:$0xf]
    %v3872 = vld [vmem:[%s13 + $0x5] ss:$0 sm:$0xff]
    %v3873 = vpack.c.bf16 %v3855, %v3854
    %v3890 = vunpack.c.l.b16 %v3856
    %v3891 = vunpack.c.l.b16 %v3857
    %v3892 = vunpack.c.l.b16 %v3858
    %v3893 = vunpack.c.l.b16 %v3859
    %v3894 = vunpack.c.l.b16 %v3860
    %v3895 = vunpack.c.l.b16 %v3861
    %v3896 = vunpack.c.l.b16 %v3862
    %v3897 = vunpack.c.l.b16 %v3863
    %v3898 = vunpack.c.l.b16 %v3864
    %v3899 = vunpack.c.l.b16 %v3865
    %v3900 = vunpack.c.l.b16 %v3866
    %v3901 = vunpack.c.l.b16 %v3867
    %v3902 = vunpack.c.l.b16 %v3868
    %v3903 = vunpack.c.l.b16 %v3869
    %v3904 = vunpack.c.l.b16 %v3870
    %v3905 = vunpack.c.l.b16 %v3871
    %v3906 = vpack.c.b16 %v3891, %v3890
    %v3907 = vpack.c.b16 %v3893, %v3892
    %v3908 = vpack.c.b16 %v3895, %v3894
    %v3909 = vpack.c.b16 %v3897, %v3896
    %v3910 = vpack.c.b16 %v3899, %v3898
    %v3911 = vpack.c.b16 %v3901, %v3900
    %v3912 = vpack.c.b16 %v3903, %v3902
    %v3913 = vpack.c.b16 %v3905, %v3904
    %3922 = vmatprep.subr.bf16.mxu0 0
    %3923 = vmatpush1.bf16.msra.mxu0 %v3913
    %3924 = vmatprep.subr.bf16.mxu0 0
    %3925 = vmatpush1.bf16.msra.mxu0 %v3912
    %3926 = vmatprep.subr.bf16.mxu0 0
    %3927 = vmatpush1.bf16.msra.mxu0 %v3911
    %3928 = vmatprep.subr.bf16.mxu0 0
    %3929 = vmatpush1.bf16.msra.mxu0 %v3910
    %3930 = vmatprep.subr.bf16.mxu0 0
    %3931 = vmatpush1.bf16.msra.mxu0 %v3909
    %3932 = vmatprep.subr.bf16.mxu0 0
    %3933 = vmatpush1.bf16.msra.mxu0 %v3908
    %3934 = vmatprep.subr.bf16.mxu0 0
    %3935 = vmatpush1.bf16.msra.mxu0 %v3907
    %3936 = vmatprep.subr.bf16.mxu0 0
    %3937 = vmatpush1.bf16.msra.mxu0 %v3906
    %3938 = vmatprep.subr.bf16.mxu0 0
    %3939 = vmatpush2.bf16.msra.mxu0 0
    %3940 = vmatprep.subr.bf16.mxu0 0
    %3941 = vmatpush2.bf16.msra.mxu0 0
    %3942 = vmatprep.subr.bf16.mxu0 0
    %3943 = vmatpush2.bf16.msra.mxu0 0
    %3944 = vmatprep.subr.bf16.mxu0 0
    %3945 = vmatpush2.bf16.msra.mxu0 0
    %3946 = vmatprep.subr.bf16.mxu0 0
    %3947 = vmatpush2.bf16.msra.mxu0 0
    %3948 = vmatprep.subr.bf16.mxu0 0
    %3949 = vmatpush2.bf16.msra.mxu0 0
    %3950 = vmatprep.subr.bf16.mxu0 0
    %3951 = vmatpush2.bf16.msra.mxu0 0
    %3952 = vmatprep.subr.bf16.mxu0 0
    %3953 = vmatpush2.bf16.msra.mxu0 0
    %3954 = vmatprep.mubr.bf16.mxu0 0
    %3955 = vmatmul.mubr.bf16.gmra.mxu0 %v3873
    %v3956 = vpop.f32.mrf.mxu0
    %v3957 = vadd.f32 %v3872, %v3956
    %v3958 = vpop.f32.mrf.mxu0
    %v3959 = vpop.f32.mrf.mxu0
    %v3960 = vadd.f32 %v3872, %v3959
    %v3961 = vpop.f32.mrf.mxu0
    %3962 = vdwg.mxu0
    %v3963 = vtanh.pop %v3957
    %v3964 = vtanh.pop %v3960
    %v3965 = vld [vmem:[%s7] sm:$0xf]
    %v3966 = vld [vmem:[%s7 + $0x4] sm:$0xf]
    %v3967 = vld [vmem:[%s7 + $0x8] sm:$0xf]
    %v3968 = vld [vmem:[%s7 + $0xc] sm:$0xf]
    %v3969 = vld [vmem:[%s7 + $0x10] sm:$0xf]
    %v3970 = vld [vmem:[%s7 + $0x14] sm:$0xf]
    %v3971 = vld [vmem:[%s7 + $0x18] sm:$0xf]
    %v3972 = vld [vmem:[%s7 + $0x1c] sm:$0xf]
    %v3973 = vld [vmem:[%s7 + $0x20] sm:$0xf]
    %v3974 = vld [vmem:[%s7 + $0x24] sm:$0xf]
    %v3975 = vld [vmem:[%s7 + $0x28] sm:$0xf]
    %v3976 = vld [vmem:[%s7 + $0x2c] sm:$0xf]
    %v3977 = vld [vmem:[%s7 + $0x30] sm:$0xf]
    %v3978 = vld [vmem:[%s7 + $0x34] sm:$0xf]
    %v3979 = vld [vmem:[%s7 + $0x38] sm:$0xf]
    %v3980 = vld [vmem:[%s7 + $0x3c] sm:$0xf]
    %v3981 = vld [vmem:[%s13 + $0x6] ss:$0 sm:$0xff]
    %v3982 = vpack.c.bf16 %v3964, %v3963
    %v3999 = vunpack.c.l.b16 %v3965
    %v4000 = vunpack.c.l.b16 %v3966
    %v4001 = vunpack.c.l.b16 %v3967
    %v4002 = vunpack.c.l.b16 %v3968
    %v4003 = vunpack.c.l.b16 %v3969
    %v4004 = vunpack.c.l.b16 %v3970
    %v4005 = vunpack.c.l.b16 %v3971
    %v4006 = vunpack.c.l.b16 %v3972
    %v4007 = vunpack.c.l.b16 %v3973
    %v4008 = vunpack.c.l.b16 %v3974
    %v4009 = vunpack.c.l.b16 %v3975
    %v4010 = vunpack.c.l.b16 %v3976
    %v4011 = vunpack.c.l.b16 %v3977
    %v4012 = vunpack.c.l.b16 %v3978
    %v4013 = vunpack.c.l.b16 %v3979
    %v4014 = vunpack.c.l.b16 %v3980
    %v4015 = vpack.c.b16 %v4000, %v3999
    %v4016 = vpack.c.b16 %v4002, %v4001
    %v4017 = vpack.c.b16 %v4004, %v4003
    %v4018 = vpack.c.b16 %v4006, %v4005
    %v4019 = vpack.c.b16 %v4008, %v4007
    %v4020 = vpack.c.b16 %v4010, %v4009
    %v4021 = vpack.c.b16 %v4012, %v4011
    %v4022 = vpack.c.b16 %v4014, %v4013
    %4031 = vmatprep.subr.bf16.mxu0 0
    %4032 = vmatpush1.bf16.msra.mxu0 %v4022
    %4033 = vmatprep.subr.bf16.mxu0 0
    %4034 = vmatpush1.bf16.msra.mxu0 %v4021
    %4035 = vmatprep.subr.bf16.mxu0 0
    %4036 = vmatpush1.bf16.msra.mxu0 %v4020
    %4037 = vmatprep.subr.bf16.mxu0 0
    %4038 = vmatpush1.bf16.msra.mxu0 %v4019
    %4039 = vmatprep.subr.bf16.mxu0 0
    %4040 = vmatpush1.bf16.msra.mxu0 %v4018
    %4041 = vmatprep.subr.bf16.mxu0 0
    %4042 = vmatpush1.bf16.msra.mxu0 %v4017
    %4043 = vmatprep.subr.bf16.mxu0 0
    %4044 = vmatpush1.bf16.msra.mxu0 %v4016
    %4045 = vmatprep.subr.bf16.mxu0 0
    %4046 = vmatpush1.bf16.msra.mxu0 %v4015
    %4047 = vmatprep.subr.bf16.mxu0 0
    %4048 = vmatpush2.bf16.msra.mxu0 0
    %4049 = vmatprep.subr.bf16.mxu0 0
    %4050 = vmatpush2.bf16.msra.mxu0 0
    %4051 = vmatprep.subr.bf16.mxu0 0
    %4052 = vmatpush2.bf16.msra.mxu0 0
    %4053 = vmatprep.subr.bf16.mxu0 0
    %4054 = vmatpush2.bf16.msra.mxu0 0
    %4055 = vmatprep.subr.bf16.mxu0 0
    %4056 = vmatpush2.bf16.msra.mxu0 0
    %4057 = vmatprep.subr.bf16.mxu0 0
    %4058 = vmatpush2.bf16.msra.mxu0 0
    %4059 = vmatprep.subr.bf16.mxu0 0
    %4060 = vmatpush2.bf16.msra.mxu0 0
    %4061 = vmatprep.subr.bf16.mxu0 0
    %4062 = vmatpush2.bf16.msra.mxu0 0
    %4063 = vmatprep.mubr.bf16.mxu0 0
    %4064 = vmatmul.mubr.bf16.gmra.mxu0 %v3982
    %v4065 = vpop.f32.mrf.mxu0
    %v4066 = vadd.f32 %v3981, %v4065
    %v4067 = vpop.f32.mrf.mxu0
    %v4068 = vpop.f32.mrf.mxu0
    %v4069 = vadd.f32 %v3981, %v4068
    %v4070 = vpop.f32.mrf.mxu0
    %4071 = vdwg.mxu0
    %v4072 = vmul.f32 %v4066, 0.5
    %v4073 = vmul.f32 %v4069, 0.5
    %v4074 = vmul.f32 %v4066, 0.70710677
    %v4075 = vmul.f32 %v4069, 0.70710677
    %v4076 = verf.f32.pop %v4074
    %v4077 = verf.f32.pop %v4075
    %v4078 = vadd.f32 %v4076, 1.0
    %v4079 = vadd.f32 %v4077, 1.0
    %v4080 = vmul.f32 %v4072, %v4078
    %v4081 = vmul.f32 %v4073, %v4079
    %v4082 = vld [vmem:[%s8] sm:$0xf]
    %v4083 = vld [vmem:[%s8 + $0x4] sm:$0xf]
    %v4084 = vld [vmem:[%s8 + $0x8] sm:$0xf]
    %v4085 = vld [vmem:[%s8 + $0xc] sm:$0xf]
    %v4086 = vld [vmem:[%s8 + $0x10] sm:$0xf]
    %v4087 = vld [vmem:[%s8 + $0x14] sm:$0xf]
    %v4088 = vld [vmem:[%s8 + $0x18] sm:$0xf]
    %v4089 = vld [vmem:[%s8 + $0x1c] sm:$0xf]
    %v4090 = vld [vmem:[%s8 + $0x20] sm:$0xf]
    %v4091 = vld [vmem:[%s8 + $0x24] sm:$0xf]
    %v4092 = vld [vmem:[%s8 + $0x28] sm:$0xf]
    %v4093 = vld [vmem:[%s8 + $0x2c] sm:$0xf]
    %v4094 = vld [vmem:[%s8 + $0x30] sm:$0xf]
    %v4095 = vld [vmem:[%s8 + $0x34] sm:$0xf]
    %v4096 = vld [vmem:[%s8 + $0x38] sm:$0xf]
    %v4097 = vld [vmem:[%s8 + $0x3c] sm:$0xf]
    %v4098 = vld [vmem:[%s13 + $0x7] ss:$0 sm:$0xff]
    %v4099 = vpack.c.bf16 %v4081, %v4080
    %v4116 = vunpack.c.l.b16 %v4082
    %v4117 = vunpack.c.l.b16 %v4083
    %v4118 = vunpack.c.l.b16 %v4084
    %v4119 = vunpack.c.l.b16 %v4085
    %v4120 = vunpack.c.l.b16 %v4086
    %v4121 = vunpack.c.l.b16 %v4087
    %v4122 = vunpack.c.l.b16 %v4088
    %v4123 = vunpack.c.l.b16 %v4089
    %v4124 = vunpack.c.l.b16 %v4090
    %v4125 = vunpack.c.l.b16 %v4091
    %v4126 = vunpack.c.l.b16 %v4092
    %v4127 = vunpack.c.l.b16 %v4093
    %v4128 = vunpack.c.l.b16 %v4094
    %v4129 = vunpack.c.l.b16 %v4095
    %v4130 = vunpack.c.l.b16 %v4096
    %v4131 = vunpack.c.l.b16 %v4097
    %v4132 = vpack.c.b16 %v4117, %v4116
    %v4133 = vpack.c.b16 %v4119, %v4118
    %v4134 = vpack.c.b16 %v4121, %v4120
    %v4135 = vpack.c.b16 %v4123, %v4122
    %v4136 = vpack.c.b16 %v4125, %v4124
    %v4137 = vpack.c.b16 %v4127, %v4126
    %v4138 = vpack.c.b16 %v4129, %v4128
    %v4139 = vpack.c.b16 %v4131, %v4130
    %4148 = vmatprep.subr.bf16.mxu0 0
    %4149 = vmatpush1.bf16.msra.mxu0 %v4139
    %4150 = vmatprep.subr.bf16.mxu0 0
    %4151 = vmatpush1.bf16.msra.mxu0 %v4138
    %4152 = vmatprep.subr.bf16.mxu0 0
    %4153 = vmatpush1.bf16.msra.mxu0 %v4137
    %4154 = vmatprep.subr.bf16.mxu0 0
    %4155 = vmatpush1.bf16.msra.mxu0 %v4136
    %4156 = vmatprep.subr.bf16.mxu0 0
    %4157 = vmatpush1.bf16.msra.mxu0 %v4135
    %4158 = vmatprep.subr.bf16.mxu0 0
    %4159 = vmatpush1.bf16.msra.mxu0 %v4134
    %4160 = vmatprep.subr.bf16.mxu0 0
    %4161 = vmatpush1.bf16.msra.mxu0 %v4133
    %4162 = vmatprep.subr.bf16.mxu0 0
    %4163 = vmatpush1.bf16.msra.mxu0 %v4132
    %4164 = vmatprep.subr.bf16.mxu0 0
    %4165 = vmatpush2.bf16.msra.mxu0 0
    %4166 = vmatprep.subr.bf16.mxu0 0
    %4167 = vmatpush2.bf16.msra.mxu0 0
    %4168 = vmatprep.subr.bf16.mxu0 0
    %4169 = vmatpush2.bf16.msra.mxu0 0
    %4170 = vmatprep.subr.bf16.mxu0 0
    %4171 = vmatpush2.bf16.msra.mxu0 0
    %4172 = vmatprep.subr.bf16.mxu0 0
    %4173 = vmatpush2.bf16.msra.mxu0 0
    %4174 = vmatprep.subr.bf16.mxu0 0
    %4175 = vmatpush2.bf16.msra.mxu0 0
    %4176 = vmatprep.subr.bf16.mxu0 0
    %4177 = vmatpush2.bf16.msra.mxu0 0
    %4178 = vmatprep.subr.bf16.mxu0 0
    %4179 = vmatpush2.bf16.msra.mxu0 0
    %4180 = vmatprep.mubr.bf16.mxu0 0
    %4181 = vmatmul.mubr.bf16.gmra.mxu0 %v4099
    %v4182 = vpop.f32.mrf.mxu0
    %v4183 = vadd.f32 %v4098, %v4182
    %v4184 = vpop.f32.mrf.mxu0
    %v4185 = vpop.f32.mrf.mxu0
    %v4186 = vadd.f32 %v4098, %v4185
    %v4187 = vpop.f32.mrf.mxu0
    %4188 = vdwg.mxu0
    %v4189 = vmul.f32 %v4183, 0.5
    %v4190 = vmul.f32 %v4186, 0.5
    %v4191 = vmul.f32 %v4183, 0.70710677
    %v4192 = vmul.f32 %v4186, 0.70710677
    %v4193 = verf.f32.pop %v4191
    %v4194 = verf.f32.pop %v4192
    %v4195 = vadd.f32 %v4193, 1.0
    %v4196 = vadd.f32 %v4194, 1.0
    %v4197 = vmul.f32 %v4189, %v4195
    %v4198 = vmul.f32 %v4190, %v4196
    %v4199 = vld [vmem:[%s9] sm:$0xf]
    %v4200 = vld [vmem:[%s9 + $0x4] sm:$0xf]
    %v4201 = vld [vmem:[%s9 + $0x8] sm:$0xf]
    %v4202 = vld [vmem:[%s9 + $0xc] sm:$0xf]
    %v4203 = vld [vmem:[%s9 + $0x10] sm:$0xf]
    %v4204 = vld [vmem:[%s9 + $0x14] sm:$0xf]
    %v4205 = vld [vmem:[%s9 + $0x18] sm:$0xf]
    %v4206 = vld [vmem:[%s9 + $0x1c] sm:$0xf]
    %v4207 = vld [vmem:[%s9 + $0x20] sm:$0xf]
    %v4208 = vld [vmem:[%s9 + $0x24] sm:$0xf]
    %v4209 = vld [vmem:[%s9 + $0x28] sm:$0xf]
    %v4210 = vld [vmem:[%s9 + $0x2c] sm:$0xf]
    %v4211 = vld [vmem:[%s9 + $0x30] sm:$0xf]
    %v4212 = vld [vmem:[%s9 + $0x34] sm:$0xf]
    %v4213 = vld [vmem:[%s9 + $0x38] sm:$0xf]
    %v4214 = vld [vmem:[%s9 + $0x3c] sm:$0xf]
    %v4215 = vld [vmem:[%s13 + $0x38] ss:$0 sm:$0xff]
    %v4216 = vpack.c.bf16 %v4198, %v4197
    %v4233 = vunpack.c.l.b16 %v4199
    %v4234 = vunpack.c.l.b16 %v4200
    %v4235 = vunpack.c.l.b16 %v4201
    %v4236 = vunpack.c.l.b16 %v4202
    %v4237 = vunpack.c.l.b16 %v4203
    %v4238 = vunpack.c.l.b16 %v4204
    %v4239 = vunpack.c.l.b16 %v4205
    %v4240 = vunpack.c.l.b16 %v4206
    %v4241 = vunpack.c.l.b16 %v4207
    %v4242 = vunpack.c.l.b16 %v4208
    %v4243 = vunpack.c.l.b16 %v4209
    %v4244 = vunpack.c.l.b16 %v4210
    %v4245 = vunpack.c.l.b16 %v4211
    %v4246 = vunpack.c.l.b16 %v4212
    %v4247 = vunpack.c.l.b16 %v4213
    %v4248 = vunpack.c.l.b16 %v4214
    %v4249 = vpack.c.b16 %v4234, %v4233
    %v4250 = vpack.c.b16 %v4236, %v4235
    %v4251 = vpack.c.b16 %v4238, %v4237
    %v4252 = vpack.c.b16 %v4240, %v4239
    %v4253 = vpack.c.b16 %v4242, %v4241
    %v4254 = vpack.c.b16 %v4244, %v4243
    %v4255 = vpack.c.b16 %v4246, %v4245
    %v4256 = vpack.c.b16 %v4248, %v4247
    %4265 = vmatprep.subr.bf16.mxu0 0
    %4266 = vmatpush1.bf16.msra.mxu0 %v4256
    %4267 = vmatprep.subr.bf16.mxu0 0
    %4268 = vmatpush1.bf16.msra.mxu0 %v4255
    %4269 = vmatprep.subr.bf16.mxu0 0
    %4270 = vmatpush1.bf16.msra.mxu0 %v4254
    %4271 = vmatprep.subr.bf16.mxu0 0
    %4272 = vmatpush1.bf16.msra.mxu0 %v4253
    %4273 = vmatprep.subr.bf16.mxu0 0
    %4274 = vmatpush1.bf16.msra.mxu0 %v4252
    %4275 = vmatprep.subr.bf16.mxu0 0
    %4276 = vmatpush1.bf16.msra.mxu0 %v4251
    %4277 = vmatprep.subr.bf16.mxu0 0
    %4278 = vmatpush1.bf16.msra.mxu0 %v4250
    %4279 = vmatprep.subr.bf16.mxu0 0
    %4280 = vmatpush1.bf16.msra.mxu0 %v4249
    %4281 = vmatprep.subr.bf16.mxu0 0
    %4282 = vmatpush2.bf16.msra.mxu0 0
    %4283 = vmatprep.subr.bf16.mxu0 0
    %4284 = vmatpush2.bf16.msra.mxu0 0
    %4285 = vmatprep.subr.bf16.mxu0 0
    %4286 = vmatpush2.bf16.msra.mxu0 0
    %4287 = vmatprep.subr.bf16.mxu0 0
    %4288 = vmatpush2.bf16.msra.mxu0 0
    %4289 = vmatprep.subr.bf16.mxu0 0
    %4290 = vmatpush2.bf16.msra.mxu0 0
    %4291 = vmatprep.subr.bf16.mxu0 0
    %4292 = vmatpush2.bf16.msra.mxu0 0
    %4293 = vmatprep.subr.bf16.mxu0 0
    %4294 = vmatpush2.bf16.msra.mxu0 0
    %4295 = vmatprep.subr.bf16.mxu0 0
    %4296 = vmatpush2.bf16.msra.mxu0 0
    %4297 = vmatprep.mubr.bf16.mxu0 0
    %4298 = vmatmul.mubr.bf16.gmra.mxu0 %v4216
    %v4299 = vpop.f32.mrf.mxu0
    %v4300 = vadd.f32 %v4215, %v4299
    %v4301 = vpop.f32.mrf.mxu0
    %v4302 = vpop.f32.mrf.mxu0
    %v4303 = vadd.f32 %v4215, %v4302
    %v4304 = vpop.f32.mrf.mxu0
    %4305 = vdwg.mxu0
    %v4306 = vmul.f32 %v4300, 0.5
    %v4307 = vmul.f32 %v4303, 0.5
    %v4308 = vmul.f32 %v4300, 0.70710677
    %v4309 = vmul.f32 %v4303, 0.70710677
    %v4310 = verf.f32.pop %v4308
    %v4311 = verf.f32.pop %v4309
    %v4312 = vadd.f32 %v4310, 1.0
    %v4313 = vadd.f32 %v4311, 1.0
    %v4314 = vmul.f32 %v4306, %v4312
    %v4315 = vmul.f32 %v4307, %v4313
    %v4316 = vld [vmem:[%s10] sm:$0xff]
    %v4317 = vld [vmem:[%s10 + $0x8] sm:$0xff]
    %v4318 = vld [vmem:[%s10 + $0x10] sm:$0xff]
    %v4319 = vld [vmem:[%s10 + $0x18] sm:$0xff]
    %v4320 = vld [vmem:[%s10 + $0x20] sm:$0xff]
    %v4321 = vld [vmem:[%s10 + $0x28] sm:$0xff]
    %v4322 = vld [vmem:[%s10 + $0x30] sm:$0xff]
    %v4323 = vld [vmem:[%s10 + $0x38] sm:$0xff]
    %v4324 = vld [vmem:[%s10 + $0x40] sm:$0xff]
    %v4325 = vld [vmem:[%s10 + $0x48] sm:$0xff]
    %v4326 = vld [vmem:[%s10 + $0x50] sm:$0xff]
    %v4327 = vld [vmem:[%s10 + $0x58] sm:$0xff]
    %v4328 = vld [vmem:[%s10 + $0x60] sm:$0xff]
    %v4329 = vld [vmem:[%s10 + $0x68] sm:$0xff]
    %v4330 = vld [vmem:[%s10 + $0x70] sm:$0xff]
    %v4331 = vld [vmem:[%s10 + $0x78] sm:$0xff]
    %s4332 = scalar_lea.vmem %s13, 57
    %v4333 = vld [vmem:[%s4332] ss:$8 sm:$0x3]
    %v4334 = vpack.c.bf16 %v4315, %v4314
    %v4336 = vlaneseq
    %v4337 = vshrl.u32 %v4336, 7
    %v4338 = vsub.s32 0, %v4337
    %v4339 = vrot.slane %v4333, %v4338
    %v4340 = vlaneseq
    %v4341 = vshrl.u32 %v4340, 7
    %v4342 = vsub.s32 1, %v4341
    %v4343 = vrot.slane %v4333, %v4342
    %v4362 = vunpack.c.l.b16 %v4316
    %v4363 = vunpack.c.h.b16 %v4316
    %v4364 = vunpack.c.l.b16 %v4317
    %v4365 = vunpack.c.h.b16 %v4317
    %v4366 = vunpack.c.l.b16 %v4318
    %v4367 = vunpack.c.h.b16 %v4318
    %v4368 = vunpack.c.l.b16 %v4319
    %v4369 = vunpack.c.h.b16 %v4319
    %v4370 = vunpack.c.l.b16 %v4320
    %v4371 = vunpack.c.h.b16 %v4320
    %v4372 = vunpack.c.l.b16 %v4321
    %v4373 = vunpack.c.h.b16 %v4321
    %v4374 = vunpack.c.l.b16 %v4322
    %v4375 = vunpack.c.h.b16 %v4322
    %v4376 = vunpack.c.l.b16 %v4323
    %v4377 = vunpack.c.h.b16 %v4323
    %v4378 = vunpack.c.l.b16 %v4324
    %v4379 = vunpack.c.h.b16 %v4324
    %v4380 = vunpack.c.l.b16 %v4325
    %v4381 = vunpack.c.h.b16 %v4325
    %v4382 = vunpack.c.l.b16 %v4326
    %v4383 = vunpack.c.h.b16 %v4326
    %v4384 = vunpack.c.l.b16 %v4327
    %v4385 = vunpack.c.h.b16 %v4327
    %v4386 = vunpack.c.l.b16 %v4328
    %v4387 = vunpack.c.h.b16 %v4328
    %v4388 = vunpack.c.l.b16 %v4329
    %v4389 = vunpack.c.h.b16 %v4329
    %v4390 = vunpack.c.l.b16 %v4330
    %v4391 = vunpack.c.h.b16 %v4330
    %v4392 = vunpack.c.l.b16 %v4331
    %v4393 = vunpack.c.h.b16 %v4331
    %v4394 = vpack.c.b16 %v4364, %v4362
    %v4395 = vpack.c.b16 %v4365, %v4363
    %v4396 = vpack.c.b16 %v4368, %v4366
    %v4397 = vpack.c.b16 %v4369, %v4367
    %v4398 = vpack.c.b16 %v4372, %v4370
    %v4399 = vpack.c.b16 %v4373, %v4371
    %v4400 = vpack.c.b16 %v4376, %v4374
    %v4401 = vpack.c.b16 %v4377, %v4375
    %v4402 = vpack.c.b16 %v4380, %v4378
    %v4403 = vpack.c.b16 %v4381, %v4379
    %v4404 = vpack.c.b16 %v4384, %v4382
    %v4405 = vpack.c.b16 %v4385, %v4383
    %v4406 = vpack.c.b16 %v4388, %v4386
    %v4407 = vpack.c.b16 %v4389, %v4387
    %v4408 = vpack.c.b16 %v4392, %v4390
    %v4409 = vpack.c.b16 %v4393, %v4391
    %4426 = vmatprep.subr.bf16.mxu0 %v4409
    %4427 = vmatpush1.bf16.msra.mxu0 %v4408
    %4428 = vmatprep.subr.bf16.mxu0 %v4407
    %4429 = vmatpush1.bf16.msra.mxu0 %v4406
    %4430 = vmatprep.subr.bf16.mxu0 %v4405
    %4431 = vmatpush1.bf16.msra.mxu0 %v4404
    %4432 = vmatprep.subr.bf16.mxu0 %v4403
    %4433 = vmatpush1.bf16.msra.mxu0 %v4402
    %4434 = vmatprep.subr.bf16.mxu0 %v4401
    %4435 = vmatpush1.bf16.msra.mxu0 %v4400
    %4436 = vmatprep.subr.bf16.mxu0 %v4399
    %4437 = vmatpush1.bf16.msra.mxu0 %v4398
    %4438 = vmatprep.subr.bf16.mxu0 %v4397
    %4439 = vmatpush1.bf16.msra.mxu0 %v4396
    %4440 = vmatprep.subr.bf16.mxu0 %v4395
    %4441 = vmatpush1.bf16.msra.mxu0 %v4394
    %4442 = vmatprep.subr.bf16.mxu0 0
    %4443 = vmatpush2.bf16.msra.mxu0 0
    %4444 = vmatprep.subr.bf16.mxu0 0
    %4445 = vmatpush2.bf16.msra.mxu0 0
    %4446 = vmatprep.subr.bf16.mxu0 0
    %4447 = vmatpush2.bf16.msra.mxu0 0
    %4448 = vmatprep.subr.bf16.mxu0 0
    %4449 = vmatpush2.bf16.msra.mxu0 0
    %4450 = vmatprep.subr.bf16.mxu0 0
    %4451 = vmatpush2.bf16.msra.mxu0 0
    %4452 = vmatprep.subr.bf16.mxu0 0
    %4453 = vmatpush2.bf16.msra.mxu0 0
    %4454 = vmatprep.subr.bf16.mxu0 0
    %4455 = vmatpush2.bf16.msra.mxu0 0
    %4456 = vmatprep.subr.bf16.mxu0 0
    %4457 = vmatpush2.bf16.msra.mxu0 0
    %4458 = vmatprep.mubr.bf16.mxu0 0
    %4459 = vmatmul.mubr.bf16.gmra.mxu0 %v4334
    %v4460 = vpop.f32.mrf.mxu0
    %v4461 = vadd.f32 %v4339, %v4460
    %v4462 = vpop.f32.mrf.mxu0
    %v4463 = vadd.f32 %v4343, %v4462
    %v4464 = vpop.f32.mrf.mxu0
    %v4465 = vadd.f32 %v4339, %v4464
    %v4466 = vpop.f32.mrf.mxu0
    %v4467 = vadd.f32 %v4343, %v4466
    %4468 = vdwg.mxu0
    %v4469 = vmul.f32 %v4461, 0.5
    %v4470 = vmul.f32 %v4463, 0.5
    %v4471 = vmul.f32 %v4465, 0.5
    %v4472 = vmul.f32 %v4467, 0.5
    %v4473 = vmul.f32 %v4461, 0.70710677
    %v4474 = vmul.f32 %v4463, 0.70710677
    %v4475 = vmul.f32 %v4465, 0.70710677
    %v4476 = vmul.f32 %v4467, 0.70710677
    %v4477 = verf.f32.pop %v4473
    %v4478 = verf.f32.pop %v4474
    %v4479 = verf.f32.pop %v4475
    %v4480 = verf.f32.pop %v4476
    %v4481 = vadd.f32 %v4477, 1.0
    %v4482 = vadd.f32 %v4478, 1.0
    %v4483 = vadd.f32 %v4479, 1.0
    %v4484 = vadd.f32 %v4480, 1.0
    %v4485 = vmul.f32 %v4469, %v4481
    %v4486 = vmul.f32 %v4470, %v4482
    %v4487 = vmul.f32 %v4471, %v4483
    %v4488 = vmul.f32 %v4472, %v4484
    %v4489 = vld [vmem:[%s11] sm:$0xff]
    %v4490 = vld [vmem:[%s11 + $0x8] sm:$0xff]
    %v4491 = vld [vmem:[%s11 + $0x10] sm:$0xff]
    %v4492 = vld [vmem:[%s11 + $0x18] sm:$0xff]
    %v4493 = vld [vmem:[%s11 + $0x20] sm:$0xff]
    %v4494 = vld [vmem:[%s11 + $0x28] sm:$0xff]
    %v4495 = vld [vmem:[%s11 + $0x30] sm:$0xff]
    %v4496 = vld [vmem:[%s11 + $0x38] sm:$0xff]
    %v4497 = vld [vmem:[%s11 + $0x40] sm:$0xff]
    %v4498 = vld [vmem:[%s11 + $0x48] sm:$0xff]
    %v4499 = vld [vmem:[%s11 + $0x50] sm:$0xff]
    %v4500 = vld [vmem:[%s11 + $0x58] sm:$0xff]
    %v4501 = vld [vmem:[%s11 + $0x60] sm:$0xff]
    %v4502 = vld [vmem:[%s11 + $0x68] sm:$0xff]
    %v4503 = vld [vmem:[%s11 + $0x70] sm:$0xff]
    %v4504 = vld [vmem:[%s11 + $0x78] sm:$0xff]
    %v4505 = vld [vmem:[%s11 + $0x80] sm:$0xff]
    %v4506 = vld [vmem:[%s11 + $0x88] sm:$0xff]
    %v4507 = vld [vmem:[%s11 + $0x90] sm:$0xff]
    %v4508 = vld [vmem:[%s11 + $0x98] sm:$0xff]
    %v4509 = vld [vmem:[%s11 + $0xa0] sm:$0xff]
    %v4510 = vld [vmem:[%s11 + $0xa8] sm:$0xff]
    %v4511 = vld [vmem:[%s11 + $0xb0] sm:$0xff]
    %v4512 = vld [vmem:[%s11 + $0xb8] sm:$0xff]
    %v4513 = vld [vmem:[%s11 + $0xc0] sm:$0xff]
    %v4514 = vld [vmem:[%s11 + $0xc8] sm:$0xff]
    %v4515 = vld [vmem:[%s11 + $0xd0] sm:$0xff]
    %v4516 = vld [vmem:[%s11 + $0xd8] sm:$0xff]
    %v4517 = vld [vmem:[%s11 + $0xe0] sm:$0xff]
    %v4518 = vld [vmem:[%s11 + $0xe8] sm:$0xff]
    %v4519 = vld [vmem:[%s11 + $0xf0] sm:$0xff]
    %v4520 = vld [vmem:[%s11 + $0xf8] sm:$0xff]
    %v4521 = vld [vmem:[%s11 + $0x100] sm:$0xff]
    %v4522 = vld [vmem:[%s11 + $0x108] sm:$0xff]
    %v4523 = vld [vmem:[%s11 + $0x110] sm:$0xff]
    %v4524 = vld [vmem:[%s11 + $0x118] sm:$0xff]
    %v4525 = vld [vmem:[%s11 + $0x120] sm:$0xff]
    %v4526 = vld [vmem:[%s11 + $0x128] sm:$0xff]
    %v4527 = vld [vmem:[%s11 + $0x130] sm:$0xff]
    %v4528 = vld [vmem:[%s11 + $0x138] sm:$0xff]
    %v4529 = vld [vmem:[%s11 + $0x140] sm:$0xff]
    %v4530 = vld [vmem:[%s11 + $0x148] sm:$0xff]
    %v4531 = vld [vmem:[%s11 + $0x150] sm:$0xff]
    %v4532 = vld [vmem:[%s11 + $0x158] sm:$0xff]
    %v4533 = vld [vmem:[%s11 + $0x160] sm:$0xff]
    %v4534 = vld [vmem:[%s11 + $0x168] sm:$0xff]
    %v4535 = vld [vmem:[%s11 + $0x170] sm:$0xff]
    %v4536 = vld [vmem:[%s11 + $0x178] sm:$0xff]
    %v4537 = vld [vmem:[%s11 + $0x180] sm:$0xff]
    %v4538 = vld [vmem:[%s11 + $0x188] sm:$0xff]
    %v4539 = vld [vmem:[%s11 + $0x190] sm:$0xff]
    %v4540 = vld [vmem:[%s11 + $0x198] sm:$0xff]
    %v4541 = vld [vmem:[%s11 + $0x1a0] sm:$0xff]
    %v4542 = vld [vmem:[%s11 + $0x1a8] sm:$0xff]
    %v4543 = vld [vmem:[%s11 + $0x1b0] sm:$0xff]
    %v4544 = vld [vmem:[%s11 + $0x1b8] sm:$0xff]
    %v4545 = vld [vmem:[%s11 + $0x1c0] sm:$0xff]
    %v4546 = vld [vmem:[%s11 + $0x1c8] sm:$0xff]
    %v4547 = vld [vmem:[%s11 + $0x1d0] sm:$0xff]
    %v4548 = vld [vmem:[%s11 + $0x1d8] sm:$0xff]
    %v4549 = vld [vmem:[%s11 + $0x1e0] sm:$0xff]
    %v4550 = vld [vmem:[%s11 + $0x1e8] sm:$0xff]
    %v4551 = vld [vmem:[%s11 + $0x1f0] sm:$0xff]
    %v4552 = vld [vmem:[%s11 + $0x1f8] sm:$0xff]
    %v4553 = vld [vmem:[%s11 + $0x200] sm:$0xff]
    %v4554 = vld [vmem:[%s11 + $0x208] sm:$0xff]
    %v4555 = vld [vmem:[%s11 + $0x210] sm:$0xff]
    %v4556 = vld [vmem:[%s11 + $0x218] sm:$0xff]
    %v4557 = vld [vmem:[%s11 + $0x220] sm:$0xff]
    %v4558 = vld [vmem:[%s11 + $0x228] sm:$0xff]
    %v4559 = vld [vmem:[%s11 + $0x230] sm:$0xff]
    %v4560 = vld [vmem:[%s11 + $0x238] sm:$0xff]
    %v4561 = vld [vmem:[%s11 + $0x240] sm:$0xff]
    %v4562 = vld [vmem:[%s11 + $0x248] sm:$0xff]
    %v4563 = vld [vmem:[%s11 + $0x250] sm:$0xff]
    %v4564 = vld [vmem:[%s11 + $0x258] sm:$0xff]
    %v4565 = vld [vmem:[%s11 + $0x260] sm:$0xff]
    %v4566 = vld [vmem:[%s11 + $0x268] sm:$0xff]
    %v4567 = vld [vmem:[%s11 + $0x270] sm:$0xff]
    %v4568 = vld [vmem:[%s11 + $0x278] sm:$0xff]
    %v4569 = vld [vmem:[%s11 + $0x280] sm:$0xff]
    %v4570 = vld [vmem:[%s11 + $0x288] sm:$0xff]
    %v4571 = vld [vmem:[%s11 + $0x290] sm:$0xff]
    %v4572 = vld [vmem:[%s11 + $0x298] sm:$0xff]
    %v4573 = vld [vmem:[%s11 + $0x2a0] sm:$0xff]
    %v4574 = vld [vmem:[%s11 + $0x2a8] sm:$0xff]
    %v4575 = vld [vmem:[%s11 + $0x2b0] sm:$0xff]
    %v4576 = vld [vmem:[%s11 + $0x2b8] sm:$0xff]
    %v4577 = vld [vmem:[%s11 + $0x2c0] sm:$0xff]
    %v4578 = vld [vmem:[%s11 + $0x2c8] sm:$0xff]
    %v4579 = vld [vmem:[%s11 + $0x2d0] sm:$0xff]
    %v4580 = vld [vmem:[%s11 + $0x2d8] sm:$0xff]
    %v4581 = vld [vmem:[%s11 + $0x2e0] sm:$0xff]
    %v4582 = vld [vmem:[%s11 + $0x2e8] sm:$0xff]
    %v4583 = vld [vmem:[%s11 + $0x2f0] sm:$0xff]
    %v4584 = vld [vmem:[%s11 + $0x2f8] sm:$0xff]
    %s4585 = scalar_lea.vmem %s13, 58
    %v4586 = vld [vmem:[%s4585] ss:$8 sm:$0xf]
    %v4587 = vld [vmem:[%s4585] ss:$8 sm:$0x30]
    %v4588 = vor.u32 %v4586, %v4587
    %v4589 = vpack.c.bf16 %v4487, %v4485
    %v4590 = vpack.c.bf16 %v4488, %v4486
    %v4592 = vlaneseq
    %v4593 = vshrl.u32 %v4592, 7
    %v4594 = vsub.s32 0, %v4593
    %v4595 = vrot.slane %v4588, %v4594
    %v4596 = vlaneseq
    %v4597 = vshrl.u32 %v4596, 7
    %v4598 = vsub.s32 1, %v4597
    %v4599 = vrot.slane %v4588, %v4598
    %v4600 = vlaneseq
    %v4601 = vshrl.u32 %v4600, 7
    %v4602 = vsub.s32 2, %v4601
    %v4603 = vrot.slane %v4588, %v4602
    %v4604 = vlaneseq
    %v4605 = vshrl.u32 %v4604, 7
    %v4606 = vsub.s32 3, %v4605
    %v4607 = vrot.slane %v4588, %v4606
    %v4608 = vlaneseq
    %v4609 = vshrl.u32 %v4608, 7
    %v4610 = vsub.s32 4, %v4609
    %v4611 = vrot.slane %v4588, %v4610
    %v4612 = vlaneseq
    %v4613 = vshrl.u32 %v4612, 7
    %v4614 = vsub.s32 5, %v4613
    %v4615 = vrot.slane %v4588, %v4614
    %v4718 = vunpack.c.l.b16 %v4489
    %v4719 = vunpack.c.h.b16 %v4489
    %v4720 = vunpack.c.l.b16 %v4490
    %v4721 = vunpack.c.h.b16 %v4490
    %v4722 = vunpack.c.l.b16 %v4491
    %v4723 = vunpack.c.h.b16 %v4491
    %v4724 = vunpack.c.l.b16 %v4492
    %v4725 = vunpack.c.h.b16 %v4492
    %v4726 = vunpack.c.l.b16 %v4493
    %v4727 = vunpack.c.h.b16 %v4493
    %v4728 = vunpack.c.l.b16 %v4494
    %v4729 = vunpack.c.h.b16 %v4494
    %v4730 = vunpack.c.l.b16 %v4495
    %v4731 = vunpack.c.h.b16 %v4495
    %v4732 = vunpack.c.l.b16 %v4496
    %v4733 = vunpack.c.h.b16 %v4496
    %v4734 = vunpack.c.l.b16 %v4497
    %v4735 = vunpack.c.h.b16 %v4497
    %v4736 = vunpack.c.l.b16 %v4498
    %v4737 = vunpack.c.h.b16 %v4498
    %v4738 = vunpack.c.l.b16 %v4499
    %v4739 = vunpack.c.h.b16 %v4499
    %v4740 = vunpack.c.l.b16 %v4500
    %v4741 = vunpack.c.h.b16 %v4500
    %v4742 = vunpack.c.l.b16 %v4501
    %v4743 = vunpack.c.h.b16 %v4501
    %v4744 = vunpack.c.l.b16 %v4502
    %v4745 = vunpack.c.h.b16 %v4502
    %v4746 = vunpack.c.l.b16 %v4503
    %v4747 = vunpack.c.h.b16 %v4503
    %v4748 = vunpack.c.l.b16 %v4504
    %v4749 = vunpack.c.h.b16 %v4504
    %v4750 = vunpack.c.l.b16 %v4505
    %v4751 = vunpack.c.h.b16 %v4505
    %v4752 = vunpack.c.l.b16 %v4506
    %v4753 = vunpack.c.h.b16 %v4506
    %v4754 = vunpack.c.l.b16 %v4507
    %v4755 = vunpack.c.h.b16 %v4507
    %v4756 = vunpack.c.l.b16 %v4508
    %v4757 = vunpack.c.h.b16 %v4508
    %v4758 = vunpack.c.l.b16 %v4509
    %v4759 = vunpack.c.h.b16 %v4509
    %v4760 = vunpack.c.l.b16 %v4510
    %v4761 = vunpack.c.h.b16 %v4510
    %v4762 = vunpack.c.l.b16 %v4511
    %v4763 = vunpack.c.h.b16 %v4511
    %v4764 = vunpack.c.l.b16 %v4512
    %v4765 = vunpack.c.h.b16 %v4512
    %v4766 = vunpack.c.l.b16 %v4513
    %v4767 = vunpack.c.h.b16 %v4513
    %v4768 = vunpack.c.l.b16 %v4514
    %v4769 = vunpack.c.h.b16 %v4514
    %v4770 = vunpack.c.l.b16 %v4515
    %v4771 = vunpack.c.h.b16 %v4515
    %v4772 = vunpack.c.l.b16 %v4516
    %v4773 = vunpack.c.h.b16 %v4516
    %v4774 = vunpack.c.l.b16 %v4517
    %v4775 = vunpack.c.h.b16 %v4517
    %v4776 = vunpack.c.l.b16 %v4518
    %v4777 = vunpack.c.h.b16 %v4518
    %v4778 = vunpack.c.l.b16 %v4519
    %v4779 = vunpack.c.h.b16 %v4519
    %v4780 = vunpack.c.l.b16 %v4520
    %v4781 = vunpack.c.h.b16 %v4520
    %v4782 = vunpack.c.l.b16 %v4521
    %v4783 = vunpack.c.h.b16 %v4521
    %v4784 = vunpack.c.l.b16 %v4522
    %v4785 = vunpack.c.h.b16 %v4522
    %v4786 = vunpack.c.l.b16 %v4523
    %v4787 = vunpack.c.h.b16 %v4523
    %v4788 = vunpack.c.l.b16 %v4524
    %v4789 = vunpack.c.h.b16 %v4524
    %v4790 = vunpack.c.l.b16 %v4525
    %v4791 = vunpack.c.h.b16 %v4525
    %v4792 = vunpack.c.l.b16 %v4526
    %v4793 = vunpack.c.h.b16 %v4526
    %v4794 = vunpack.c.l.b16 %v4527
    %v4795 = vunpack.c.h.b16 %v4527
    %v4796 = vunpack.c.l.b16 %v4528
    %v4797 = vunpack.c.h.b16 %v4528
    %v4798 = vunpack.c.l.b16 %v4529
    %v4799 = vunpack.c.h.b16 %v4529
    %v4800 = vunpack.c.l.b16 %v4530
    %v4801 = vunpack.c.h.b16 %v4530
    %v4802 = vunpack.c.l.b16 %v4531
    %v4803 = vunpack.c.h.b16 %v4531
    %v4804 = vunpack.c.l.b16 %v4532
    %v4805 = vunpack.c.h.b16 %v4532
    %v4806 = vunpack.c.l.b16 %v4533
    %v4807 = vunpack.c.h.b16 %v4533
    %v4808 = vunpack.c.l.b16 %v4534
    %v4809 = vunpack.c.h.b16 %v4534
    %v4810 = vunpack.c.l.b16 %v4535
    %v4811 = vunpack.c.h.b16 %v4535
    %v4812 = vunpack.c.l.b16 %v4536
    %v4813 = vunpack.c.h.b16 %v4536
    %v4814 = vunpack.c.l.b16 %v4537
    %v4815 = vunpack.c.h.b16 %v4537
    %v4816 = vunpack.c.l.b16 %v4538
    %v4817 = vunpack.c.h.b16 %v4538
    %v4818 = vunpack.c.l.b16 %v4539
    %v4819 = vunpack.c.h.b16 %v4539
    %v4820 = vunpack.c.l.b16 %v4540
    %v4821 = vunpack.c.h.b16 %v4540
    %v4822 = vunpack.c.l.b16 %v4541
    %v4823 = vunpack.c.h.b16 %v4541
    %v4824 = vunpack.c.l.b16 %v4542
    %v4825 = vunpack.c.h.b16 %v4542
    %v4826 = vunpack.c.l.b16 %v4543
    %v4827 = vunpack.c.h.b16 %v4543
    %v4828 = vunpack.c.l.b16 %v4544
    %v4829 = vunpack.c.h.b16 %v4544
    %v4830 = vunpack.c.l.b16 %v4545
    %v4831 = vunpack.c.h.b16 %v4545
    %v4832 = vunpack.c.l.b16 %v4546
    %v4833 = vunpack.c.h.b16 %v4546
    %v4834 = vunpack.c.l.b16 %v4547
    %v4835 = vunpack.c.h.b16 %v4547
    %v4836 = vunpack.c.l.b16 %v4548
    %v4837 = vunpack.c.h.b16 %v4548
    %v4838 = vunpack.c.l.b16 %v4549
    %v4839 = vunpack.c.h.b16 %v4549
    %v4840 = vunpack.c.l.b16 %v4550
    %v4841 = vunpack.c.h.b16 %v4550
    %v4842 = vunpack.c.l.b16 %v4551
    %v4843 = vunpack.c.h.b16 %v4551
    %v4844 = vunpack.c.l.b16 %v4552
    %v4845 = vunpack.c.h.b16 %v4552
    %v4846 = vunpack.c.l.b16 %v4553
    %v4847 = vunpack.c.h.b16 %v4553
    %v4848 = vunpack.c.l.b16 %v4554
    %v4849 = vunpack.c.h.b16 %v4554
    %v4850 = vunpack.c.l.b16 %v4555
    %v4851 = vunpack.c.h.b16 %v4555
    %v4852 = vunpack.c.l.b16 %v4556
    %v4853 = vunpack.c.h.b16 %v4556
    %v4854 = vunpack.c.l.b16 %v4557
    %v4855 = vunpack.c.h.b16 %v4557
    %v4856 = vunpack.c.l.b16 %v4558
    %v4857 = vunpack.c.h.b16 %v4558
    %v4858 = vunpack.c.l.b16 %v4559
    %v4859 = vunpack.c.h.b16 %v4559
    %v4860 = vunpack.c.l.b16 %v4560
    %v4861 = vunpack.c.h.b16 %v4560
    %v4862 = vunpack.c.l.b16 %v4561
    %v4863 = vunpack.c.h.b16 %v4561
    %v4864 = vunpack.c.l.b16 %v4562
    %v4865 = vunpack.c.h.b16 %v4562
    %v4866 = vunpack.c.l.b16 %v4563
    %v4867 = vunpack.c.h.b16 %v4563
    %v4868 = vunpack.c.l.b16 %v4564
    %v4869 = vunpack.c.h.b16 %v4564
    %v4870 = vunpack.c.l.b16 %v4565
    %v4871 = vunpack.c.h.b16 %v4565
    %v4872 = vunpack.c.l.b16 %v4566
    %v4873 = vunpack.c.h.b16 %v4566
    %v4874 = vunpack.c.l.b16 %v4567
    %v4875 = vunpack.c.h.b16 %v4567
    %v4876 = vunpack.c.l.b16 %v4568
    %v4877 = vunpack.c.h.b16 %v4568
    %v4878 = vunpack.c.l.b16 %v4569
    %v4879 = vunpack.c.h.b16 %v4569
    %v4880 = vunpack.c.l.b16 %v4570
    %v4881 = vunpack.c.h.b16 %v4570
    %v4882 = vunpack.c.l.b16 %v4571
    %v4883 = vunpack.c.h.b16 %v4571
    %v4884 = vunpack.c.l.b16 %v4572
    %v4885 = vunpack.c.h.b16 %v4572
    %v4886 = vunpack.c.l.b16 %v4573
    %v4887 = vunpack.c.h.b16 %v4573
    %v4888 = vunpack.c.l.b16 %v4574
    %v4889 = vunpack.c.h.b16 %v4574
    %v4890 = vunpack.c.l.b16 %v4575
    %v4891 = vunpack.c.h.b16 %v4575
    %v4892 = vunpack.c.l.b16 %v4576
    %v4893 = vunpack.c.h.b16 %v4576
    %v4894 = vunpack.c.l.b16 %v4577
    %v4895 = vunpack.c.h.b16 %v4577
    %v4896 = vunpack.c.l.b16 %v4578
    %v4897 = vunpack.c.h.b16 %v4578
    %v4898 = vunpack.c.l.b16 %v4579
    %v4899 = vunpack.c.h.b16 %v4579
    %v4900 = vunpack.c.l.b16 %v4580
    %v4901 = vunpack.c.h.b16 %v4580
    %v4902 = vunpack.c.l.b16 %v4581
    %v4903 = vunpack.c.h.b16 %v4581
    %v4904 = vunpack.c.l.b16 %v4582
    %v4905 = vunpack.c.h.b16 %v4582
    %v4906 = vunpack.c.l.b16 %v4583
    %v4907 = vunpack.c.h.b16 %v4583
    %v4908 = vunpack.c.l.b16 %v4584
    %v4909 = vunpack.c.h.b16 %v4584
    %v4910 = vpack.c.b16 %v4724, %v4718
    %v4911 = vpack.c.b16 %v4725, %v4719
    %v4912 = vpack.c.b16 %v4726, %v4720
    %v4913 = vpack.c.b16 %v4727, %v4721
    %v4914 = vpack.c.b16 %v4728, %v4722
    %v4915 = vpack.c.b16 %v4729, %v4723
    %v4916 = vpack.c.b16 %v4736, %v4730
    %v4917 = vpack.c.b16 %v4737, %v4731
    %v4918 = vpack.c.b16 %v4738, %v4732
    %v4919 = vpack.c.b16 %v4739, %v4733
    %v4920 = vpack.c.b16 %v4740, %v4734
    %v4921 = vpack.c.b16 %v4741, %v4735
    %v4922 = vpack.c.b16 %v4748, %v4742
    %v4923 = vpack.c.b16 %v4749, %v4743
    %v4924 = vpack.c.b16 %v4750, %v4744
    %v4925 = vpack.c.b16 %v4751, %v4745
    %v4926 = vpack.c.b16 %v4752, %v4746
    %v4927 = vpack.c.b16 %v4753, %v4747
    %v4928 = vpack.c.b16 %v4760, %v4754
    %v4929 = vpack.c.b16 %v4761, %v4755
    %v4930 = vpack.c.b16 %v4762, %v4756
    %v4931 = vpack.c.b16 %v4763, %v4757
    %v4932 = vpack.c.b16 %v4764, %v4758
    %v4933 = vpack.c.b16 %v4765, %v4759
    %v4934 = vpack.c.b16 %v4772, %v4766
    %v4935 = vpack.c.b16 %v4773, %v4767
    %v4936 = vpack.c.b16 %v4774, %v4768
    %v4937 = vpack.c.b16 %v4775, %v4769
    %v4938 = vpack.c.b16 %v4776, %v4770
    %v4939 = vpack.c.b16 %v4777, %v4771
    %v4940 = vpack.c.b16 %v4784, %v4778
    %v4941 = vpack.c.b16 %v4785, %v4779
    %v4942 = vpack.c.b16 %v4786, %v4780
    %v4943 = vpack.c.b16 %v4787, %v4781
    %v4944 = vpack.c.b16 %v4788, %v4782
    %v4945 = vpack.c.b16 %v4789, %v4783
    %v4946 = vpack.c.b16 %v4796, %v4790
    %v4947 = vpack.c.b16 %v4797, %v4791
    %v4948 = vpack.c.b16 %v4798, %v4792
    %v4949 = vpack.c.b16 %v4799, %v4793
    %v4950 = vpack.c.b16 %v4800, %v4794
    %v4951 = vpack.c.b16 %v4801, %v4795
    %v4952 = vpack.c.b16 %v4808, %v4802
    %v4953 = vpack.c.b16 %v4809, %v4803
    %v4954 = vpack.c.b16 %v4810, %v4804
    %v4955 = vpack.c.b16 %v4811, %v4805
    %v4956 = vpack.c.b16 %v4812, %v4806
    %v4957 = vpack.c.b16 %v4813, %v4807
    %v4958 = vpack.c.b16 %v4820, %v4814
    %v4959 = vpack.c.b16 %v4821, %v4815
    %v4960 = vpack.c.b16 %v4822, %v4816
    %v4961 = vpack.c.b16 %v4823, %v4817
    %v4962 = vpack.c.b16 %v4824, %v4818
    %v4963 = vpack.c.b16 %v4825, %v4819
    %v4964 = vpack.c.b16 %v4832, %v4826
    %v4965 = vpack.c.b16 %v4833, %v4827
    %v4966 = vpack.c.b16 %v4834, %v4828
    %v4967 = vpack.c.b16 %v4835, %v4829
    %v4968 = vpack.c.b16 %v4836, %v4830
    %v4969 = vpack.c.b16 %v4837, %v4831
    %v4970 = vpack.c.b16 %v4844, %v4838
    %v4971 = vpack.c.b16 %v4845, %v4839
    %v4972 = vpack.c.b16 %v4846, %v4840
    %v4973 = vpack.c.b16 %v4847, %v4841
    %v4974 = vpack.c.b16 %v4848, %v4842
    %v4975 = vpack.c.b16 %v4849, %v4843
    %v4976 = vpack.c.b16 %v4856, %v4850
    %v4977 = vpack.c.b16 %v4857, %v4851
    %v4978 = vpack.c.b16 %v4858, %v4852
    %v4979 = vpack.c.b16 %v4859, %v4853
    %v4980 = vpack.c.b16 %v4860, %v4854
    %v4981 = vpack.c.b16 %v4861, %v4855
    %v4982 = vpack.c.b16 %v4868, %v4862
    %v4983 = vpack.c.b16 %v4869, %v4863
    %v4984 = vpack.c.b16 %v4870, %v4864
    %v4985 = vpack.c.b16 %v4871, %v4865
    %v4986 = vpack.c.b16 %v4872, %v4866
    %v4987 = vpack.c.b16 %v4873, %v4867
    %v4988 = vpack.c.b16 %v4880, %v4874
    %v4989 = vpack.c.b16 %v4881, %v4875
    %v4990 = vpack.c.b16 %v4882, %v4876
    %v4991 = vpack.c.b16 %v4883, %v4877
    %v4992 = vpack.c.b16 %v4884, %v4878
    %v4993 = vpack.c.b16 %v4885, %v4879
    %v4994 = vpack.c.b16 %v4892, %v4886
    %v4995 = vpack.c.b16 %v4893, %v4887
    %v4996 = vpack.c.b16 %v4894, %v4888
    %v4997 = vpack.c.b16 %v4895, %v4889
    %v4998 = vpack.c.b16 %v4896, %v4890
    %v4999 = vpack.c.b16 %v4897, %v4891
    %v5000 = vpack.c.b16 %v4904, %v4898
    %v5001 = vpack.c.b16 %v4905, %v4899
    %v5002 = vpack.c.b16 %v4906, %v4900
    %v5003 = vpack.c.b16 %v4907, %v4901
    %v5004 = vpack.c.b16 %v4908, %v4902
    %v5005 = vpack.c.b16 %v4909, %v4903
    %5102 = vmatprep.subr.bf16.mxu0 %v4953
    %5103 = vmatpush1.bf16.msra.mxu0 %v4952
    %5104 = vmatprep.subr.bf16.mxu0 %v4947
    %5105 = vmatpush1.bf16.msra.mxu0 %v4946
    %5106 = vmatprep.subr.bf16.mxu0 %v4941
    %5107 = vmatpush1.bf16.msra.mxu0 %v4940
    %5108 = vmatprep.subr.bf16.mxu0 %v4935
    %5109 = vmatpush1.bf16.msra.mxu0 %v4934
    %5110 = vmatprep.subr.bf16.mxu0 %v4929
    %5111 = vmatpush1.bf16.msra.mxu0 %v4928
    %5112 = vmatprep.subr.bf16.mxu0 %v4923
    %5113 = vmatpush1.bf16.msra.mxu0 %v4922
    %5114 = vmatprep.subr.bf16.mxu0 %v4917
    %5115 = vmatpush1.bf16.msra.mxu0 %v4916
    %5116 = vmatprep.subr.bf16.mxu0 %v4911
    %5117 = vmatpush1.bf16.msra.mxu0 %v4910
    %5118 = vmatprep.subr.bf16.mxu0 %v5001
    %5119 = vmatpush2.bf16.msra.mxu0 %v5000
    %5120 = vmatprep.subr.bf16.mxu0 %v4995
    %5121 = vmatpush2.bf16.msra.mxu0 %v4994
    %5122 = vmatprep.subr.bf16.mxu0 %v4989
    %5123 = vmatpush2.bf16.msra.mxu0 %v4988
    %5124 = vmatprep.subr.bf16.mxu0 %v4983
    %5125 = vmatpush2.bf16.msra.mxu0 %v4982
    %5126 = vmatprep.subr.bf16.mxu0 %v4977
    %5127 = vmatpush2.bf16.msra.mxu0 %v4976
    %5128 = vmatprep.subr.bf16.mxu0 %v4971
    %5129 = vmatpush2.bf16.msra.mxu0 %v4970
    %5130 = vmatprep.subr.bf16.mxu0 %v4965
    %5131 = vmatpush2.bf16.msra.mxu0 %v4964
    %5132 = vmatprep.subr.bf16.mxu0 %v4959
    %5133 = vmatpush2.bf16.msra.mxu0 %v4958
    %5134 = vmatprep.mubr.bf16.mxu0 %v4590
    %5135 = vmatmul.mubr.bf16.gmra.mxu0 %v4589
    %v5136 = vpop.f32.mrf.mxu0
    %v5137 = vadd.f32 %v4595, %v5136
    %v5138 = vpop.f32.mrf.mxu0
    %v5139 = vadd.f32 %v4599, %v5138
    %v5140 = vpop.f32.mrf.mxu0
    %v5141 = vadd.f32 %v4595, %v5140
    %v5142 = vpop.f32.mrf.mxu0
    %v5143 = vadd.f32 %v4599, %v5142
    %5144 = vdwg.mxu0
    %5145 = vmatprep.subr.bf16.mxu0 %v4955
    %5146 = vmatpush1.bf16.msra.mxu0 %v4954
    %5147 = vmatprep.subr.bf16.mxu0 %v4949
    %5148 = vmatpush1.bf16.msra.mxu0 %v4948
    %5149 = vmatprep.subr.bf16.mxu0 %v4943
    %5150 = vmatpush1.bf16.msra.mxu0 %v4942
    %5151 = vmatprep.subr.bf16.mxu0 %v4937
    %5152 = vmatpush1.bf16.msra.mxu0 %v4936
    %5153 = vmatprep.subr.bf16.mxu0 %v4931
    %5154 = vmatpush1.bf16.msra.mxu0 %v4930
    %5155 = vmatprep.subr.bf16.mxu0 %v4925
    %5156 = vmatpush1.bf16.msra.mxu0 %v4924
    %5157 = vmatprep.subr.bf16.mxu0 %v4919
    %5158 = vmatpush1.bf16.msra.mxu0 %v4918
    %5159 = vmatprep.subr.bf16.mxu0 %v4913
    %5160 = vmatpush1.bf16.msra.mxu0 %v4912
    %5161 = vmatprep.subr.bf16.mxu0 %v5003
    %5162 = vmatpush2.bf16.msra.mxu0 %v5002
    %5163 = vmatprep.subr.bf16.mxu0 %v4997
    %5164 = vmatpush2.bf16.msra.mxu0 %v4996
    %5165 = vmatprep.subr.bf16.mxu0 %v4991
    %5166 = vmatpush2.bf16.msra.mxu0 %v4990
    %5167 = vmatprep.subr.bf16.mxu0 %v4985
    %5168 = vmatpush2.bf16.msra.mxu0 %v4984
    %5169 = vmatprep.subr.bf16.mxu0 %v4979
    %5170 = vmatpush2.bf16.msra.mxu0 %v4978
    %5171 = vmatprep.subr.bf16.mxu0 %v4973
    %5172 = vmatpush2.bf16.msra.mxu0 %v4972
    %5173 = vmatprep.subr.bf16.mxu0 %v4967
    %5174 = vmatpush2.bf16.msra.mxu0 %v4966
    %5175 = vmatprep.subr.bf16.mxu0 %v4961
    %5176 = vmatpush2.bf16.msra.mxu0 %v4960
    %5177 = vmatprep.mubr.bf16.mxu0 %v4590
    %5178 = vmatmul.mubr.bf16.gmra.mxu0 %v4589
    %v5179 = vpop.f32.mrf.mxu0
    %v5180 = vadd.f32 %v4603, %v5179
    %v5181 = vpop.f32.mrf.mxu0
    %v5182 = vadd.f32 %v4607, %v5181
    %v5183 = vpop.f32.mrf.mxu0
    %v5184 = vadd.f32 %v4603, %v5183
    %v5185 = vpop.f32.mrf.mxu0
    %v5186 = vadd.f32 %v4607, %v5185
    %5187 = vdwg.mxu0
    %5188 = vmatprep.subr.bf16.mxu0 %v4957
    %5189 = vmatpush1.bf16.msra.mxu0 %v4956
    %5190 = vmatprep.subr.bf16.mxu0 %v4951
    %5191 = vmatpush1.bf16.msra.mxu0 %v4950
    %5192 = vmatprep.subr.bf16.mxu0 %v4945
    %5193 = vmatpush1.bf16.msra.mxu0 %v4944
    %5194 = vmatprep.subr.bf16.mxu0 %v4939
    %5195 = vmatpush1.bf16.msra.mxu0 %v4938
    %5196 = vmatprep.subr.bf16.mxu0 %v4933
    %5197 = vmatpush1.bf16.msra.mxu0 %v4932
    %5198 = vmatprep.subr.bf16.mxu0 %v4927
    %5199 = vmatpush1.bf16.msra.mxu0 %v4926
    %5200 = vmatprep.subr.bf16.mxu0 %v4921
    %5201 = vmatpush1.bf16.msra.mxu0 %v4920
    %5202 = vmatprep.subr.bf16.mxu0 %v4915
    %5203 = vmatpush1.bf16.msra.mxu0 %v4914
    %5204 = vmatprep.subr.bf16.mxu0 %v5005
    %5205 = vmatpush2.bf16.msra.mxu0 %v5004
    %5206 = vmatprep.subr.bf16.mxu0 %v4999
    %5207 = vmatpush2.bf16.msra.mxu0 %v4998
    %5208 = vmatprep.subr.bf16.mxu0 %v4993
    %5209 = vmatpush2.bf16.msra.mxu0 %v4992
    %5210 = vmatprep.subr.bf16.mxu0 %v4987
    %5211 = vmatpush2.bf16.msra.mxu0 %v4986
    %5212 = vmatprep.subr.bf16.mxu0 %v4981
    %5213 = vmatpush2.bf16.msra.mxu0 %v4980
    %5214 = vmatprep.subr.bf16.mxu0 %v4975
    %5215 = vmatpush2.bf16.msra.mxu0 %v4974
    %5216 = vmatprep.subr.bf16.mxu0 %v4969
    %5217 = vmatpush2.bf16.msra.mxu0 %v4968
    %5218 = vmatprep.subr.bf16.mxu0 %v4963
    %5219 = vmatpush2.bf16.msra.mxu0 %v4962
    %5220 = vmatprep.mubr.bf16.mxu0 %v4590
    %5221 = vmatmul.mubr.bf16.gmra.mxu0 %v4589
    %v5222 = vpop.f32.mrf.mxu0
    %v5223 = vadd.f32 %v4611, %v5222
    %v5224 = vpop.f32.mrf.mxu0
    %v5225 = vadd.f32 %v4615, %v5224
    %v5226 = vpop.f32.mrf.mxu0
    %v5227 = vadd.f32 %v4611, %v5226
    %v5228 = vpop.f32.mrf.mxu0
    %v5229 = vadd.f32 %v4615, %v5228
    %5230 = vdwg.mxu0
    %v5231 = vmul.f32 %v5137, 0.5
    %v5232 = vmul.f32 %v5139, 0.5
    %v5233 = vmul.f32 %v5180, 0.5
    %v5234 = vmul.f32 %v5182, 0.5
    %v5235 = vmul.f32 %v5223, 0.5
    %v5236 = vmul.f32 %v5225, 0.5
    %v5237 = vmul.f32 %v5141, 0.5
    %v5238 = vmul.f32 %v5143, 0.5
    %v5239 = vmul.f32 %v5184, 0.5
    %v5240 = vmul.f32 %v5186, 0.5
    %v5241 = vmul.f32 %v5227, 0.5
    %v5242 = vmul.f32 %v5229, 0.5
    %v5243 = vmul.f32 %v5137, 0.70710677
    %v5244 = vmul.f32 %v5139, 0.70710677
    %v5245 = vmul.f32 %v5180, 0.70710677
    %v5246 = vmul.f32 %v5182, 0.70710677
    %v5247 = vmul.f32 %v5223, 0.70710677
    %v5248 = vmul.f32 %v5225, 0.70710677
    %v5249 = vmul.f32 %v5141, 0.70710677
    %v5250 = vmul.f32 %v5143, 0.70710677
    %v5251 = vmul.f32 %v5184, 0.70710677
    %v5252 = vmul.f32 %v5186, 0.70710677
    %v5253 = vmul.f32 %v5227, 0.70710677
    %v5254 = vmul.f32 %v5229, 0.70710677
    %v5255 = verf.f32.pop %v5243
    %v5256 = verf.f32.pop %v5244
    %v5257 = verf.f32.pop %v5245
    %v5258 = verf.f32.pop %v5246
    %v5259 = verf.f32.pop %v5247
    %v5260 = verf.f32.pop %v5248
    %v5261 = verf.f32.pop %v5249
    %v5262 = verf.f32.pop %v5250
    %v5263 = verf.f32.pop %v5251
    %v5264 = verf.f32.pop %v5252
    %v5265 = verf.f32.pop %v5253
    %v5266 = verf.f32.pop %v5254
    %v5267 = vadd.f32 %v5255, 1.0
    %v5268 = vadd.f32 %v5256, 1.0
    %v5269 = vadd.f32 %v5257, 1.0
    %v5270 = vadd.f32 %v5258, 1.0
    %v5271 = vadd.f32 %v5259, 1.0
    %v5272 = vadd.f32 %v5260, 1.0
    %v5273 = vadd.f32 %v5261, 1.0
    %v5274 = vadd.f32 %v5262, 1.0
    %v5275 = vadd.f32 %v5263, 1.0
    %v5276 = vadd.f32 %v5264, 1.0
    %v5277 = vadd.f32 %v5265, 1.0
    %v5278 = vadd.f32 %v5266, 1.0
    %v5279 = vmul.f32 %v5231, %v5267
    %v5280 = vmul.f32 %v5232, %v5268
    %v5281 = vmul.f32 %v5233, %v5269
    %v5282 = vmul.f32 %v5234, %v5270
    %v5283 = vmul.f32 %v5235, %v5271
    %v5284 = vmul.f32 %v5236, %v5272
    %v5285 = vmul.f32 %v5237, %v5273
    %v5286 = vmul.f32 %v5238, %v5274
    %v5287 = vmul.f32 %v5239, %v5275
    %v5288 = vmul.f32 %v5240, %v5276
    %v5289 = vmul.f32 %v5241, %v5277
    %v5290 = vmul.f32 %v5242, %v5278
    %v5291 = vld [vmem:[%s12] sm:$0xff]
    %v5292 = vld [vmem:[%s12 + $0x8] sm:$0xff]
    %v5293 = vld [vmem:[%s12 + $0x10] sm:$0xff]
    %v5294 = vld [vmem:[%s12 + $0x18] sm:$0xf]
    %v5295 = vld [vmem:[%s12 + $0x1c] sm:$0xff]
    %v5296 = vld [vmem:[%s12 + $0x24] sm:$0xff]
    %v5297 = vld [vmem:[%s12 + $0x2c] sm:$0xff]
    %v5298 = vld [vmem:[%s12 + $0x34] sm:$0xf]
    %v5299 = vld [vmem:[%s12 + $0x38] sm:$0xff]
    %v5300 = vld [vmem:[%s12 + $0x40] sm:$0xff]
    %v5301 = vld [vmem:[%s12 + $0x48] sm:$0xff]
    %v5302 = vld [vmem:[%s12 + $0x50] sm:$0xf]
    %v5303 = vld [vmem:[%s12 + $0x54] sm:$0xff]
    %v5304 = vld [vmem:[%s12 + $0x5c] sm:$0xff]
    %v5305 = vld [vmem:[%s12 + $0x64] sm:$0xff]
    %v5306 = vld [vmem:[%s12 + $0x6c] sm:$0xf]
    %v5307 = vld [vmem:[%s12 + $0x70] sm:$0xff]
    %v5308 = vld [vmem:[%s12 + $0x78] sm:$0xff]
    %v5309 = vld [vmem:[%s12 + $0x80] sm:$0xff]
    %v5310 = vld [vmem:[%s12 + $0x88] sm:$0xf]
    %v5311 = vld [vmem:[%s12 + $0x8c] sm:$0xff]
    %v5312 = vld [vmem:[%s12 + $0x94] sm:$0xff]
    %v5313 = vld [vmem:[%s12 + $0x9c] sm:$0xff]
    %v5314 = vld [vmem:[%s12 + $0xa4] sm:$0xf]
    %v5315 = vld [vmem:[%s12 + $0xa8] sm:$0xff]
    %v5316 = vld [vmem:[%s12 + $0xb0] sm:$0xff]
    %v5317 = vld [vmem:[%s12 + $0xb8] sm:$0xff]
    %v5318 = vld [vmem:[%s12 + $0xc0] sm:$0xf]
    %v5319 = vld [vmem:[%s12 + $0xc4] sm:$0xff]
    %v5320 = vld [vmem:[%s12 + $0xcc] sm:$0xff]
    %v5321 = vld [vmem:[%s12 + $0xd4] sm:$0xff]
    %v5322 = vld [vmem:[%s12 + $0xdc] sm:$0xf]
    %v5323 = vld [vmem:[%s12 + $0xe0] sm:$0xff]
    %v5324 = vld [vmem:[%s12 + $0xe8] sm:$0xff]
    %v5325 = vld [vmem:[%s12 + $0xf0] sm:$0xff]
    %v5326 = vld [vmem:[%s12 + $0xf8] sm:$0xf]
    %v5327 = vld [vmem:[%s12 + $0xfc] sm:$0xff]
    %v5328 = vld [vmem:[%s12 + $0x104] sm:$0xff]
    %v5329 = vld [vmem:[%s12 + $0x10c] sm:$0xff]
    %v5330 = vld [vmem:[%s12 + $0x114] sm:$0xf]
    %v5331 = vld [vmem:[%s12 + $0x118] sm:$0xff]
    %v5332 = vld [vmem:[%s12 + $0x120] sm:$0xff]
    %v5333 = vld [vmem:[%s12 + $0x128] sm:$0xff]
    %v5334 = vld [vmem:[%s12 + $0x130] sm:$0xf]
    %v5335 = vld [vmem:[%s12 + $0x134] sm:$0xff]
    %v5336 = vld [vmem:[%s12 + $0x13c] sm:$0xff]
    %v5337 = vld [vmem:[%s12 + $0x144] sm:$0xff]
    %v5338 = vld [vmem:[%s12 + $0x14c] sm:$0xf]
    %v5339 = vld [vmem:[%s12 + $0x150] sm:$0xff]
    %v5340 = vld [vmem:[%s12 + $0x158] sm:$0xff]
    %v5341 = vld [vmem:[%s12 + $0x160] sm:$0xff]
    %v5342 = vld [vmem:[%s12 + $0x168] sm:$0xf]
    %v5343 = vld [vmem:[%s12 + $0x16c] sm:$0xff]
    %v5344 = vld [vmem:[%s12 + $0x174] sm:$0xff]
    %v5345 = vld [vmem:[%s12 + $0x17c] sm:$0xff]
    %v5346 = vld [vmem:[%s12 + $0x184] sm:$0xf]
    %v5347 = vld [vmem:[%s12 + $0x188] sm:$0xff]
    %v5348 = vld [vmem:[%s12 + $0x190] sm:$0xff]
    %v5349 = vld [vmem:[%s12 + $0x198] sm:$0xff]
    %v5350 = vld [vmem:[%s12 + $0x1a0] sm:$0xf]
    %v5351 = vld [vmem:[%s12 + $0x1a4] sm:$0xff]
    %v5352 = vld [vmem:[%s12 + $0x1ac] sm:$0xff]
    %v5353 = vld [vmem:[%s12 + $0x1b4] sm:$0xff]
    %v5354 = vld [vmem:[%s12 + $0x1bc] sm:$0xf]
    %v5355 = vld [vmem:[%s12 + $0x1c0] sm:$0xff]
    %v5356 = vld [vmem:[%s12 + $0x1c8] sm:$0xff]
    %v5357 = vld [vmem:[%s12 + $0x1d0] sm:$0xff]
    %v5358 = vld [vmem:[%s12 + $0x1d8] sm:$0xf]
    %v5359 = vld [vmem:[%s12 + $0x1dc] sm:$0xff]
    %v5360 = vld [vmem:[%s12 + $0x1e4] sm:$0xff]
    %v5361 = vld [vmem:[%s12 + $0x1ec] sm:$0xff]
    %v5362 = vld [vmem:[%s12 + $0x1f4] sm:$0xf]
    %v5363 = vld [vmem:[%s12 + $0x1f8] sm:$0xff]
    %v5364 = vld [vmem:[%s12 + $0x200] sm:$0xff]
    %v5365 = vld [vmem:[%s12 + $0x208] sm:$0xff]
    %v5366 = vld [vmem:[%s12 + $0x210] sm:$0xf]
    %v5367 = vld [vmem:[%s12 + $0x214] sm:$0xff]
    %v5368 = vld [vmem:[%s12 + $0x21c] sm:$0xff]
    %v5369 = vld [vmem:[%s12 + $0x224] sm:$0xff]
    %v5370 = vld [vmem:[%s12 + $0x22c] sm:$0xf]
    %v5371 = vld [vmem:[%s12 + $0x230] sm:$0xff]
    %v5372 = vld [vmem:[%s12 + $0x238] sm:$0xff]
    %v5373 = vld [vmem:[%s12 + $0x240] sm:$0xff]
    %v5374 = vld [vmem:[%s12 + $0x248] sm:$0xf]
    %v5375 = vld [vmem:[%s12 + $0x24c] sm:$0xff]
    %v5376 = vld [vmem:[%s12 + $0x254] sm:$0xff]
    %v5377 = vld [vmem:[%s12 + $0x25c] sm:$0xff]
    %v5378 = vld [vmem:[%s12 + $0x264] sm:$0xf]
    %v5379 = vld [vmem:[%s12 + $0x268] sm:$0xff]
    %v5380 = vld [vmem:[%s12 + $0x270] sm:$0xff]
    %v5381 = vld [vmem:[%s12 + $0x278] sm:$0xff]
    %v5382 = vld [vmem:[%s12 + $0x280] sm:$0xf]
    %v5383 = vld [vmem:[%s12 + $0x284] sm:$0xff]
    %v5384 = vld [vmem:[%s12 + $0x28c] sm:$0xff]
    %v5385 = vld [vmem:[%s12 + $0x294] sm:$0xff]
    %v5386 = vld [vmem:[%s12 + $0x29c] sm:$0xf]
    %v5387 = vld [vmem:[%s12 + $0x2a0] sm:$0xff]
    %v5388 = vld [vmem:[%s12 + $0x2a8] sm:$0xff]
    %v5389 = vld [vmem:[%s12 + $0x2b0] sm:$0xff]
    %v5390 = vld [vmem:[%s12 + $0x2b8] sm:$0xf]
    %v5391 = vld [vmem:[%s12 + $0x2bc] sm:$0xff]
    %v5392 = vld [vmem:[%s12 + $0x2c4] sm:$0xff]
    %v5393 = vld [vmem:[%s12 + $0x2cc] sm:$0xff]
    %v5394 = vld [vmem:[%s12 + $0x2d4] sm:$0xf]
    %v5395 = vld [vmem:[%s12 + $0x2d8] sm:$0xff]
    %v5396 = vld [vmem:[%s12 + $0x2e0] sm:$0xff]
    %v5397 = vld [vmem:[%s12 + $0x2e8] sm:$0xff]
    %v5398 = vld [vmem:[%s12 + $0x2f0] sm:$0xf]
    %v5399 = vld [vmem:[%s12 + $0x2f4] sm:$0xff]
    %v5400 = vld [vmem:[%s12 + $0x2fc] sm:$0xff]
    %v5401 = vld [vmem:[%s12 + $0x304] sm:$0xff]
    %v5402 = vld [vmem:[%s12 + $0x30c] sm:$0xf]
    %v5403 = vld [vmem:[%s12 + $0x310] sm:$0xff]
    %v5404 = vld [vmem:[%s12 + $0x318] sm:$0xff]
    %v5405 = vld [vmem:[%s12 + $0x320] sm:$0xff]
    %v5406 = vld [vmem:[%s12 + $0x328] sm:$0xf]
    %v5407 = vld [vmem:[%s12 + $0x32c] sm:$0xff]
    %v5408 = vld [vmem:[%s12 + $0x334] sm:$0xff]
    %v5409 = vld [vmem:[%s12 + $0x33c] sm:$0xff]
    %v5410 = vld [vmem:[%s12 + $0x344] sm:$0xf]
    %v5411 = vld [vmem:[%s12 + $0x348] sm:$0xff]
    %v5412 = vld [vmem:[%s12 + $0x350] sm:$0xff]
    %v5413 = vld [vmem:[%s12 + $0x358] sm:$0xff]
    %v5414 = vld [vmem:[%s12 + $0x360] sm:$0xf]
    %v5415 = vld [vmem:[%s12 + $0x364] sm:$0xff]
    %v5416 = vld [vmem:[%s12 + $0x36c] sm:$0xff]
    %v5417 = vld [vmem:[%s12 + $0x374] sm:$0xff]
    %v5418 = vld [vmem:[%s12 + $0x37c] sm:$0xf]
    %v5419 = vld [vmem:[%s12 + $0x380] sm:$0xff]
    %v5420 = vld [vmem:[%s12 + $0x388] sm:$0xff]
    %v5421 = vld [vmem:[%s12 + $0x390] sm:$0xff]
    %v5422 = vld [vmem:[%s12 + $0x398] sm:$0xf]
    %v5423 = vld [vmem:[%s12 + $0x39c] sm:$0xff]
    %v5424 = vld [vmem:[%s12 + $0x3a4] sm:$0xff]
    %v5425 = vld [vmem:[%s12 + $0x3ac] sm:$0xff]
    %v5426 = vld [vmem:[%s12 + $0x3b4] sm:$0xf]
    %v5427 = vld [vmem:[%s12 + $0x3b8] sm:$0xff]
    %v5428 = vld [vmem:[%s12 + $0x3c0] sm:$0xff]
    %v5429 = vld [vmem:[%s12 + $0x3c8] sm:$0xff]
    %v5430 = vld [vmem:[%s12 + $0x3d0] sm:$0xf]
    %v5431 = vld [vmem:[%s12 + $0x3d4] sm:$0xff]
    %v5432 = vld [vmem:[%s12 + $0x3dc] sm:$0xff]
    %v5433 = vld [vmem:[%s12 + $0x3e4] sm:$0xff]
    %v5434 = vld [vmem:[%s12 + $0x3ec] sm:$0xf]
    %v5435 = vld [vmem:[%s12 + $0x3f0] sm:$0xff]
    %v5436 = vld [vmem:[%s12 + $0x3f8] sm:$0xff]
    %v5437 = vld [vmem:[%s12 + $0x400] sm:$0xff]
    %v5438 = vld [vmem:[%s12 + $0x408] sm:$0xf]
    %v5439 = vld [vmem:[%s12 + $0x40c] sm:$0xff]
    %v5440 = vld [vmem:[%s12 + $0x414] sm:$0xff]
    %v5441 = vld [vmem:[%s12 + $0x41c] sm:$0xff]
    %v5442 = vld [vmem:[%s12 + $0x424] sm:$0xf]
    %v5443 = vld [vmem:[%s12 + $0x428] sm:$0xff]
    %v5444 = vld [vmem:[%s12 + $0x430] sm:$0xff]
    %v5445 = vld [vmem:[%s12 + $0x438] sm:$0xff]
    %v5446 = vld [vmem:[%s12 + $0x440] sm:$0xf]
    %v5447 = vld [vmem:[%s12 + $0x444] sm:$0xff]
    %v5448 = vld [vmem:[%s12 + $0x44c] sm:$0xff]
    %v5449 = vld [vmem:[%s12 + $0x454] sm:$0xff]
    %v5450 = vld [vmem:[%s12 + $0x45c] sm:$0xf]
    %v5451 = vld [vmem:[%s12 + $0x460] sm:$0xff]
    %v5452 = vld [vmem:[%s12 + $0x468] sm:$0xff]
    %v5453 = vld [vmem:[%s12 + $0x470] sm:$0xff]
    %v5454 = vld [vmem:[%s12 + $0x478] sm:$0xf]
    %v5455 = vld [vmem:[%s12 + $0x47c] sm:$0xff]
    %v5456 = vld [vmem:[%s12 + $0x484] sm:$0xff]
    %v5457 = vld [vmem:[%s12 + $0x48c] sm:$0xff]
    %v5458 = vld [vmem:[%s12 + $0x494] sm:$0xf]
    %v5459 = vld [vmem:[%s12 + $0x498] sm:$0xff]
    %v5460 = vld [vmem:[%s12 + $0x4a0] sm:$0xff]
    %v5461 = vld [vmem:[%s12 + $0x4a8] sm:$0xff]
    %v5462 = vld [vmem:[%s12 + $0x4b0] sm:$0xf]
    %v5463 = vld [vmem:[%s12 + $0x4b4] sm:$0xff]
    %v5464 = vld [vmem:[%s12 + $0x4bc] sm:$0xff]
    %v5465 = vld [vmem:[%s12 + $0x4c4] sm:$0xff]
    %v5466 = vld [vmem:[%s12 + $0x4cc] sm:$0xf]
    %v5467 = vld [vmem:[%s12 + $0x4d0] sm:$0xff]
    %v5468 = vld [vmem:[%s12 + $0x4d8] sm:$0xff]
    %v5469 = vld [vmem:[%s12 + $0x4e0] sm:$0xff]
    %v5470 = vld [vmem:[%s12 + $0x4e8] sm:$0xf]
    %v5471 = vld [vmem:[%s12 + $0x4ec] sm:$0xff]
    %v5472 = vld [vmem:[%s12 + $0x4f4] sm:$0xff]
    %v5473 = vld [vmem:[%s12 + $0x4fc] sm:$0xff]
    %v5474 = vld [vmem:[%s12 + $0x504] sm:$0xf]
    %v5475 = vld [vmem:[%s12 + $0x508] sm:$0xff]
    %v5476 = vld [vmem:[%s12 + $0x510] sm:$0xff]
    %v5477 = vld [vmem:[%s12 + $0x518] sm:$0xff]
    %v5478 = vld [vmem:[%s12 + $0x520] sm:$0xf]
    %v5479 = vld [vmem:[%s12 + $0x524] sm:$0xff]
    %v5480 = vld [vmem:[%s12 + $0x52c] sm:$0xff]
    %v5481 = vld [vmem:[%s12 + $0x534] sm:$0xff]
    %v5482 = vld [vmem:[%s12 + $0x53c] sm:$0xf]
    %v5483 = vld [vmem:[%s12 + $0x540] sm:$0xff]
    %v5484 = vld [vmem:[%s12 + $0x548] sm:$0xff]
    %v5485 = vld [vmem:[%s12 + $0x550] sm:$0xff]
    %v5486 = vld [vmem:[%s12 + $0x558] sm:$0xf]
    %v5487 = vld [vmem:[%s12 + $0x55c] sm:$0xff]
    %v5488 = vld [vmem:[%s12 + $0x564] sm:$0xff]
    %v5489 = vld [vmem:[%s12 + $0x56c] sm:$0xff]
    %v5490 = vld [vmem:[%s12 + $0x574] sm:$0xf]
    %v5491 = vld [vmem:[%s12 + $0x578] sm:$0xff]
    %v5492 = vld [vmem:[%s12 + $0x580] sm:$0xff]
    %v5493 = vld [vmem:[%s12 + $0x588] sm:$0xff]
    %v5494 = vld [vmem:[%s12 + $0x590] sm:$0xf]
    %v5495 = vld [vmem:[%s12 + $0x594] sm:$0xff]
    %v5496 = vld [vmem:[%s12 + $0x59c] sm:$0xff]
    %v5497 = vld [vmem:[%s12 + $0x5a4] sm:$0xff]
    %v5498 = vld [vmem:[%s12 + $0x5ac] sm:$0xf]
    %v5499 = vld [vmem:[%s12 + $0x5b0] sm:$0xff]
    %v5500 = vld [vmem:[%s12 + $0x5b8] sm:$0xff]
    %v5501 = vld [vmem:[%s12 + $0x5c0] sm:$0xff]
    %v5502 = vld [vmem:[%s12 + $0x5c8] sm:$0xf]
    %v5503 = vld [vmem:[%s12 + $0x5cc] sm:$0xff]
    %v5504 = vld [vmem:[%s12 + $0x5d4] sm:$0xff]
    %v5505 = vld [vmem:[%s12 + $0x5dc] sm:$0xff]
    %v5506 = vld [vmem:[%s12 + $0x5e4] sm:$0xf]
    %v5507 = vld [vmem:[%s12 + $0x5e8] sm:$0xff]
    %v5508 = vld [vmem:[%s12 + $0x5f0] sm:$0xff]
    %v5509 = vld [vmem:[%s12 + $0x5f8] sm:$0xff]
    %v5510 = vld [vmem:[%s12 + $0x600] sm:$0xf]
    %v5511 = vld [vmem:[%s12 + $0x604] sm:$0xff]
    %v5512 = vld [vmem:[%s12 + $0x60c] sm:$0xff]
    %v5513 = vld [vmem:[%s12 + $0x614] sm:$0xff]
    %v5514 = vld [vmem:[%s12 + $0x61c] sm:$0xf]
    %v5515 = vld [vmem:[%s12 + $0x620] sm:$0xff]
    %v5516 = vld [vmem:[%s12 + $0x628] sm:$0xff]
    %v5517 = vld [vmem:[%s12 + $0x630] sm:$0xff]
    %v5518 = vld [vmem:[%s12 + $0x638] sm:$0xf]
    %v5519 = vld [vmem:[%s12 + $0x63c] sm:$0xff]
    %v5520 = vld [vmem:[%s12 + $0x644] sm:$0xff]
    %v5521 = vld [vmem:[%s12 + $0x64c] sm:$0xff]
    %v5522 = vld [vmem:[%s12 + $0x654] sm:$0xf]
    %v5523 = vld [vmem:[%s12 + $0x658] sm:$0xff]
    %v5524 = vld [vmem:[%s12 + $0x660] sm:$0xff]
    %v5525 = vld [vmem:[%s12 + $0x668] sm:$0xff]
    %v5526 = vld [vmem:[%s12 + $0x670] sm:$0xf]
    %v5527 = vld [vmem:[%s12 + $0x674] sm:$0xff]
    %v5528 = vld [vmem:[%s12 + $0x67c] sm:$0xff]
    %v5529 = vld [vmem:[%s12 + $0x684] sm:$0xff]
    %v5530 = vld [vmem:[%s12 + $0x68c] sm:$0xf]
    %v5531 = vld [vmem:[%s12 + $0x690] sm:$0xff]
    %v5532 = vld [vmem:[%s12 + $0x698] sm:$0xff]
    %v5533 = vld [vmem:[%s12 + $0x6a0] sm:$0xff]
    %v5534 = vld [vmem:[%s12 + $0x6a8] sm:$0xf]
    %v5535 = vld [vmem:[%s12 + $0x6ac] sm:$0xff]
    %v5536 = vld [vmem:[%s12 + $0x6b4] sm:$0xff]
    %v5537 = vld [vmem:[%s12 + $0x6bc] sm:$0xff]
    %v5538 = vld [vmem:[%s12 + $0x6c4] sm:$0xf]
    %v5539 = vld [vmem:[%s12 + $0x6c8] sm:$0xff]
    %v5540 = vld [vmem:[%s12 + $0x6d0] sm:$0xff]
    %v5541 = vld [vmem:[%s12 + $0x6d8] sm:$0xff]
    %v5542 = vld [vmem:[%s12 + $0x6e0] sm:$0xf]
    %v5543 = vld [vmem:[%s12 + $0x6e4] sm:$0xff]
    %v5544 = vld [vmem:[%s12 + $0x6ec] sm:$0xff]
    %v5545 = vld [vmem:[%s12 + $0x6f4] sm:$0xff]
    %v5546 = vld [vmem:[%s12 + $0x6fc] sm:$0xf]
    %v5547 = vld [vmem:[%s12 + $0x700] sm:$0xff]
    %v5548 = vld [vmem:[%s12 + $0x708] sm:$0xff]
    %v5549 = vld [vmem:[%s12 + $0x710] sm:$0xff]
    %v5550 = vld [vmem:[%s12 + $0x718] sm:$0xf]
    %v5551 = vld [vmem:[%s12 + $0x71c] sm:$0xff]
    %v5552 = vld [vmem:[%s12 + $0x724] sm:$0xff]
    %v5553 = vld [vmem:[%s12 + $0x72c] sm:$0xff]
    %v5554 = vld [vmem:[%s12 + $0x734] sm:$0xf]
    %v5555 = vld [vmem:[%s12 + $0x738] sm:$0xff]
    %v5556 = vld [vmem:[%s12 + $0x740] sm:$0xff]
    %v5557 = vld [vmem:[%s12 + $0x748] sm:$0xff]
    %v5558 = vld [vmem:[%s12 + $0x750] sm:$0xf]
    %v5559 = vld [vmem:[%s12 + $0x754] sm:$0xff]
    %v5560 = vld [vmem:[%s12 + $0x75c] sm:$0xff]
    %v5561 = vld [vmem:[%s12 + $0x764] sm:$0xff]
    %v5562 = vld [vmem:[%s12 + $0x76c] sm:$0xf]
    %v5563 = vld [vmem:[%s12 + $0x770] sm:$0xff]
    %v5564 = vld [vmem:[%s12 + $0x778] sm:$0xff]
    %v5565 = vld [vmem:[%s12 + $0x780] sm:$0xff]
    %v5566 = vld [vmem:[%s12 + $0x788] sm:$0xf]
    %v5567 = vld [vmem:[%s12 + $0x78c] sm:$0xff]
    %v5568 = vld [vmem:[%s12 + $0x794] sm:$0xff]
    %v5569 = vld [vmem:[%s12 + $0x79c] sm:$0xff]
    %v5570 = vld [vmem:[%s12 + $0x7a4] sm:$0xf]
    %v5571 = vld [vmem:[%s12 + $0x7a8] sm:$0xff]
    %v5572 = vld [vmem:[%s12 + $0x7b0] sm:$0xff]
    %v5573 = vld [vmem:[%s12 + $0x7b8] sm:$0xff]
    %v5574 = vld [vmem:[%s12 + $0x7c0] sm:$0xf]
    %v5575 = vld [vmem:[%s12 + $0x7c4] sm:$0xff]
    %v5576 = vld [vmem:[%s12 + $0x7cc] sm:$0xff]
    %v5577 = vld [vmem:[%s12 + $0x7d4] sm:$0xff]
    %v5578 = vld [vmem:[%s12 + $0x7dc] sm:$0xf]
    %v5579 = vld [vmem:[%s12 + $0x7e0] sm:$0xff]
    %v5580 = vld [vmem:[%s12 + $0x7e8] sm:$0xff]
    %v5581 = vld [vmem:[%s12 + $0x7f0] sm:$0xff]
    %v5582 = vld [vmem:[%s12 + $0x7f8] sm:$0xf]
    %v5583 = vld [vmem:[%s12 + $0x7fc] sm:$0xff]
    %v5584 = vld [vmem:[%s12 + $0x804] sm:$0xff]
    %v5585 = vld [vmem:[%s12 + $0x80c] sm:$0xff]
    %v5586 = vld [vmem:[%s12 + $0x814] sm:$0xf]
    %v5587 = vld [vmem:[%s12 + $0x818] sm:$0xff]
    %v5588 = vld [vmem:[%s12 + $0x820] sm:$0xff]
    %v5589 = vld [vmem:[%s12 + $0x828] sm:$0xff]
    %v5590 = vld [vmem:[%s12 + $0x830] sm:$0xf]
    %v5591 = vld [vmem:[%s12 + $0x834] sm:$0xff]
    %v5592 = vld [vmem:[%s12 + $0x83c] sm:$0xff]
    %v5593 = vld [vmem:[%s12 + $0x844] sm:$0xff]
    %v5594 = vld [vmem:[%s12 + $0x84c] sm:$0xf]
    %v5595 = vld [vmem:[%s12 + $0x850] sm:$0xff]
    %v5596 = vld [vmem:[%s12 + $0x858] sm:$0xff]
    %v5597 = vld [vmem:[%s12 + $0x860] sm:$0xff]
    %v5598 = vld [vmem:[%s12 + $0x868] sm:$0xf]
    %v5599 = vld [vmem:[%s12 + $0x86c] sm:$0xff]
    %v5600 = vld [vmem:[%s12 + $0x874] sm:$0xff]
    %v5601 = vld [vmem:[%s12 + $0x87c] sm:$0xff]
    %v5602 = vld [vmem:[%s12 + $0x884] sm:$0xf]
    %v5603 = vld [vmem:[%s12 + $0x888] sm:$0xff]
    %v5604 = vld [vmem:[%s12 + $0x890] sm:$0xff]
    %v5605 = vld [vmem:[%s12 + $0x898] sm:$0xff]
    %v5606 = vld [vmem:[%s12 + $0x8a0] sm:$0xf]
    %v5607 = vld [vmem:[%s12 + $0x8a4] sm:$0xff]
    %v5608 = vld [vmem:[%s12 + $0x8ac] sm:$0xff]
    %v5609 = vld [vmem:[%s12 + $0x8b4] sm:$0xff]
    %v5610 = vld [vmem:[%s12 + $0x8bc] sm:$0xf]
    %v5611 = vld [vmem:[%s12 + $0x8c0] sm:$0xff]
    %v5612 = vld [vmem:[%s12 + $0x8c8] sm:$0xff]
    %v5613 = vld [vmem:[%s12 + $0x8d0] sm:$0xff]
    %v5614 = vld [vmem:[%s12 + $0x8d8] sm:$0xf]
    %v5615 = vld [vmem:[%s12 + $0x8dc] sm:$0xff]
    %v5616 = vld [vmem:[%s12 + $0x8e4] sm:$0xff]
    %v5617 = vld [vmem:[%s12 + $0x8ec] sm:$0xff]
    %v5618 = vld [vmem:[%s12 + $0x8f4] sm:$0xf]
    %v5619 = vld [vmem:[%s12 + $0x8f8] sm:$0xff]
    %v5620 = vld [vmem:[%s12 + $0x900] sm:$0xff]
    %v5621 = vld [vmem:[%s12 + $0x908] sm:$0xff]
    %v5622 = vld [vmem:[%s12 + $0x910] sm:$0xf]
    %v5623 = vld [vmem:[%s12 + $0x914] sm:$0xff]
    %v5624 = vld [vmem:[%s12 + $0x91c] sm:$0xff]
    %v5625 = vld [vmem:[%s12 + $0x924] sm:$0xff]
    %v5626 = vld [vmem:[%s12 + $0x92c] sm:$0xf]
    %v5627 = vld [vmem:[%s12 + $0x930] sm:$0xff]
    %v5628 = vld [vmem:[%s12 + $0x938] sm:$0xff]
    %v5629 = vld [vmem:[%s12 + $0x940] sm:$0xff]
    %v5630 = vld [vmem:[%s12 + $0x948] sm:$0xf]
    %v5631 = vld [vmem:[%s12 + $0x94c] sm:$0xff]
    %v5632 = vld [vmem:[%s12 + $0x954] sm:$0xff]
    %v5633 = vld [vmem:[%s12 + $0x95c] sm:$0xff]
    %v5634 = vld [vmem:[%s12 + $0x964] sm:$0xf]
    %v5635 = vld [vmem:[%s12 + $0x968] sm:$0xff]
    %v5636 = vld [vmem:[%s12 + $0x970] sm:$0xff]
    %v5637 = vld [vmem:[%s12 + $0x978] sm:$0xff]
    %v5638 = vld [vmem:[%s12 + $0x980] sm:$0xf]
    %v5639 = vld [vmem:[%s12 + $0x984] sm:$0xff]
    %v5640 = vld [vmem:[%s12 + $0x98c] sm:$0xff]
    %v5641 = vld [vmem:[%s12 + $0x994] sm:$0xff]
    %v5642 = vld [vmem:[%s12 + $0x99c] sm:$0xf]
    %v5643 = vld [vmem:[%s12 + $0x9a0] sm:$0xff]
    %v5644 = vld [vmem:[%s12 + $0x9a8] sm:$0xff]
    %v5645 = vld [vmem:[%s12 + $0x9b0] sm:$0xff]
    %v5646 = vld [vmem:[%s12 + $0x9b8] sm:$0xf]
    %v5647 = vld [vmem:[%s12 + $0x9bc] sm:$0xff]
    %v5648 = vld [vmem:[%s12 + $0x9c4] sm:$0xff]
    %v5649 = vld [vmem:[%s12 + $0x9cc] sm:$0xff]
    %v5650 = vld [vmem:[%s12 + $0x9d4] sm:$0xf]
    %v5651 = vld [vmem:[%s12 + $0x9d8] sm:$0xff]
    %v5652 = vld [vmem:[%s12 + $0x9e0] sm:$0xff]
    %v5653 = vld [vmem:[%s12 + $0x9e8] sm:$0xff]
    %v5654 = vld [vmem:[%s12 + $0x9f0] sm:$0xf]
    %v5655 = vld [vmem:[%s12 + $0x9f4] sm:$0xff]
    %v5656 = vld [vmem:[%s12 + $0x9fc] sm:$0xff]
    %v5657 = vld [vmem:[%s12 + $0xa04] sm:$0xff]
    %v5658 = vld [vmem:[%s12 + $0xa0c] sm:$0xf]
    %v5659 = vld [vmem:[%s12 + $0xa10] sm:$0xff]
    %v5660 = vld [vmem:[%s12 + $0xa18] sm:$0xff]
    %v5661 = vld [vmem:[%s12 + $0xa20] sm:$0xff]
    %v5662 = vld [vmem:[%s12 + $0xa28] sm:$0xf]
    %v5663 = vld [vmem:[%s12 + $0xa2c] sm:$0xff]
    %v5664 = vld [vmem:[%s12 + $0xa34] sm:$0xff]
    %v5665 = vld [vmem:[%s12 + $0xa3c] sm:$0xff]
    %v5666 = vld [vmem:[%s12 + $0xa44] sm:$0xf]
    %v5667 = vld [vmem:[%s12 + $0xa48] sm:$0xff]
    %v5668 = vld [vmem:[%s12 + $0xa50] sm:$0xff]
    %v5669 = vld [vmem:[%s12 + $0xa58] sm:$0xff]
    %v5670 = vld [vmem:[%s12 + $0xa60] sm:$0xf]
    %v5671 = vld [vmem:[%s12 + $0xa64] sm:$0xff]
    %v5672 = vld [vmem:[%s12 + $0xa6c] sm:$0xff]
    %v5673 = vld [vmem:[%s12 + $0xa74] sm:$0xff]
    %v5674 = vld [vmem:[%s12 + $0xa7c] sm:$0xf]
    %s5675 = scalar_lea.vmem %s13, 59
    %v5676 = vld [vmem:[%s5675] ss:$8 sm:$0xf]
    %v5677 = vld [vmem:[%s5675] ss:$8 sm:$0xf0]
    %v5678 = vor.u32 %v5676, %v5677
    %v5679 = vpack.c.bf16 %v5285, %v5279
    %v5680 = vpack.c.bf16 %v5286, %v5280
    %v5681 = vpack.c.bf16 %v5287, %v5281
    %v5682 = vpack.c.bf16 %v5288, %v5282
    %v5683 = vpack.c.bf16 %v5289, %v5283
    %v5684 = vpack.c.bf16 %v5290, %v5284
    %v5686 = vlaneseq
    %v5687 = vshrl.u32 %v5686, 7
    %v5688 = vsub.s32 0, %v5687
    %v5689 = vrot.slane %v5678, %v5688
    %v5690 = vlaneseq
    %v5691 = vshrl.u32 %v5690, 7
    %v5692 = vsub.s32 1, %v5691
    %v5693 = vrot.slane %v5678, %v5692
    %v5694 = vlaneseq
    %v5695 = vshrl.u32 %v5694, 7
    %v5696 = vsub.s32 2, %v5695
    %v5697 = vrot.slane %v5678, %v5696
    %v5698 = vlaneseq
    %v5699 = vshrl.u32 %v5698, 7
    %v5700 = vsub.s32 3, %v5699
    %v5701 = vrot.slane %v5678, %v5700
    %v5702 = vlaneseq
    %v5703 = vshrl.u32 %v5702, 7
    %v5704 = vsub.s32 4, %v5703
    %v5705 = vrot.slane %v5678, %v5704
    %v5706 = vlaneseq
    %v5707 = vshrl.u32 %v5706, 7
    %v5708 = vsub.s32 5, %v5707
    %v5709 = vrot.slane %v5678, %v5708
    %v5710 = vlaneseq
    %v5711 = vshrl.u32 %v5710, 7
    %v5712 = vsub.s32 6, %v5711
    %v5713 = vrot.slane %v5678, %v5712
    %v6105 = vunpack.c.l.b16 %v5291
    %v6106 = vunpack.c.h.b16 %v5291
    %v6107 = vunpack.c.l.b16 %v5292
    %v6108 = vunpack.c.h.b16 %v5292
    %v6109 = vunpack.c.l.b16 %v5293
    %v6110 = vunpack.c.h.b16 %v5293
    %v6111 = vunpack.c.l.b16 %v5294
    %v6112 = vunpack.c.l.b16 %v5295
    %v6113 = vunpack.c.h.b16 %v5295
    %v6114 = vunpack.c.l.b16 %v5296
    %v6115 = vunpack.c.h.b16 %v5296
    %v6116 = vunpack.c.l.b16 %v5297
    %v6117 = vunpack.c.h.b16 %v5297
    %v6118 = vunpack.c.l.b16 %v5298
    %v6119 = vunpack.c.l.b16 %v5299
    %v6120 = vunpack.c.h.b16 %v5299
    %v6121 = vunpack.c.l.b16 %v5300
    %v6122 = vunpack.c.h.b16 %v5300
    %v6123 = vunpack.c.l.b16 %v5301
    %v6124 = vunpack.c.h.b16 %v5301
    %v6125 = vunpack.c.l.b16 %v5302
    %v6126 = vunpack.c.l.b16 %v5303
    %v6127 = vunpack.c.h.b16 %v5303
    %v6128 = vunpack.c.l.b16 %v5304
    %v6129 = vunpack.c.h.b16 %v5304
    %v6130 = vunpack.c.l.b16 %v5305
    %v6131 = vunpack.c.h.b16 %v5305
    %v6132 = vunpack.c.l.b16 %v5306
    %v6133 = vunpack.c.l.b16 %v5307
    %v6134 = vunpack.c.h.b16 %v5307
    %v6135 = vunpack.c.l.b16 %v5308
    %v6136 = vunpack.c.h.b16 %v5308
    %v6137 = vunpack.c.l.b16 %v5309
    %v6138 = vunpack.c.h.b16 %v5309
    %v6139 = vunpack.c.l.b16 %v5310
    %v6140 = vunpack.c.l.b16 %v5311
    %v6141 = vunpack.c.h.b16 %v5311
    %v6142 = vunpack.c.l.b16 %v5312
    %v6143 = vunpack.c.h.b16 %v5312
    %v6144 = vunpack.c.l.b16 %v5313
    %v6145 = vunpack.c.h.b16 %v5313
    %v6146 = vunpack.c.l.b16 %v5314
    %v6147 = vunpack.c.l.b16 %v5315
    %v6148 = vunpack.c.h.b16 %v5315
    %v6149 = vunpack.c.l.b16 %v5316
    %v6150 = vunpack.c.h.b16 %v5316
    %v6151 = vunpack.c.l.b16 %v5317
    %v6152 = vunpack.c.h.b16 %v5317
    %v6153 = vunpack.c.l.b16 %v5318
    %v6154 = vunpack.c.l.b16 %v5319
    %v6155 = vunpack.c.h.b16 %v5319
    %v6156 = vunpack.c.l.b16 %v5320
    %v6157 = vunpack.c.h.b16 %v5320
    %v6158 = vunpack.c.l.b16 %v5321
    %v6159 = vunpack.c.h.b16 %v5321
    %v6160 = vunpack.c.l.b16 %v5322
    %v6161 = vunpack.c.l.b16 %v5323
    %v6162 = vunpack.c.h.b16 %v5323
    %v6163 = vunpack.c.l.b16 %v5324
    %v6164 = vunpack.c.h.b16 %v5324
    %v6165 = vunpack.c.l.b16 %v5325
    %v6166 = vunpack.c.h.b16 %v5325
    %v6167 = vunpack.c.l.b16 %v5326
    %v6168 = vunpack.c.l.b16 %v5327
    %v6169 = vunpack.c.h.b16 %v5327
    %v6170 = vunpack.c.l.b16 %v5328
    %v6171 = vunpack.c.h.b16 %v5328
    %v6172 = vunpack.c.l.b16 %v5329
    %v6173 = vunpack.c.h.b16 %v5329
    %v6174 = vunpack.c.l.b16 %v5330
    %v6175 = vunpack.c.l.b16 %v5331
    %v6176 = vunpack.c.h.b16 %v5331
    %v6177 = vunpack.c.l.b16 %v5332
    %v6178 = vunpack.c.h.b16 %v5332
    %v6179 = vunpack.c.l.b16 %v5333
    %v6180 = vunpack.c.h.b16 %v5333
    %v6181 = vunpack.c.l.b16 %v5334
    %v6182 = vunpack.c.l.b16 %v5335
    %v6183 = vunpack.c.h.b16 %v5335
    %v6184 = vunpack.c.l.b16 %v5336
    %v6185 = vunpack.c.h.b16 %v5336
    %v6186 = vunpack.c.l.b16 %v5337
    %v6187 = vunpack.c.h.b16 %v5337
    %v6188 = vunpack.c.l.b16 %v5338
    %v6189 = vunpack.c.l.b16 %v5339
    %v6190 = vunpack.c.h.b16 %v5339
    %v6191 = vunpack.c.l.b16 %v5340
    %v6192 = vunpack.c.h.b16 %v5340
    %v6193 = vunpack.c.l.b16 %v5341
    %v6194 = vunpack.c.h.b16 %v5341
    %v6195 = vunpack.c.l.b16 %v5342
    %v6196 = vunpack.c.l.b16 %v5343
    %v6197 = vunpack.c.h.b16 %v5343
    %v6198 = vunpack.c.l.b16 %v5344
    %v6199 = vunpack.c.h.b16 %v5344
    %v6200 = vunpack.c.l.b16 %v5345
    %v6201 = vunpack.c.h.b16 %v5345
    %v6202 = vunpack.c.l.b16 %v5346
    %v6203 = vunpack.c.l.b16 %v5347
    %v6204 = vunpack.c.h.b16 %v5347
    %v6205 = vunpack.c.l.b16 %v5348
    %v6206 = vunpack.c.h.b16 %v5348
    %v6207 = vunpack.c.l.b16 %v5349
    %v6208 = vunpack.c.h.b16 %v5349
    %v6209 = vunpack.c.l.b16 %v5350
    %v6210 = vunpack.c.l.b16 %v5351
    %v6211 = vunpack.c.h.b16 %v5351
    %v6212 = vunpack.c.l.b16 %v5352
    %v6213 = vunpack.c.h.b16 %v5352
    %v6214 = vunpack.c.l.b16 %v5353
    %v6215 = vunpack.c.h.b16 %v5353
    %v6216 = vunpack.c.l.b16 %v5354
    %v6217 = vunpack.c.l.b16 %v5355
    %v6218 = vunpack.c.h.b16 %v5355
    %v6219 = vunpack.c.l.b16 %v5356
    %v6220 = vunpack.c.h.b16 %v5356
    %v6221 = vunpack.c.l.b16 %v5357
    %v6222 = vunpack.c.h.b16 %v5357
    %v6223 = vunpack.c.l.b16 %v5358
    %v6224 = vunpack.c.l.b16 %v5359
    %v6225 = vunpack.c.h.b16 %v5359
    %v6226 = vunpack.c.l.b16 %v5360
    %v6227 = vunpack.c.h.b16 %v5360
    %v6228 = vunpack.c.l.b16 %v5361
    %v6229 = vunpack.c.h.b16 %v5361
    %v6230 = vunpack.c.l.b16 %v5362
    %v6231 = vunpack.c.l.b16 %v5363
    %v6232 = vunpack.c.h.b16 %v5363
    %v6233 = vunpack.c.l.b16 %v5364
    %v6234 = vunpack.c.h.b16 %v5364
    %v6235 = vunpack.c.l.b16 %v5365
    %v6236 = vunpack.c.h.b16 %v5365
    %v6237 = vunpack.c.l.b16 %v5366
    %v6238 = vunpack.c.l.b16 %v5367
    %v6239 = vunpack.c.h.b16 %v5367
    %v6240 = vunpack.c.l.b16 %v5368
    %v6241 = vunpack.c.h.b16 %v5368
    %v6242 = vunpack.c.l.b16 %v5369
    %v6243 = vunpack.c.h.b16 %v5369
    %v6244 = vunpack.c.l.b16 %v5370
    %v6245 = vunpack.c.l.b16 %v5371
    %v6246 = vunpack.c.h.b16 %v5371
    %v6247 = vunpack.c.l.b16 %v5372
    %v6248 = vunpack.c.h.b16 %v5372
    %v6249 = vunpack.c.l.b16 %v5373
    %v6250 = vunpack.c.h.b16 %v5373
    %v6251 = vunpack.c.l.b16 %v5374
    %v6252 = vunpack.c.l.b16 %v5375
    %v6253 = vunpack.c.h.b16 %v5375
    %v6254 = vunpack.c.l.b16 %v5376
    %v6255 = vunpack.c.h.b16 %v5376
    %v6256 = vunpack.c.l.b16 %v5377
    %v6257 = vunpack.c.h.b16 %v5377
    %v6258 = vunpack.c.l.b16 %v5378
    %v6259 = vunpack.c.l.b16 %v5379
    %v6260 = vunpack.c.h.b16 %v5379
    %v6261 = vunpack.c.l.b16 %v5380
    %v6262 = vunpack.c.h.b16 %v5380
    %v6263 = vunpack.c.l.b16 %v5381
    %v6264 = vunpack.c.h.b16 %v5381
    %v6265 = vunpack.c.l.b16 %v5382
    %v6266 = vunpack.c.l.b16 %v5383
    %v6267 = vunpack.c.h.b16 %v5383
    %v6268 = vunpack.c.l.b16 %v5384
    %v6269 = vunpack.c.h.b16 %v5384
    %v6270 = vunpack.c.l.b16 %v5385
    %v6271 = vunpack.c.h.b16 %v5385
    %v6272 = vunpack.c.l.b16 %v5386
    %v6273 = vunpack.c.l.b16 %v5387
    %v6274 = vunpack.c.h.b16 %v5387
    %v6275 = vunpack.c.l.b16 %v5388
    %v6276 = vunpack.c.h.b16 %v5388
    %v6277 = vunpack.c.l.b16 %v5389
    %v6278 = vunpack.c.h.b16 %v5389
    %v6279 = vunpack.c.l.b16 %v5390
    %v6280 = vunpack.c.l.b16 %v5391
    %v6281 = vunpack.c.h.b16 %v5391
    %v6282 = vunpack.c.l.b16 %v5392
    %v6283 = vunpack.c.h.b16 %v5392
    %v6284 = vunpack.c.l.b16 %v5393
    %v6285 = vunpack.c.h.b16 %v5393
    %v6286 = vunpack.c.l.b16 %v5394
    %v6287 = vunpack.c.l.b16 %v5395
    %v6288 = vunpack.c.h.b16 %v5395
    %v6289 = vunpack.c.l.b16 %v5396
    %v6290 = vunpack.c.h.b16 %v5396
    %v6291 = vunpack.c.l.b16 %v5397
    %v6292 = vunpack.c.h.b16 %v5397
    %v6293 = vunpack.c.l.b16 %v5398
    %v6294 = vunpack.c.l.b16 %v5399
    %v6295 = vunpack.c.h.b16 %v5399
    %v6296 = vunpack.c.l.b16 %v5400
    %v6297 = vunpack.c.h.b16 %v5400
    %v6298 = vunpack.c.l.b16 %v5401
    %v6299 = vunpack.c.h.b16 %v5401
    %v6300 = vunpack.c.l.b16 %v5402
    %v6301 = vunpack.c.l.b16 %v5403
    %v6302 = vunpack.c.h.b16 %v5403
    %v6303 = vunpack.c.l.b16 %v5404
    %v6304 = vunpack.c.h.b16 %v5404
    %v6305 = vunpack.c.l.b16 %v5405
    %v6306 = vunpack.c.h.b16 %v5405
    %v6307 = vunpack.c.l.b16 %v5406
    %v6308 = vunpack.c.l.b16 %v5407
    %v6309 = vunpack.c.h.b16 %v5407
    %v6310 = vunpack.c.l.b16 %v5408
    %v6311 = vunpack.c.h.b16 %v5408
    %v6312 = vunpack.c.l.b16 %v5409
    %v6313 = vunpack.c.h.b16 %v5409
    %v6314 = vunpack.c.l.b16 %v5410
    %v6315 = vunpack.c.l.b16 %v5411
    %v6316 = vunpack.c.h.b16 %v5411
    %v6317 = vunpack.c.l.b16 %v5412
    %v6318 = vunpack.c.h.b16 %v5412
    %v6319 = vunpack.c.l.b16 %v5413
    %v6320 = vunpack.c.h.b16 %v5413
    %v6321 = vunpack.c.l.b16 %v5414
    %v6322 = vunpack.c.l.b16 %v5415
    %v6323 = vunpack.c.h.b16 %v5415
    %v6324 = vunpack.c.l.b16 %v5416
    %v6325 = vunpack.c.h.b16 %v5416
    %v6326 = vunpack.c.l.b16 %v5417
    %v6327 = vunpack.c.h.b16 %v5417
    %v6328 = vunpack.c.l.b16 %v5418
    %v6329 = vunpack.c.l.b16 %v5419
    %v6330 = vunpack.c.h.b16 %v5419
    %v6331 = vunpack.c.l.b16 %v5420
    %v6332 = vunpack.c.h.b16 %v5420
    %v6333 = vunpack.c.l.b16 %v5421
    %v6334 = vunpack.c.h.b16 %v5421
    %v6335 = vunpack.c.l.b16 %v5422
    %v6336 = vunpack.c.l.b16 %v5423
    %v6337 = vunpack.c.h.b16 %v5423
    %v6338 = vunpack.c.l.b16 %v5424
    %v6339 = vunpack.c.h.b16 %v5424
    %v6340 = vunpack.c.l.b16 %v5425
    %v6341 = vunpack.c.h.b16 %v5425
    %v6342 = vunpack.c.l.b16 %v5426
    %v6343 = vunpack.c.l.b16 %v5427
    %v6344 = vunpack.c.h.b16 %v5427
    %v6345 = vunpack.c.l.b16 %v5428
    %v6346 = vunpack.c.h.b16 %v5428
    %v6347 = vunpack.c.l.b16 %v5429
    %v6348 = vunpack.c.h.b16 %v5429
    %v6349 = vunpack.c.l.b16 %v5430
    %v6350 = vunpack.c.l.b16 %v5431
    %v6351 = vunpack.c.h.b16 %v5431
    %v6352 = vunpack.c.l.b16 %v5432
    %v6353 = vunpack.c.h.b16 %v5432
    %v6354 = vunpack.c.l.b16 %v5433
    %v6355 = vunpack.c.h.b16 %v5433
    %v6356 = vunpack.c.l.b16 %v5434
    %v6357 = vunpack.c.l.b16 %v5435
    %v6358 = vunpack.c.h.b16 %v5435
    %v6359 = vunpack.c.l.b16 %v5436
    %v6360 = vunpack.c.h.b16 %v5436
    %v6361 = vunpack.c.l.b16 %v5437
    %v6362 = vunpack.c.h.b16 %v5437
    %v6363 = vunpack.c.l.b16 %v5438
    %v6364 = vunpack.c.l.b16 %v5439
    %v6365 = vunpack.c.h.b16 %v5439
    %v6366 = vunpack.c.l.b16 %v5440
    %v6367 = vunpack.c.h.b16 %v5440
    %v6368 = vunpack.c.l.b16 %v5441
    %v6369 = vunpack.c.h.b16 %v5441
    %v6370 = vunpack.c.l.b16 %v5442
    %v6371 = vunpack.c.l.b16 %v5443
    %v6372 = vunpack.c.h.b16 %v5443
    %v6373 = vunpack.c.l.b16 %v5444
    %v6374 = vunpack.c.h.b16 %v5444
    %v6375 = vunpack.c.l.b16 %v5445
    %v6376 = vunpack.c.h.b16 %v5445
    %v6377 = vunpack.c.l.b16 %v5446
    %v6378 = vunpack.c.l.b16 %v5447
    %v6379 = vunpack.c.h.b16 %v5447
    %v6380 = vunpack.c.l.b16 %v5448
    %v6381 = vunpack.c.h.b16 %v5448
    %v6382 = vunpack.c.l.b16 %v5449
    %v6383 = vunpack.c.h.b16 %v5449
    %v6384 = vunpack.c.l.b16 %v5450
    %v6385 = vunpack.c.l.b16 %v5451
    %v6386 = vunpack.c.h.b16 %v5451
    %v6387 = vunpack.c.l.b16 %v5452
    %v6388 = vunpack.c.h.b16 %v5452
    %v6389 = vunpack.c.l.b16 %v5453
    %v6390 = vunpack.c.h.b16 %v5453
    %v6391 = vunpack.c.l.b16 %v5454
    %v6392 = vunpack.c.l.b16 %v5455
    %v6393 = vunpack.c.h.b16 %v5455
    %v6394 = vunpack.c.l.b16 %v5456
    %v6395 = vunpack.c.h.b16 %v5456
    %v6396 = vunpack.c.l.b16 %v5457
    %v6397 = vunpack.c.h.b16 %v5457
    %v6398 = vunpack.c.l.b16 %v5458
    %v6399 = vunpack.c.l.b16 %v5459
    %v6400 = vunpack.c.h.b16 %v5459
    %v6401 = vunpack.c.l.b16 %v5460
    %v6402 = vunpack.c.h.b16 %v5460
    %v6403 = vunpack.c.l.b16 %v5461
    %v6404 = vunpack.c.h.b16 %v5461
    %v6405 = vunpack.c.l.b16 %v5462
    %v6406 = vunpack.c.l.b16 %v5463
    %v6407 = vunpack.c.h.b16 %v5463
    %v6408 = vunpack.c.l.b16 %v5464
    %v6409 = vunpack.c.h.b16 %v5464
    %v6410 = vunpack.c.l.b16 %v5465
    %v6411 = vunpack.c.h.b16 %v5465
    %v6412 = vunpack.c.l.b16 %v5466
    %v6413 = vunpack.c.l.b16 %v5467
    %v6414 = vunpack.c.h.b16 %v5467
    %v6415 = vunpack.c.l.b16 %v5468
    %v6416 = vunpack.c.h.b16 %v5468
    %v6417 = vunpack.c.l.b16 %v5469
    %v6418 = vunpack.c.h.b16 %v5469
    %v6419 = vunpack.c.l.b16 %v5470
    %v6420 = vunpack.c.l.b16 %v5471
    %v6421 = vunpack.c.h.b16 %v5471
    %v6422 = vunpack.c.l.b16 %v5472
    %v6423 = vunpack.c.h.b16 %v5472
    %v6424 = vunpack.c.l.b16 %v5473
    %v6425 = vunpack.c.h.b16 %v5473
    %v6426 = vunpack.c.l.b16 %v5474
    %v6427 = vunpack.c.l.b16 %v5475
    %v6428 = vunpack.c.h.b16 %v5475
    %v6429 = vunpack.c.l.b16 %v5476
    %v6430 = vunpack.c.h.b16 %v5476
    %v6431 = vunpack.c.l.b16 %v5477
    %v6432 = vunpack.c.h.b16 %v5477
    %v6433 = vunpack.c.l.b16 %v5478
    %v6434 = vunpack.c.l.b16 %v5479
    %v6435 = vunpack.c.h.b16 %v5479
    %v6436 = vunpack.c.l.b16 %v5480
    %v6437 = vunpack.c.h.b16 %v5480
    %v6438 = vunpack.c.l.b16 %v5481
    %v6439 = vunpack.c.h.b16 %v5481
    %v6440 = vunpack.c.l.b16 %v5482
    %v6441 = vunpack.c.l.b16 %v5483
    %v6442 = vunpack.c.h.b16 %v5483
    %v6443 = vunpack.c.l.b16 %v5484
    %v6444 = vunpack.c.h.b16 %v5484
    %v6445 = vunpack.c.l.b16 %v5485
    %v6446 = vunpack.c.h.b16 %v5485
    %v6447 = vunpack.c.l.b16 %v5486
    %v6448 = vunpack.c.l.b16 %v5487
    %v6449 = vunpack.c.h.b16 %v5487
    %v6450 = vunpack.c.l.b16 %v5488
    %v6451 = vunpack.c.h.b16 %v5488
    %v6452 = vunpack.c.l.b16 %v5489
    %v6453 = vunpack.c.h.b16 %v5489
    %v6454 = vunpack.c.l.b16 %v5490
    %v6455 = vunpack.c.l.b16 %v5491
    %v6456 = vunpack.c.h.b16 %v5491
    %v6457 = vunpack.c.l.b16 %v5492
    %v6458 = vunpack.c.h.b16 %v5492
    %v6459 = vunpack.c.l.b16 %v5493
    %v6460 = vunpack.c.h.b16 %v5493
    %v6461 = vunpack.c.l.b16 %v5494
    %v6462 = vunpack.c.l.b16 %v5495
    %v6463 = vunpack.c.h.b16 %v5495
    %v6464 = vunpack.c.l.b16 %v5496
    %v6465 = vunpack.c.h.b16 %v5496
    %v6466 = vunpack.c.l.b16 %v5497
    %v6467 = vunpack.c.h.b16 %v5497
    %v6468 = vunpack.c.l.b16 %v5498
    %v6469 = vunpack.c.l.b16 %v5499
    %v6470 = vunpack.c.h.b16 %v5499
    %v6471 = vunpack.c.l.b16 %v5500
    %v6472 = vunpack.c.h.b16 %v5500
    %v6473 = vunpack.c.l.b16 %v5501
    %v6474 = vunpack.c.h.b16 %v5501
    %v6475 = vunpack.c.l.b16 %v5502
    %v6476 = vunpack.c.l.b16 %v5503
    %v6477 = vunpack.c.h.b16 %v5503
    %v6478 = vunpack.c.l.b16 %v5504
    %v6479 = vunpack.c.h.b16 %v5504
    %v6480 = vunpack.c.l.b16 %v5505
    %v6481 = vunpack.c.h.b16 %v5505
    %v6482 = vunpack.c.l.b16 %v5506
    %v6483 = vunpack.c.l.b16 %v5507
    %v6484 = vunpack.c.h.b16 %v5507
    %v6485 = vunpack.c.l.b16 %v5508
    %v6486 = vunpack.c.h.b16 %v5508
    %v6487 = vunpack.c.l.b16 %v5509
    %v6488 = vunpack.c.h.b16 %v5509
    %v6489 = vunpack.c.l.b16 %v5510
    %v6490 = vunpack.c.l.b16 %v5511
    %v6491 = vunpack.c.h.b16 %v5511
    %v6492 = vunpack.c.l.b16 %v5512
    %v6493 = vunpack.c.h.b16 %v5512
    %v6494 = vunpack.c.l.b16 %v5513
    %v6495 = vunpack.c.h.b16 %v5513
    %v6496 = vunpack.c.l.b16 %v5514
    %v6497 = vunpack.c.l.b16 %v5515
    %v6498 = vunpack.c.h.b16 %v5515
    %v6499 = vunpack.c.l.b16 %v5516
    %v6500 = vunpack.c.h.b16 %v5516
    %v6501 = vunpack.c.l.b16 %v5517
    %v6502 = vunpack.c.h.b16 %v5517
    %v6503 = vunpack.c.l.b16 %v5518
    %v6504 = vunpack.c.l.b16 %v5519
    %v6505 = vunpack.c.h.b16 %v5519
    %v6506 = vunpack.c.l.b16 %v5520
    %v6507 = vunpack.c.h.b16 %v5520
    %v6508 = vunpack.c.l.b16 %v5521
    %v6509 = vunpack.c.h.b16 %v5521
    %v6510 = vunpack.c.l.b16 %v5522
    %v6511 = vunpack.c.l.b16 %v5523
    %v6512 = vunpack.c.h.b16 %v5523
    %v6513 = vunpack.c.l.b16 %v5524
    %v6514 = vunpack.c.h.b16 %v5524
    %v6515 = vunpack.c.l.b16 %v5525
    %v6516 = vunpack.c.h.b16 %v5525
    %v6517 = vunpack.c.l.b16 %v5526
    %v6518 = vunpack.c.l.b16 %v5527
    %v6519 = vunpack.c.h.b16 %v5527
    %v6520 = vunpack.c.l.b16 %v5528
    %v6521 = vunpack.c.h.b16 %v5528
    %v6522 = vunpack.c.l.b16 %v5529
    %v6523 = vunpack.c.h.b16 %v5529
    %v6524 = vunpack.c.l.b16 %v5530
    %v6525 = vunpack.c.l.b16 %v5531
    %v6526 = vunpack.c.h.b16 %v5531
    %v6527 = vunpack.c.l.b16 %v5532
    %v6528 = vunpack.c.h.b16 %v5532
    %v6529 = vunpack.c.l.b16 %v5533
    %v6530 = vunpack.c.h.b16 %v5533
    %v6531 = vunpack.c.l.b16 %v5534
    %v6532 = vunpack.c.l.b16 %v5535
    %v6533 = vunpack.c.h.b16 %v5535
    %v6534 = vunpack.c.l.b16 %v5536
    %v6535 = vunpack.c.h.b16 %v5536
    %v6536 = vunpack.c.l.b16 %v5537
    %v6537 = vunpack.c.h.b16 %v5537
    %v6538 = vunpack.c.l.b16 %v5538
    %v6539 = vunpack.c.l.b16 %v5539
    %v6540 = vunpack.c.h.b16 %v5539
    %v6541 = vunpack.c.l.b16 %v5540
    %v6542 = vunpack.c.h.b16 %v5540
    %v6543 = vunpack.c.l.b16 %v5541
    %v6544 = vunpack.c.h.b16 %v5541
    %v6545 = vunpack.c.l.b16 %v5542
    %v6546 = vunpack.c.l.b16 %v5543
    %v6547 = vunpack.c.h.b16 %v5543
    %v6548 = vunpack.c.l.b16 %v5544
    %v6549 = vunpack.c.h.b16 %v5544
    %v6550 = vunpack.c.l.b16 %v5545
    %v6551 = vunpack.c.h.b16 %v5545
    %v6552 = vunpack.c.l.b16 %v5546
    %v6553 = vunpack.c.l.b16 %v5547
    %v6554 = vunpack.c.h.b16 %v5547
    %v6555 = vunpack.c.l.b16 %v5548
    %v6556 = vunpack.c.h.b16 %v5548
    %v6557 = vunpack.c.l.b16 %v5549
    %v6558 = vunpack.c.h.b16 %v5549
    %v6559 = vunpack.c.l.b16 %v5550
    %v6560 = vunpack.c.l.b16 %v5551
    %v6561 = vunpack.c.h.b16 %v5551
    %v6562 = vunpack.c.l.b16 %v5552
    %v6563 = vunpack.c.h.b16 %v5552
    %v6564 = vunpack.c.l.b16 %v5553
    %v6565 = vunpack.c.h.b16 %v5553
    %v6566 = vunpack.c.l.b16 %v5554
    %v6567 = vunpack.c.l.b16 %v5555
    %v6568 = vunpack.c.h.b16 %v5555
    %v6569 = vunpack.c.l.b16 %v5556
    %v6570 = vunpack.c.h.b16 %v5556
    %v6571 = vunpack.c.l.b16 %v5557
    %v6572 = vunpack.c.h.b16 %v5557
    %v6573 = vunpack.c.l.b16 %v5558
    %v6574 = vunpack.c.l.b16 %v5559
    %v6575 = vunpack.c.h.b16 %v5559
    %v6576 = vunpack.c.l.b16 %v5560
    %v6577 = vunpack.c.h.b16 %v5560
    %v6578 = vunpack.c.l.b16 %v5561
    %v6579 = vunpack.c.h.b16 %v5561
    %v6580 = vunpack.c.l.b16 %v5562
    %v6581 = vunpack.c.l.b16 %v5563
    %v6582 = vunpack.c.h.b16 %v5563
    %v6583 = vunpack.c.l.b16 %v5564
    %v6584 = vunpack.c.h.b16 %v5564
    %v6585 = vunpack.c.l.b16 %v5565
    %v6586 = vunpack.c.h.b16 %v5565
    %v6587 = vunpack.c.l.b16 %v5566
    %v6588 = vunpack.c.l.b16 %v5567
    %v6589 = vunpack.c.h.b16 %v5567
    %v6590 = vunpack.c.l.b16 %v5568
    %v6591 = vunpack.c.h.b16 %v5568
    %v6592 = vunpack.c.l.b16 %v5569
    %v6593 = vunpack.c.h.b16 %v5569
    %v6594 = vunpack.c.l.b16 %v5570
    %v6595 = vunpack.c.l.b16 %v5571
    %v6596 = vunpack.c.h.b16 %v5571
    %v6597 = vunpack.c.l.b16 %v5572
    %v6598 = vunpack.c.h.b16 %v5572
    %v6599 = vunpack.c.l.b16 %v5573
    %v6600 = vunpack.c.h.b16 %v5573
    %v6601 = vunpack.c.l.b16 %v5574
    %v6602 = vunpack.c.l.b16 %v5575
    %v6603 = vunpack.c.h.b16 %v5575
    %v6604 = vunpack.c.l.b16 %v5576
    %v6605 = vunpack.c.h.b16 %v5576
    %v6606 = vunpack.c.l.b16 %v5577
    %v6607 = vunpack.c.h.b16 %v5577
    %v6608 = vunpack.c.l.b16 %v5578
    %v6609 = vunpack.c.l.b16 %v5579
    %v6610 = vunpack.c.h.b16 %v5579
    %v6611 = vunpack.c.l.b16 %v5580
    %v6612 = vunpack.c.h.b16 %v5580
    %v6613 = vunpack.c.l.b16 %v5581
    %v6614 = vunpack.c.h.b16 %v5581
    %v6615 = vunpack.c.l.b16 %v5582
    %v6616 = vunpack.c.l.b16 %v5583
    %v6617 = vunpack.c.h.b16 %v5583
    %v6618 = vunpack.c.l.b16 %v5584
    %v6619 = vunpack.c.h.b16 %v5584
    %v6620 = vunpack.c.l.b16 %v5585
    %v6621 = vunpack.c.h.b16 %v5585
    %v6622 = vunpack.c.l.b16 %v5586
    %v6623 = vunpack.c.l.b16 %v5587
    %v6624 = vunpack.c.h.b16 %v5587
    %v6625 = vunpack.c.l.b16 %v5588
    %v6626 = vunpack.c.h.b16 %v5588
    %v6627 = vunpack.c.l.b16 %v5589
    %v6628 = vunpack.c.h.b16 %v5589
    %v6629 = vunpack.c.l.b16 %v5590
    %v6630 = vunpack.c.l.b16 %v5591
    %v6631 = vunpack.c.h.b16 %v5591
    %v6632 = vunpack.c.l.b16 %v5592
    %v6633 = vunpack.c.h.b16 %v5592
    %v6634 = vunpack.c.l.b16 %v5593
    %v6635 = vunpack.c.h.b16 %v5593
    %v6636 = vunpack.c.l.b16 %v5594
    %v6637 = vunpack.c.l.b16 %v5595
    %v6638 = vunpack.c.h.b16 %v5595
    %v6639 = vunpack.c.l.b16 %v5596
    %v6640 = vunpack.c.h.b16 %v5596
    %v6641 = vunpack.c.l.b16 %v5597
    %v6642 = vunpack.c.h.b16 %v5597
    %v6643 = vunpack.c.l.b16 %v5598
    %v6644 = vunpack.c.l.b16 %v5599
    %v6645 = vunpack.c.h.b16 %v5599
    %v6646 = vunpack.c.l.b16 %v5600
    %v6647 = vunpack.c.h.b16 %v5600
    %v6648 = vunpack.c.l.b16 %v5601
    %v6649 = vunpack.c.h.b16 %v5601
    %v6650 = vunpack.c.l.b16 %v5602
    %v6651 = vunpack.c.l.b16 %v5603
    %v6652 = vunpack.c.h.b16 %v5603
    %v6653 = vunpack.c.l.b16 %v5604
    %v6654 = vunpack.c.h.b16 %v5604
    %v6655 = vunpack.c.l.b16 %v5605
    %v6656 = vunpack.c.h.b16 %v5605
    %v6657 = vunpack.c.l.b16 %v5606
    %v6658 = vunpack.c.l.b16 %v5607
    %v6659 = vunpack.c.h.b16 %v5607
    %v6660 = vunpack.c.l.b16 %v5608
    %v6661 = vunpack.c.h.b16 %v5608
    %v6662 = vunpack.c.l.b16 %v5609
    %v6663 = vunpack.c.h.b16 %v5609
    %v6664 = vunpack.c.l.b16 %v5610
    %v6665 = vunpack.c.l.b16 %v5611
    %v6666 = vunpack.c.h.b16 %v5611
    %v6667 = vunpack.c.l.b16 %v5612
    %v6668 = vunpack.c.h.b16 %v5612
    %v6669 = vunpack.c.l.b16 %v5613
    %v6670 = vunpack.c.h.b16 %v5613
    %v6671 = vunpack.c.l.b16 %v5614
    %v6672 = vunpack.c.l.b16 %v5615
    %v6673 = vunpack.c.h.b16 %v5615
    %v6674 = vunpack.c.l.b16 %v5616
    %v6675 = vunpack.c.h.b16 %v5616
    %v6676 = vunpack.c.l.b16 %v5617
    %v6677 = vunpack.c.h.b16 %v5617
    %v6678 = vunpack.c.l.b16 %v5618
    %v6679 = vunpack.c.l.b16 %v5619
    %v6680 = vunpack.c.h.b16 %v5619
    %v6681 = vunpack.c.l.b16 %v5620
    %v6682 = vunpack.c.h.b16 %v5620
    %v6683 = vunpack.c.l.b16 %v5621
    %v6684 = vunpack.c.h.b16 %v5621
    %v6685 = vunpack.c.l.b16 %v5622
    %v6686 = vunpack.c.l.b16 %v5623
    %v6687 = vunpack.c.h.b16 %v5623
    %v6688 = vunpack.c.l.b16 %v5624
    %v6689 = vunpack.c.h.b16 %v5624
    %v6690 = vunpack.c.l.b16 %v5625
    %v6691 = vunpack.c.h.b16 %v5625
    %v6692 = vunpack.c.l.b16 %v5626
    %v6693 = vunpack.c.l.b16 %v5627
    %v6694 = vunpack.c.h.b16 %v5627
    %v6695 = vunpack.c.l.b16 %v5628
    %v6696 = vunpack.c.h.b16 %v5628
    %v6697 = vunpack.c.l.b16 %v5629
    %v6698 = vunpack.c.h.b16 %v5629
    %v6699 = vunpack.c.l.b16 %v5630
    %v6700 = vunpack.c.l.b16 %v5631
    %v6701 = vunpack.c.h.b16 %v5631
    %v6702 = vunpack.c.l.b16 %v5632
    %v6703 = vunpack.c.h.b16 %v5632
    %v6704 = vunpack.c.l.b16 %v5633
    %v6705 = vunpack.c.h.b16 %v5633
    %v6706 = vunpack.c.l.b16 %v5634
    %v6707 = vunpack.c.l.b16 %v5635
    %v6708 = vunpack.c.h.b16 %v5635
    %v6709 = vunpack.c.l.b16 %v5636
    %v6710 = vunpack.c.h.b16 %v5636
    %v6711 = vunpack.c.l.b16 %v5637
    %v6712 = vunpack.c.h.b16 %v5637
    %v6713 = vunpack.c.l.b16 %v5638
    %v6714 = vunpack.c.l.b16 %v5639
    %v6715 = vunpack.c.h.b16 %v5639
    %v6716 = vunpack.c.l.b16 %v5640
    %v6717 = vunpack.c.h.b16 %v5640
    %v6718 = vunpack.c.l.b16 %v5641
    %v6719 = vunpack.c.h.b16 %v5641
    %v6720 = vunpack.c.l.b16 %v5642
    %v6721 = vunpack.c.l.b16 %v5643
    %v6722 = vunpack.c.h.b16 %v5643
    %v6723 = vunpack.c.l.b16 %v5644
    %v6724 = vunpack.c.h.b16 %v5644
    %v6725 = vunpack.c.l.b16 %v5645
    %v6726 = vunpack.c.h.b16 %v5645
    %v6727 = vunpack.c.l.b16 %v5646
    %v6728 = vunpack.c.l.b16 %v5647
    %v6729 = vunpack.c.h.b16 %v5647
    %v6730 = vunpack.c.l.b16 %v5648
    %v6731 = vunpack.c.h.b16 %v5648
    %v6732 = vunpack.c.l.b16 %v5649
    %v6733 = vunpack.c.h.b16 %v5649
    %v6734 = vunpack.c.l.b16 %v5650
    %v6735 = vunpack.c.l.b16 %v5651
    %v6736 = vunpack.c.h.b16 %v5651
    %v6737 = vunpack.c.l.b16 %v5652
    %v6738 = vunpack.c.h.b16 %v5652
    %v6739 = vunpack.c.l.b16 %v5653
    %v6740 = vunpack.c.h.b16 %v5653
    %v6741 = vunpack.c.l.b16 %v5654
    %v6742 = vunpack.c.l.b16 %v5655
    %v6743 = vunpack.c.h.b16 %v5655
    %v6744 = vunpack.c.l.b16 %v5656
    %v6745 = vunpack.c.h.b16 %v5656
    %v6746 = vunpack.c.l.b16 %v5657
    %v6747 = vunpack.c.h.b16 %v5657
    %v6748 = vunpack.c.l.b16 %v5658
    %v6749 = vunpack.c.l.b16 %v5659
    %v6750 = vunpack.c.h.b16 %v5659
    %v6751 = vunpack.c.l.b16 %v5660
    %v6752 = vunpack.c.h.b16 %v5660
    %v6753 = vunpack.c.l.b16 %v5661
    %v6754 = vunpack.c.h.b16 %v5661
    %v6755 = vunpack.c.l.b16 %v5662
    %v6756 = vunpack.c.l.b16 %v5663
    %v6757 = vunpack.c.h.b16 %v5663
    %v6758 = vunpack.c.l.b16 %v5664
    %v6759 = vunpack.c.h.b16 %v5664
    %v6760 = vunpack.c.l.b16 %v5665
    %v6761 = vunpack.c.h.b16 %v5665
    %v6762 = vunpack.c.l.b16 %v5666
    %v6763 = vunpack.c.l.b16 %v5667
    %v6764 = vunpack.c.h.b16 %v5667
    %v6765 = vunpack.c.l.b16 %v5668
    %v6766 = vunpack.c.h.b16 %v5668
    %v6767 = vunpack.c.l.b16 %v5669
    %v6768 = vunpack.c.h.b16 %v5669
    %v6769 = vunpack.c.l.b16 %v5670
    %v6770 = vunpack.c.l.b16 %v5671
    %v6771 = vunpack.c.h.b16 %v5671
    %v6772 = vunpack.c.l.b16 %v5672
    %v6773 = vunpack.c.h.b16 %v5672
    %v6774 = vunpack.c.l.b16 %v5673
    %v6775 = vunpack.c.h.b16 %v5673
    %v6776 = vunpack.c.l.b16 %v5674
    %v6777 = vpack.c.b16 %v6112, %v6105
    %v6778 = vpack.c.b16 %v6113, %v6106
    %v6779 = vpack.c.b16 %v6114, %v6107
    %v6780 = vpack.c.b16 %v6115, %v6108
    %v6781 = vpack.c.b16 %v6116, %v6109
    %v6782 = vpack.c.b16 %v6117, %v6110
    %v6783 = vpack.c.b16 %v6118, %v6111
    %v6784 = vpack.c.b16 %v6126, %v6119
    %v6785 = vpack.c.b16 %v6127, %v6120
    %v6786 = vpack.c.b16 %v6128, %v6121
    %v6787 = vpack.c.b16 %v6129, %v6122
    %v6788 = vpack.c.b16 %v6130, %v6123
    %v6789 = vpack.c.b16 %v6131, %v6124
    %v6790 = vpack.c.b16 %v6132, %v6125
    %v6791 = vpack.c.b16 %v6140, %v6133
    %v6792 = vpack.c.b16 %v6141, %v6134
    %v6793 = vpack.c.b16 %v6142, %v6135
    %v6794 = vpack.c.b16 %v6143, %v6136
    %v6795 = vpack.c.b16 %v6144, %v6137
    %v6796 = vpack.c.b16 %v6145, %v6138
    %v6797 = vpack.c.b16 %v6146, %v6139
    %v6798 = vpack.c.b16 %v6154, %v6147
    %v6799 = vpack.c.b16 %v6155, %v6148
    %v6800 = vpack.c.b16 %v6156, %v6149
    %v6801 = vpack.c.b16 %v6157, %v6150
    %v6802 = vpack.c.b16 %v6158, %v6151
    %v6803 = vpack.c.b16 %v6159, %v6152
    %v6804 = vpack.c.b16 %v6160, %v6153
    %v6805 = vpack.c.b16 %v6168, %v6161
    %v6806 = vpack.c.b16 %v6169, %v6162
    %v6807 = vpack.c.b16 %v6170, %v6163
    %v6808 = vpack.c.b16 %v6171, %v6164
    %v6809 = vpack.c.b16 %v6172, %v6165
    %v6810 = vpack.c.b16 %v6173, %v6166
    %v6811 = vpack.c.b16 %v6174, %v6167
    %v6812 = vpack.c.b16 %v6182, %v6175
    %v6813 = vpack.c.b16 %v6183, %v6176
    %v6814 = vpack.c.b16 %v6184, %v6177
    %v6815 = vpack.c.b16 %v6185, %v6178
    %v6816 = vpack.c.b16 %v6186, %v6179
    %v6817 = vpack.c.b16 %v6187, %v6180
    %v6818 = vpack.c.b16 %v6188, %v6181
    %v6819 = vpack.c.b16 %v6196, %v6189
    %v6820 = vpack.c.b16 %v6197, %v6190
    %v6821 = vpack.c.b16 %v6198, %v6191
    %v6822 = vpack.c.b16 %v6199, %v6192
    %v6823 = vpack.c.b16 %v6200, %v6193
    %v6824 = vpack.c.b16 %v6201, %v6194
    %v6825 = vpack.c.b16 %v6202, %v6195
    %v6826 = vpack.c.b16 %v6210, %v6203
    %v6827 = vpack.c.b16 %v6211, %v6204
    %v6828 = vpack.c.b16 %v6212, %v6205
    %v6829 = vpack.c.b16 %v6213, %v6206
    %v6830 = vpack.c.b16 %v6214, %v6207
    %v6831 = vpack.c.b16 %v6215, %v6208
    %v6832 = vpack.c.b16 %v6216, %v6209
    %v6833 = vpack.c.b16 %v6224, %v6217
    %v6834 = vpack.c.b16 %v6225, %v6218
    %v6835 = vpack.c.b16 %v6226, %v6219
    %v6836 = vpack.c.b16 %v6227, %v6220
    %v6837 = vpack.c.b16 %v6228, %v6221
    %v6838 = vpack.c.b16 %v6229, %v6222
    %v6839 = vpack.c.b16 %v6230, %v6223
    %v6840 = vpack.c.b16 %v6238, %v6231
    %v6841 = vpack.c.b16 %v6239, %v6232
    %v6842 = vpack.c.b16 %v6240, %v6233
    %v6843 = vpack.c.b16 %v6241, %v6234
    %v6844 = vpack.c.b16 %v6242, %v6235
    %v6845 = vpack.c.b16 %v6243, %v6236
    %v6846 = vpack.c.b16 %v6244, %v6237
    %v6847 = vpack.c.b16 %v6252, %v6245
    %v6848 = vpack.c.b16 %v6253, %v6246
    %v6849 = vpack.c.b16 %v6254, %v6247
    %v6850 = vpack.c.b16 %v6255, %v6248
    %v6851 = vpack.c.b16 %v6256, %v6249
    %v6852 = vpack.c.b16 %v6257, %v6250
    %v6853 = vpack.c.b16 %v6258, %v6251
    %v6854 = vpack.c.b16 %v6266, %v6259
    %v6855 = vpack.c.b16 %v6267, %v6260
    %v6856 = vpack.c.b16 %v6268, %v6261
    %v6857 = vpack.c.b16 %v6269, %v6262
    %v6858 = vpack.c.b16 %v6270, %v6263
    %v6859 = vpack.c.b16 %v6271, %v6264
    %v6860 = vpack.c.b16 %v6272, %v6265
    %v6861 = vpack.c.b16 %v6280, %v6273
    %v6862 = vpack.c.b16 %v6281, %v6274
    %v6863 = vpack.c.b16 %v6282, %v6275
    %v6864 = vpack.c.b16 %v6283, %v6276
    %v6865 = vpack.c.b16 %v6284, %v6277
    %v6866 = vpack.c.b16 %v6285, %v6278
    %v6867 = vpack.c.b16 %v6286, %v6279
    %v6868 = vpack.c.b16 %v6294, %v6287
    %v6869 = vpack.c.b16 %v6295, %v6288
    %v6870 = vpack.c.b16 %v6296, %v6289
    %v6871 = vpack.c.b16 %v6297, %v6290
    %v6872 = vpack.c.b16 %v6298, %v6291
    %v6873 = vpack.c.b16 %v6299, %v6292
    %v6874 = vpack.c.b16 %v6300, %v6293
    %v6875 = vpack.c.b16 %v6308, %v6301
    %v6876 = vpack.c.b16 %v6309, %v6302
    %v6877 = vpack.c.b16 %v6310, %v6303
    %v6878 = vpack.c.b16 %v6311, %v6304
    %v6879 = vpack.c.b16 %v6312, %v6305
    %v6880 = vpack.c.b16 %v6313, %v6306
    %v6881 = vpack.c.b16 %v6314, %v6307
    %v6882 = vpack.c.b16 %v6322, %v6315
    %v6883 = vpack.c.b16 %v6323, %v6316
    %v6884 = vpack.c.b16 %v6324, %v6317
    %v6885 = vpack.c.b16 %v6325, %v6318
    %v6886 = vpack.c.b16 %v6326, %v6319
    %v6887 = vpack.c.b16 %v6327, %v6320
    %v6888 = vpack.c.b16 %v6328, %v6321
    %v6889 = vpack.c.b16 %v6336, %v6329
    %v6890 = vpack.c.b16 %v6337, %v6330
    %v6891 = vpack.c.b16 %v6338, %v6331
    %v6892 = vpack.c.b16 %v6339, %v6332
    %v6893 = vpack.c.b16 %v6340, %v6333
    %v6894 = vpack.c.b16 %v6341, %v6334
    %v6895 = vpack.c.b16 %v6342, %v6335
    %v6896 = vpack.c.b16 %v6350, %v6343
    %v6897 = vpack.c.b16 %v6351, %v6344
    %v6898 = vpack.c.b16 %v6352, %v6345
    %v6899 = vpack.c.b16 %v6353, %v6346
    %v6900 = vpack.c.b16 %v6354, %v6347
    %v6901 = vpack.c.b16 %v6355, %v6348
    %v6902 = vpack.c.b16 %v6356, %v6349
    %v6903 = vpack.c.b16 %v6364, %v6357
    %v6904 = vpack.c.b16 %v6365, %v6358
    %v6905 = vpack.c.b16 %v6366, %v6359
    %v6906 = vpack.c.b16 %v6367, %v6360
    %v6907 = vpack.c.b16 %v6368, %v6361
    %v6908 = vpack.c.b16 %v6369, %v6362
    %v6909 = vpack.c.b16 %v6370, %v6363
    %v6910 = vpack.c.b16 %v6378, %v6371
    %v6911 = vpack.c.b16 %v6379, %v6372
    %v6912 = vpack.c.b16 %v6380, %v6373
    %v6913 = vpack.c.b16 %v6381, %v6374
    %v6914 = vpack.c.b16 %v6382, %v6375
    %v6915 = vpack.c.b16 %v6383, %v6376
    %v6916 = vpack.c.b16 %v6384, %v6377
    %v6917 = vpack.c.b16 %v6392, %v6385
    %v6918 = vpack.c.b16 %v6393, %v6386
    %v6919 = vpack.c.b16 %v6394, %v6387
    %v6920 = vpack.c.b16 %v6395, %v6388
    %v6921 = vpack.c.b16 %v6396, %v6389
    %v6922 = vpack.c.b16 %v6397, %v6390
    %v6923 = vpack.c.b16 %v6398, %v6391
    %v6924 = vpack.c.b16 %v6406, %v6399
    %v6925 = vpack.c.b16 %v6407, %v6400
    %v6926 = vpack.c.b16 %v6408, %v6401
    %v6927 = vpack.c.b16 %v6409, %v6402
    %v6928 = vpack.c.b16 %v6410, %v6403
    %v6929 = vpack.c.b16 %v6411, %v6404
    %v6930 = vpack.c.b16 %v6412, %v6405
    %v6931 = vpack.c.b16 %v6420, %v6413
    %v6932 = vpack.c.b16 %v6421, %v6414
    %v6933 = vpack.c.b16 %v6422, %v6415
    %v6934 = vpack.c.b16 %v6423, %v6416
    %v6935 = vpack.c.b16 %v6424, %v6417
    %v6936 = vpack.c.b16 %v6425, %v6418
    %v6937 = vpack.c.b16 %v6426, %v6419
    %v6938 = vpack.c.b16 %v6434, %v6427
    %v6939 = vpack.c.b16 %v6435, %v6428
    %v6940 = vpack.c.b16 %v6436, %v6429
    %v6941 = vpack.c.b16 %v6437, %v6430
    %v6942 = vpack.c.b16 %v6438, %v6431
    %v6943 = vpack.c.b16 %v6439, %v6432
    %v6944 = vpack.c.b16 %v6440, %v6433
    %v6945 = vpack.c.b16 %v6448, %v6441
    %v6946 = vpack.c.b16 %v6449, %v6442
    %v6947 = vpack.c.b16 %v6450, %v6443
    %v6948 = vpack.c.b16 %v6451, %v6444
    %v6949 = vpack.c.b16 %v6452, %v6445
    %v6950 = vpack.c.b16 %v6453, %v6446
    %v6951 = vpack.c.b16 %v6454, %v6447
    %v6952 = vpack.c.b16 %v6462, %v6455
    %v6953 = vpack.c.b16 %v6463, %v6456
    %v6954 = vpack.c.b16 %v6464, %v6457
    %v6955 = vpack.c.b16 %v6465, %v6458
    %v6956 = vpack.c.b16 %v6466, %v6459
    %v6957 = vpack.c.b16 %v6467, %v6460
    %v6958 = vpack.c.b16 %v6468, %v6461
    %v6959 = vpack.c.b16 %v6476, %v6469
    %v6960 = vpack.c.b16 %v6477, %v6470
    %v6961 = vpack.c.b16 %v6478, %v6471
    %v6962 = vpack.c.b16 %v6479, %v6472
    %v6963 = vpack.c.b16 %v6480, %v6473
    %v6964 = vpack.c.b16 %v6481, %v6474
    %v6965 = vpack.c.b16 %v6482, %v6475
    %v6966 = vpack.c.b16 %v6490, %v6483
    %v6967 = vpack.c.b16 %v6491, %v6484
    %v6968 = vpack.c.b16 %v6492, %v6485
    %v6969 = vpack.c.b16 %v6493, %v6486
    %v6970 = vpack.c.b16 %v6494, %v6487
    %v6971 = vpack.c.b16 %v6495, %v6488
    %v6972 = vpack.c.b16 %v6496, %v6489
    %v6973 = vpack.c.b16 %v6504, %v6497
    %v6974 = vpack.c.b16 %v6505, %v6498
    %v6975 = vpack.c.b16 %v6506, %v6499
    %v6976 = vpack.c.b16 %v6507, %v6500
    %v6977 = vpack.c.b16 %v6508, %v6501
    %v6978 = vpack.c.b16 %v6509, %v6502
    %v6979 = vpack.c.b16 %v6510, %v6503
    %v6980 = vpack.c.b16 %v6518, %v6511
    %v6981 = vpack.c.b16 %v6519, %v6512
    %v6982 = vpack.c.b16 %v6520, %v6513
    %v6983 = vpack.c.b16 %v6521, %v6514
    %v6984 = vpack.c.b16 %v6522, %v6515
    %v6985 = vpack.c.b16 %v6523, %v6516
    %v6986 = vpack.c.b16 %v6524, %v6517
    %v6987 = vpack.c.b16 %v6532, %v6525
    %v6988 = vpack.c.b16 %v6533, %v6526
    %v6989 = vpack.c.b16 %v6534, %v6527
    %v6990 = vpack.c.b16 %v6535, %v6528
    %v6991 = vpack.c.b16 %v6536, %v6529
    %v6992 = vpack.c.b16 %v6537, %v6530
    %v6993 = vpack.c.b16 %v6538, %v6531
    %v6994 = vpack.c.b16 %v6546, %v6539
    %v6995 = vpack.c.b16 %v6547, %v6540
    %v6996 = vpack.c.b16 %v6548, %v6541
    %v6997 = vpack.c.b16 %v6549, %v6542
    %v6998 = vpack.c.b16 %v6550, %v6543
    %v6999 = vpack.c.b16 %v6551, %v6544
    %v7000 = vpack.c.b16 %v6552, %v6545
    %v7001 = vpack.c.b16 %v6560, %v6553
    %v7002 = vpack.c.b16 %v6561, %v6554
    %v7003 = vpack.c.b16 %v6562, %v6555
    %v7004 = vpack.c.b16 %v6563, %v6556
    %v7005 = vpack.c.b16 %v6564, %v6557
    %v7006 = vpack.c.b16 %v6565, %v6558
    %v7007 = vpack.c.b16 %v6566, %v6559
    %v7008 = vpack.c.b16 %v6574, %v6567
    %v7009 = vpack.c.b16 %v6575, %v6568
    %v7010 = vpack.c.b16 %v6576, %v6569
    %v7011 = vpack.c.b16 %v6577, %v6570
    %v7012 = vpack.c.b16 %v6578, %v6571
    %v7013 = vpack.c.b16 %v6579, %v6572
    %v7014 = vpack.c.b16 %v6580, %v6573
    %v7015 = vpack.c.b16 %v6588, %v6581
    %v7016 = vpack.c.b16 %v6589, %v6582
    %v7017 = vpack.c.b16 %v6590, %v6583
    %v7018 = vpack.c.b16 %v6591, %v6584
    %v7019 = vpack.c.b16 %v6592, %v6585
    %v7020 = vpack.c.b16 %v6593, %v6586
    %v7021 = vpack.c.b16 %v6594, %v6587
    %v7022 = vpack.c.b16 %v6602, %v6595
    %v7023 = vpack.c.b16 %v6603, %v6596
    %v7024 = vpack.c.b16 %v6604, %v6597
    %v7025 = vpack.c.b16 %v6605, %v6598
    %v7026 = vpack.c.b16 %v6606, %v6599
    %v7027 = vpack.c.b16 %v6607, %v6600
    %v7028 = vpack.c.b16 %v6608, %v6601
    %v7029 = vpack.c.b16 %v6616, %v6609
    %v7030 = vpack.c.b16 %v6617, %v6610
    %v7031 = vpack.c.b16 %v6618, %v6611
    %v7032 = vpack.c.b16 %v6619, %v6612
    %v7033 = vpack.c.b16 %v6620, %v6613
    %v7034 = vpack.c.b16 %v6621, %v6614
    %v7035 = vpack.c.b16 %v6622, %v6615
    %v7036 = vpack.c.b16 %v6630, %v6623
    %v7037 = vpack.c.b16 %v6631, %v6624
    %v7038 = vpack.c.b16 %v6632, %v6625
    %v7039 = vpack.c.b16 %v6633, %v6626
    %v7040 = vpack.c.b16 %v6634, %v6627
    %v7041 = vpack.c.b16 %v6635, %v6628
    %v7042 = vpack.c.b16 %v6636, %v6629
    %v7043 = vpack.c.b16 %v6644, %v6637
    %v7044 = vpack.c.b16 %v6645, %v6638
    %v7045 = vpack.c.b16 %v6646, %v6639
    %v7046 = vpack.c.b16 %v6647, %v6640
    %v7047 = vpack.c.b16 %v6648, %v6641
    %v7048 = vpack.c.b16 %v6649, %v6642
    %v7049 = vpack.c.b16 %v6650, %v6643
    %v7050 = vpack.c.b16 %v6658, %v6651
    %v7051 = vpack.c.b16 %v6659, %v6652
    %v7052 = vpack.c.b16 %v6660, %v6653
    %v7053 = vpack.c.b16 %v6661, %v6654
    %v7054 = vpack.c.b16 %v6662, %v6655
    %v7055 = vpack.c.b16 %v6663, %v6656
    %v7056 = vpack.c.b16 %v6664, %v6657
    %v7057 = vpack.c.b16 %v6672, %v6665
    %v7058 = vpack.c.b16 %v6673, %v6666
    %v7059 = vpack.c.b16 %v6674, %v6667
    %v7060 = vpack.c.b16 %v6675, %v6668
    %v7061 = vpack.c.b16 %v6676, %v6669
    %v7062 = vpack.c.b16 %v6677, %v6670
    %v7063 = vpack.c.b16 %v6678, %v6671
    %v7064 = vpack.c.b16 %v6686, %v6679
    %v7065 = vpack.c.b16 %v6687, %v6680
    %v7066 = vpack.c.b16 %v6688, %v6681
    %v7067 = vpack.c.b16 %v6689, %v6682
    %v7068 = vpack.c.b16 %v6690, %v6683
    %v7069 = vpack.c.b16 %v6691, %v6684
    %v7070 = vpack.c.b16 %v6692, %v6685
    %v7071 = vpack.c.b16 %v6700, %v6693
    %v7072 = vpack.c.b16 %v6701, %v6694
    %v7073 = vpack.c.b16 %v6702, %v6695
    %v7074 = vpack.c.b16 %v6703, %v6696
    %v7075 = vpack.c.b16 %v6704, %v6697
    %v7076 = vpack.c.b16 %v6705, %v6698
    %v7077 = vpack.c.b16 %v6706, %v6699
    %v7078 = vpack.c.b16 %v6714, %v6707
    %v7079 = vpack.c.b16 %v6715, %v6708
    %v7080 = vpack.c.b16 %v6716, %v6709
    %v7081 = vpack.c.b16 %v6717, %v6710
    %v7082 = vpack.c.b16 %v6718, %v6711
    %v7083 = vpack.c.b16 %v6719, %v6712
    %v7084 = vpack.c.b16 %v6720, %v6713
    %v7085 = vpack.c.b16 %v6728, %v6721
    %v7086 = vpack.c.b16 %v6729, %v6722
    %v7087 = vpack.c.b16 %v6730, %v6723
    %v7088 = vpack.c.b16 %v6731, %v6724
    %v7089 = vpack.c.b16 %v6732, %v6725
    %v7090 = vpack.c.b16 %v6733, %v6726
    %v7091 = vpack.c.b16 %v6734, %v6727
    %v7092 = vpack.c.b16 %v6742, %v6735
    %v7093 = vpack.c.b16 %v6743, %v6736
    %v7094 = vpack.c.b16 %v6744, %v6737
    %v7095 = vpack.c.b16 %v6745, %v6738
    %v7096 = vpack.c.b16 %v6746, %v6739
    %v7097 = vpack.c.b16 %v6747, %v6740
    %v7098 = vpack.c.b16 %v6748, %v6741
    %v7099 = vpack.c.b16 %v6756, %v6749
    %v7100 = vpack.c.b16 %v6757, %v6750
    %v7101 = vpack.c.b16 %v6758, %v6751
    %v7102 = vpack.c.b16 %v6759, %v6752
    %v7103 = vpack.c.b16 %v6760, %v6753
    %v7104 = vpack.c.b16 %v6761, %v6754
    %v7105 = vpack.c.b16 %v6762, %v6755
    %v7106 = vpack.c.b16 %v6770, %v6763
    %v7107 = vpack.c.b16 %v6771, %v6764
    %v7108 = vpack.c.b16 %v6772, %v6765
    %v7109 = vpack.c.b16 %v6773, %v6766
    %v7110 = vpack.c.b16 %v6774, %v6767
    %v7111 = vpack.c.b16 %v6775, %v6768
    %v7112 = vpack.c.b16 %v6776, %v6769
    %7449 = vmatprep.subr.bf16.mxu0 %v6827
    %7450 = vmatpush1.bf16.msra.mxu0 %v6826
    %7451 = vmatprep.subr.bf16.mxu0 %v6820
    %7452 = vmatpush1.bf16.msra.mxu0 %v6819
    %7453 = vmatprep.subr.bf16.mxu0 %v6813
    %7454 = vmatpush1.bf16.msra.mxu0 %v6812
    %7455 = vmatprep.subr.bf16.mxu0 %v6806
    %7456 = vmatpush1.bf16.msra.mxu0 %v6805
    %7457 = vmatprep.subr.bf16.mxu0 %v6799
    %7458 = vmatpush1.bf16.msra.mxu0 %v6798
    %7459 = vmatprep.subr.bf16.mxu0 %v6792
    %7460 = vmatpush1.bf16.msra.mxu0 %v6791
    %7461 = vmatprep.subr.bf16.mxu0 %v6785
    %7462 = vmatpush1.bf16.msra.mxu0 %v6784
    %7463 = vmatprep.subr.bf16.mxu0 %v6778
    %7464 = vmatpush1.bf16.msra.mxu0 %v6777
    %7465 = vmatprep.subr.bf16.mxu0 %v6883
    %7466 = vmatpush2.bf16.msra.mxu0 %v6882
    %7467 = vmatprep.subr.bf16.mxu0 %v6876
    %7468 = vmatpush2.bf16.msra.mxu0 %v6875
    %7469 = vmatprep.subr.bf16.mxu0 %v6869
    %7470 = vmatpush2.bf16.msra.mxu0 %v6868
    %7471 = vmatprep.subr.bf16.mxu0 %v6862
    %7472 = vmatpush2.bf16.msra.mxu0 %v6861
    %7473 = vmatprep.subr.bf16.mxu0 %v6855
    %7474 = vmatpush2.bf16.msra.mxu0 %v6854
    %7475 = vmatprep.subr.bf16.mxu0 %v6848
    %7476 = vmatpush2.bf16.msra.mxu0 %v6847
    %7477 = vmatprep.subr.bf16.mxu0 %v6841
    %7478 = vmatpush2.bf16.msra.mxu0 %v6840
    %7479 = vmatprep.subr.bf16.mxu0 %v6834
    %7480 = vmatpush2.bf16.msra.mxu0 %v6833
    %7481 = vmatprep.mubr.bf16.mxu0 %v5680
    %7482 = vmatmul.mubr.bf16.gmra.mxu0 %v5679
    %v7483 = vpop.f32.mrf.mxu0
    %v7484 = vadd.f32 %v5689, %v7483
    %v7485 = vpop.f32.mrf.mxu0
    %v7486 = vadd.f32 %v5693, %v7485
    %v7487 = vpop.f32.mrf.mxu0
    %v7488 = vadd.f32 %v5689, %v7487
    %v7489 = vpop.f32.mrf.mxu0
    %v7490 = vadd.f32 %v5693, %v7489
    %7491 = vdwg.mxu0
    %7492 = vmatprep.subr.bf16.mxu0 %v6939
    %7493 = vmatpush1.bf16.msra.mxu0 %v6938
    %7494 = vmatprep.subr.bf16.mxu0 %v6932
    %7495 = vmatpush1.bf16.msra.mxu0 %v6931
    %7496 = vmatprep.subr.bf16.mxu0 %v6925
    %7497 = vmatpush1.bf16.msra.mxu0 %v6924
    %7498 = vmatprep.subr.bf16.mxu0 %v6918
    %7499 = vmatpush1.bf16.msra.mxu0 %v6917
    %7500 = vmatprep.subr.bf16.mxu0 %v6911
    %7501 = vmatpush1.bf16.msra.mxu0 %v6910
    %7502 = vmatprep.subr.bf16.mxu0 %v6904
    %7503 = vmatpush1.bf16.msra.mxu0 %v6903
    %7504 = vmatprep.subr.bf16.mxu0 %v6897
    %7505 = vmatpush1.bf16.msra.mxu0 %v6896
    %7506 = vmatprep.subr.bf16.mxu0 %v6890
    %7507 = vmatpush1.bf16.msra.mxu0 %v6889
    %7508 = vmatprep.subr.bf16.mxu0 %v6995
    %7509 = vmatpush2.bf16.msra.mxu0 %v6994
    %7510 = vmatprep.subr.bf16.mxu0 %v6988
    %7511 = vmatpush2.bf16.msra.mxu0 %v6987
    %7512 = vmatprep.subr.bf16.mxu0 %v6981
    %7513 = vmatpush2.bf16.msra.mxu0 %v6980
    %7514 = vmatprep.subr.bf16.mxu0 %v6974
    %7515 = vmatpush2.bf16.msra.mxu0 %v6973
    %7516 = vmatprep.subr.bf16.mxu0 %v6967
    %7517 = vmatpush2.bf16.msra.mxu0 %v6966
    %7518 = vmatprep.subr.bf16.mxu0 %v6960
    %7519 = vmatpush2.bf16.msra.mxu0 %v6959
    %7520 = vmatprep.subr.bf16.mxu0 %v6953
    %7521 = vmatpush2.bf16.msra.mxu0 %v6952
    %7522 = vmatprep.subr.bf16.mxu0 %v6946
    %7523 = vmatpush2.bf16.msra.mxu0 %v6945
    %7524 = vmatprep.mubr.bf16.mxu0 %v5682
    %7525 = vmatmul.mubr.bf16.gmra.mxu0 %v5681
    %v7526 = vpop.f32.mrf.mxu0
    %v7527 = vadd.f32 %v7484, %v7526
    %v7528 = vpop.f32.mrf.mxu0
    %v7529 = vadd.f32 %v7486, %v7528
    %v7530 = vpop.f32.mrf.mxu0
    %v7531 = vadd.f32 %v7488, %v7530
    %v7532 = vpop.f32.mrf.mxu0
    %v7533 = vadd.f32 %v7490, %v7532
    %7534 = vdwg.mxu0
    %7535 = vmatprep.subr.bf16.mxu0 %v7051
    %7536 = vmatpush1.bf16.msra.mxu0 %v7050
    %7537 = vmatprep.subr.bf16.mxu0 %v7044
    %7538 = vmatpush1.bf16.msra.mxu0 %v7043
    %7539 = vmatprep.subr.bf16.mxu0 %v7037
    %7540 = vmatpush1.bf16.msra.mxu0 %v7036
    %7541 = vmatprep.subr.bf16.mxu0 %v7030
    %7542 = vmatpush1.bf16.msra.mxu0 %v7029
    %7543 = vmatprep.subr.bf16.mxu0 %v7023
    %7544 = vmatpush1.bf16.msra.mxu0 %v7022
    %7545 = vmatprep.subr.bf16.mxu0 %v7016
    %7546 = vmatpush1.bf16.msra.mxu0 %v7015
    %7547 = vmatprep.subr.bf16.mxu0 %v7009
    %7548 = vmatpush1.bf16.msra.mxu0 %v7008
    %7549 = vmatprep.subr.bf16.mxu0 %v7002
    %7550 = vmatpush1.bf16.msra.mxu0 %v7001
    %7551 = vmatprep.subr.bf16.mxu0 %v7107
    %7552 = vmatpush2.bf16.msra.mxu0 %v7106
    %7553 = vmatprep.subr.bf16.mxu0 %v7100
    %7554 = vmatpush2.bf16.msra.mxu0 %v7099
    %7555 = vmatprep.subr.bf16.mxu0 %v7093
    %7556 = vmatpush2.bf16.msra.mxu0 %v7092
    %7557 = vmatprep.subr.bf16.mxu0 %v7086
    %7558 = vmatpush2.bf16.msra.mxu0 %v7085
    %7559 = vmatprep.subr.bf16.mxu0 %v7079
    %7560 = vmatpush2.bf16.msra.mxu0 %v7078
    %7561 = vmatprep.subr.bf16.mxu0 %v7072
    %7562 = vmatpush2.bf16.msra.mxu0 %v7071
    %7563 = vmatprep.subr.bf16.mxu0 %v7065
    %7564 = vmatpush2.bf16.msra.mxu0 %v7064
    %7565 = vmatprep.subr.bf16.mxu0 %v7058
    %7566 = vmatpush2.bf16.msra.mxu0 %v7057
    %7567 = vmatprep.mubr.bf16.mxu0 %v5684
    %7568 = vmatmul.mubr.bf16.gmra.mxu0 %v5683
    %v7569 = vpop.f32.mrf.mxu0
    %v7570 = vadd.f32 %v7527, %v7569
    %v7571 = vpop.f32.mrf.mxu0
    %v7572 = vadd.f32 %v7529, %v7571
    %v7573 = vpop.f32.mrf.mxu0
    %v7574 = vadd.f32 %v7531, %v7573
    %v7575 = vpop.f32.mrf.mxu0
    %v7576 = vadd.f32 %v7533, %v7575
    %7577 = vdwg.mxu0
    %7578 = vmatprep.subr.bf16.mxu0 %v6829
    %7579 = vmatpush1.bf16.msra.mxu0 %v6828
    %7580 = vmatprep.subr.bf16.mxu0 %v6822
    %7581 = vmatpush1.bf16.msra.mxu0 %v6821
    %7582 = vmatprep.subr.bf16.mxu0 %v6815
    %7583 = vmatpush1.bf16.msra.mxu0 %v6814
    %7584 = vmatprep.subr.bf16.mxu0 %v6808
    %7585 = vmatpush1.bf16.msra.mxu0 %v6807
    %7586 = vmatprep.subr.bf16.mxu0 %v6801
    %7587 = vmatpush1.bf16.msra.mxu0 %v6800
    %7588 = vmatprep.subr.bf16.mxu0 %v6794
    %7589 = vmatpush1.bf16.msra.mxu0 %v6793
    %7590 = vmatprep.subr.bf16.mxu0 %v6787
    %7591 = vmatpush1.bf16.msra.mxu0 %v6786
    %7592 = vmatprep.subr.bf16.mxu0 %v6780
    %7593 = vmatpush1.bf16.msra.mxu0 %v6779
    %7594 = vmatprep.subr.bf16.mxu0 %v6885
    %7595 = vmatpush2.bf16.msra.mxu0 %v6884
    %7596 = vmatprep.subr.bf16.mxu0 %v6878
    %7597 = vmatpush2.bf16.msra.mxu0 %v6877
    %7598 = vmatprep.subr.bf16.mxu0 %v6871
    %7599 = vmatpush2.bf16.msra.mxu0 %v6870
    %7600 = vmatprep.subr.bf16.mxu0 %v6864
    %7601 = vmatpush2.bf16.msra.mxu0 %v6863
    %7602 = vmatprep.subr.bf16.mxu0 %v6857
    %7603 = vmatpush2.bf16.msra.mxu0 %v6856
    %7604 = vmatprep.subr.bf16.mxu0 %v6850
    %7605 = vmatpush2.bf16.msra.mxu0 %v6849
    %7606 = vmatprep.subr.bf16.mxu0 %v6843
    %7607 = vmatpush2.bf16.msra.mxu0 %v6842
    %7608 = vmatprep.subr.bf16.mxu0 %v6836
    %7609 = vmatpush2.bf16.msra.mxu0 %v6835
    %7610 = vmatprep.mubr.bf16.mxu0 %v5680
    %7611 = vmatmul.mubr.bf16.gmra.mxu0 %v5679
    %v7612 = vpop.f32.mrf.mxu0
    %v7613 = vadd.f32 %v5697, %v7612
    %v7614 = vpop.f32.mrf.mxu0
    %v7615 = vadd.f32 %v5701, %v7614
    %v7616 = vpop.f32.mrf.mxu0
    %v7617 = vadd.f32 %v5697, %v7616
    %v7618 = vpop.f32.mrf.mxu0
    %v7619 = vadd.f32 %v5701, %v7618
    %7620 = vdwg.mxu0
    %7621 = vmatprep.subr.bf16.mxu0 %v6941
    %7622 = vmatpush1.bf16.msra.mxu0 %v6940
    %7623 = vmatprep.subr.bf16.mxu0 %v6934
    %7624 = vmatpush1.bf16.msra.mxu0 %v6933
    %7625 = vmatprep.subr.bf16.mxu0 %v6927
    %7626 = vmatpush1.bf16.msra.mxu0 %v6926
    %7627 = vmatprep.subr.bf16.mxu0 %v6920
    %7628 = vmatpush1.bf16.msra.mxu0 %v6919
    %7629 = vmatprep.subr.bf16.mxu0 %v6913
    %7630 = vmatpush1.bf16.msra.mxu0 %v6912
    %7631 = vmatprep.subr.bf16.mxu0 %v6906
    %7632 = vmatpush1.bf16.msra.mxu0 %v6905
    %7633 = vmatprep.subr.bf16.mxu0 %v6899
    %7634 = vmatpush1.bf16.msra.mxu0 %v6898
    %7635 = vmatprep.subr.bf16.mxu0 %v6892
    %7636 = vmatpush1.bf16.msra.mxu0 %v6891
    %7637 = vmatprep.subr.bf16.mxu0 %v6997
    %7638 = vmatpush2.bf16.msra.mxu0 %v6996
    %7639 = vmatprep.subr.bf16.mxu0 %v6990
    %7640 = vmatpush2.bf16.msra.mxu0 %v6989
    %7641 = vmatprep.subr.bf16.mxu0 %v6983
    %7642 = vmatpush2.bf16.msra.mxu0 %v6982
    %7643 = vmatprep.subr.bf16.mxu0 %v6976
    %7644 = vmatpush2.bf16.msra.mxu0 %v6975
    %7645 = vmatprep.subr.bf16.mxu0 %v6969
    %7646 = vmatpush2.bf16.msra.mxu0 %v6968
    %7647 = vmatprep.subr.bf16.mxu0 %v6962
    %7648 = vmatpush2.bf16.msra.mxu0 %v6961
    %7649 = vmatprep.subr.bf16.mxu0 %v6955
    %7650 = vmatpush2.bf16.msra.mxu0 %v6954
    %7651 = vmatprep.subr.bf16.mxu0 %v6948
    %7652 = vmatpush2.bf16.msra.mxu0 %v6947
    %7653 = vmatprep.mubr.bf16.mxu0 %v5682
    %7654 = vmatmul.mubr.bf16.gmra.mxu0 %v5681
    %v7655 = vpop.f32.mrf.mxu0
    %v7656 = vadd.f32 %v7613, %v7655
    %v7657 = vpop.f32.mrf.mxu0
    %v7658 = vadd.f32 %v7615, %v7657
    %v7659 = vpop.f32.mrf.mxu0
    %v7660 = vadd.f32 %v7617, %v7659
    %v7661 = vpop.f32.mrf.mxu0
    %v7662 = vadd.f32 %v7619, %v7661
    %7663 = vdwg.mxu0
    %7664 = vmatprep.subr.bf16.mxu0 %v7053
    %7665 = vmatpush1.bf16.msra.mxu0 %v7052
    %7666 = vmatprep.subr.bf16.mxu0 %v7046
    %7667 = vmatpush1.bf16.msra.mxu0 %v7045
    %7668 = vmatprep.subr.bf16.mxu0 %v7039
    %7669 = vmatpush1.bf16.msra.mxu0 %v7038
    %7670 = vmatprep.subr.bf16.mxu0 %v7032
    %7671 = vmatpush1.bf16.msra.mxu0 %v7031
    %7672 = vmatprep.subr.bf16.mxu0 %v7025
    %7673 = vmatpush1.bf16.msra.mxu0 %v7024
    %7674 = vmatprep.subr.bf16.mxu0 %v7018
    %7675 = vmatpush1.bf16.msra.mxu0 %v7017
    %7676 = vmatprep.subr.bf16.mxu0 %v7011
    %7677 = vmatpush1.bf16.msra.mxu0 %v7010
    %7678 = vmatprep.subr.bf16.mxu0 %v7004
    %7679 = vmatpush1.bf16.msra.mxu0 %v7003
    %7680 = vmatprep.subr.bf16.mxu0 %v7109
    %7681 = vmatpush2.bf16.msra.mxu0 %v7108
    %7682 = vmatprep.subr.bf16.mxu0 %v7102
    %7683 = vmatpush2.bf16.msra.mxu0 %v7101
    %7684 = vmatprep.subr.bf16.mxu0 %v7095
    %7685 = vmatpush2.bf16.msra.mxu0 %v7094
    %7686 = vmatprep.subr.bf16.mxu0 %v7088
    %7687 = vmatpush2.bf16.msra.mxu0 %v7087
    %7688 = vmatprep.subr.bf16.mxu0 %v7081
    %7689 = vmatpush2.bf16.msra.mxu0 %v7080
    %7690 = vmatprep.subr.bf16.mxu0 %v7074
    %7691 = vmatpush2.bf16.msra.mxu0 %v7073
    %7692 = vmatprep.subr.bf16.mxu0 %v7067
    %7693 = vmatpush2.bf16.msra.mxu0 %v7066
    %7694 = vmatprep.subr.bf16.mxu0 %v7060
    %7695 = vmatpush2.bf16.msra.mxu0 %v7059
    %7696 = vmatprep.mubr.bf16.mxu0 %v5684
    %7697 = vmatmul.mubr.bf16.gmra.mxu0 %v5683
    %v7698 = vpop.f32.mrf.mxu0
    %v7699 = vadd.f32 %v7656, %v7698
    %v7700 = vpop.f32.mrf.mxu0
    %v7701 = vadd.f32 %v7658, %v7700
    %v7702 = vpop.f32.mrf.mxu0
    %v7703 = vadd.f32 %v7660, %v7702
    %v7704 = vpop.f32.mrf.mxu0
    %v7705 = vadd.f32 %v7662, %v7704
    %7706 = vdwg.mxu0
    %7707 = vmatprep.subr.bf16.mxu0 %v6831
    %7708 = vmatpush1.bf16.msra.mxu0 %v6830
    %7709 = vmatprep.subr.bf16.mxu0 %v6824
    %7710 = vmatpush1.bf16.msra.mxu0 %v6823
    %7711 = vmatprep.subr.bf16.mxu0 %v6817
    %7712 = vmatpush1.bf16.msra.mxu0 %v6816
    %7713 = vmatprep.subr.bf16.mxu0 %v6810
    %7714 = vmatpush1.bf16.msra.mxu0 %v6809
    %7715 = vmatprep.subr.bf16.mxu0 %v6803
    %7716 = vmatpush1.bf16.msra.mxu0 %v6802
    %7717 = vmatprep.subr.bf16.mxu0 %v6796
    %7718 = vmatpush1.bf16.msra.mxu0 %v6795
    %7719 = vmatprep.subr.bf16.mxu0 %v6789
    %7720 = vmatpush1.bf16.msra.mxu0 %v6788
    %7721 = vmatprep.subr.bf16.mxu0 %v6782
    %7722 = vmatpush1.bf16.msra.mxu0 %v6781
    %7723 = vmatprep.subr.bf16.mxu0 %v6887
    %7724 = vmatpush2.bf16.msra.mxu0 %v6886
    %7725 = vmatprep.subr.bf16.mxu0 %v6880
    %7726 = vmatpush2.bf16.msra.mxu0 %v6879
    %7727 = vmatprep.subr.bf16.mxu0 %v6873
    %7728 = vmatpush2.bf16.msra.mxu0 %v6872
    %7729 = vmatprep.subr.bf16.mxu0 %v6866
    %7730 = vmatpush2.bf16.msra.mxu0 %v6865
    %7731 = vmatprep.subr.bf16.mxu0 %v6859
    %7732 = vmatpush2.bf16.msra.mxu0 %v6858
    %7733 = vmatprep.subr.bf16.mxu0 %v6852
    %7734 = vmatpush2.bf16.msra.mxu0 %v6851
    %7735 = vmatprep.subr.bf16.mxu0 %v6845
    %7736 = vmatpush2.bf16.msra.mxu0 %v6844
    %7737 = vmatprep.subr.bf16.mxu0 %v6838
    %7738 = vmatpush2.bf16.msra.mxu0 %v6837
    %7739 = vmatprep.mubr.bf16.mxu0 %v5680
    %7740 = vmatmul.mubr.bf16.gmra.mxu0 %v5679
    %v7741 = vpop.f32.mrf.mxu0
    %v7742 = vadd.f32 %v5705, %v7741
    %v7743 = vpop.f32.mrf.mxu0
    %v7744 = vadd.f32 %v5709, %v7743
    %v7745 = vpop.f32.mrf.mxu0
    %v7746 = vadd.f32 %v5705, %v7745
    %v7747 = vpop.f32.mrf.mxu0
    %v7748 = vadd.f32 %v5709, %v7747
    %7749 = vdwg.mxu0
    %7750 = vmatprep.subr.bf16.mxu0 %v6943
    %7751 = vmatpush1.bf16.msra.mxu0 %v6942
    %7752 = vmatprep.subr.bf16.mxu0 %v6936
    %7753 = vmatpush1.bf16.msra.mxu0 %v6935
    %7754 = vmatprep.subr.bf16.mxu0 %v6929
    %7755 = vmatpush1.bf16.msra.mxu0 %v6928
    %7756 = vmatprep.subr.bf16.mxu0 %v6922
    %7757 = vmatpush1.bf16.msra.mxu0 %v6921
    %7758 = vmatprep.subr.bf16.mxu0 %v6915
    %7759 = vmatpush1.bf16.msra.mxu0 %v6914
    %7760 = vmatprep.subr.bf16.mxu0 %v6908
    %7761 = vmatpush1.bf16.msra.mxu0 %v6907
    %7762 = vmatprep.subr.bf16.mxu0 %v6901
    %7763 = vmatpush1.bf16.msra.mxu0 %v6900
    %7764 = vmatprep.subr.bf16.mxu0 %v6894
    %7765 = vmatpush1.bf16.msra.mxu0 %v6893
    %7766 = vmatprep.subr.bf16.mxu0 %v6999
    %7767 = vmatpush2.bf16.msra.mxu0 %v6998
    %7768 = vmatprep.subr.bf16.mxu0 %v6992
    %7769 = vmatpush2.bf16.msra.mxu0 %v6991
    %7770 = vmatprep.subr.bf16.mxu0 %v6985
    %7771 = vmatpush2.bf16.msra.mxu0 %v6984
    %7772 = vmatprep.subr.bf16.mxu0 %v6978
    %7773 = vmatpush2.bf16.msra.mxu0 %v6977
    %7774 = vmatprep.subr.bf16.mxu0 %v6971
    %7775 = vmatpush2.bf16.msra.mxu0 %v6970
    %7776 = vmatprep.subr.bf16.mxu0 %v6964
    %7777 = vmatpush2.bf16.msra.mxu0 %v6963
    %7778 = vmatprep.subr.bf16.mxu0 %v6957
    %7779 = vmatpush2.bf16.msra.mxu0 %v6956
    %7780 = vmatprep.subr.bf16.mxu0 %v6950
    %7781 = vmatpush2.bf16.msra.mxu0 %v6949
    %7782 = vmatprep.mubr.bf16.mxu0 %v5682
    %7783 = vmatmul.mubr.bf16.gmra.mxu0 %v5681
    %v7784 = vpop.f32.mrf.mxu0
    %v7785 = vadd.f32 %v7742, %v7784
    %v7786 = vpop.f32.mrf.mxu0
    %v7787 = vadd.f32 %v7744, %v7786
    %v7788 = vpop.f32.mrf.mxu0
    %v7789 = vadd.f32 %v7746, %v7788
    %v7790 = vpop.f32.mrf.mxu0
    %v7791 = vadd.f32 %v7748, %v7790
    %7792 = vdwg.mxu0
    %7793 = vmatprep.subr.bf16.mxu0 %v7055
    %7794 = vmatpush1.bf16.msra.mxu0 %v7054
    %7795 = vmatprep.subr.bf16.mxu0 %v7048
    %7796 = vmatpush1.bf16.msra.mxu0 %v7047
    %7797 = vmatprep.subr.bf16.mxu0 %v7041
    %7798 = vmatpush1.bf16.msra.mxu0 %v7040
    %7799 = vmatprep.subr.bf16.mxu0 %v7034
    %7800 = vmatpush1.bf16.msra.mxu0 %v7033
    %7801 = vmatprep.subr.bf16.mxu0 %v7027
    %7802 = vmatpush1.bf16.msra.mxu0 %v7026
    %7803 = vmatprep.subr.bf16.mxu0 %v7020
    %7804 = vmatpush1.bf16.msra.mxu0 %v7019
    %7805 = vmatprep.subr.bf16.mxu0 %v7013
    %7806 = vmatpush1.bf16.msra.mxu0 %v7012
    %7807 = vmatprep.subr.bf16.mxu0 %v7006
    %7808 = vmatpush1.bf16.msra.mxu0 %v7005
    %7809 = vmatprep.subr.bf16.mxu0 %v7111
    %7810 = vmatpush2.bf16.msra.mxu0 %v7110
    %7811 = vmatprep.subr.bf16.mxu0 %v7104
    %7812 = vmatpush2.bf16.msra.mxu0 %v7103
    %7813 = vmatprep.subr.bf16.mxu0 %v7097
    %7814 = vmatpush2.bf16.msra.mxu0 %v7096
    %7815 = vmatprep.subr.bf16.mxu0 %v7090
    %7816 = vmatpush2.bf16.msra.mxu0 %v7089
    %7817 = vmatprep.subr.bf16.mxu0 %v7083
    %7818 = vmatpush2.bf16.msra.mxu0 %v7082
    %7819 = vmatprep.subr.bf16.mxu0 %v7076
    %7820 = vmatpush2.bf16.msra.mxu0 %v7075
    %7821 = vmatprep.subr.bf16.mxu0 %v7069
    %7822 = vmatpush2.bf16.msra.mxu0 %v7068
    %7823 = vmatprep.subr.bf16.mxu0 %v7062
    %7824 = vmatpush2.bf16.msra.mxu0 %v7061
    %7825 = vmatprep.mubr.bf16.mxu0 %v5684
    %7826 = vmatmul.mubr.bf16.gmra.mxu0 %v5683
    %v7827 = vpop.f32.mrf.mxu0
    %v7828 = vadd.f32 %v7785, %v7827
    %v7829 = vpop.f32.mrf.mxu0
    %v7830 = vadd.f32 %v7787, %v7829
    %v7831 = vpop.f32.mrf.mxu0
    %v7832 = vadd.f32 %v7789, %v7831
    %v7833 = vpop.f32.mrf.mxu0
    %v7834 = vadd.f32 %v7791, %v7833
    %7835 = vdwg.mxu0
    %7836 = vmatprep.subr.bf16.mxu0 0
    %7837 = vmatpush1.bf16.msra.mxu0 %v6832
    %7838 = vmatprep.subr.bf16.mxu0 0
    %7839 = vmatpush1.bf16.msra.mxu0 %v6825
    %7840 = vmatprep.subr.bf16.mxu0 0
    %7841 = vmatpush1.bf16.msra.mxu0 %v6818
    %7842 = vmatprep.subr.bf16.mxu0 0
    %7843 = vmatpush1.bf16.msra.mxu0 %v6811
    %7844 = vmatprep.subr.bf16.mxu0 0
    %7845 = vmatpush1.bf16.msra.mxu0 %v6804
    %7846 = vmatprep.subr.bf16.mxu0 0
    %7847 = vmatpush1.bf16.msra.mxu0 %v6797
    %7848 = vmatprep.subr.bf16.mxu0 0
    %7849 = vmatpush1.bf16.msra.mxu0 %v6790
    %7850 = vmatprep.subr.bf16.mxu0 0
    %7851 = vmatpush1.bf16.msra.mxu0 %v6783
    %7852 = vmatprep.subr.bf16.mxu0 0
    %7853 = vmatpush2.bf16.msra.mxu0 %v6888
    %7854 = vmatprep.subr.bf16.mxu0 0
    %7855 = vmatpush2.bf16.msra.mxu0 %v6881
    %7856 = vmatprep.subr.bf16.mxu0 0
    %7857 = vmatpush2.bf16.msra.mxu0 %v6874
    %7858 = vmatprep.subr.bf16.mxu0 0
    %7859 = vmatpush2.bf16.msra.mxu0 %v6867
    %7860 = vmatprep.subr.bf16.mxu0 0
    %7861 = vmatpush2.bf16.msra.mxu0 %v6860
    %7862 = vmatprep.subr.bf16.mxu0 0
    %7863 = vmatpush2.bf16.msra.mxu0 %v6853
    %7864 = vmatprep.subr.bf16.mxu0 0
    %7865 = vmatpush2.bf16.msra.mxu0 %v6846
    %7866 = vmatprep.subr.bf16.mxu0 0
    %7867 = vmatpush2.bf16.msra.mxu0 %v6839
    %7868 = vmatprep.mubr.bf16.mxu0 %v5680
    %7869 = vmatmul.mubr.bf16.gmra.mxu0 %v5679
    %v7870 = vpop.f32.mrf.mxu0
    %v7871 = vadd.f32 %v5713, %v7870
    %v7872 = vpop.f32.mrf.mxu0
    %v7873 = vpop.f32.mrf.mxu0
    %v7874 = vadd.f32 %v5713, %v7873
    %v7875 = vpop.f32.mrf.mxu0
    %7876 = vdwg.mxu0
    %7877 = vmatprep.subr.bf16.mxu0 0
    %7878 = vmatpush1.bf16.msra.mxu0 %v6944
    %7879 = vmatprep.subr.bf16.mxu0 0
    %7880 = vmatpush1.bf16.msra.mxu0 %v6937
    %7881 = vmatprep.subr.bf16.mxu0 0
    %7882 = vmatpush1.bf16.msra.mxu0 %v6930
    %7883 = vmatprep.subr.bf16.mxu0 0
    %7884 = vmatpush1.bf16.msra.mxu0 %v6923
    %7885 = vmatprep.subr.bf16.mxu0 0
    %7886 = vmatpush1.bf16.msra.mxu0 %v6916
    %7887 = vmatprep.subr.bf16.mxu0 0
    %7888 = vmatpush1.bf16.msra.mxu0 %v6909
    %7889 = vmatprep.subr.bf16.mxu0 0
    %7890 = vmatpush1.bf16.msra.mxu0 %v6902
    %7891 = vmatprep.subr.bf16.mxu0 0
    %7892 = vmatpush1.bf16.msra.mxu0 %v6895
    %7893 = vmatprep.subr.bf16.mxu0 0
    %7894 = vmatpush2.bf16.msra.mxu0 %v7000
    %7895 = vmatprep.subr.bf16.mxu0 0
    %7896 = vmatpush2.bf16.msra.mxu0 %v6993
    %7897 = vmatprep.subr.bf16.mxu0 0
    %7898 = vmatpush2.bf16.msra.mxu0 %v6986
    %7899 = vmatprep.subr.bf16.mxu0 0
    %7900 = vmatpush2.bf16.msra.mxu0 %v6979
    %7901 = vmatprep.subr.bf16.mxu0 0
    %7902 = vmatpush2.bf16.msra.mxu0 %v6972
    %7903 = vmatprep.subr.bf16.mxu0 0
    %7904 = vmatpush2.bf16.msra.mxu0 %v6965
    %7905 = vmatprep.subr.bf16.mxu0 0
    %7906 = vmatpush2.bf16.msra.mxu0 %v6958
    %7907 = vmatprep.subr.bf16.mxu0 0
    %7908 = vmatpush2.bf16.msra.mxu0 %v6951
    %7909 = vmatprep.mubr.bf16.mxu0 %v5682
    %7910 = vmatmul.mubr.bf16.gmra.mxu0 %v5681
    %v7911 = vpop.f32.mrf.mxu0
    %v7912 = vadd.f32 %v7871, %v7911
    %v7913 = vpop.f32.mrf.mxu0
    %v7914 = vpop.f32.mrf.mxu0
    %v7915 = vadd.f32 %v7874, %v7914
    %v7916 = vpop.f32.mrf.mxu0
    %7917 = vdwg.mxu0
    %7918 = vmatprep.subr.bf16.mxu0 0
    %7919 = vmatpush1.bf16.msra.mxu0 %v7056
    %7920 = vmatprep.subr.bf16.mxu0 0
    %7921 = vmatpush1.bf16.msra.mxu0 %v7049
    %7922 = vmatprep.subr.bf16.mxu0 0
    %7923 = vmatpush1.bf16.msra.mxu0 %v7042
    %7924 = vmatprep.subr.bf16.mxu0 0
    %7925 = vmatpush1.bf16.msra.mxu0 %v7035
    %7926 = vmatprep.subr.bf16.mxu0 0
    %7927 = vmatpush1.bf16.msra.mxu0 %v7028
    %7928 = vmatprep.subr.bf16.mxu0 0
    %7929 = vmatpush1.bf16.msra.mxu0 %v7021
    %7930 = vmatprep.subr.bf16.mxu0 0
    %7931 = vmatpush1.bf16.msra.mxu0 %v7014
    %7932 = vmatprep.subr.bf16.mxu0 0
    %7933 = vmatpush1.bf16.msra.mxu0 %v7007
    %7934 = vmatprep.subr.bf16.mxu0 0
    %7935 = vmatpush2.bf16.msra.mxu0 %v7112
    %7936 = vmatprep.subr.bf16.mxu0 0
    %7937 = vmatpush2.bf16.msra.mxu0 %v7105
    %7938 = vmatprep.subr.bf16.mxu0 0
    %7939 = vmatpush2.bf16.msra.mxu0 %v7098
    %7940 = vmatprep.subr.bf16.mxu0 0
    %7941 = vmatpush2.bf16.msra.mxu0 %v7091
    %7942 = vmatprep.subr.bf16.mxu0 0
    %7943 = vmatpush2.bf16.msra.mxu0 %v7084
    %7944 = vmatprep.subr.bf16.mxu0 0
    %7945 = vmatpush2.bf16.msra.mxu0 %v7077
    %7946 = vmatprep.subr.bf16.mxu0 0
    %7947 = vmatpush2.bf16.msra.mxu0 %v7070
    %7948 = vmatprep.subr.bf16.mxu0 0
    %7949 = vmatpush2.bf16.msra.mxu0 %v7063
    %7950 = vmatprep.mubr.bf16.mxu0 %v5684
    %7951 = vmatmul.mubr.bf16.gmra.mxu0 %v5683
    %v7952 = vpop.f32.mrf.mxu0
    %v7953 = vadd.f32 %v7912, %v7952
    %v7954 = vpop.f32.mrf.mxu0
    %v7955 = vpop.f32.mrf.mxu0
    %v7956 = vadd.f32 %v7915, %v7955
    %v7957 = vpop.f32.mrf.mxu0
    %7958 = vdwg.mxu0
    %v7959 = vtanh.pop %v7570
    %v7960 = vtanh.pop %v7572
    %v7961 = vtanh.pop %v7699
    %v7962 = vtanh.pop %v7701
    %v7963 = vtanh.pop %v7828
    %v7964 = vtanh.pop %v7830
    %v7965 = vtanh.pop %v7953
    %v7966 = vtanh.pop %v7574
    %v7967 = vtanh.pop %v7576
    %v7968 = vtanh.pop %v7703
    %v7969 = vtanh.pop %v7705
    %v7970 = vtanh.pop %v7832
    %v7971 = vtanh.pop %v7834
    %v7972 = vtanh.pop %v7956
    %7973 = vst [vmem:[#allocation2] sm:$0xff] %v7959
    %7974 = vst [vmem:[#allocation2 + $0x8] sm:$0xff] %v7960
    %7975 = vst [vmem:[#allocation2 + $0x10] sm:$0xff] %v7961
    %7976 = vst [vmem:[#allocation2 + $0x18] sm:$0xff] %v7962
    %7977 = vst [vmem:[#allocation2 + $0x20] sm:$0xff] %v7963
    %7978 = vst [vmem:[#allocation2 + $0x28] sm:$0xff] %v7964
    %7979 = vst [vmem:[#allocation2 + $0x30] sm:$0xff] %v7965
    %7980 = vst [vmem:[#allocation2 + $0x38] sm:$0xff] %v7966
    %7981 = vst [vmem:[#allocation2 + $0x40] sm:$0xff] %v7967
    %7982 = vst [vmem:[#allocation2 + $0x48] sm:$0xff] %v7968
    %7983 = vst [vmem:[#allocation2 + $0x50] sm:$0xff] %v7969
    %7984 = vst [vmem:[#allocation2 + $0x58] sm:$0xff] %v7970
    %7985 = vst [vmem:[#allocation2 + $0x60] sm:$0xff] %v7971
    %7986 = vst [vmem:[#allocation2 + $0x68] sm:$0xff] %v7972
    // Predicated region
    $region58: #{autoencoder_forward.1} parent=1 // pred_check
      _
    $region59: #{autoencoder_forward.1} parent=1 // pred_check_branch
      %7988 = sbr.rel (0) target = $region61
    $region60: #{autoencoder_forward.1} parent=1 // pred_region
      %s7990 = ssub.s32 1792, 1792
      %7991 = vsyncadd [#allocation3], %s7990
      %s7992 = sshll.u32 [#allocation2], 4
      %s7993 = int_to_ptr.vmem [resolvable:$true] %s7992
      %7998 = dma.vmem_to_hbm [thread:$0]  %s7993, 1792, %s14, [#allocation3], 896, 896, 56
    $region61: #{autoencoder_forward.1} parent=1 // pred_fallthru
      _
    // Predicated region
    $region62: #{autoencoder_forward.1} parent=1 // pred_check
      _
    $region63: #{autoencoder_forward.1} parent=1 // pred_check_branch
      %8000 = sbr.rel (0) target = $region65
    $region64: #{autoencoder_forward.1} parent=1 // pred_region
      %8001 = dma.done [#allocation3], 1792
    $region65: #{autoencoder_forward.1} parent=1 // pred_fallthru
      _
    %8002 = vsyncpa [#allocation3], 1

</llo_original>
